<compile_context>
chip_gen: v7x
topology: tpu7x:2x2x1
jax: 0.10.0
libtpu: 0.0.40
codegen_flags: <defaults>
</compile_context>

<pallas_src>
import functools

import jax
import jax.numpy as jnp
from jax.experimental import pallas as pl
from jax.experimental.pallas import tpu as pltpu

LEAKY_SLOPE = 0.01
BN_EPS = 1e-5
_TM_MAX = 256   # M (rows) tile
_TK_MAX = 256   # K (reduction) tile
_VMEM_LIMIT = 32 * 1024 * 1024


# ----------------------------------------------------------------------------
# Pallas kernels: GEMM + folded-BN (+ residual) (+ activation)
# grid = (M tiles ["parallel"], K tiles ["arbitrary"]); output block resident
# across K and used directly as the f32 accumulator.
# ----------------------------------------------------------------------------
def _gemm_bn_act_kernel(p_ref, w_ref, s_ref, b_ref, o_ref, *, act):
    """o = act(scale * (patches @ W) + bias)."""
    k = pl.program_id(1)

    @pl.when(k == 0)
    def _():
        o_ref[...] = jnp.zeros_like(o_ref)

    o_ref[...] += jnp.dot(p_ref[...].astype(jnp.bfloat16), w_ref[...],
                          preferred_element_type=jnp.float32)

    @pl.when(k == pl.num_programs(1) - 1)
    def _():
        y = o_ref[...] * s_ref[...] + b_ref[...]
        if act == "leaky_relu":
            y = jnp.where(y >= 0, y, LEAKY_SLOPE * y)
        o_ref[...] = y


def _gemm_bn_res_act_kernel(p_ref, w_ref, s_ref, b_ref, r_ref, o_ref):
    """o = leaky_relu(scale*(patches @ W)+bias + residual)  (act only)."""
    k = pl.program_id(1)

    @pl.when(k == 0)
    def _():
        o_ref[...] = jnp.zeros_like(o_ref)

    o_ref[...] += jnp.dot(p_ref[...].astype(jnp.bfloat16), w_ref[...],
                          preferred_element_type=jnp.float32)

    @pl.when(k == pl.num_programs(1) - 1)
    def _():
        pre = o_ref[...] * s_ref[...] + b_ref[...] + r_ref[...]
        o_ref[...] = jnp.where(pre >= 0, pre, LEAKY_SLOPE * pre)


def _gemm_bn_res_pre_kernel(p_ref, w_ref, s_ref, b_ref, r_ref,
                            act_ref, pre_ref):
    """pre = scale*(patches @ W)+bias + residual ; act = leaky_relu(pre)."""
    k = pl.program_id(1)

    @pl.when(k == 0)
    def _():
        pre_ref[...] = jnp.zeros_like(pre_ref)

    pre_ref[...] += jnp.dot(p_ref[...].astype(jnp.bfloat16), w_ref[...],
                            preferred_element_type=jnp.float32)

    @pl.when(k == pl.num_programs(1) - 1)
    def _():
        pre = pre_ref[...] * s_ref[...] + b_ref[...] + r_ref[...]
        pre_ref[...] = pre
        act_ref[...] = jnp.where(pre >= 0, pre, LEAKY_SLOPE * pre)


# ----------------------------------------------------------------------------
# Conv-as-GEMM wrapper
# ----------------------------------------------------------------------------
def _round_up(v, m):
    return ((v + m - 1) // m) * m


def _pad2(a, rows, cols):
    r, c = rows - a.shape[0], cols - a.shape[1]
    if r == 0 and c == 0:
        return a
    return jnp.pad(a, ((0, r), (0, c)))


def _conv_gemm(patches, w_mat, scale, bias, residual=None,
               act="leaky_relu", want_pre=False):
    M, K = patches.shape
    Cout = w_mat.shape[1]

    Cp = _round_up(Cout, 128)                 # lane-dense output stores

    # K tiling: if a single K step suffices and K is sublane-aligned, use a
    # full-dim K block (no zero-padding of the large (M, K) patch array).
    if K <= _TK_MAX and K % 8 == 0:
        TK, Kp = K, K
    else:
        TK = min(_TK_MAX, _round_up(K, 128))
        Kp = _round_up(K, TK)

    TM = min(_TM_MAX, _round_up(M, 8))
    Mp = _round_up(M, TM)

    # zero padding is exact for the dot; padded channels get scale=bias=0.
    p = _pad2(patches, Mp, Kp)                           # dtype preserved
    w = _pad2(w_mat, Kp, Cp).astype(jnp.bfloat16)
    s2 = _pad2(scale.reshape(1, Cout).astype(jnp.float32), 1, Cp)
    b2 = _pad2(bias.reshape(1, Cout).astype(jnp.float32), 1, Cp)

    grid = (Mp // TM, Kp // TK)
    in_specs = [
        pl.BlockSpec((TM, TK), lambda i, k: (i, k)),
        pl.BlockSpec((TK, Cp), lambda i, k: (k, 0)),
        pl.BlockSpec((1, Cp), lambda i, k: (0, 0)),
        pl.BlockSpec((1, Cp), lambda i, k: (0, 0)),
    ]
    out_blk = pl.BlockSpec((TM, Cp), lambda i, k: (i, 0))
    cparams = pltpu.CompilerParams(
        dimension_semantics=("parallel", "arbitrary"),
        vmem_limit_bytes=_VMEM_LIMIT)

    if residual is None:
        out = pl.pallas_call(
            functools.partial(_gemm_bn_act_kernel, act=act),
            out_shape=jax.ShapeDtypeStruct((Mp, Cp), jnp.float32),
            grid_spec=pltpu.PrefetchScalarGridSpec(
                num_scalar_prefetch=0, grid=grid,
                in_specs=in_specs, out_specs=out_blk),
            compiler_params=cparams,
        )(p, w, s2, b2)
        if Mp != M or Cp != Cout:
            out = out[:M, :Cout]
        return out

    r = _pad2(residual.astype(jnp.float32), Mp, Cp)
    in_specs_r = in_specs + [pl.BlockSpec((TM, Cp), lambda i, k: (i, 0))]

    if not want_pre:
        out = pl.pallas_call(
            _gemm_bn_res_act_kernel,
            out_shape=jax.ShapeDtypeStruct((Mp, Cp), jnp.float32),
            grid_spec=pltpu.PrefetchScalarGridSpec(
                num_scalar_prefetch=0, grid=grid,
                in_specs=in_specs_r, out_specs=out_blk),
            compiler_params=cparams,
        )(p, w, s2, b2, r)
        if Mp != M or Cp != Cout:
            out = out[:M, :Cout]
        return out, None

    act_o, pre_o = pl.pallas_call(
        _gemm_bn_res_pre_kernel,
        out_shape=(jax.ShapeDtypeStruct((Mp, Cp), jnp.float32),
                   jax.ShapeDtypeStruct((Mp, Cp), jnp.float32)),
        grid_spec=pltpu.PrefetchScalarGridSpec(
            num_scalar_prefetch=0, grid=grid,
            in_specs=in_specs_r,
            out_specs=(out_blk, pl.BlockSpec((TM, Cp), lambda i, k: (i, 0)))),
        compiler_params=cparams,
    )(p, w, s2, b2, r)
    if Mp != M or Cp != Cout:
        act_o = act_o[:M, :Cout]
        pre_o = pre_o[:M, :Cout]
    return act_o, pre_o


def conv_bn(x, w, scale, bias, *, stride=1, padding=0, dilation=1,
            act="leaky_relu", residual=None, want_pre=False):
    """x: NHWC; w: PyTorch layout (Cout, Cin, KH, KW)."""
    N, H, W_, C = x.shape
    Cout, Cin, KH, KW = w.shape
    assert Cin == C
    Ho = (H + 2 * padding - dilation * (KH - 1) - 1) // stride + 1
    Wo = (W_ + 2 * padding - dilation * (KW - 1) - 1) // stride + 1

    if KH == 1 and KW == 1 and padding == 0:
        # 1x1 conv: no im2col at all -- just (strided) reshape.  Keep f32 and
        # let the kernel cast to bf16 (saves an HBM conversion pass).
        patches = x[:, ::stride, ::stride, :].reshape(N * Ho * Wo, C)
        w_mat = w.reshape(Cout, Cin).T
    else:
        # TODO(synk): 3x3/7x7 convs still materialize im2col patches in HBM;
        # a direct shifted-window path (memory_space=pl.ANY + manual DMA)
        # would remove the KH*KW read inflation at large resolutions.
        xp = jnp.pad(x, ((0, 0), (padding, padding), (padding, padding), (0, 0)))
        cols = []
        for i in range(KH):
            for j in range(KW):
                cols.append(
                    xp[:, i * dilation: i * dilation + (Ho - 1) * stride + 1: stride,
                          j * dilation: j * dilation + (Wo - 1) * stride + 1: stride, :])
        patches = jnp.concatenate(cols, axis=-1).reshape(
            N * Ho * Wo, KH * KW * C).astype(jnp.bfloat16)
        w_mat = jnp.transpose(w, (2, 3, 1, 0)).reshape(KH * KW * Cin, Cout)

    if residual is None:
        out = _conv_gemm(patches, w_mat, scale, bias, act=act)
        return out.reshape(N, Ho, Wo, Cout)

    r = residual.reshape(N * Ho * Wo, Cout)
    a, p = _conv_gemm(patches, w_mat, scale, bias, residual=r,
                      want_pre=want_pre)
    a = a.reshape(N, Ho, Wo, Cout)
    p = p.reshape(N, Ho, Wo, Cout) if p is not None else None
    return a, p


def max_pool_3x3_s2_p1(x):
    """MaxPool2d(3, stride=2, padding=1) on NHWC input.

    Fused jnp.maximum tree over 9 shifted strided slices (single XLA fusion
    under jit; avoids a 9x stacked HBM materialization)."""
    N, H, W_, C = x.shape
    k, stride, pad = 3, 2, 1
    Ho = (H + 2 * pad - k) // stride + 1
    Wo = (W_ + 2 * pad - k) // stride + 1
    xp = jnp.pad(x, ((0, 0), (pad, pad), (pad, pad), (0, 0)),
                 constant_values=-jnp.inf)
    out = None
    for i in range(k):
        for j in range(k):
            s = xp[:, i: i + (Ho - 1) * stride + 1: stride,
                      j: j + (Wo - 1) * stride + 1: stride, :]
            out = s if out is None else jnp.maximum(out, s)
    return out


# ----------------------------------------------------------------------------
# Deterministic parameter construction (synthetic; shapes from the module)
# ----------------------------------------------------------------------------
class _KeyGen:
    def __init__(self, key):
        self.key = key

    def __call__(self):
        self.key, sub = jax.random.split(self.key)
        return sub


def _make_conv_w(key, cout, cin, kh, kw):
    fan_in = cin * kh * kw
    return jax.random.normal(key, (cout, cin, kh, kw), jnp.float32) * (fan_in ** -0.5)


def _make_bn(key, c):
    k1, k2, k3, k4 = jax.random.split(key, 4)
    gamma = 1.0 + 0.1 * jax.random.normal(k1, (c,), jnp.float32)
    beta = 0.1 * jax.random.normal(k2, (c,), jnp.float32)
    mean = 0.1 * jax.random.normal(k3, (c,), jnp.float32)
    var = 0.5 + jax.random.uniform(k4, (c,), jnp.float32)
    scale = gamma * (var + BN_EPS) ** -0.5
    bias = beta - mean * scale
    return scale, bias


def build_resnet(key, structure, bottleneck, output_stride=16):
    assert len(structure) == 4
    dilation = [1, 1, 1, 2] if output_stride == 16 else [1, 1, 2, 4]
    kg = _KeyGen(key)
    params = {"mod1": {"w": _make_conv_w(kg(), 64, 3, 7, 7),
                       "bn": _make_bn(kg(), 64)}}
    in_ch = 64
    channels = (64, 64, 256) if bottleneck else (64, 64)
    mods = []
    for mod_id, num in enumerate(structure):
        blocks = []
        for block_id in range(num):
            d = dilation[mod_id]
            stride = 2 if d == 1 and block_id == 0 and mod_id > 0 else 1
            blk = {"stride": stride, "dilation": d, "last": block_id == num - 1}
            if bottleneck:
                blk["conv1"] = (_make_conv_w(kg(), channels[0], in_ch, 1, 1),
                                _make_bn(kg(), channels[0]))
                blk["conv2"] = (_make_conv_w(kg(), channels[1], channels[0], 3, 3),
                                _make_bn(kg(), channels[1]))
                blk["conv3"] = (_make_conv_w(kg(), channels[2], channels[1], 1, 1),
                                _make_bn(kg(), channels[2]))
            else:
                blk["conv1"] = (_make_conv_w(kg(), channels[0], in_ch, 3, 3),
                                _make_bn(kg(), channels[0]))
                blk["conv2"] = (_make_conv_w(kg(), channels[1], channels[0], 3, 3),
                                _make_bn(kg(), channels[1]))
            if stride != 1 or in_ch != channels[-1]:
                blk["proj"] = (_make_conv_w(kg(), channels[-1], in_ch, 1, 1),
                               _make_bn(kg(), channels[-1]))
            blocks.append(blk)
            in_ch = channels[-1]
        mods.append(blocks)
        channels = tuple(c * 2 for c in channels)
    params["mods"] = mods
    return params


# ----------------------------------------------------------------------------
# Forward pass
# ----------------------------------------------------------------------------
def residual_block_forward(x, blk, bottleneck):
    stride, dil = blk["stride"], blk["dilation"]
    want_pre = blk["last"]
    if "proj" in blk:
        pw, (ps, pb) = blk["proj"]
        residual = conv_bn(x, pw, ps, pb, stride=stride, padding=0, dilation=1,
                           act="identity")
    else:
        residual = x
    if bottleneck:
        # TODO(synk): grouped 3x3 conv (groups > 1) not implemented; module default groups=1.
        w1, (s1, b1) = blk["conv1"]
        h = conv_bn(x, w1, s1, b1, stride=1, padding=0, act="leaky_relu")
        w2, (s2, b2) = blk["conv2"]
        h = conv_bn(h, w2, s2, b2, stride=stride, padding=dil, dilation=dil,
                    act="leaky_relu")
        w3, (s3, b3) = blk["conv3"]
        act, pre = conv_bn(h, w3, s3, b3, stride=1, padding=0,
                           residual=residual, want_pre=want_pre)
    else:
        w1, (s1, b1) = blk["conv1"]
        h = conv_bn(x, w1, s1, b1, stride=stride, padding=dil, dilation=dil,
                    act="leaky_relu")
        w2, (s2, b2) = blk["conv2"]
        act, pre = conv_bn(h, w2, s2, b2, stride=1, padding=dil, dilation=dil,
                           residual=residual, want_pre=want_pre)
    return act, pre


def resnet_forward(params, x_nchw, bottleneck):
    x = jnp.transpose(x_nchw, (0, 2, 3, 1))  # NCHW -> NHWC for kernels
    w = params["mod1"]["w"]
    s, b = params["mod1"]["bn"]
    x = conv_bn(x, w, s, b, stride=2, padding=3, dilation=1, act="leaky_relu")
    x = max_pool_3x3_s2_p1(x)

    attentions = []
    for blocks in params["mods"]:
        att = None
        for blk in blocks:
            act, pre = residual_block_forward(x, blk, bottleneck)
            x = act
            if blk["last"]:
                att = pre
        attentions.append(jnp.transpose(att, (0, 3, 1, 2)))  # back to NCHW
    return jnp.transpose(x, (0, 3, 1, 2)), attentions


# ----------------------------------------------------------------------------
if __name__ == "__main__":
    key = jax.random.PRNGKey(0)
    pkey, xkey = jax.random.split(key)

    structure = [2, 1, 1, 1]      # module 1 has a non-last block (act-only path)
    bottleneck = False            # standard (two 3x3 conv) blocks
    params = build_resnet(pkey, structure, bottleneck, output_stride=16)

    x = jax.random.normal(xkey, (2, 3, 32, 32), jnp.float32)  # NCHW input

    # jit the whole forward (params closed over -> Python ints stay static):
    # removes per-op dispatch overhead and fuses the glue between Pallas GEMMs.
    forward = jax.jit(lambda inp: resnet_forward(params, inp, bottleneck))
    y, atts = forward(x)

    y = jax.block_until_ready(y)
    atts = [jax.block_until_ready(a) for a in atts]

    assert y.shape == (2, 512, 2, 2), y.shape
    assert [tuple(a.shape) for a in atts] == [(2, 64, 8, 8), (2, 128, 4, 4),
                                              (2, 256, 2, 2), (2, 512, 2, 2)]
    assert all(bool(jnp.isfinite(a).all()) for a in atts) and bool(jnp.isfinite(y).all())
    print("KERNEL_OK")
</pallas_src>

<mosaic_0001>
module attributes {stable_mosaic.version = 11 : i64} {
  func.func @_gemm_bn_act_kernel(%arg0: i32, %arg1: i32, %arg2: memref<256x256xbf16, #tpu.memory_space<vmem>>, %arg3: memref<256x128xbf16, #tpu.memory_space<vmem>>, %arg4: memref<1x128xf32, #tpu.memory_space<vmem>>, %arg5: memref<1x128xf32, #tpu.memory_space<vmem>>, %arg6: memref<256x128xf32, #tpu.memory_space<vmem>>) attributes {dimension_semantics = [#tpu.dimension_semantics<parallel>, #tpu.dimension_semantics<arbitrary>], iteration_bounds = array<i64: 2, 1>, scalar_prefetch = 0 : i64, scratch_operands = 0 : i64, tpu.core_type = #tpu.core_type<tc>, window_params = [{transform_indices = @transform_0, window_bounds = array<i64: 256, 256>}, {transform_indices = @transform_1, window_bounds = array<i64: 256, 128>}, {pipeline_mode = #tpu.pipeline_mode<synchronous>, transform_indices = @transform_2, window_bounds = array<i64: 1, 128>}, {pipeline_mode = #tpu.pipeline_mode<synchronous>, transform_indices = @transform_3, window_bounds = array<i64: 1, 128>}, {transform_indices = @transform_4, window_bounds = array<i64: 256, 128>}]} {
    %c0_i32 = arith.constant 0 : i32
    %0 = arith.cmpi eq, %arg1, %c0_i32 : i32
    %1 = arith.extui %0 : i1 to i32
    %c0_i32_0 = arith.constant 0 : i32
    %2 = arith.cmpi ne, %1, %c0_i32_0 : i32
    scf.if %2 {
      %cst_10 = arith.constant 0.000000e+00 : f32
      %12 = vector.broadcast %cst_10 : f32 to vector<256x128xf32>
      %c0_11 = arith.constant 0 : index
      %c0_12 = arith.constant 0 : index
      %13 = vector.load %arg6[%c0_11, %c0_12] : memref<256x128xf32, #tpu.memory_space<vmem>>, vector<256x128xf32>
      tpu.vector_store %arg6[%c0_11, %c0_12], %12 {strides = array<i32>} : memref<256x128xf32, #tpu.memory_space<vmem>>, vector<256x128xf32>,
    } else {
    }
    %c0 = arith.constant 0 : index
    %c0_1 = arith.constant 0 : index
    %3 = vector.load %arg6[%c0, %c0_1] : memref<256x128xf32, #tpu.memory_space<vmem>>, vector<256x128xf32>
    %c0_2 = arith.constant 0 : index
    %c0_3 = arith.constant 0 : index
    %4 = vector.load %arg2[%c0_2, %c0_3] : memref<256x256xbf16, #tpu.memory_space<vmem>>, vector<256x256xbf16>
    %c0_4 = arith.constant 0 : index
    %c0_5 = arith.constant 0 : index
    %5 = vector.load %arg3[%c0_4, %c0_5] : memref<256x128xbf16, #tpu.memory_space<vmem>>, vector<256x128xbf16>
    %cst = arith.constant dense<0.000000e+00> : vector<256x128xf32>
    %6 = tpu.matmul %4, %5, %cst {dimension_numbers = #tpu.dot_dimension_numbers<[1], [0], [0], [1], [0, 0, 1, 1], [], []>} : vector<256x256xbf16>, vector<256x128xbf16>, vector<256x128xf32> -> vector<256x128xf32>
    %7 = arith.addf %3, %6 : vector<256x128xf32>
    %c0_6 = arith.constant 0 : index
    %c0_7 = arith.constant 0 : index
    %8 = vector.load %arg6[%c0_6, %c0_7] : memref<256x128xf32, #tpu.memory_space<vmem>>, vector<256x128xf32>
    tpu.vector_store %arg6[%c0_6, %c0_7], %7 {strides = array<i32>} : memref<256x128xf32, #tpu.memory_space<vmem>>, vector<256x128xf32>,
    %c0_i32_8 = arith.constant 0 : i32
    %9 = arith.cmpi eq, %arg1, %c0_i32_8 : i32
    %10 = arith.extui %9 : i1 to i32
    %c0_i32_9 = arith.constant 0 : i32
    %11 = arith.cmpi ne, %10, %c0_i32_9 : i32
    scf.if %11 {
      %c0_10 = arith.constant 0 : index
      %c0_11 = arith.constant 0 : index
      %12 = vector.load %arg6[%c0_10, %c0_11] : memref<256x128xf32, #tpu.memory_space<vmem>>, vector<256x128xf32>
      %c0_12 = arith.constant 0 : index
      %c0_13 = arith.constant 0 : index
      %13 = vector.load %arg4[%c0_12, %c0_13] : memref<1x128xf32, #tpu.memory_space<vmem>>, vector<1x128xf32>
      %14 = vector.broadcast %13 : vector<1x128xf32> to vector<256x128xf32>
      %15 = arith.mulf %12, %14 : vector<256x128xf32>
      %c0_14 = arith.constant 0 : index
      %c0_15 = arith.constant 0 : index
      %16 = vector.load %arg5[%c0_14, %c0_15] : memref<1x128xf32, #tpu.memory_space<vmem>>, vector<1x128xf32>
      %17 = vector.broadcast %16 : vector<1x128xf32> to vector<256x128xf32>
      %18 = arith.addf %15, %17 : vector<256x128xf32>
      %cst_16 = arith.constant 0.000000e+00 : f32
      %19 = vector.broadcast %cst_16 : f32 to vector<256x128xf32>
      %20 = arith.cmpf oge, %18, %19 : vector<256x128xf32>
      %cst_17 = arith.constant 0.00999999977 : f32
      %21 = vector.broadcast %cst_17 : f32 to vector<256x128xf32>
      %22 = arith.mulf %21, %18 : vector<256x128xf32>
      %23 = arith.select %20, %18, %22 : vector<256x128xi1>, vector<256x128xf32>
      %c0_18 = arith.constant 0 : index
      %c0_19 = arith.constant 0 : index
      %24 = vector.load %arg6[%c0_18, %c0_19] : memref<256x128xf32, #tpu.memory_space<vmem>>, vector<256x128xf32>
      tpu.vector_store %arg6[%c0_18, %c0_19], %23 {strides = array<i32>} : memref<256x128xf32, #tpu.memory_space<vmem>>, vector<256x128xf32>,
    } else {
    }
    return
  }
  func.func @transform_0(%arg0: i32, %arg1: i32) -> (i32, i32) {
    %c0_i32 = arith.constant 0 : i32
    return %arg0, %arg1 : i32, i32
  }
  func.func @transform_1(%arg0: i32, %arg1: i32) -> (i32, i32) {
    %c0_i32 = arith.constant 0 : i32
    %c0_i32_0 = arith.constant 0 : i32
    return %arg1, %c0_i32 : i32, i32
  }
  func.func @transform_2(%arg0: i32, %arg1: i32) -> (i32, i32) {
    %c0_i32 = arith.constant 0 : i32
    %c0_i32_0 = arith.constant 0 : i32
    %c0_i32_1 = arith.constant 0 : i32
    return %c0_i32, %c0_i32_0 : i32, i32
  }
  func.func @transform_3(%arg0: i32, %arg1: i32) -> (i32, i32) {
    %c0_i32 = arith.constant 0 : i32
    %c0_i32_0 = arith.constant 0 : i32
    %c0_i32_1 = arith.constant 0 : i32
    return %c0_i32, %c0_i32_0 : i32, i32
  }
  func.func @transform_4(%arg0: i32, %arg1: i32) -> (i32, i32) {
    %c0_i32 = arith.constant 0 : i32
    %c0_i32_0 = arith.constant 0 : i32
    return %arg0, %c0_i32 : i32, i32
  }
}

module attributes {stable_mosaic.version = 11 : i64} {
  func.func @_gemm_bn_act_kernel(%arg0: i32, %arg1: i32, %arg2: memref<128x256xbf16, #tpu.memory_space<vmem>>, %arg3: memref<256x128xbf16, #tpu.memory_space<vmem>>, %arg4: memref<1x128xf32, #tpu.memory_space<vmem>>, %arg5: memref<1x128xf32, #tpu.memory_space<vmem>>, %arg6: memref<128x128xf32, #tpu.memory_space<vmem>>) attributes {dimension_semantics = [#tpu.dimension_semantics<parallel>, #tpu.dimension_semantics<arbitrary>], iteration_bounds = array<i64: 1, 3>, scalar_prefetch = 0 : i64, scratch_operands = 0 : i64, tpu.core_type = #tpu.core_type<tc>, window_params = [{transform_indices = @transform_0, window_bounds = array<i64: 128, 256>}, {transform_indices = @transform_1, window_bounds = array<i64: 256, 128>}, {pipeline_mode = #tpu.pipeline_mode<synchronous>, transform_indices = @transform_2, window_bounds = array<i64: 1, 128>}, {pipeline_mode = #tpu.pipeline_mode<synchronous>, transform_indices = @transform_3, window_bounds = array<i64: 1, 128>}, {transform_indices = @transform_4, window_bounds = array<i64: 128, 128>}]} {
    %c0_i32 = arith.constant 0 : i32
    %0 = arith.cmpi eq, %arg1, %c0_i32 : i32
    %1 = arith.extui %0 : i1 to i32
    %c0_i32_0 = arith.constant 0 : i32
    %2 = arith.cmpi ne, %1, %c0_i32_0 : i32
    scf.if %2 {
      %cst_9 = arith.constant 0.000000e+00 : f32
      %12 = vector.broadcast %cst_9 : f32 to vector<128x128xf32>
      %c0_10 = arith.constant 0 : index
      %c0_11 = arith.constant 0 : index
      %13 = vector.load %arg6[%c0_10, %c0_11] : memref<128x128xf32, #tpu.memory_space<vmem>>, vector<128x128xf32>
      tpu.vector_store %arg6[%c0_10, %c0_11], %12 {strides = array<i32>} : memref<128x128xf32, #tpu.memory_space<vmem>>, vector<128x128xf32>,
    } else {
    }
    %c0 = arith.constant 0 : index
    %c0_1 = arith.constant 0 : index
    %3 = vector.load %arg6[%c0, %c0_1] : memref<128x128xf32, #tpu.memory_space<vmem>>, vector<128x128xf32>
    %c0_2 = arith.constant 0 : index
    %c0_3 = arith.constant 0 : index
    %4 = vector.load %arg2[%c0_2, %c0_3] : memref<128x256xbf16, #tpu.memory_space<vmem>>, vector<128x256xbf16>
    %c0_4 = arith.constant 0 : index
    %c0_5 = arith.constant 0 : index
    %5 = vector.load %arg3[%c0_4, %c0_5] : memref<256x128xbf16, #tpu.memory_space<vmem>>, vector<256x128xbf16>
    %cst = arith.constant dense<0.000000e+00> : vector<128x128xf32>
    %6 = tpu.matmul %4, %5, %cst {dimension_numbers = #tpu.dot_dimension_numbers<[1], [0], [0], [1], [0, 0, 1, 1], [], []>} : vector<128x256xbf16>, vector<256x128xbf16>, vector<128x128xf32> -> vector<128x128xf32>
    %7 = arith.addf %3, %6 : vector<128x128xf32>
    %c0_6 = arith.constant 0 : index
    %c0_7 = arith.constant 0 : index
    %8 = vector.load %arg6[%c0_6, %c0_7] : memref<128x128xf32, #tpu.memory_space<vmem>>, vector<128x128xf32>
    tpu.vector_store %arg6[%c0_6, %c0_7], %7 {strides = array<i32>} : memref<128x128xf32, #tpu.memory_space<vmem>>, vector<128x128xf32>,
    %c2_i32 = arith.constant 2 : i32
    %9 = arith.cmpi eq, %arg1, %c2_i32 : i32
    %10 = arith.extui %9 : i1 to i32
    %c0_i32_8 = arith.constant 0 : i32
    %11 = arith.cmpi ne, %10, %c0_i32_8 : i32
    scf.if %11 {
      %c0_9 = arith.constant 0 : index
      %c0_10 = arith.constant 0 : index
      %12 = vector.load %arg6[%c0_9, %c0_10] : memref<128x128xf32, #tpu.memory_space<vmem>>, vector<128x128xf32>
      %c0_11 = arith.constant 0 : index
      %c0_12 = arith.constant 0 : index
      %13 = vector.load %arg4[%c0_11, %c0_12] : memref<1x128xf32, #tpu.memory_space<vmem>>, vector<1x128xf32>
      %14 = vector.broadcast %13 : vector<1x128xf32> to vector<128x128xf32>
      %15 = arith.mulf %12, %14 : vector<128x128xf32>
      %c0_13 = arith.constant 0 : index
      %c0_14 = arith.constant 0 : index
      %16 = vector.load %arg5[%c0_13, %c0_14] : memref<1x128xf32, #tpu.memory_space<vmem>>, vector<1x128xf32>
      %17 = vector.broadcast %16 : vector<1x128xf32> to vector<128x128xf32>
      %18 = arith.addf %15, %17 : vector<128x128xf32>
      %cst_15 = arith.constant 0.000000e+00 : f32
      %19 = vector.broadcast %cst_15 : f32 to vector<128x128xf32>
      %20 = arith.cmpf oge, %18, %19 : vector<128x128xf32>
      %cst_16 = arith.constant 0.00999999977 : f32
      %21 = vector.broadcast %cst_16 : f32 to vector<128x128xf32>
      %22 = arith.mulf %21, %18 : vector<128x128xf32>
      %23 = arith.select %20, %18, %22 : vector<128x128xi1>, vector<128x128xf32>
      %c0_17 = arith.constant 0 : index
      %c0_18 = arith.constant 0 : index
      %24 = vector.load %arg6[%c0_17, %c0_18] : memref<128x128xf32, #tpu.memory_space<vmem>>, vector<128x128xf32>
      tpu.vector_store %arg6[%c0_17, %c0_18], %23 {strides = array<i32>} : memref<128x128xf32, #tpu.memory_space<vmem>>, vector<128x128xf32>,
    } else {
    }
    return
  }
  func.func @transform_0(%arg0: i32, %arg1: i32) -> (i32, i32) {
    %c0_i32 = arith.constant 0 : i32
    return %arg0, %arg1 : i32, i32
  }
  func.func @transform_1(%arg0: i32, %arg1: i32) -> (i32, i32) {
    %c0_i32 = arith.constant 0 : i32
    %c0_i32_0 = arith.constant 0 : i32
    return %arg1, %c0_i32 : i32, i32
  }
  func.func @transform_2(%arg0: i32, %arg1: i32) -> (i32, i32) {
    %c0_i32 = arith.constant 0 : i32
    %c0_i32_0 = arith.constant 0 : i32
    %c0_i32_1 = arith.constant 0 : i32
    return %c0_i32, %c0_i32_0 : i32, i32
  }
  func.func @transform_3(%arg0: i32, %arg1: i32) -> (i32, i32) {
    %c0_i32 = arith.constant 0 : i32
    %c0_i32_0 = arith.constant 0 : i32
    %c0_i32_1 = arith.constant 0 : i32
    return %c0_i32, %c0_i32_0 : i32, i32
  }
  func.func @transform_4(%arg0: i32, %arg1: i32) -> (i32, i32) {
    %c0_i32 = arith.constant 0 : i32
    %c0_i32_0 = arith.constant 0 : i32
    return %arg0, %c0_i32 : i32, i32
  }
}

module attributes {stable_mosaic.version = 11 : i64} {
  func.func @_gemm_bn_res_act_kernel(%arg0: i32, %arg1: i32, %arg2: memref<128x256xbf16, #tpu.memory_space<vmem>>, %arg3: memref<256x128xbf16, #tpu.memory_space<vmem>>, %arg4: memref<1x128xf32, #tpu.memory_space<vmem>>, %arg5: memref<1x128xf32, #tpu.memory_space<vmem>>, %arg6: memref<128x128xf32, #tpu.memory_space<vmem>>, %arg7: memref<128x128xf32, #tpu.memory_space<vmem>>) attributes {dimension_semantics = [#tpu.dimension_semantics<parallel>, #tpu.dimension_semantics<arbitrary>], iteration_bounds = array<i64: 1, 3>, scalar_prefetch = 0 : i64, scratch_operands = 0 : i64, tpu.core_type = #tpu.core_type<tc>, window_params = [{transform_indices = @transform_0, window_bounds = array<i64: 128, 256>}, {transform_indices = @transform_1, window_bounds = array<i64: 256, 128>}, {pipeline_mode = #tpu.pipeline_mode<synchronous>, transform_indices = @transform_2, window_bounds = array<i64: 1, 128>}, {pipeline_mode = #tpu.pipeline_mode<synchronous>, transform_indices = @transform_3, window_bounds = array<i64: 1, 128>}, {transform_indices = @transform_4, window_bounds = array<i64: 128, 128>}, {transform_indices = @transform_5, window_bounds = array<i64: 128, 128>}]} {
    %c0_i32 = arith.constant 0 : i32
    %0 = arith.cmpi eq, %arg1, %c0_i32 : i32
    %1 = arith.extui %0 : i1 to i32
    %c0_i32_0 = arith.constant 0 : i32
    %2 = arith.cmpi ne, %1, %c0_i32_0 : i32
    scf.if %2 {
      %cst_9 = arith.constant 0.000000e+00 : f32
      %12 = vector.broadcast %cst_9 : f32 to vector<128x128xf32>
      %c0_10 = arith.constant 0 : index
      %c0_11 = arith.constant 0 : index
      %13 = vector.load %arg7[%c0_10, %c0_11] : memref<128x128xf32, #tpu.memory_space<vmem>>, vector<128x128xf32>
      tpu.vector_store %arg7[%c0_10, %c0_11], %12 {strides = array<i32>} : memref<128x128xf32, #tpu.memory_space<vmem>>, vector<128x128xf32>,
    } else {
    }
    %c0 = arith.constant 0 : index
    %c0_1 = arith.constant 0 : index
    %3 = vector.load %arg7[%c0, %c0_1] : memref<128x128xf32, #tpu.memory_space<vmem>>, vector<128x128xf32>
    %c0_2 = arith.constant 0 : index
    %c0_3 = arith.constant 0 : index
    %4 = vector.load %arg2[%c0_2, %c0_3] : memref<128x256xbf16, #tpu.memory_space<vmem>>, vector<128x256xbf16>
    %c0_4 = arith.constant 0 : index
    %c0_5 = arith.constant 0 : index
    %5 = vector.load %arg3[%c0_4, %c0_5] : memref<256x128xbf16, #tpu.memory_space<vmem>>, vector<256x128xbf16>
    %cst = arith.constant dense<0.000000e+00> : vector<128x128xf32>
    %6 = tpu.matmul %4, %5, %cst {dimension_numbers = #tpu.dot_dimension_numbers<[1], [0], [0], [1], [0, 0, 1, 1], [], []>} : vector<128x256xbf16>, vector<256x128xbf16>, vector<128x128xf32> -> vector<128x128xf32>
    %7 = arith.addf %3, %6 : vector<128x128xf32>
    %c0_6 = arith.constant 0 : index
    %c0_7 = arith.constant 0 : index
    %8 = vector.load %arg7[%c0_6, %c0_7] : memref<128x128xf32, #tpu.memory_space<vmem>>, vector<128x128xf32>
    tpu.vector_store %arg7[%c0_6, %c0_7], %7 {strides = array<i32>} : memref<128x128xf32, #tpu.memory_space<vmem>>, vector<128x128xf32>,
    %c2_i32 = arith.constant 2 : i32
    %9 = arith.cmpi eq, %arg1, %c2_i32 : i32
    %10 = arith.extui %9 : i1 to i32
    %c0_i32_8 = arith.constant 0 : i32
    %11 = arith.cmpi ne, %10, %c0_i32_8 : i32
    scf.if %11 {
      %c0_9 = arith.constant 0 : index
      %c0_10 = arith.constant 0 : index
      %12 = vector.load %arg7[%c0_9, %c0_10] : memref<128x128xf32, #tpu.memory_space<vmem>>, vector<128x128xf32>
      %c0_11 = arith.constant 0 : index
      %c0_12 = arith.constant 0 : index
      %13 = vector.load %arg4[%c0_11, %c0_12] : memref<1x128xf32, #tpu.memory_space<vmem>>, vector<1x128xf32>
      %14 = vector.broadcast %13 : vector<1x128xf32> to vector<128x128xf32>
      %15 = arith.mulf %12, %14 : vector<128x128xf32>
      %c0_13 = arith.constant 0 : index
      %c0_14 = arith.constant 0 : index
      %16 = vector.load %arg5[%c0_13, %c0_14] : memref<1x128xf32, #tpu.memory_space<vmem>>, vector<1x128xf32>
      %17 = vector.broadcast %16 : vector<1x128xf32> to vector<128x128xf32>
      %18 = arith.addf %15, %17 : vector<128x128xf32>
      %c0_15 = arith.constant 0 : index
      %c0_16 = arith.constant 0 : index
      %19 = vector.load %arg6[%c0_15, %c0_16] : memref<128x128xf32, #tpu.memory_space<vmem>>, vector<128x128xf32>
      %20 = arith.addf %18, %19 : vector<128x128xf32>
      %cst_17 = arith.constant 0.000000e+00 : f32
      %21 = vector.broadcast %cst_17 : f32 to vector<128x128xf32>
      %22 = arith.cmpf oge, %20, %21 : vector<128x128xf32>
      %cst_18 = arith.constant 0.00999999977 : f32
      %23 = vector.broadcast %cst_18 : f32 to vector<128x128xf32>
      %24 = arith.mulf %23, %20 : vector<128x128xf32>
      %25 = arith.select %22, %20, %24 : vector<128x128xi1>, vector<128x128xf32>
      %c0_19 = arith.constant 0 : index
      %c0_20 = arith.constant 0 : index
      %26 = vector.load %arg7[%c0_19, %c0_20] : memref<128x128xf32, #tpu.memory_space<vmem>>, vector<128x128xf32>
      tpu.vector_store %arg7[%c0_19, %c0_20], %25 {strides = array<i32>} : memref<128x128xf32, #tpu.memory_space<vmem>>, vector<128x128xf32>,
    } else {
    }
    return
  }
  func.func @transform_0(%arg0: i32, %arg1: i32) -> (i32, i32) {
    %c0_i32 = arith.constant 0 : i32
    return %arg0, %arg1 : i32, i32
  }
  func.func @transform_1(%arg0: i32, %arg1: i32) -> (i32, i32) {
    %c0_i32 = arith.constant 0 : i32
    %c0_i32_0 = arith.constant 0 : i32
    return %arg1, %c0_i32 : i32, i32
  }
  func.func @transform_2(%arg0: i32, %arg1: i32) -> (i32, i32) {
    %c0_i32 = arith.constant 0 : i32
    %c0_i32_0 = arith.constant 0 : i32
    %c0_i32_1 = arith.constant 0 : i32
    return %c0_i32, %c0_i32_0 : i32, i32
  }
  func.func @transform_3(%arg0: i32, %arg1: i32) -> (i32, i32) {
    %c0_i32 = arith.constant 0 : i32
    %c0_i32_0 = arith.constant 0 : i32
    %c0_i32_1 = arith.constant 0 : i32
    return %c0_i32, %c0_i32_0 : i32, i32
  }
  func.func @transform_4(%arg0: i32, %arg1: i32) -> (i32, i32) {
    %c0_i32 = arith.constant 0 : i32
    %c0_i32_0 = arith.constant 0 : i32
    return %arg0, %c0_i32 : i32, i32
  }
  func.func @transform_5(%arg0: i32, %arg1: i32) -> (i32, i32) {
    %c0_i32 = arith.constant 0 : i32
    %c0_i32_0 = arith.constant 0 : i32
    return %arg0, %c0_i32 : i32, i32
  }
}

module attributes {stable_mosaic.version = 11 : i64} {
  func.func @_gemm_bn_res_pre_kernel(%arg0: i32, %arg1: i32, %arg2: memref<128x256xbf16, #tpu.memory_space<vmem>>, %arg3: memref<256x128xbf16, #tpu.memory_space<vmem>>, %arg4: memref<1x128xf32, #tpu.memory_space<vmem>>, %arg5: memref<1x128xf32, #tpu.memory_space<vmem>>, %arg6: memref<128x128xf32, #tpu.memory_space<vmem>>, %arg7: memref<128x128xf32, #tpu.memory_space<vmem>>, %arg8: memref<128x128xf32, #tpu.memory_space<vmem>>) attributes {dimension_semantics = [#tpu.dimension_semantics<parallel>, #tpu.dimension_semantics<arbitrary>], iteration_bounds = array<i64: 1, 3>, scalar_prefetch = 0 : i64, scratch_operands = 0 : i64, tpu.core_type = #tpu.core_type<tc>, window_params = [{transform_indices = @transform_0, window_bounds = array<i64: 128, 256>}, {transform_indices = @transform_1, window_bounds = array<i64: 256, 128>}, {pipeline_mode = #tpu.pipeline_mode<synchronous>, transform_indices = @transform_2, window_bounds = array<i64: 1, 128>}, {pipeline_mode = #tpu.pipeline_mode<synchronous>, transform_indices = @transform_3, window_bounds = array<i64: 1, 128>}, {transform_indices = @transform_4, window_bounds = array<i64: 128, 128>}, {transform_indices = @transform_5, window_bounds = array<i64: 128, 128>}, {transform_indices = @transform_6, window_bounds = array<i64: 128, 128>}]} {
    %c0_i32 = arith.constant 0 : i32
    %0 = arith.cmpi eq, %arg1, %c0_i32 : i32
    %1 = arith.extui %0 : i1 to i32
    %c0_i32_0 = arith.constant 0 : i32
    %2 = arith.cmpi ne, %1, %c0_i32_0 : i32
    scf.if %2 {
      %cst_9 = arith.constant 0.000000e+00 : f32
      %12 = vector.broadcast %cst_9 : f32 to vector<128x128xf32>
      %c0_10 = arith.constant 0 : index
      %c0_11 = arith.constant 0 : index
      %13 = vector.load %arg8[%c0_10, %c0_11] : memref<128x128xf32, #tpu.memory_space<vmem>>, vector<128x128xf32>
      tpu.vector_store %arg8[%c0_10, %c0_11], %12 {strides = array<i32>} : memref<128x128xf32, #tpu.memory_space<vmem>>, vector<128x128xf32>,
    } else {
    }
    %c0 = arith.constant 0 : index
    %c0_1 = arith.constant 0 : index
    %3 = vector.load %arg8[%c0, %c0_1] : memref<128x128xf32, #tpu.memory_space<vmem>>, vector<128x128xf32>
    %c0_2 = arith.constant 0 : index
    %c0_3 = arith.constant 0 : index
    %4 = vector.load %arg2[%c0_2, %c0_3] : memref<128x256xbf16, #tpu.memory_space<vmem>>, vector<128x256xbf16>
    %c0_4 = arith.constant 0 : index
    %c0_5 = arith.constant 0 : index
    %5 = vector.load %arg3[%c0_4, %c0_5] : memref<256x128xbf16, #tpu.memory_space<vmem>>, vector<256x128xbf16>
    %cst = arith.constant dense<0.000000e+00> : vector<128x128xf32>
    %6 = tpu.matmul %4, %5, %cst {dimension_numbers = #tpu.dot_dimension_numbers<[1], [0], [0], [1], [0, 0, 1, 1], [], []>} : vector<128x256xbf16>, vector<256x128xbf16>, vector<128x128xf32> -> vector<128x128xf32>
    %7 = arith.addf %3, %6 : vector<128x128xf32>
    %c0_6 = arith.constant 0 : index
    %c0_7 = arith.constant 0 : index
    %8 = vector.load %arg8[%c0_6, %c0_7] : memref<128x128xf32, #tpu.memory_space<vmem>>, vector<128x128xf32>
    tpu.vector_store %arg8[%c0_6, %c0_7], %7 {strides = array<i32>} : memref<128x128xf32, #tpu.memory_space<vmem>>, vector<128x128xf32>,
    %c2_i32 = arith.constant 2 : i32
    %9 = arith.cmpi eq, %arg1, %c2_i32 : i32
    %10 = arith.extui %9 : i1 to i32
    %c0_i32_8 = arith.constant 0 : i32
    %11 = arith.cmpi ne, %10, %c0_i32_8 : i32
    scf.if %11 {
      %c0_9 = arith.constant 0 : index
      %c0_10 = arith.constant 0 : index
      %12 = vector.load %arg8[%c0_9, %c0_10] : memref<128x128xf32, #tpu.memory_space<vmem>>, vector<128x128xf32>
      %c0_11 = arith.constant 0 : index
      %c0_12 = arith.constant 0 : index
      %13 = vector.load %arg4[%c0_11, %c0_12] : memref<1x128xf32, #tpu.memory_space<vmem>>, vector<1x128xf32>
      %14 = vector.broadcast %13 : vector<1x128xf32> to vector<128x128xf32>
      %15 = arith.mulf %12, %14 : vector<128x128xf32>
      %c0_13 = arith.constant 0 : index
      %c0_14 = arith.constant 0 : index
      %16 = vector.load %arg5[%c0_13, %c0_14] : memref<1x128xf32, #tpu.memory_space<vmem>>, vector<1x128xf32>
      %17 = vector.broadcast %16 : vector<1x128xf32> to vector<128x128xf32>
      %18 = arith.addf %15, %17 : vector<128x128xf32>
      %c0_15 = arith.constant 0 : index
      %c0_16 = arith.constant 0 : index
      %19 = vector.load %arg6[%c0_15, %c0_16] : memref<128x128xf32, #tpu.memory_space<vmem>>, vector<128x128xf32>
      %20 = arith.addf %18, %19 : vector<128x128xf32>
      %c0_17 = arith.constant 0 : index
      %c0_18 = arith.constant 0 : index
      %21 = vector.load %arg8[%c0_17, %c0_18] : memref<128x128xf32, #tpu.memory_space<vmem>>, vector<128x128xf32>
      tpu.vector_store %arg8[%c0_17, %c0_18], %20 {strides = array<i32>} : memref<128x128xf32, #tpu.memory_space<vmem>>, vector<128x128xf32>,
      %cst_19 = arith.constant 0.000000e+00 : f32
      %22 = vector.broadcast %cst_19 : f32 to vector<128x128xf32>
      %23 = arith.cmpf oge, %20, %22 : vector<128x128xf32>
      %cst_20 = arith.constant 0.00999999977 : f32
      %24 = vector.broadcast %cst_20 : f32 to vector<128x128xf32>
      %25 = arith.mulf %24, %20 : vector<128x128xf32>
      %26 = arith.select %23, %20, %25 : vector<128x128xi1>, vector<128x128xf32>
      %c0_21 = arith.constant 0 : index
      %c0_22 = arith.constant 0 : index
      %27 = vector.load %arg7[%c0_21, %c0_22] : memref<128x128xf32, #tpu.memory_space<vmem>>, vector<128x128xf32>
      tpu.vector_store %arg7[%c0_21, %c0_22], %26 {strides = array<i32>} : memref<128x128xf32, #tpu.memory_space<vmem>>, vector<128x128xf32>,
    } else {
    }
    return
  }
  func.func @transform_0(%arg0: i32, %arg1: i32) -> (i32, i32) {
    %c0_i32 = arith.constant 0 : i32
    return %arg0, %arg1 : i32, i32
  }
  func.func @transform_1(%arg0: i32, %arg1: i32) -> (i32, i32) {
    %c0_i32 = arith.constant 0 : i32
    %c0_i32_0 = arith.constant 0 : i32
    return %arg1, %c0_i32 : i32, i32
  }
  func.func @transform_2(%arg0: i32, %arg1: i32) -> (i32, i32) {
    %c0_i32 = arith.constant 0 : i32
    %c0_i32_0 = arith.constant 0 : i32
    %c0_i32_1 = arith.constant 0 : i32
    return %c0_i32, %c0_i32_0 : i32, i32
  }
  func.func @transform_3(%arg0: i32, %arg1: i32) -> (i32, i32) {
    %c0_i32 = arith.constant 0 : i32
    %c0_i32_0 = arith.constant 0 : i32
    %c0_i32_1 = arith.constant 0 : i32
    return %c0_i32, %c0_i32_0 : i32, i32
  }
  func.func @transform_4(%arg0: i32, %arg1: i32) -> (i32, i32) {
    %c0_i32 = arith.constant 0 : i32
    %c0_i32_0 = arith.constant 0 : i32
    return %arg0, %c0_i32 : i32, i32
  }
  func.func @transform_5(%arg0: i32, %arg1: i32) -> (i32, i32) {
    %c0_i32 = arith.constant 0 : i32
    %c0_i32_0 = arith.constant 0 : i32
    return %arg0, %c0_i32 : i32, i32
  }
  func.func @transform_6(%arg0: i32, %arg1: i32) -> (i32, i32) {
    %c0_i32 = arith.constant 0 : i32
    %c0_i32_0 = arith.constant 0 : i32
    return %arg0, %c0_i32 : i32, i32
  }
}

module attributes {stable_mosaic.version = 11 : i64} {
  func.func @_gemm_bn_act_kernel(%arg0: i32, %arg1: i32, %arg2: memref<32x256xbf16, #tpu.memory_space<vmem>>, %arg3: memref<256x128xbf16, #tpu.memory_space<vmem>>, %arg4: memref<1x128xf32, #tpu.memory_space<vmem>>, %arg5: memref<1x128xf32, #tpu.memory_space<vmem>>, %arg6: memref<32x128xf32, #tpu.memory_space<vmem>>) attributes {dimension_semantics = [#tpu.dimension_semantics<parallel>, #tpu.dimension_semantics<arbitrary>], iteration_bounds = array<i64: 1, 3>, scalar_prefetch = 0 : i64, scratch_operands = 0 : i64, tpu.core_type = #tpu.core_type<tc>, window_params = [{transform_indices = @transform_0, window_bounds = array<i64: 32, 256>}, {transform_indices = @transform_1, window_bounds = array<i64: 256, 128>}, {pipeline_mode = #tpu.pipeline_mode<synchronous>, transform_indices = @transform_2, window_bounds = array<i64: 1, 128>}, {pipeline_mode = #tpu.pipeline_mode<synchronous>, transform_indices = @transform_3, window_bounds = array<i64: 1, 128>}, {transform_indices = @transform_4, window_bounds = array<i64: 32, 128>}]} {
    %c0_i32 = arith.constant 0 : i32
    %0 = arith.cmpi eq, %arg1, %c0_i32 : i32
    %1 = arith.extui %0 : i1 to i32
    %c0_i32_0 = arith.constant 0 : i32
    %2 = arith.cmpi ne, %1, %c0_i32_0 : i32
    scf.if %2 {
      %cst_9 = arith.constant 0.000000e+00 : f32
      %12 = vector.broadcast %cst_9 : f32 to vector<32x128xf32>
      %c0_10 = arith.constant 0 : index
      %c0_11 = arith.constant 0 : index
      %13 = vector.load %arg6[%c0_10, %c0_11] : memref<32x128xf32, #tpu.memory_space<vmem>>, vector<32x128xf32>
      tpu.vector_store %arg6[%c0_10, %c0_11], %12 {strides = array<i32>} : memref<32x128xf32, #tpu.memory_space<vmem>>, vector<32x128xf32>,
    } else {
    }
    %c0 = arith.constant 0 : index
    %c0_1 = arith.constant 0 : index
    %3 = vector.load %arg6[%c0, %c0_1] : memref<32x128xf32, #tpu.memory_space<vmem>>, vector<32x128xf32>
    %c0_2 = arith.constant 0 : index
    %c0_3 = arith.constant 0 : index
    %4 = vector.load %arg2[%c0_2, %c0_3] : memref<32x256xbf16, #tpu.memory_space<vmem>>, vector<32x256xbf16>
    %c0_4 = arith.constant 0 : index
    %c0_5 = arith.constant 0 : index
    %5 = vector.load %arg3[%c0_4, %c0_5] : memref<256x128xbf16, #tpu.memory_space<vmem>>, vector<256x128xbf16>
    %cst = arith.constant dense<0.000000e+00> : vector<32x128xf32>
    %6 = tpu.matmul %4, %5, %cst {dimension_numbers = #tpu.dot_dimension_numbers<[1], [0], [0], [1], [0, 0, 1, 1], [], []>} : vector<32x256xbf16>, vector<256x128xbf16>, vector<32x128xf32> -> vector<32x128xf32>
    %7 = arith.addf %3, %6 : vector<32x128xf32>
    %c0_6 = arith.constant 0 : index
    %c0_7 = arith.constant 0 : index
    %8 = vector.load %arg6[%c0_6, %c0_7] : memref<32x128xf32, #tpu.memory_space<vmem>>, vector<32x128xf32>
    tpu.vector_store %arg6[%c0_6, %c0_7], %7 {strides = array<i32>} : memref<32x128xf32, #tpu.memory_space<vmem>>, vector<32x128xf32>,
    %c2_i32 = arith.constant 2 : i32
    %9 = arith.cmpi eq, %arg1, %c2_i32 : i32
    %10 = arith.extui %9 : i1 to i32
    %c0_i32_8 = arith.constant 0 : i32
    %11 = arith.cmpi ne, %10, %c0_i32_8 : i32
    scf.if %11 {
      %c0_9 = arith.constant 0 : index
      %c0_10 = arith.constant 0 : index
      %12 = vector.load %arg6[%c0_9, %c0_10] : memref<32x128xf32, #tpu.memory_space<vmem>>, vector<32x128xf32>
      %c0_11 = arith.constant 0 : index
      %c0_12 = arith.constant 0 : index
      %13 = vector.load %arg4[%c0_11, %c0_12] : memref<1x128xf32, #tpu.memory_space<vmem>>, vector<1x128xf32>
      %14 = vector.broadcast %13 : vector<1x128xf32> to vector<32x128xf32>
      %15 = arith.mulf %12, %14 : vector<32x128xf32>
      %c0_13 = arith.constant 0 : index
      %c0_14 = arith.constant 0 : index
      %16 = vector.load %arg5[%c0_13, %c0_14] : memref<1x128xf32, #tpu.memory_space<vmem>>, vector<1x128xf32>
      %17 = vector.broadcast %16 : vector<1x128xf32> to vector<32x128xf32>
      %18 = arith.addf %15, %17 : vector<32x128xf32>
      %cst_15 = arith.constant 0.000000e+00 : f32
      %19 = vector.broadcast %cst_15 : f32 to vector<32x128xf32>
      %20 = arith.cmpf oge, %18, %19 : vector<32x128xf32>
      %cst_16 = arith.constant 0.00999999977 : f32
      %21 = vector.broadcast %cst_16 : f32 to vector<32x128xf32>
      %22 = arith.mulf %21, %18 : vector<32x128xf32>
      %23 = arith.select %20, %18, %22 : vector<32x128xi1>, vector<32x128xf32>
      %c0_17 = arith.constant 0 : index
      %c0_18 = arith.constant 0 : index
      %24 = vector.load %arg6[%c0_17, %c0_18] : memref<32x128xf32, #tpu.memory_space<vmem>>, vector<32x128xf32>
      tpu.vector_store %arg6[%c0_17, %c0_18], %23 {strides = array<i32>} : memref<32x128xf32, #tpu.memory_space<vmem>>, vector<32x128xf32>,
    } else {
    }
    return
  }
  func.func @transform_0(%arg0: i32, %arg1: i32) -> (i32, i32) {
    %c0_i32 = arith.constant 0 : i32
    return %arg0, %arg1 : i32, i32
  }
  func.func @transform_1(%arg0: i32, %arg1: i32) -> (i32, i32) {
    %c0_i32 = arith.constant 0 : i32
    %c0_i32_0 = arith.constant 0 : i32
    return %arg1, %c0_i32 : i32, i32
  }
  func.func @transform_2(%arg0: i32, %arg1: i32) -> (i32, i32) {
    %c0_i32 = arith.constant 0 : i32
    %c0_i32_0 = arith.constant 0 : i32
    %c0_i32_1 = arith.constant 0 : i32
    return %c0_i32, %c0_i32_0 : i32, i32
  }
  func.func @transform_3(%arg0: i32, %arg1: i32) -> (i32, i32) {
    %c0_i32 = arith.constant 0 : i32
    %c0_i32_0 = arith.constant 0 : i32
    %c0_i32_1 = arith.constant 0 : i32
    return %c0_i32, %c0_i32_0 : i32, i32
  }
  func.func @transform_4(%arg0: i32, %arg1: i32) -> (i32, i32) {
    %c0_i32 = arith.constant 0 : i32
    %c0_i32_0 = arith.constant 0 : i32
    return %arg0, %c0_i32 : i32, i32
  }
}

module attributes {stable_mosaic.version = 11 : i64} {
  func.func @_gemm_bn_act_kernel(%arg0: i32, %arg1: i32, %arg2: memref<32x64xf32, #tpu.memory_space<vmem>>, %arg3: memref<64x128xbf16, #tpu.memory_space<vmem>>, %arg4: memref<1x128xf32, #tpu.memory_space<vmem>>, %arg5: memref<1x128xf32, #tpu.memory_space<vmem>>, %arg6: memref<32x128xf32, #tpu.memory_space<vmem>>) attributes {dimension_semantics = [#tpu.dimension_semantics<parallel>, #tpu.dimension_semantics<arbitrary>], iteration_bounds = array<i64: 1, 1>, scalar_prefetch = 0 : i64, scratch_operands = 0 : i64, tpu.core_type = #tpu.core_type<tc>, window_params = [{transform_indices = @transform_0, window_bounds = array<i64: 32, 64>}, {transform_indices = @transform_1, window_bounds = array<i64: 64, 128>}, {pipeline_mode = #tpu.pipeline_mode<synchronous>, transform_indices = @transform_2, window_bounds = array<i64: 1, 128>}, {pipeline_mode = #tpu.pipeline_mode<synchronous>, transform_indices = @transform_3, window_bounds = array<i64: 1, 128>}, {transform_indices = @transform_4, window_bounds = array<i64: 32, 128>}]} {
    %c0_i32 = arith.constant 0 : i32
    %0 = arith.cmpi eq, %arg1, %c0_i32 : i32
    %1 = arith.extui %0 : i1 to i32
    %c0_i32_0 = arith.constant 0 : i32
    %2 = arith.cmpi ne, %1, %c0_i32_0 : i32
    scf.if %2 {
      %cst_10 = arith.constant 0.000000e+00 : f32
      %13 = vector.broadcast %cst_10 : f32 to vector<32x128xf32>
      %c0_11 = arith.constant 0 : index
      %c0_12 = arith.constant 0 : index
      %14 = vector.load %arg6[%c0_11, %c0_12] : memref<32x128xf32, #tpu.memory_space<vmem>>, vector<32x128xf32>
      tpu.vector_store %arg6[%c0_11, %c0_12], %13 {strides = array<i32>} : memref<32x128xf32, #tpu.memory_space<vmem>>, vector<32x128xf32>,
    } else {
    }
    %c0 = arith.constant 0 : index
    %c0_1 = arith.constant 0 : index
    %3 = vector.load %arg6[%c0, %c0_1] : memref<32x128xf32, #tpu.memory_space<vmem>>, vector<32x128xf32>
    %c0_2 = arith.constant 0 : index
    %c0_3 = arith.constant 0 : index
    %4 = vector.load %arg2[%c0_2, %c0_3] : memref<32x64xf32, #tpu.memory_space<vmem>>, vector<32x64xf32>
    %5 = arith.truncf %4 : vector<32x64xf32> to vector<32x64xbf16>
    %c0_4 = arith.constant 0 : index
    %c0_5 = arith.constant 0 : index
    %6 = vector.load %arg3[%c0_4, %c0_5] : memref<64x128xbf16, #tpu.memory_space<vmem>>, vector<64x128xbf16>
    %cst = arith.constant dense<0.000000e+00> : vector<32x128xf32>
    %7 = tpu.matmul %5, %6, %cst {dimension_numbers = #tpu.dot_dimension_numbers<[1], [0], [0], [1], [0, 0, 1, 1], [], []>} : vector<32x64xbf16>, vector<64x128xbf16>, vector<32x128xf32> -> vector<32x128xf32>
    %8 = arith.addf %3, %7 : vector<32x128xf32>
    %c0_6 = arith.constant 0 : index
    %c0_7 = arith.constant 0 : index
    %9 = vector.load %arg6[%c0_6, %c0_7] : memref<32x128xf32, #tpu.memory_space<vmem>>, vector<32x128xf32>
    tpu.vector_store %arg6[%c0_6, %c0_7], %8 {strides = array<i32>} : memref<32x128xf32, #tpu.memory_space<vmem>>, vector<32x128xf32>,
    %c0_i32_8 = arith.constant 0 : i32
    %10 = arith.cmpi eq, %arg1, %c0_i32_8 : i32
    %11 = arith.extui %10 : i1 to i32
    %c0_i32_9 = arith.constant 0 : i32
    %12 = arith.cmpi ne, %11, %c0_i32_9 : i32
    scf.if %12 {
      %c0_10 = arith.constant 0 : index
      %c0_11 = arith.constant 0 : index
      %13 = vector.load %arg6[%c0_10, %c0_11] : memref<32x128xf32, #tpu.memory_space<vmem>>, vector<32x128xf32>
      %c0_12 = arith.constant 0 : index
      %c0_13 = arith.constant 0 : index
      %14 = vector.load %arg4[%c0_12, %c0_13] : memref<1x128xf32, #tpu.memory_space<vmem>>, vector<1x128xf32>
      %15 = vector.broadcast %14 : vector<1x128xf32> to vector<32x128xf32>
      %16 = arith.mulf %13, %15 : vector<32x128xf32>
      %c0_14 = arith.constant 0 : index
      %c0_15 = arith.constant 0 : index
      %17 = vector.load %arg5[%c0_14, %c0_15] : memref<1x128xf32, #tpu.memory_space<vmem>>, vector<1x128xf32>
      %18 = vector.broadcast %17 : vector<1x128xf32> to vector<32x128xf32>
      %19 = arith.addf %16, %18 : vector<32x128xf32>
      %c0_16 = arith.constant 0 : index
      %c0_17 = arith.constant 0 : index
      %20 = vector.load %arg6[%c0_16, %c0_17] : memref<32x128xf32, #tpu.memory_space<vmem>>, vector<32x128xf32>
      tpu.vector_store %arg6[%c0_16, %c0_17], %19 {strides = array<i32>} : memref<32x128xf32, #tpu.memory_space<vmem>>, vector<32x128xf32>,
    } else {
    }
    return
  }
  func.func @transform_0(%arg0: i32, %arg1: i32) -> (i32, i32) {
    %c0_i32 = arith.constant 0 : i32
    return %arg0, %arg1 : i32, i32
  }
  func.func @transform_1(%arg0: i32, %arg1: i32) -> (i32, i32) {
    %c0_i32 = arith.constant 0 : i32
    %c0_i32_0 = arith.constant 0 : i32
    return %arg1, %c0_i32 : i32, i32
  }
  func.func @transform_2(%arg0: i32, %arg1: i32) -> (i32, i32) {
    %c0_i32 = arith.constant 0 : i32
    %c0_i32_0 = arith.constant 0 : i32
    %c0_i32_1 = arith.constant 0 : i32
    return %c0_i32, %c0_i32_0 : i32, i32
  }
  func.func @transform_3(%arg0: i32, %arg1: i32) -> (i32, i32) {
    %c0_i32 = arith.constant 0 : i32
    %c0_i32_0 = arith.constant 0 : i32
    %c0_i32_1 = arith.constant 0 : i32
    return %c0_i32, %c0_i32_0 : i32, i32
  }
  func.func @transform_4(%arg0: i32, %arg1: i32) -> (i32, i32) {
    %c0_i32 = arith.constant 0 : i32
    %c0_i32_0 = arith.constant 0 : i32
    return %arg0, %c0_i32 : i32, i32
  }
}

module attributes {stable_mosaic.version = 11 : i64} {
  func.func @_gemm_bn_res_pre_kernel(%arg0: i32, %arg1: i32, %arg2: memref<32x256xbf16, #tpu.memory_space<vmem>>, %arg3: memref<256x128xbf16, #tpu.memory_space<vmem>>, %arg4: memref<1x128xf32, #tpu.memory_space<vmem>>, %arg5: memref<1x128xf32, #tpu.memory_space<vmem>>, %arg6: memref<32x128xf32, #tpu.memory_space<vmem>>, %arg7: memref<32x128xf32, #tpu.memory_space<vmem>>, %arg8: memref<32x128xf32, #tpu.memory_space<vmem>>) attributes {dimension_semantics = [#tpu.dimension_semantics<parallel>, #tpu.dimension_semantics<arbitrary>], iteration_bounds = array<i64: 1, 5>, scalar_prefetch = 0 : i64, scratch_operands = 0 : i64, tpu.core_type = #tpu.core_type<tc>, window_params = [{transform_indices = @transform_0, window_bounds = array<i64: 32, 256>}, {transform_indices = @transform_1, window_bounds = array<i64: 256, 128>}, {pipeline_mode = #tpu.pipeline_mode<synchronous>, transform_indices = @transform_2, window_bounds = array<i64: 1, 128>}, {pipeline_mode = #tpu.pipeline_mode<synchronous>, transform_indices = @transform_3, window_bounds = array<i64: 1, 128>}, {transform_indices = @transform_4, window_bounds = array<i64: 32, 128>}, {transform_indices = @transform_5, window_bounds = array<i64: 32, 128>}, {transform_indices = @transform_6, window_bounds = array<i64: 32, 128>}]} {
    %c0_i32 = arith.constant 0 : i32
    %0 = arith.cmpi eq, %arg1, %c0_i32 : i32
    %1 = arith.extui %0 : i1 to i32
    %c0_i32_0 = arith.constant 0 : i32
    %2 = arith.cmpi ne, %1, %c0_i32_0 : i32
    scf.if %2 {
      %cst_9 = arith.constant 0.000000e+00 : f32
      %12 = vector.broadcast %cst_9 : f32 to vector<32x128xf32>
      %c0_10 = arith.constant 0 : index
      %c0_11 = arith.constant 0 : index
      %13 = vector.load %arg8[%c0_10, %c0_11] : memref<32x128xf32, #tpu.memory_space<vmem>>, vector<32x128xf32>
      tpu.vector_store %arg8[%c0_10, %c0_11], %12 {strides = array<i32>} : memref<32x128xf32, #tpu.memory_space<vmem>>, vector<32x128xf32>,
    } else {
    }
    %c0 = arith.constant 0 : index
    %c0_1 = arith.constant 0 : index
    %3 = vector.load %arg8[%c0, %c0_1] : memref<32x128xf32, #tpu.memory_space<vmem>>, vector<32x128xf32>
    %c0_2 = arith.constant 0 : index
    %c0_3 = arith.constant 0 : index
    %4 = vector.load %arg2[%c0_2, %c0_3] : memref<32x256xbf16, #tpu.memory_space<vmem>>, vector<32x256xbf16>
    %c0_4 = arith.constant 0 : index
    %c0_5 = arith.constant 0 : index
    %5 = vector.load %arg3[%c0_4, %c0_5] : memref<256x128xbf16, #tpu.memory_space<vmem>>, vector<256x128xbf16>
    %cst = arith.constant dense<0.000000e+00> : vector<32x128xf32>
    %6 = tpu.matmul %4, %5, %cst {dimension_numbers = #tpu.dot_dimension_numbers<[1], [0], [0], [1], [0, 0, 1, 1], [], []>} : vector<32x256xbf16>, vector<256x128xbf16>, vector<32x128xf32> -> vector<32x128xf32>
    %7 = arith.addf %3, %6 : vector<32x128xf32>
    %c0_6 = arith.constant 0 : index
    %c0_7 = arith.constant 0 : index
    %8 = vector.load %arg8[%c0_6, %c0_7] : memref<32x128xf32, #tpu.memory_space<vmem>>, vector<32x128xf32>
    tpu.vector_store %arg8[%c0_6, %c0_7], %7 {strides = array<i32>} : memref<32x128xf32, #tpu.memory_space<vmem>>, vector<32x128xf32>,
    %c4_i32 = arith.constant 4 : i32
    %9 = arith.cmpi eq, %arg1, %c4_i32 : i32
    %10 = arith.extui %9 : i1 to i32
    %c0_i32_8 = arith.constant 0 : i32
    %11 = arith.cmpi ne, %10, %c0_i32_8 : i32
    scf.if %11 {
      %c0_9 = arith.constant 0 : index
      %c0_10 = arith.constant 0 : index
      %12 = vector.load %arg8[%c0_9, %c0_10] : memref<32x128xf32, #tpu.memory_space<vmem>>, vector<32x128xf32>
      %c0_11 = arith.constant 0 : index
      %c0_12 = arith.constant 0 : index
      %13 = vector.load %arg4[%c0_11, %c0_12] : memref<1x128xf32, #tpu.memory_space<vmem>>, vector<1x128xf32>
      %14 = vector.broadcast %13 : vector<1x128xf32> to vector<32x128xf32>
      %15 = arith.mulf %12, %14 : vector<32x128xf32>
      %c0_13 = arith.constant 0 : index
      %c0_14 = arith.constant 0 : index
      %16 = vector.load %arg5[%c0_13, %c0_14] : memref<1x128xf32, #tpu.memory_space<vmem>>, vector<1x128xf32>
      %17 = vector.broadcast %16 : vector<1x128xf32> to vector<32x128xf32>
      %18 = arith.addf %15, %17 : vector<32x128xf32>
      %c0_15 = arith.constant 0 : index
      %c0_16 = arith.constant 0 : index
      %19 = vector.load %arg6[%c0_15, %c0_16] : memref<32x128xf32, #tpu.memory_space<vmem>>, vector<32x128xf32>
      %20 = arith.addf %18, %19 : vector<32x128xf32>
      %c0_17 = arith.constant 0 : index
      %c0_18 = arith.constant 0 : index
      %21 = vector.load %arg8[%c0_17, %c0_18] : memref<32x128xf32, #tpu.memory_space<vmem>>, vector<32x128xf32>
      tpu.vector_store %arg8[%c0_17, %c0_18], %20 {strides = array<i32>} : memref<32x128xf32, #tpu.memory_space<vmem>>, vector<32x128xf32>,
      %cst_19 = arith.constant 0.000000e+00 : f32
      %22 = vector.broadcast %cst_19 : f32 to vector<32x128xf32>
      %23 = arith.cmpf oge, %20, %22 : vector<32x128xf32>
      %cst_20 = arith.constant 0.00999999977 : f32
      %24 = vector.broadcast %cst_20 : f32 to vector<32x128xf32>
      %25 = arith.mulf %24, %20 : vector<32x128xf32>
      %26 = arith.select %23, %20, %25 : vector<32x128xi1>, vector<32x128xf32>
      %c0_21 = arith.constant 0 : index
      %c0_22 = arith.constant 0 : index
      %27 = vector.load %arg7[%c0_21, %c0_22] : memref<32x128xf32, #tpu.memory_space<vmem>>, vector<32x128xf32>
      tpu.vector_store %arg7[%c0_21, %c0_22], %26 {strides = array<i32>} : memref<32x128xf32, #tpu.memory_space<vmem>>, vector<32x128xf32>,
    } else {
    }
    return
  }
  func.func @transform_0(%arg0: i32, %arg1: i32) -> (i32, i32) {
    %c0_i32 = arith.constant 0 : i32
    return %arg0, %arg1 : i32, i32
  }
  func.func @transform_1(%arg0: i32, %arg1: i32) -> (i32, i32) {
    %c0_i32 = arith.constant 0 : i32
    %c0_i32_0 = arith.constant 0 : i32
    return %arg1, %c0_i32 : i32, i32
  }
  func.func @transform_2(%arg0: i32, %arg1: i32) -> (i32, i32) {
    %c0_i32 = arith.constant 0 : i32
    %c0_i32_0 = arith.constant 0 : i32
    %c0_i32_1 = arith.constant 0 : i32
    return %c0_i32, %c0_i32_0 : i32, i32
  }
  func.func @transform_3(%arg0: i32, %arg1: i32) -> (i32, i32) {
    %c0_i32 = arith.constant 0 : i32
    %c0_i32_0 = arith.constant 0 : i32
    %c0_i32_1 = arith.constant 0 : i32
    return %c0_i32, %c0_i32_0 : i32, i32
  }
  func.func @transform_4(%arg0: i32, %arg1: i32) -> (i32, i32) {
    %c0_i32 = arith.constant 0 : i32
    %c0_i32_0 = arith.constant 0 : i32
    return %arg0, %c0_i32 : i32, i32
  }
  func.func @transform_5(%arg0: i32, %arg1: i32) -> (i32, i32) {
    %c0_i32 = arith.constant 0 : i32
    %c0_i32_0 = arith.constant 0 : i32
    return %arg0, %c0_i32 : i32, i32
  }
  func.func @transform_6(%arg0: i32, %arg1: i32) -> (i32, i32) {
    %c0_i32 = arith.constant 0 : i32
    %c0_i32_0 = arith.constant 0 : i32
    return %arg0, %c0_i32 : i32, i32
  }
}

module attributes {stable_mosaic.version = 11 : i64} {
  func.func @_gemm_bn_act_kernel(%arg0: i32, %arg1: i32, %arg2: memref<8x256xbf16, #tpu.memory_space<vmem>>, %arg3: memref<256x256xbf16, #tpu.memory_space<vmem>>, %arg4: memref<1x256xf32, #tpu.memory_space<vmem>>, %arg5: memref<1x256xf32, #tpu.memory_space<vmem>>, %arg6: memref<8x256xf32, #tpu.memory_space<vmem>>) attributes {dimension_semantics = [#tpu.dimension_semantics<parallel>, #tpu.dimension_semantics<arbitrary>], iteration_bounds = array<i64: 1, 5>, scalar_prefetch = 0 : i64, scratch_operands = 0 : i64, tpu.core_type = #tpu.core_type<tc>, window_params = [{transform_indices = @transform_0, window_bounds = array<i64: 8, 256>}, {transform_indices = @transform_1, window_bounds = array<i64: 256, 256>}, {pipeline_mode = #tpu.pipeline_mode<synchronous>, transform_indices = @transform_2, window_bounds = array<i64: 1, 256>}, {pipeline_mode = #tpu.pipeline_mode<synchronous>, transform_indices = @transform_3, window_bounds = array<i64: 1, 256>}, {transform_indices = @transform_4, window_bounds = array<i64: 8, 256>}]} {
    %c0_i32 = arith.constant 0 : i32
    %0 = arith.cmpi eq, %arg1, %c0_i32 : i32
    %1 = arith.extui %0 : i1 to i32
    %c0_i32_0 = arith.constant 0 : i32
    %2 = arith.cmpi ne, %1, %c0_i32_0 : i32
    scf.if %2 {
      %cst_9 = arith.constant 0.000000e+00 : f32
      %12 = vector.broadcast %cst_9 : f32 to vector<8x256xf32>
      %c0_10 = arith.constant 0 : index
      %c0_11 = arith.constant 0 : index
      %13 = vector.load %arg6[%c0_10, %c0_11] : memref<8x256xf32, #tpu.memory_space<vmem>>, vector<8x256xf32>
      tpu.vector_store %arg6[%c0_10, %c0_11], %12 {strides = array<i32>} : memref<8x256xf32, #tpu.memory_space<vmem>>, vector<8x256xf32>,
    } else {
    }
    %c0 = arith.constant 0 : index
    %c0_1 = arith.constant 0 : index
    %3 = vector.load %arg6[%c0, %c0_1] : memref<8x256xf32, #tpu.memory_space<vmem>>, vector<8x256xf32>
    %c0_2 = arith.constant 0 : index
    %c0_3 = arith.constant 0 : index
    %4 = vector.load %arg2[%c0_2, %c0_3] : memref<8x256xbf16, #tpu.memory_space<vmem>>, vector<8x256xbf16>
    %c0_4 = arith.constant 0 : index
    %c0_5 = arith.constant 0 : index
    %5 = vector.load %arg3[%c0_4, %c0_5] : memref<256x256xbf16, #tpu.memory_space<vmem>>, vector<256x256xbf16>
    %cst = arith.constant dense<0.000000e+00> : vector<8x256xf32>
    %6 = tpu.matmul %4, %5, %cst {dimension_numbers = #tpu.dot_dimension_numbers<[1], [0], [0], [1], [0, 0, 1, 1], [], []>} : vector<8x256xbf16>, vector<256x256xbf16>, vector<8x256xf32> -> vector<8x256xf32>
    %7 = arith.addf %3, %6 : vector<8x256xf32>
    %c0_6 = arith.constant 0 : index
    %c0_7 = arith.constant 0 : index
    %8 = vector.load %arg6[%c0_6, %c0_7] : memref<8x256xf32, #tpu.memory_space<vmem>>, vector<8x256xf32>
    tpu.vector_store %arg6[%c0_6, %c0_7], %7 {strides = array<i32>} : memref<8x256xf32, #tpu.memory_space<vmem>>, vector<8x256xf32>,
    %c4_i32 = arith.constant 4 : i32
    %9 = arith.cmpi eq, %arg1, %c4_i32 : i32
    %10 = arith.extui %9 : i1 to i32
    %c0_i32_8 = arith.constant 0 : i32
    %11 = arith.cmpi ne, %10, %c0_i32_8 : i32
    scf.if %11 {
      %c0_9 = arith.constant 0 : index
      %c0_10 = arith.constant 0 : index
      %12 = vector.load %arg6[%c0_9, %c0_10] : memref<8x256xf32, #tpu.memory_space<vmem>>, vector<8x256xf32>
      %c0_11 = arith.constant 0 : index
      %c0_12 = arith.constant 0 : index
      %13 = vector.load %arg4[%c0_11, %c0_12] : memref<1x256xf32, #tpu.memory_space<vmem>>, vector<1x256xf32>
      %14 = vector.broadcast %13 : vector<1x256xf32> to vector<8x256xf32>
      %15 = arith.mulf %12, %14 : vector<8x256xf32>
      %c0_13 = arith.constant 0 : index
      %c0_14 = arith.constant 0 : index
      %16 = vector.load %arg5[%c0_13, %c0_14] : memref<1x256xf32, #tpu.memory_space<vmem>>, vector<1x256xf32>
      %17 = vector.broadcast %16 : vector<1x256xf32> to vector<8x256xf32>
      %18 = arith.addf %15, %17 : vector<8x256xf32>
      %cst_15 = arith.constant 0.000000e+00 : f32
      %19 = vector.broadcast %cst_15 : f32 to vector<8x256xf32>
      %20 = arith.cmpf oge, %18, %19 : vector<8x256xf32>
      %cst_16 = arith.constant 0.00999999977 : f32
      %21 = vector.broadcast %cst_16 : f32 to vector<8x256xf32>
      %22 = arith.mulf %21, %18 : vector<8x256xf32>
      %23 = arith.select %20, %18, %22 : vector<8x256xi1>, vector<8x256xf32>
      %c0_17 = arith.constant 0 : index
      %c0_18 = arith.constant 0 : index
      %24 = vector.load %arg6[%c0_17, %c0_18] : memref<8x256xf32, #tpu.memory_space<vmem>>, vector<8x256xf32>
      tpu.vector_store %arg6[%c0_17, %c0_18], %23 {strides = array<i32>} : memref<8x256xf32, #tpu.memory_space<vmem>>, vector<8x256xf32>,
    } else {
    }
    return
  }
  func.func @transform_0(%arg0: i32, %arg1: i32) -> (i32, i32) {
    %c0_i32 = arith.constant 0 : i32
    return %arg0, %arg1 : i32, i32
  }
  func.func @transform_1(%arg0: i32, %arg1: i32) -> (i32, i32) {
    %c0_i32 = arith.constant 0 : i32
    %c0_i32_0 = arith.constant 0 : i32
    return %arg1, %c0_i32 : i32, i32
  }
  func.func @transform_2(%arg0: i32, %arg1: i32) -> (i32, i32) {
    %c0_i32 = arith.constant 0 : i32
    %c0_i32_0 = arith.constant 0 : i32
    %c0_i32_1 = arith.constant 0 : i32
    return %c0_i32, %c0_i32_0 : i32, i32
  }
  func.func @transform_3(%arg0: i32, %arg1: i32) -> (i32, i32) {
    %c0_i32 = arith.constant 0 : i32
    %c0_i32_0 = arith.constant 0 : i32
    %c0_i32_1 = arith.constant 0 : i32
    return %c0_i32, %c0_i32_0 : i32, i32
  }
  func.func @transform_4(%arg0: i32, %arg1: i32) -> (i32, i32) {
    %c0_i32 = arith.constant 0 : i32
    %c0_i32_0 = arith.constant 0 : i32
    return %arg0, %c0_i32 : i32, i32
  }
}

module attributes {stable_mosaic.version = 11 : i64} {
  func.func @_gemm_bn_act_kernel(%arg0: i32, %arg1: i32, %arg2: memref<8x128xf32, #tpu.memory_space<vmem>>, %arg3: memref<128x256xbf16, #tpu.memory_space<vmem>>, %arg4: memref<1x256xf32, #tpu.memory_space<vmem>>, %arg5: memref<1x256xf32, #tpu.memory_space<vmem>>, %arg6: memref<8x256xf32, #tpu.memory_space<vmem>>) attributes {dimension_semantics = [#tpu.dimension_semantics<parallel>, #tpu.dimension_semantics<arbitrary>], iteration_bounds = array<i64: 1, 1>, scalar_prefetch = 0 : i64, scratch_operands = 0 : i64, tpu.core_type = #tpu.core_type<tc>, window_params = [{transform_indices = @transform_0, window_bounds = array<i64: 8, 128>}, {transform_indices = @transform_1, window_bounds = array<i64: 128, 256>}, {pipeline_mode = #tpu.pipeline_mode<synchronous>, transform_indices = @transform_2, window_bounds = array<i64: 1, 256>}, {pipeline_mode = #tpu.pipeline_mode<synchronous>, transform_indices = @transform_3, window_bounds = array<i64: 1, 256>}, {transform_indices = @transform_4, window_bounds = array<i64: 8, 256>}]} {
    %c0_i32 = arith.constant 0 : i32
    %0 = arith.cmpi eq, %arg1, %c0_i32 : i32
    %1 = arith.extui %0 : i1 to i32
    %c0_i32_0 = arith.constant 0 : i32
    %2 = arith.cmpi ne, %1, %c0_i32_0 : i32
    scf.if %2 {
      %cst_10 = arith.constant 0.000000e+00 : f32
      %13 = vector.broadcast %cst_10 : f32 to vector<8x256xf32>
      %c0_11 = arith.constant 0 : index
      %c0_12 = arith.constant 0 : index
      %14 = vector.load %arg6[%c0_11, %c0_12] : memref<8x256xf32, #tpu.memory_space<vmem>>, vector<8x256xf32>
      tpu.vector_store %arg6[%c0_11, %c0_12], %13 {strides = array<i32>} : memref<8x256xf32, #tpu.memory_space<vmem>>, vector<8x256xf32>,
    } else {
    }
    %c0 = arith.constant 0 : index
    %c0_1 = arith.constant 0 : index
    %3 = vector.load %arg6[%c0, %c0_1] : memref<8x256xf32, #tpu.memory_space<vmem>>, vector<8x256xf32>
    %c0_2 = arith.constant 0 : index
    %c0_3 = arith.constant 0 : index
    %4 = vector.load %arg2[%c0_2, %c0_3] : memref<8x128xf32, #tpu.memory_space<vmem>>, vector<8x128xf32>
    %5 = arith.truncf %4 : vector<8x128xf32> to vector<8x128xbf16>
    %c0_4 = arith.constant 0 : index
    %c0_5 = arith.constant 0 : index
    %6 = vector.load %arg3[%c0_4, %c0_5] : memref<128x256xbf16, #tpu.memory_space<vmem>>, vector<128x256xbf16>
    %cst = arith.constant dense<0.000000e+00> : vector<8x256xf32>
    %7 = tpu.matmul %5, %6, %cst {dimension_numbers = #tpu.dot_dimension_numbers<[1], [0], [0], [1], [0, 0, 1, 1], [], []>} : vector<8x128xbf16>, vector<128x256xbf16>, vector<8x256xf32> -> vector<8x256xf32>
    %8 = arith.addf %3, %7 : vector<8x256xf32>
    %c0_6 = arith.constant 0 : index
    %c0_7 = arith.constant 0 : index
    %9 = vector.load %arg6[%c0_6, %c0_7] : memref<8x256xf32, #tpu.memory_space<vmem>>, vector<8x256xf32>
    tpu.vector_store %arg6[%c0_6, %c0_7], %8 {strides = array<i32>} : memref<8x256xf32, #tpu.memory_space<vmem>>, vector<8x256xf32>,
    %c0_i32_8 = arith.constant 0 : i32
    %10 = arith.cmpi eq, %arg1, %c0_i32_8 : i32
    %11 = arith.extui %10 : i1 to i32
    %c0_i32_9 = arith.constant 0 : i32
    %12 = arith.cmpi ne, %11, %c0_i32_9 : i32
    scf.if %12 {
      %c0_10 = arith.constant 0 : index
      %c0_11 = arith.constant 0 : index
      %13 = vector.load %arg6[%c0_10, %c0_11] : memref<8x256xf32, #tpu.memory_space<vmem>>, vector<8x256xf32>
      %c0_12 = arith.constant 0 : index
      %c0_13 = arith.constant 0 : index
      %14 = vector.load %arg4[%c0_12, %c0_13] : memref<1x256xf32, #tpu.memory_space<vmem>>, vector<1x256xf32>
      %15 = vector.broadcast %14 : vector<1x256xf32> to vector<8x256xf32>
      %16 = arith.mulf %13, %15 : vector<8x256xf32>
      %c0_14 = arith.constant 0 : index
      %c0_15 = arith.constant 0 : index
      %17 = vector.load %arg5[%c0_14, %c0_15] : memref<1x256xf32, #tpu.memory_space<vmem>>, vector<1x256xf32>
      %18 = vector.broadcast %17 : vector<1x256xf32> to vector<8x256xf32>
      %19 = arith.addf %16, %18 : vector<8x256xf32>
      %c0_16 = arith.constant 0 : index
      %c0_17 = arith.constant 0 : index
      %20 = vector.load %arg6[%c0_16, %c0_17] : memref<8x256xf32, #tpu.memory_space<vmem>>, vector<8x256xf32>
      tpu.vector_store %arg6[%c0_16, %c0_17], %19 {strides = array<i32>} : memref<8x256xf32, #tpu.memory_space<vmem>>, vector<8x256xf32>,
    } else {
    }
    return
  }
  func.func @transform_0(%arg0: i32, %arg1: i32) -> (i32, i32) {
    %c0_i32 = arith.constant 0 : i32
    return %arg0, %arg1 : i32, i32
  }
  func.func @transform_1(%arg0: i32, %arg1: i32) -> (i32, i32) {
    %c0_i32 = arith.constant 0 : i32
    %c0_i32_0 = arith.constant 0 : i32
    return %arg1, %c0_i32 : i32, i32
  }
  func.func @transform_2(%arg0: i32, %arg1: i32) -> (i32, i32) {
    %c0_i32 = arith.constant 0 : i32
    %c0_i32_0 = arith.constant 0 : i32
    %c0_i32_1 = arith.constant 0 : i32
    return %c0_i32, %c0_i32_0 : i32, i32
  }
  func.func @transform_3(%arg0: i32, %arg1: i32) -> (i32, i32) {
    %c0_i32 = arith.constant 0 : i32
    %c0_i32_0 = arith.constant 0 : i32
    %c0_i32_1 = arith.constant 0 : i32
    return %c0_i32, %c0_i32_0 : i32, i32
  }
  func.func @transform_4(%arg0: i32, %arg1: i32) -> (i32, i32) {
    %c0_i32 = arith.constant 0 : i32
    %c0_i32_0 = arith.constant 0 : i32
    return %arg0, %c0_i32 : i32, i32
  }
}

module attributes {stable_mosaic.version = 11 : i64} {
  func.func @_gemm_bn_res_pre_kernel(%arg0: i32, %arg1: i32, %arg2: memref<8x256xbf16, #tpu.memory_space<vmem>>, %arg3: memref<256x256xbf16, #tpu.memory_space<vmem>>, %arg4: memref<1x256xf32, #tpu.memory_space<vmem>>, %arg5: memref<1x256xf32, #tpu.memory_space<vmem>>, %arg6: memref<8x256xf32, #tpu.memory_space<vmem>>, %arg7: memref<8x256xf32, #tpu.memory_space<vmem>>, %arg8: memref<8x256xf32, #tpu.memory_space<vmem>>) attributes {dimension_semantics = [#tpu.dimension_semantics<parallel>, #tpu.dimension_semantics<arbitrary>], iteration_bounds = array<i64: 1, 9>, scalar_prefetch = 0 : i64, scratch_operands = 0 : i64, tpu.core_type = #tpu.core_type<tc>, window_params = [{transform_indices = @transform_0, window_bounds = array<i64: 8, 256>}, {transform_indices = @transform_1, window_bounds = array<i64: 256, 256>}, {pipeline_mode = #tpu.pipeline_mode<synchronous>, transform_indices = @transform_2, window_bounds = array<i64: 1, 256>}, {pipeline_mode = #tpu.pipeline_mode<synchronous>, transform_indices = @transform_3, window_bounds = array<i64: 1, 256>}, {transform_indices = @transform_4, window_bounds = array<i64: 8, 256>}, {transform_indices = @transform_5, window_bounds = array<i64: 8, 256>}, {transform_indices = @transform_6, window_bounds = array<i64: 8, 256>}]} {
    %c0_i32 = arith.constant 0 : i32
    %0 = arith.cmpi eq, %arg1, %c0_i32 : i32
    %1 = arith.extui %0 : i1 to i32
    %c0_i32_0 = arith.constant 0 : i32
    %2 = arith.cmpi ne, %1, %c0_i32_0 : i32
    scf.if %2 {
      %cst_9 = arith.constant 0.000000e+00 : f32
      %12 = vector.broadcast %cst_9 : f32 to vector<8x256xf32>
      %c0_10 = arith.constant 0 : index
      %c0_11 = arith.constant 0 : index
      %13 = vector.load %arg8[%c0_10, %c0_11] : memref<8x256xf32, #tpu.memory_space<vmem>>, vector<8x256xf32>
      tpu.vector_store %arg8[%c0_10, %c0_11], %12 {strides = array<i32>} : memref<8x256xf32, #tpu.memory_space<vmem>>, vector<8x256xf32>,
    } else {
    }
    %c0 = arith.constant 0 : index
    %c0_1 = arith.constant 0 : index
    %3 = vector.load %arg8[%c0, %c0_1] : memref<8x256xf32, #tpu.memory_space<vmem>>, vector<8x256xf32>
    %c0_2 = arith.constant 0 : index
    %c0_3 = arith.constant 0 : index
    %4 = vector.load %arg2[%c0_2, %c0_3] : memref<8x256xbf16, #tpu.memory_space<vmem>>, vector<8x256xbf16>
    %c0_4 = arith.constant 0 : index
    %c0_5 = arith.constant 0 : index
    %5 = vector.load %arg3[%c0_4, %c0_5] : memref<256x256xbf16, #tpu.memory_space<vmem>>, vector<256x256xbf16>
    %cst = arith.constant dense<0.000000e+00> : vector<8x256xf32>
    %6 = tpu.matmul %4, %5, %cst {dimension_numbers = #tpu.dot_dimension_numbers<[1], [0], [0], [1], [0, 0, 1, 1], [], []>} : vector<8x256xbf16>, vector<256x256xbf16>, vector<8x256xf32> -> vector<8x256xf32>
    %7 = arith.addf %3, %6 : vector<8x256xf32>
    %c0_6 = arith.constant 0 : index
    %c0_7 = arith.constant 0 : index
    %8 = vector.load %arg8[%c0_6, %c0_7] : memref<8x256xf32, #tpu.memory_space<vmem>>, vector<8x256xf32>
    tpu.vector_store %arg8[%c0_6, %c0_7], %7 {strides = array<i32>} : memref<8x256xf32, #tpu.memory_space<vmem>>, vector<8x256xf32>,
    %c8_i32 = arith.constant 8 : i32
    %9 = arith.cmpi eq, %arg1, %c8_i32 : i32
    %10 = arith.extui %9 : i1 to i32
    %c0_i32_8 = arith.constant 0 : i32
    %11 = arith.cmpi ne, %10, %c0_i32_8 : i32
    scf.if %11 {
      %c0_9 = arith.constant 0 : index
      %c0_10 = arith.constant 0 : index
      %12 = vector.load %arg8[%c0_9, %c0_10] : memref<8x256xf32, #tpu.memory_space<vmem>>, vector<8x256xf32>
      %c0_11 = arith.constant 0 : index
      %c0_12 = arith.constant 0 : index
      %13 = vector.load %arg4[%c0_11, %c0_12] : memref<1x256xf32, #tpu.memory_space<vmem>>, vector<1x256xf32>
      %14 = vector.broadcast %13 : vector<1x256xf32> to vector<8x256xf32>
      %15 = arith.mulf %12, %14 : vector<8x256xf32>
      %c0_13 = arith.constant 0 : index
      %c0_14 = arith.constant 0 : index
      %16 = vector.load %arg5[%c0_13, %c0_14] : memref<1x256xf32, #tpu.memory_space<vmem>>, vector<1x256xf32>
      %17 = vector.broadcast %16 : vector<1x256xf32> to vector<8x256xf32>
      %18 = arith.addf %15, %17 : vector<8x256xf32>
      %c0_15 = arith.constant 0 : index
      %c0_16 = arith.constant 0 : index
      %19 = vector.load %arg6[%c0_15, %c0_16] : memref<8x256xf32, #tpu.memory_space<vmem>>, vector<8x256xf32>
      %20 = arith.addf %18, %19 : vector<8x256xf32>
      %c0_17 = arith.constant 0 : index
      %c0_18 = arith.constant 0 : index
      %21 = vector.load %arg8[%c0_17, %c0_18] : memref<8x256xf32, #tpu.memory_space<vmem>>, vector<8x256xf32>
      tpu.vector_store %arg8[%c0_17, %c0_18], %20 {strides = array<i32>} : memref<8x256xf32, #tpu.memory_space<vmem>>, vector<8x256xf32>,
      %cst_19 = arith.constant 0.000000e+00 : f32
      %22 = vector.broadcast %cst_19 : f32 to vector<8x256xf32>
      %23 = arith.cmpf oge, %20, %22 : vector<8x256xf32>
      %cst_20 = arith.constant 0.00999999977 : f32
      %24 = vector.broadcast %cst_20 : f32 to vector<8x256xf32>
      %25 = arith.mulf %24, %20 : vector<8x256xf32>
      %26 = arith.select %23, %20, %25 : vector<8x256xi1>, vector<8x256xf32>
      %c0_21 = arith.constant 0 : index
      %c0_22 = arith.constant 0 : index
      %27 = vector.load %arg7[%c0_21, %c0_22] : memref<8x256xf32, #tpu.memory_space<vmem>>, vector<8x256xf32>
      tpu.vector_store %arg7[%c0_21, %c0_22], %26 {strides = array<i32>} : memref<8x256xf32, #tpu.memory_space<vmem>>, vector<8x256xf32>,
    } else {
    }
    return
  }
  func.func @transform_0(%arg0: i32, %arg1: i32) -> (i32, i32) {
    %c0_i32 = arith.constant 0 : i32
    return %arg0, %arg1 : i32, i32
  }
  func.func @transform_1(%arg0: i32, %arg1: i32) -> (i32, i32) {
    %c0_i32 = arith.constant 0 : i32
    %c0_i32_0 = arith.constant 0 : i32
    return %arg1, %c0_i32 : i32, i32
  }
  func.func @transform_2(%arg0: i32, %arg1: i32) -> (i32, i32) {
    %c0_i32 = arith.constant 0 : i32
    %c0_i32_0 = arith.constant 0 : i32
    %c0_i32_1 = arith.constant 0 : i32
    return %c0_i32, %c0_i32_0 : i32, i32
  }
  func.func @transform_3(%arg0: i32, %arg1: i32) -> (i32, i32) {
    %c0_i32 = arith.constant 0 : i32
    %c0_i32_0 = arith.constant 0 : i32
    %c0_i32_1 = arith.constant 0 : i32
    return %c0_i32, %c0_i32_0 : i32, i32
  }
  func.func @transform_4(%arg0: i32, %arg1: i32) -> (i32, i32) {
    %c0_i32 = arith.constant 0 : i32
    %c0_i32_0 = arith.constant 0 : i32
    return %arg0, %c0_i32 : i32, i32
  }
  func.func @transform_5(%arg0: i32, %arg1: i32) -> (i32, i32) {
    %c0_i32 = arith.constant 0 : i32
    %c0_i32_0 = arith.constant 0 : i32
    return %arg0, %c0_i32 : i32, i32
  }
  func.func @transform_6(%arg0: i32, %arg1: i32) -> (i32, i32) {
    %c0_i32 = arith.constant 0 : i32
    %c0_i32_0 = arith.constant 0 : i32
    return %arg0, %c0_i32 : i32, i32
  }
}

module attributes {stable_mosaic.version = 11 : i64} {
  func.func @_gemm_bn_act_kernel(%arg0: i32, %arg1: i32, %arg2: memref<8x256xbf16, #tpu.memory_space<vmem>>, %arg3: memref<256x512xbf16, #tpu.memory_space<vmem>>, %arg4: memref<1x512xf32, #tpu.memory_space<vmem>>, %arg5: memref<1x512xf32, #tpu.memory_space<vmem>>, %arg6: memref<8x512xf32, #tpu.memory_space<vmem>>) attributes {dimension_semantics = [#tpu.dimension_semantics<parallel>, #tpu.dimension_semantics<arbitrary>], iteration_bounds = array<i64: 1, 9>, scalar_prefetch = 0 : i64, scratch_operands = 0 : i64, tpu.core_type = #tpu.core_type<tc>, window_params = [{transform_indices = @transform_0, window_bounds = array<i64: 8, 256>}, {transform_indices = @transform_1, window_bounds = array<i64: 256, 512>}, {pipeline_mode = #tpu.pipeline_mode<synchronous>, transform_indices = @transform_2, window_bounds = array<i64: 1, 512>}, {pipeline_mode = #tpu.pipeline_mode<synchronous>, transform_indices = @transform_3, window_bounds = array<i64: 1, 512>}, {transform_indices = @transform_4, window_bounds = array<i64: 8, 512>}]} {
    %c0_i32 = arith.constant 0 : i32
    %0 = arith.cmpi eq, %arg1, %c0_i32 : i32
    %1 = arith.extui %0 : i1 to i32
    %c0_i32_0 = arith.constant 0 : i32
    %2 = arith.cmpi ne, %1, %c0_i32_0 : i32
    scf.if %2 {
      %cst_9 = arith.constant 0.000000e+00 : f32
      %12 = vector.broadcast %cst_9 : f32 to vector<8x512xf32>
      %c0_10 = arith.constant 0 : index
      %c0_11 = arith.constant 0 : index
      %13 = vector.load %arg6[%c0_10, %c0_11] : memref<8x512xf32, #tpu.memory_space<vmem>>, vector<8x512xf32>
      tpu.vector_store %arg6[%c0_10, %c0_11], %12 {strides = array<i32>} : memref<8x512xf32, #tpu.memory_space<vmem>>, vector<8x512xf32>,
    } else {
    }
    %c0 = arith.constant 0 : index
    %c0_1 = arith.constant 0 : index
    %3 = vector.load %arg6[%c0, %c0_1] : memref<8x512xf32, #tpu.memory_space<vmem>>, vector<8x512xf32>
    %c0_2 = arith.constant 0 : index
    %c0_3 = arith.constant 0 : index
    %4 = vector.load %arg2[%c0_2, %c0_3] : memref<8x256xbf16, #tpu.memory_space<vmem>>, vector<8x256xbf16>
    %c0_4 = arith.constant 0 : index
    %c0_5 = arith.constant 0 : index
    %5 = vector.load %arg3[%c0_4, %c0_5] : memref<256x512xbf16, #tpu.memory_space<vmem>>, vector<256x512xbf16>
    %cst = arith.constant dense<0.000000e+00> : vector<8x512xf32>
    %6 = tpu.matmul %4, %5, %cst {dimension_numbers = #tpu.dot_dimension_numbers<[1], [0], [0], [1], [0, 0, 1, 1], [], []>} : vector<8x256xbf16>, vector<256x512xbf16>, vector<8x512xf32> -> vector<8x512xf32>
    %7 = arith.addf %3, %6 : vector<8x512xf32>
    %c0_6 = arith.constant 0 : index
    %c0_7 = arith.constant 0 : index
    %8 = vector.load %arg6[%c0_6, %c0_7] : memref<8x512xf32, #tpu.memory_space<vmem>>, vector<8x512xf32>
    tpu.vector_store %arg6[%c0_6, %c0_7], %7 {strides = array<i32>} : memref<8x512xf32, #tpu.memory_space<vmem>>, vector<8x512xf32>,
    %c8_i32 = arith.constant 8 : i32
    %9 = arith.cmpi eq, %arg1, %c8_i32 : i32
    %10 = arith.extui %9 : i1 to i32
    %c0_i32_8 = arith.constant 0 : i32
    %11 = arith.cmpi ne, %10, %c0_i32_8 : i32
    scf.if %11 {
      %c0_9 = arith.constant 0 : index
      %c0_10 = arith.constant 0 : index
      %12 = vector.load %arg6[%c0_9, %c0_10] : memref<8x512xf32, #tpu.memory_space<vmem>>, vector<8x512xf32>
      %c0_11 = arith.constant 0 : index
      %c0_12 = arith.constant 0 : index
      %13 = vector.load %arg4[%c0_11, %c0_12] : memref<1x512xf32, #tpu.memory_space<vmem>>, vector<1x512xf32>
      %14 = vector.broadcast %13 : vector<1x512xf32> to vector<8x512xf32>
      %15 = arith.mulf %12, %14 : vector<8x512xf32>
      %c0_13 = arith.constant 0 : index
      %c0_14 = arith.constant 0 : index
      %16 = vector.load %arg5[%c0_13, %c0_14] : memref<1x512xf32, #tpu.memory_space<vmem>>, vector<1x512xf32>
      %17 = vector.broadcast %16 : vector<1x512xf32> to vector<8x512xf32>
      %18 = arith.addf %15, %17 : vector<8x512xf32>
      %cst_15 = arith.constant 0.000000e+00 : f32
      %19 = vector.broadcast %cst_15 : f32 to vector<8x512xf32>
      %20 = arith.cmpf oge, %18, %19 : vector<8x512xf32>
      %cst_16 = arith.constant 0.00999999977 : f32
      %21 = vector.broadcast %cst_16 : f32 to vector<8x512xf32>
      %22 = arith.mulf %21, %18 : vector<8x512xf32>
      %23 = arith.select %20, %18, %22 : vector<8x512xi1>, vector<8x512xf32>
      %c0_17 = arith.constant 0 : index
      %c0_18 = arith.constant 0 : index
      %24 = vector.load %arg6[%c0_17, %c0_18] : memref<8x512xf32, #tpu.memory_space<vmem>>, vector<8x512xf32>
      tpu.vector_store %arg6[%c0_17, %c0_18], %23 {strides = array<i32>} : memref<8x512xf32, #tpu.memory_space<vmem>>, vector<8x512xf32>,
    } else {
    }
    return
  }
  func.func @transform_0(%arg0: i32, %arg1: i32) -> (i32, i32) {
    %c0_i32 = arith.constant 0 : i32
    return %arg0, %arg1 : i32, i32
  }
  func.func @transform_1(%arg0: i32, %arg1: i32) -> (i32, i32) {
    %c0_i32 = arith.constant 0 : i32
    %c0_i32_0 = arith.constant 0 : i32
    return %arg1, %c0_i32 : i32, i32
  }
  func.func @transform_2(%arg0: i32, %arg1: i32) -> (i32, i32) {
    %c0_i32 = arith.constant 0 : i32
    %c0_i32_0 = arith.constant 0 : i32
    %c0_i32_1 = arith.constant 0 : i32
    return %c0_i32, %c0_i32_0 : i32, i32
  }
  func.func @transform_3(%arg0: i32, %arg1: i32) -> (i32, i32) {
    %c0_i32 = arith.constant 0 : i32
    %c0_i32_0 = arith.constant 0 : i32
    %c0_i32_1 = arith.constant 0 : i32
    return %c0_i32, %c0_i32_0 : i32, i32
  }
  func.func @transform_4(%arg0: i32, %arg1: i32) -> (i32, i32) {
    %c0_i32 = arith.constant 0 : i32
    %c0_i32_0 = arith.constant 0 : i32
    return %arg0, %c0_i32 : i32, i32
  }
}

module attributes {stable_mosaic.version = 11 : i64} {
  func.func @_gemm_bn_act_kernel(%arg0: i32, %arg1: i32, %arg2: memref<8x256xf32, #tpu.memory_space<vmem>>, %arg3: memref<256x512xbf16, #tpu.memory_space<vmem>>, %arg4: memref<1x512xf32, #tpu.memory_space<vmem>>, %arg5: memref<1x512xf32, #tpu.memory_space<vmem>>, %arg6: memref<8x512xf32, #tpu.memory_space<vmem>>) attributes {dimension_semantics = [#tpu.dimension_semantics<parallel>, #tpu.dimension_semantics<arbitrary>], iteration_bounds = array<i64: 1, 1>, scalar_prefetch = 0 : i64, scratch_operands = 0 : i64, tpu.core_type = #tpu.core_type<tc>, window_params = [{transform_indices = @transform_0, window_bounds = array<i64: 8, 256>}, {transform_indices = @transform_1, window_bounds = array<i64: 256, 512>}, {pipeline_mode = #tpu.pipeline_mode<synchronous>, transform_indices = @transform_2, window_bounds = array<i64: 1, 512>}, {pipeline_mode = #tpu.pipeline_mode<synchronous>, transform_indices = @transform_3, window_bounds = array<i64: 1, 512>}, {transform_indices = @transform_4, window_bounds = array<i64: 8, 512>}]} {
    %c0_i32 = arith.constant 0 : i32
    %0 = arith.cmpi eq, %arg1, %c0_i32 : i32
    %1 = arith.extui %0 : i1 to i32
    %c0_i32_0 = arith.constant 0 : i32
    %2 = arith.cmpi ne, %1, %c0_i32_0 : i32
    scf.if %2 {
      %cst_10 = arith.constant 0.000000e+00 : f32
      %13 = vector.broadcast %cst_10 : f32 to vector<8x512xf32>
      %c0_11 = arith.constant 0 : index
      %c0_12 = arith.constant 0 : index
      %14 = vector.load %arg6[%c0_11, %c0_12] : memref<8x512xf32, #tpu.memory_space<vmem>>, vector<8x512xf32>
      tpu.vector_store %arg6[%c0_11, %c0_12], %13 {strides = array<i32>} : memref<8x512xf32, #tpu.memory_space<vmem>>, vector<8x512xf32>,
    } else {
    }
    %c0 = arith.constant 0 : index
    %c0_1 = arith.constant 0 : index
    %3 = vector.load %arg6[%c0, %c0_1] : memref<8x512xf32, #tpu.memory_space<vmem>>, vector<8x512xf32>
    %c0_2 = arith.constant 0 : index
    %c0_3 = arith.constant 0 : index
    %4 = vector.load %arg2[%c0_2, %c0_3] : memref<8x256xf32, #tpu.memory_space<vmem>>, vector<8x256xf32>
    %5 = arith.truncf %4 : vector<8x256xf32> to vector<8x256xbf16>
    %c0_4 = arith.constant 0 : index
    %c0_5 = arith.constant 0 : index
    %6 = vector.load %arg3[%c0_4, %c0_5] : memref<256x512xbf16, #tpu.memory_space<vmem>>, vector<256x512xbf16>
    %cst = arith.constant dense<0.000000e+00> : vector<8x512xf32>
    %7 = tpu.matmul %5, %6, %cst {dimension_numbers = #tpu.dot_dimension_numbers<[1], [0], [0], [1], [0, 0, 1, 1], [], []>} : vector<8x256xbf16>, vector<256x512xbf16>, vector<8x512xf32> -> vector<8x512xf32>
    %8 = arith.addf %3, %7 : vector<8x512xf32>
    %c0_6 = arith.constant 0 : index
    %c0_7 = arith.constant 0 : index
    %9 = vector.load %arg6[%c0_6, %c0_7] : memref<8x512xf32, #tpu.memory_space<vmem>>, vector<8x512xf32>
    tpu.vector_store %arg6[%c0_6, %c0_7], %8 {strides = array<i32>} : memref<8x512xf32, #tpu.memory_space<vmem>>, vector<8x512xf32>,
    %c0_i32_8 = arith.constant 0 : i32
    %10 = arith.cmpi eq, %arg1, %c0_i32_8 : i32
    %11 = arith.extui %10 : i1 to i32
    %c0_i32_9 = arith.constant 0 : i32
    %12 = arith.cmpi ne, %11, %c0_i32_9 : i32
    scf.if %12 {
      %c0_10 = arith.constant 0 : index
      %c0_11 = arith.constant 0 : index
      %13 = vector.load %arg6[%c0_10, %c0_11] : memref<8x512xf32, #tpu.memory_space<vmem>>, vector<8x512xf32>
      %c0_12 = arith.constant 0 : index
      %c0_13 = arith.constant 0 : index
      %14 = vector.load %arg4[%c0_12, %c0_13] : memref<1x512xf32, #tpu.memory_space<vmem>>, vector<1x512xf32>
      %15 = vector.broadcast %14 : vector<1x512xf32> to vector<8x512xf32>
      %16 = arith.mulf %13, %15 : vector<8x512xf32>
      %c0_14 = arith.constant 0 : index
      %c0_15 = arith.constant 0 : index
      %17 = vector.load %arg5[%c0_14, %c0_15] : memref<1x512xf32, #tpu.memory_space<vmem>>, vector<1x512xf32>
      %18 = vector.broadcast %17 : vector<1x512xf32> to vector<8x512xf32>
      %19 = arith.addf %16, %18 : vector<8x512xf32>
      %c0_16 = arith.constant 0 : index
      %c0_17 = arith.constant 0 : index
      %20 = vector.load %arg6[%c0_16, %c0_17] : memref<8x512xf32, #tpu.memory_space<vmem>>, vector<8x512xf32>
      tpu.vector_store %arg6[%c0_16, %c0_17], %19 {strides = array<i32>} : memref<8x512xf32, #tpu.memory_space<vmem>>, vector<8x512xf32>,
    } else {
    }
    return
  }
  func.func @transform_0(%arg0: i32, %arg1: i32) -> (i32, i32) {
    %c0_i32 = arith.constant 0 : i32
    return %arg0, %arg1 : i32, i32
  }
  func.func @transform_1(%arg0: i32, %arg1: i32) -> (i32, i32) {
    %c0_i32 = arith.constant 0 : i32
    %c0_i32_0 = arith.constant 0 : i32
    return %arg1, %c0_i32 : i32, i32
  }
  func.func @transform_2(%arg0: i32, %arg1: i32) -> (i32, i32) {
    %c0_i32 = arith.constant 0 : i32
    %c0_i32_0 = arith.constant 0 : i32
    %c0_i32_1 = arith.constant 0 : i32
    return %c0_i32, %c0_i32_0 : i32, i32
  }
  func.func @transform_3(%arg0: i32, %arg1: i32) -> (i32, i32) {
    %c0_i32 = arith.constant 0 : i32
    %c0_i32_0 = arith.constant 0 : i32
    %c0_i32_1 = arith.constant 0 : i32
    return %c0_i32, %c0_i32_0 : i32, i32
  }
  func.func @transform_4(%arg0: i32, %arg1: i32) -> (i32, i32) {
    %c0_i32 = arith.constant 0 : i32
    %c0_i32_0 = arith.constant 0 : i32
    return %arg0, %c0_i32 : i32, i32
  }
}

module attributes {stable_mosaic.version = 11 : i64} {
  func.func @_gemm_bn_res_pre_kernel(%arg0: i32, %arg1: i32, %arg2: memref<8x256xbf16, #tpu.memory_space<vmem>>, %arg3: memref<256x512xbf16, #tpu.memory_space<vmem>>, %arg4: memref<1x512xf32, #tpu.memory_space<vmem>>, %arg5: memref<1x512xf32, #tpu.memory_space<vmem>>, %arg6: memref<8x512xf32, #tpu.memory_space<vmem>>, %arg7: memref<8x512xf32, #tpu.memory_space<vmem>>, %arg8: memref<8x512xf32, #tpu.memory_space<vmem>>) attributes {dimension_semantics = [#tpu.dimension_semantics<parallel>, #tpu.dimension_semantics<arbitrary>], iteration_bounds = array<i64: 1, 18>, scalar_prefetch = 0 : i64, scratch_operands = 0 : i64, tpu.core_type = #tpu.core_type<tc>, window_params = [{transform_indices = @transform_0, window_bounds = array<i64: 8, 256>}, {transform_indices = @transform_1, window_bounds = array<i64: 256, 512>}, {pipeline_mode = #tpu.pipeline_mode<synchronous>, transform_indices = @transform_2, window_bounds = array<i64: 1, 512>}, {pipeline_mode = #tpu.pipeline_mode<synchronous>, transform_indices = @transform_3, window_bounds = array<i64: 1, 512>}, {transform_indices = @transform_4, window_bounds = array<i64: 8, 512>}, {transform_indices = @transform_5, window_bounds = array<i64: 8, 512>}, {transform_indices = @transform_6, window_bounds = array<i64: 8, 512>}]} {
    %c0_i32 = arith.constant 0 : i32
    %0 = arith.cmpi eq, %arg1, %c0_i32 : i32
    %1 = arith.extui %0 : i1 to i32
    %c0_i32_0 = arith.constant 0 : i32
    %2 = arith.cmpi ne, %1, %c0_i32_0 : i32
    scf.if %2 {
      %cst_9 = arith.constant 0.000000e+00 : f32
      %12 = vector.broadcast %cst_9 : f32 to vector<8x512xf32>
      %c0_10 = arith.constant 0 : index
      %c0_11 = arith.constant 0 : index
      %13 = vector.load %arg8[%c0_10, %c0_11] : memref<8x512xf32, #tpu.memory_space<vmem>>, vector<8x512xf32>
      tpu.vector_store %arg8[%c0_10, %c0_11], %12 {strides = array<i32>} : memref<8x512xf32, #tpu.memory_space<vmem>>, vector<8x512xf32>,
    } else {
    }
    %c0 = arith.constant 0 : index
    %c0_1 = arith.constant 0 : index
    %3 = vector.load %arg8[%c0, %c0_1] : memref<8x512xf32, #tpu.memory_space<vmem>>, vector<8x512xf32>
    %c0_2 = arith.constant 0 : index
    %c0_3 = arith.constant 0 : index
    %4 = vector.load %arg2[%c0_2, %c0_3] : memref<8x256xbf16, #tpu.memory_space<vmem>>, vector<8x256xbf16>
    %c0_4 = arith.constant 0 : index
    %c0_5 = arith.constant 0 : index
    %5 = vector.load %arg3[%c0_4, %c0_5] : memref<256x512xbf16, #tpu.memory_space<vmem>>, vector<256x512xbf16>
    %cst = arith.constant dense<0.000000e+00> : vector<8x512xf32>
    %6 = tpu.matmul %4, %5, %cst {dimension_numbers = #tpu.dot_dimension_numbers<[1], [0], [0], [1], [0, 0, 1, 1], [], []>} : vector<8x256xbf16>, vector<256x512xbf16>, vector<8x512xf32> -> vector<8x512xf32>
    %7 = arith.addf %3, %6 : vector<8x512xf32>
    %c0_6 = arith.constant 0 : index
    %c0_7 = arith.constant 0 : index
    %8 = vector.load %arg8[%c0_6, %c0_7] : memref<8x512xf32, #tpu.memory_space<vmem>>, vector<8x512xf32>
    tpu.vector_store %arg8[%c0_6, %c0_7], %7 {strides = array<i32>} : memref<8x512xf32, #tpu.memory_space<vmem>>, vector<8x512xf32>,
    %c17_i32 = arith.constant 17 : i32
    %9 = arith.cmpi eq, %arg1, %c17_i32 : i32
    %10 = arith.extui %9 : i1 to i32
    %c0_i32_8 = arith.constant 0 : i32
    %11 = arith.cmpi ne, %10, %c0_i32_8 : i32
    scf.if %11 {
      %c0_9 = arith.constant 0 : index
      %c0_10 = arith.constant 0 : index
      %12 = vector.load %arg8[%c0_9, %c0_10] : memref<8x512xf32, #tpu.memory_space<vmem>>, vector<8x512xf32>
      %c0_11 = arith.constant 0 : index
      %c0_12 = arith.constant 0 : index
      %13 = vector.load %arg4[%c0_11, %c0_12] : memref<1x512xf32, #tpu.memory_space<vmem>>, vector<1x512xf32>
      %14 = vector.broadcast %13 : vector<1x512xf32> to vector<8x512xf32>
      %15 = arith.mulf %12, %14 : vector<8x512xf32>
      %c0_13 = arith.constant 0 : index
      %c0_14 = arith.constant 0 : index
      %16 = vector.load %arg5[%c0_13, %c0_14] : memref<1x512xf32, #tpu.memory_space<vmem>>, vector<1x512xf32>
      %17 = vector.broadcast %16 : vector<1x512xf32> to vector<8x512xf32>
      %18 = arith.addf %15, %17 : vector<8x512xf32>
      %c0_15 = arith.constant 0 : index
      %c0_16 = arith.constant 0 : index
      %19 = vector.load %arg6[%c0_15, %c0_16] : memref<8x512xf32, #tpu.memory_space<vmem>>, vector<8x512xf32>
      %20 = arith.addf %18, %19 : vector<8x512xf32>
      %c0_17 = arith.constant 0 : index
      %c0_18 = arith.constant 0 : index
      %21 = vector.load %arg8[%c0_17, %c0_18] : memref<8x512xf32, #tpu.memory_space<vmem>>, vector<8x512xf32>
      tpu.vector_store %arg8[%c0_17, %c0_18], %20 {strides = array<i32>} : memref<8x512xf32, #tpu.memory_space<vmem>>, vector<8x512xf32>,
      %cst_19 = arith.constant 0.000000e+00 : f32
      %22 = vector.broadcast %cst_19 : f32 to vector<8x512xf32>
      %23 = arith.cmpf oge, %20, %22 : vector<8x512xf32>
      %cst_20 = arith.constant 0.00999999977 : f32
      %24 = vector.broadcast %cst_20 : f32 to vector<8x512xf32>
      %25 = arith.mulf %24, %20 : vector<8x512xf32>
      %26 = arith.select %23, %20, %25 : vector<8x512xi1>, vector<8x512xf32>
      %c0_21 = arith.constant 0 : index
      %c0_22 = arith.constant 0 : index
      %27 = vector.load %arg7[%c0_21, %c0_22] : memref<8x512xf32, #tpu.memory_space<vmem>>, vector<8x512xf32>
      tpu.vector_store %arg7[%c0_21, %c0_22], %26 {strides = array<i32>} : memref<8x512xf32, #tpu.memory_space<vmem>>, vector<8x512xf32>,
    } else {
    }
    return
  }
  func.func @transform_0(%arg0: i32, %arg1: i32) -> (i32, i32) {
    %c0_i32 = arith.constant 0 : i32
    return %arg0, %arg1 : i32, i32
  }
  func.func @transform_1(%arg0: i32, %arg1: i32) -> (i32, i32) {
    %c0_i32 = arith.constant 0 : i32
    %c0_i32_0 = arith.constant 0 : i32
    return %arg1, %c0_i32 : i32, i32
  }
  func.func @transform_2(%arg0: i32, %arg1: i32) -> (i32, i32) {
    %c0_i32 = arith.constant 0 : i32
    %c0_i32_0 = arith.constant 0 : i32
    %c0_i32_1 = arith.constant 0 : i32
    return %c0_i32, %c0_i32_0 : i32, i32
  }
  func.func @transform_3(%arg0: i32, %arg1: i32) -> (i32, i32) {
    %c0_i32 = arith.constant 0 : i32
    %c0_i32_0 = arith.constant 0 : i32
    %c0_i32_1 = arith.constant 0 : i32
    return %c0_i32, %c0_i32_0 : i32, i32
  }
  func.func @transform_4(%arg0: i32, %arg1: i32) -> (i32, i32) {
    %c0_i32 = arith.constant 0 : i32
    %c0_i32_0 = arith.constant 0 : i32
    return %arg0, %c0_i32 : i32, i32
  }
  func.func @transform_5(%arg0: i32, %arg1: i32) -> (i32, i32) {
    %c0_i32 = arith.constant 0 : i32
    %c0_i32_0 = arith.constant 0 : i32
    return %arg0, %c0_i32 : i32, i32
  }
  func.func @transform_6(%arg0: i32, %arg1: i32) -> (i32, i32) {
    %c0_i32 = arith.constant 0 : i32
    %c0_i32_0 = arith.constant 0 : i32
    return %arg0, %c0_i32 : i32, i32
  }
}

</mosaic_0001>

<llo_original>
// kernel: _lambda_.14
$region0: #{_lambda_.14}
  #allocation0 [shape = 'u32[]', space=smem, size = 0x4, offset = 0x4, fixed_abs, tag = 'smem constant byte address 0x4 - core index']
  #allocation1 [shape = 'u32[144,128]{1,0:T(1,128)}', space=vmem, size = 0x12000, scoped, tag = 'internal scratch']
  %s0 = inlined_call_operand.vmem [shape: bf16[512,256], index: 0, kind: input, shape index: {}]
  %s1 = inlined_call_operand.vmem [shape: bf16[256,128], index: 1, kind: input, shape index: {}]
  %s2 = inlined_call_operand.vmem [shape: f32[1,128], index: 2, kind: input, shape index: {}]
  %s3 = inlined_call_operand.vmem [shape: f32[1,128], index: 3, kind: input, shape index: {}]
  %s4 = inlined_call_operand.vmem [shape: f32[512,128], index: 4, kind: output, shape index: {}]
  %s5 = sld [smem:[#allocation0]]
  $region57: #{_lambda_.14} parent=0
    _
  %s7 = ssub.s32 1, %s5
  %s8 = scalar_select 0, %s7, %s5
  loop: start=0, step=1, limit=4
  $region2: #{_lambda_.14} parent=0 // loop_pre_header
    _
  $region3: #{_lambda_.14} parent=0 // loop_header
    %s10 = sphi 0, %s14
    %p11 = scmp.ge.s32.totalorder %s10, 4
    %s17 = sphi 0, %s29
    %s18 = sphi 0, %s25
    %s19 = sphi 0, %s17
    %s20 = sphi 0, %s18
    %s21 = sphi 0, %s19
    %s22 = sphi 0, %s20
    %s34 = sphi 0, %s36
    %s37 = sphi 0, %s34
    %s38 = sphi 0, %s37
    %s54 = sphi 0, %s38
    %s60 = sphi 0, %s62
    %s63 = sphi 0, %s60
    %s64 = sphi 0, %s63
    %s80 = sphi 0, %s64
    %s84 = sphi 0, %s84
    %s86 = sphi 0, %s84
    %s87 = sphi 0, %s86
    %s101 = sphi 0, %s87
    %s105 = sphi 0, %s105
    %s107 = sphi 0, %s105
    %s108 = sphi 0, %s107
    %s122 = sphi 0, %s108
    %s128 = sphi 0, %s130
    %s131 = sphi 0, %s128
    %s132 = sphi 0, %s131
    %s148 = sphi 0, %s132
  $region4: #{_lambda_.14} parent=0 // loop_header_branch
    %13 = sbr.rel (%p11) target = $region8
  $region5: #{_lambda_.14} parent=0 // loop_body
    %s15 = ssub.s32 %s10, 1
    %s16 = ssub.s32 %s10, 2
    %s23 = sadd.s32 1, %s18
    %p24 = scmp.ge.s32.totalorder %s23, 1
    %s25 = scalar_select %p24, 0, %s23
    %s26 = sadd.s32 1, %s17
    %s27 = scalar_select %p24, %s26, %s17
    %p28 = scmp.ge.s32.totalorder %s27, 2
    %s29 = scalar_select %p28, 0, %s27
    %s30 = ssub.s32 %s17, %s29
    %s31 = ssub.s32 %s18, %s25
    %s32 = sor.u32 %s30, %s31
    %p33 = scmp.eq.s32.totalorder %s32, 0
    %s35 = sadd.s32 %s34, 1
    %s36 = scalar_select %p33, %s34, %s35
    %p39 = pneg %p33
    %p40 = scmp.eq.s32.totalorder %s10, 1
    %p41 = por %p39, %p40
    %p42 = scmp.ne.s32.totalorder %s34, %s37
    %p43 = scmp.eq.s32.totalorder %s10, 0
    %p44 = por %p42, %p43
    %p45 = scmp.ne.s32.totalorder %s34, %s37
    %p46 = scmp.eq.s32.totalorder %s15, 1
    %p47 = por %p45, %p46
    %p48 = scmp.ne.s32.totalorder %s37, %s38
    %p49 = scmp.eq.s32.totalorder %s15, 0
    %p50 = por %p48, %p49
    %p51 = scmp.ne.s32.totalorder %s37, %s38
    %p52 = scmp.eq.s32.totalorder %s16, 1
    %p53 = por %p51, %p52
    %p55 = scmp.ne.s32.totalorder %s38, %s54
    %p56 = scmp.eq.s32.totalorder %s16, 0
    %p57 = por %p55, %p56
    %s58 = ssub.s32 %s18, %s25
    %p59 = scmp.eq.s32.totalorder %s58, 0
    %s61 = sadd.s32 %s60, 1
    %s62 = scalar_select %p59, %s60, %s61
    %p65 = pneg %p59
    %p66 = scmp.eq.s32.totalorder %s10, 1
    %p67 = por %p65, %p66
    %p68 = scmp.ne.s32.totalorder %s60, %s63
    %p69 = scmp.eq.s32.totalorder %s10, 0
    %p70 = por %p68, %p69
    %p71 = scmp.ne.s32.totalorder %s60, %s63
    %p72 = scmp.eq.s32.totalorder %s15, 1
    %p73 = por %p71, %p72
    %p74 = scmp.ne.s32.totalorder %s63, %s64
    %p75 = scmp.eq.s32.totalorder %s15, 0
    %p76 = por %p74, %p75
    %p77 = scmp.ne.s32.totalorder %s63, %s64
    %p78 = scmp.eq.s32.totalorder %s16, 1
    %p79 = por %p77, %p78
    %p81 = scmp.ne.s32.totalorder %s64, %s80
    %p82 = scmp.eq.s32.totalorder %s16, 0
    %p83 = por %p81, %p82
    %s85 = sadd.s32 %s84, 1
    %p88 = scmp.eq.s32.totalorder %s10, 1
    %p89 = scmp.ne.s32.totalorder %s84, %s86
    %p90 = scmp.eq.s32.totalorder %s10, 0
    %p91 = por %p89, %p90
    %p92 = scmp.ne.s32.totalorder %s84, %s86
    %p93 = scmp.eq.s32.totalorder %s15, 1
    %p94 = por %p92, %p93
    %p95 = scmp.ne.s32.totalorder %s86, %s87
    %p96 = scmp.eq.s32.totalorder %s15, 0
    %p97 = por %p95, %p96
    %p98 = scmp.ne.s32.totalorder %s86, %s87
    %p99 = scmp.eq.s32.totalorder %s16, 1
    %p100 = por %p98, %p99
    %p102 = scmp.ne.s32.totalorder %s87, %s101
    %p103 = scmp.eq.s32.totalorder %s16, 0
    %p104 = por %p102, %p103
    %s106 = sadd.s32 %s105, 1
    %p109 = scmp.eq.s32.totalorder %s10, 1
    %p110 = scmp.ne.s32.totalorder %s105, %s107
    %p111 = scmp.eq.s32.totalorder %s10, 0
    %p112 = por %p110, %p111
    %p113 = scmp.ne.s32.totalorder %s105, %s107
    %p114 = scmp.eq.s32.totalorder %s15, 1
    %p115 = por %p113, %p114
    %p116 = scmp.ne.s32.totalorder %s107, %s108
    %p117 = scmp.eq.s32.totalorder %s15, 0
    %p118 = por %p116, %p117
    %p119 = scmp.ne.s32.totalorder %s107, %s108
    %p120 = scmp.eq.s32.totalorder %s16, 1
    %p121 = por %p119, %p120
    %p123 = scmp.ne.s32.totalorder %s108, %s122
    %p124 = scmp.eq.s32.totalorder %s16, 0
    %p125 = por %p123, %p124
    %s126 = ssub.s32 %s17, %s29
    %p127 = scmp.eq.s32.totalorder %s126, 0
    %s129 = sadd.s32 %s128, 1
    %s130 = scalar_select %p127, %s128, %s129
    %p133 = pneg %p127
    %p134 = scmp.eq.s32.totalorder %s10, 1
    %p135 = por %p133, %p134
    %p136 = scmp.ne.s32.totalorder %s128, %s131
    %p137 = scmp.eq.s32.totalorder %s10, 0
    %p138 = por %p136, %p137
    %p139 = scmp.ne.s32.totalorder %s128, %s131
    %p140 = scmp.eq.s32.totalorder %s15, 1
    %p141 = por %p139, %p140
    %p142 = scmp.ne.s32.totalorder %s131, %s132
    %p143 = scmp.eq.s32.totalorder %s15, 0
    %p144 = por %p142, %p143
    %p145 = scmp.ne.s32.totalorder %s131, %s132
    %p146 = scmp.eq.s32.totalorder %s16, 1
    %p147 = por %p145, %p146
    %p149 = scmp.ne.s32.totalorder %s132, %s148
    %p150 = scmp.eq.s32.totalorder %s16, 0
    %p151 = por %p149, %p150
    %p152 = scmp.le.s32.totalorder 1, %s10
    %p153 = scmp.lt.s32.totalorder %s10, 3
    %p154 = pnand %p152, %p153
    %p155 = pneg %p154
    // Predicated region
    $region9: #{_lambda_.14} parent=5 // pred_check
      _
    $region10: #{_lambda_.14} parent=5 // pred_check_branch
      %157 = sbr.rel (%p154) target = $region12
    $region11: #{_lambda_.14} parent=5 // pred_region
      %s158 = ssub.s32 %s10, 1
      // Predicated region
      $region13: #{_lambda_.14} parent=11 // pred_check
        %p159 = pneg %p76
      $region14: #{_lambda_.14} parent=11 // pred_check_branch
        %161 = sbr.rel (%p159) target = $region16
      $region15: #{_lambda_.14} parent=11 // pred_region
        %s162 = smul.u32 32, %s20
        %p163 = scmp.lt.s32.totalorder %s162, 31
        %s164 = scalar_select %p163, %s162, 31
        %s165 = smul.addr %s164, 4
        %s166 = scalar_lea.vmem %s1, %s165
        %s167 = smul.u32 32, %s20
      $region16: #{_lambda_.14} parent=11 // pred_fallthru
        _
      // Predicated region
      $region17: #{_lambda_.14} parent=11 // pred_check
        %p168 = pneg %p97
      $region18: #{_lambda_.14} parent=11 // pred_check_branch
        %170 = sbr.rel (%p168) target = $region20
      $region19: #{_lambda_.14} parent=11 // pred_region
        _
      $region20: #{_lambda_.14} parent=11 // pred_fallthru
        _
      // Predicated region
      $region21: #{_lambda_.14} parent=11 // pred_check
        %p171 = pneg %p118
      $region22: #{_lambda_.14} parent=11 // pred_check_branch
        %173 = sbr.rel (%p171) target = $region24
      $region23: #{_lambda_.14} parent=11 // pred_region
        _
      $region24: #{_lambda_.14} parent=11 // pred_fallthru
        _
    $region12: #{_lambda_.14} parent=5 // pred_fallthru
      _
    %p174 = scmp.lt.s32.totalorder %s10, 2
    // Predicated region
    $region25: #{_lambda_.14} parent=5 // pred_check
      %p175 = pneg %p174
    $region26: #{_lambda_.14} parent=5 // pred_check_branch
      %177 = sbr.rel (%p175) target = $region28
    $region27: #{_lambda_.14} parent=5 // pred_region
      // Predicated region
      $region29: #{_lambda_.14} parent=27 // pred_check
        %p178 = pneg %p44
      $region30: #{_lambda_.14} parent=27 // pred_check_branch
        %180 = sbr.rel (%p178) target = $region32
      $region31: #{_lambda_.14} parent=27 // pred_region
        %s181 = smul.u32 32, %s17
        %s182 = smul.u32 2, %s18
        %p183 = scmp.lt.s32.totalorder %s181, 63
        %s184 = scalar_select %p183, %s181, 63
        %p185 = scmp.lt.s32.totalorder %s182, 1
        %s186 = scalar_select %p185, %s182, 1
        %s187 = smul.addr %s184, 2
        %s188 = sadd.s32 %s186, %s187
        %s189 = smul.addr %s188, 4
        %s190 = scalar_lea.vmem %s0, %s189
        %s191 = smul.u32 32, %s17
        %s192 = smul.u32 2, %s18
      $region32: #{_lambda_.14} parent=27 // pred_fallthru
        _
    $region28: #{_lambda_.14} parent=5 // pred_fallthru
      _
    %p193 = scmp.le.s32.totalorder 1, %s10
    %p194 = scmp.lt.s32.totalorder %s10, 3
    %p195 = pnand %p193, %p194
    %p196 = pneg %p195
    // Predicated region
    $region33: #{_lambda_.14} parent=5 // pred_check
      _
    $region34: #{_lambda_.14} parent=5 // pred_check_branch
      %198 = sbr.rel (%p195) target = $region36
    $region35: #{_lambda_.14} parent=5 // pred_region
      %s199 = ssub.s32 %s10, 1
      %s200 = smul.u32 32, %s19
      %s201 = smul.u32 2, %s20
      %p202 = scmp.lt.s32.totalorder %s200, 63
      %s203 = scalar_select %p202, %s200, 63
      %p204 = scmp.lt.s32.totalorder %s201, 1
      %s205 = scalar_select %p204, %s201, 1
      %s206 = smul.addr %s203, 2
      %s207 = sadd.s32 %s205, %s206
      %s208 = smul.addr %s207, 4
      %s209 = scalar_lea.vmem %s0, %s208
      %p210 = pneg %p50
      %p211 = pneg %p47
      %s212 = smul.u32 32, %s20
      %p213 = scmp.lt.s32.totalorder %s212, 31
      %s214 = scalar_select %p213, %s212, 31
      %s215 = smul.addr %s214, 4
      %s216 = scalar_lea.vmem %s1, %s215
      %p217 = pneg %p76
      %p218 = pneg %p73
      %p219 = pneg %p97
      %p220 = pneg %p94
      %p221 = pneg %p118
      %p222 = pneg %p115
      %p223 = pneg %p144
      %p224 = pneg %p141
      %s225 = smul.u32 32, %s19
      %p226 = scmp.lt.s32.totalorder %s225, 63
      %s227 = scalar_select %p226, %s225, 63
      %s228 = smul.addr %s227, 8
      %s229 = scalar_lea.vmem %s4, %s228
      %s230 = smul.u32 32, %s19
      %s231 = smul.u32 2, %s20
      %p232 = scmp.lt.s32.totalorder %s230, 63
      %s233 = scalar_select %p232, %s230, 63
      %p234 = scmp.lt.s32.totalorder %s231, 1
      %s235 = scalar_select %p234, %s231, 1
      %s236 = smul.addr %s233, 2
      %s237 = sadd.s32 %s235, %s236
      %s238 = smul.addr %s237, 4
      %s239 = scalar_lea.vmem %s0, %s238
      %s240 = smul.u32 32, %s19
      %s241 = smul.u32 2, %s20
      %s242 = smul.u32 32, %s20
      %p243 = scmp.lt.s32.totalorder %s242, 31
      %s244 = scalar_select %p243, %s242, 31
      %s245 = smul.addr %s244, 4
      %s246 = scalar_lea.vmem %s1, %s245
      %s247 = smul.u32 32, %s20
      %s248 = smul.u32 32, %s19
      %p249 = scmp.lt.s32.totalorder %s248, 63
      %s250 = scalar_select %p249, %s248, 63
      %s251 = smul.addr %s250, 8
      %s252 = scalar_lea.vmem %s4, %s251
      %s253 = smul.u32 32, %s19
      %p255 = scmp.eq.s32.totalorder %s20, 0
      // Predicated region
      $region37: #{_lambda_.14} parent=35 // pred_check
        %p256 = pneg %p255
      $region38: #{_lambda_.14} parent=35 // pred_check_branch
        %258 = sbr.rel (%p256) target = $region40
      $region39: #{_lambda_.14} parent=35 // pred_region
        %259 = vst [vmem:[%s252] sm:$0xff] 0.0
        %260 = vst [vmem:[%s252 + $0x8] sm:$0xff] 0.0
        %261 = vst [vmem:[%s252 + $0x10] sm:$0xff] 0.0
        %262 = vst [vmem:[%s252 + $0x18] sm:$0xff] 0.0
        %263 = vst [vmem:[%s252 + $0x20] sm:$0xff] 0.0
        %264 = vst [vmem:[%s252 + $0x28] sm:$0xff] 0.0
        %265 = vst [vmem:[%s252 + $0x30] sm:$0xff] 0.0
        %266 = vst [vmem:[%s252 + $0x38] sm:$0xff] 0.0
        %267 = vst [vmem:[%s252 + $0x40] sm:$0xff] 0.0
        %268 = vst [vmem:[%s252 + $0x48] sm:$0xff] 0.0
        %269 = vst [vmem:[%s252 + $0x50] sm:$0xff] 0.0
        %270 = vst [vmem:[%s252 + $0x58] sm:$0xff] 0.0
        %271 = vst [vmem:[%s252 + $0x60] sm:$0xff] 0.0
        %272 = vst [vmem:[%s252 + $0x68] sm:$0xff] 0.0
        %273 = vst [vmem:[%s252 + $0x70] sm:$0xff] 0.0
        %274 = vst [vmem:[%s252 + $0x78] sm:$0xff] 0.0
        %275 = vst [vmem:[%s252 + $0x80] sm:$0xff] 0.0
        %276 = vst [vmem:[%s252 + $0x88] sm:$0xff] 0.0
        %277 = vst [vmem:[%s252 + $0x90] sm:$0xff] 0.0
        %278 = vst [vmem:[%s252 + $0x98] sm:$0xff] 0.0
        %279 = vst [vmem:[%s252 + $0xa0] sm:$0xff] 0.0
        %280 = vst [vmem:[%s252 + $0xa8] sm:$0xff] 0.0
        %281 = vst [vmem:[%s252 + $0xb0] sm:$0xff] 0.0
        %282 = vst [vmem:[%s252 + $0xb8] sm:$0xff] 0.0
        %283 = vst [vmem:[%s252 + $0xc0] sm:$0xff] 0.0
        %284 = vst [vmem:[%s252 + $0xc8] sm:$0xff] 0.0
        %285 = vst [vmem:[%s252 + $0xd0] sm:$0xff] 0.0
        %286 = vst [vmem:[%s252 + $0xd8] sm:$0xff] 0.0
        %287 = vst [vmem:[%s252 + $0xe0] sm:$0xff] 0.0
        %288 = vst [vmem:[%s252 + $0xe8] sm:$0xff] 0.0
        %289 = vst [vmem:[%s252 + $0xf0] sm:$0xff] 0.0
        %290 = vst [vmem:[%s252 + $0xf8] sm:$0xff] 0.0
      $region40: #{_lambda_.14} parent=35 // pred_fallthru
        _
      %v291 = vld [vmem:[%s252] sm:$0xff]
      %v292 = vld [vmem:[%s252 + $0x8] sm:$0xff]
      %v293 = vld [vmem:[%s252 + $0x10] sm:$0xff]
      %v294 = vld [vmem:[%s252 + $0x18] sm:$0xff]
      %v295 = vld [vmem:[%s252 + $0x20] sm:$0xff]
      %v296 = vld [vmem:[%s252 + $0x28] sm:$0xff]
      %v297 = vld [vmem:[%s252 + $0x30] sm:$0xff]
      %v298 = vld [vmem:[%s252 + $0x38] sm:$0xff]
      %v299 = vld [vmem:[%s252 + $0x40] sm:$0xff]
      %v300 = vld [vmem:[%s252 + $0x48] sm:$0xff]
      %v301 = vld [vmem:[%s252 + $0x50] sm:$0xff]
      %v302 = vld [vmem:[%s252 + $0x58] sm:$0xff]
      %v303 = vld [vmem:[%s252 + $0x60] sm:$0xff]
      %v304 = vld [vmem:[%s252 + $0x68] sm:$0xff]
      %v305 = vld [vmem:[%s252 + $0x70] sm:$0xff]
      %v306 = vld [vmem:[%s252 + $0x78] sm:$0xff]
      %v307 = vld [vmem:[%s252 + $0x80] sm:$0xff]
      %v308 = vld [vmem:[%s252 + $0x88] sm:$0xff]
      %v309 = vld [vmem:[%s252 + $0x90] sm:$0xff]
      %v310 = vld [vmem:[%s252 + $0x98] sm:$0xff]
      %v311 = vld [vmem:[%s252 + $0xa0] sm:$0xff]
      %v312 = vld [vmem:[%s252 + $0xa8] sm:$0xff]
      %v313 = vld [vmem:[%s252 + $0xb0] sm:$0xff]
      %v314 = vld [vmem:[%s252 + $0xb8] sm:$0xff]
      %v315 = vld [vmem:[%s252 + $0xc0] sm:$0xff]
      %v316 = vld [vmem:[%s252 + $0xc8] sm:$0xff]
      %v317 = vld [vmem:[%s252 + $0xd0] sm:$0xff]
      %v318 = vld [vmem:[%s252 + $0xd8] sm:$0xff]
      %v319 = vld [vmem:[%s252 + $0xe0] sm:$0xff]
      %v320 = vld [vmem:[%s252 + $0xe8] sm:$0xff]
      %v321 = vld [vmem:[%s252 + $0xf0] sm:$0xff]
      %v322 = vld [vmem:[%s252 + $0xf8] sm:$0xff]
      %v323 = vld [vmem:[%s239] sm:$0xff]
      %v324 = vld [vmem:[%s239 + $0x8] sm:$0xff]
      %v325 = vld [vmem:[%s239 + $0x10] sm:$0xff]
      %v326 = vld [vmem:[%s239 + $0x18] sm:$0xff]
      %v327 = vld [vmem:[%s239 + $0x20] sm:$0xff]
      %v328 = vld [vmem:[%s239 + $0x28] sm:$0xff]
      %v329 = vld [vmem:[%s239 + $0x30] sm:$0xff]
      %v330 = vld [vmem:[%s239 + $0x38] sm:$0xff]
      %v331 = vld [vmem:[%s239 + $0x40] sm:$0xff]
      %v332 = vld [vmem:[%s239 + $0x48] sm:$0xff]
      %v333 = vld [vmem:[%s239 + $0x50] sm:$0xff]
      %v334 = vld [vmem:[%s239 + $0x58] sm:$0xff]
      %v335 = vld [vmem:[%s239 + $0x60] sm:$0xff]
      %v336 = vld [vmem:[%s239 + $0x68] sm:$0xff]
      %v337 = vld [vmem:[%s239 + $0x70] sm:$0xff]
      %v338 = vld [vmem:[%s239 + $0x78] sm:$0xff]
      %v339 = vld [vmem:[%s239 + $0x80] sm:$0xff]
      %v340 = vld [vmem:[%s239 + $0x88] sm:$0xff]
      %v341 = vld [vmem:[%s239 + $0x90] sm:$0xff]
      %v342 = vld [vmem:[%s239 + $0x98] sm:$0xff]
      %v343 = vld [vmem:[%s239 + $0xa0] sm:$0xff]
      %v344 = vld [vmem:[%s239 + $0xa8] sm:$0xff]
      %v345 = vld [vmem:[%s239 + $0xb0] sm:$0xff]
      %v346 = vld [vmem:[%s239 + $0xb8] sm:$0xff]
      %v347 = vld [vmem:[%s239 + $0xc0] sm:$0xff]
      %v348 = vld [vmem:[%s239 + $0xc8] sm:$0xff]
      %v349 = vld [vmem:[%s239 + $0xd0] sm:$0xff]
      %v350 = vld [vmem:[%s239 + $0xd8] sm:$0xff]
      %v351 = vld [vmem:[%s239 + $0xe0] sm:$0xff]
      %v352 = vld [vmem:[%s239 + $0xe8] sm:$0xff]
      %v353 = vld [vmem:[%s239 + $0xf0] sm:$0xff]
      %v354 = vld [vmem:[%s239 + $0xf8] sm:$0xff]
      %v355 = vld [vmem:[%s246] sm:$0xf]
      %v356 = vld [vmem:[%s246 + $0x4] sm:$0xf]
      %v357 = vld [vmem:[%s246 + $0x8] sm:$0xf]
      %v358 = vld [vmem:[%s246 + $0xc] sm:$0xf]
      %v359 = vld [vmem:[%s246 + $0x10] sm:$0xf]
      %v360 = vld [vmem:[%s246 + $0x14] sm:$0xf]
      %v361 = vld [vmem:[%s246 + $0x18] sm:$0xf]
      %v362 = vld [vmem:[%s246 + $0x1c] sm:$0xf]
      %v363 = vld [vmem:[%s246 + $0x20] sm:$0xf]
      %v364 = vld [vmem:[%s246 + $0x24] sm:$0xf]
      %v365 = vld [vmem:[%s246 + $0x28] sm:$0xf]
      %v366 = vld [vmem:[%s246 + $0x2c] sm:$0xf]
      %v367 = vld [vmem:[%s246 + $0x30] sm:$0xf]
      %v368 = vld [vmem:[%s246 + $0x34] sm:$0xf]
      %v369 = vld [vmem:[%s246 + $0x38] sm:$0xf]
      %v370 = vld [vmem:[%s246 + $0x3c] sm:$0xf]
      %v371 = vld [vmem:[%s246 + $0x40] sm:$0xf]
      %v372 = vld [vmem:[%s246 + $0x44] sm:$0xf]
      %v373 = vld [vmem:[%s246 + $0x48] sm:$0xf]
      %v374 = vld [vmem:[%s246 + $0x4c] sm:$0xf]
      %v375 = vld [vmem:[%s246 + $0x50] sm:$0xf]
      %v376 = vld [vmem:[%s246 + $0x54] sm:$0xf]
      %v377 = vld [vmem:[%s246 + $0x58] sm:$0xf]
      %v378 = vld [vmem:[%s246 + $0x5c] sm:$0xf]
      %v379 = vld [vmem:[%s246 + $0x60] sm:$0xf]
      %v380 = vld [vmem:[%s246 + $0x64] sm:$0xf]
      %v381 = vld [vmem:[%s246 + $0x68] sm:$0xf]
      %v382 = vld [vmem:[%s246 + $0x6c] sm:$0xf]
      %v383 = vld [vmem:[%s246 + $0x70] sm:$0xf]
      %v384 = vld [vmem:[%s246 + $0x74] sm:$0xf]
      %v385 = vld [vmem:[%s246 + $0x78] sm:$0xf]
      %v386 = vld [vmem:[%s246 + $0x7c] sm:$0xf]
      %v419 = vunpack.c.l.b16 %v323
      %v420 = vunpack.c.h.b16 %v323
      %v421 = vunpack.c.l.b16 %v324
      %v422 = vunpack.c.h.b16 %v324
      %v423 = vunpack.c.l.b16 %v325
      %v424 = vunpack.c.h.b16 %v325
      %v425 = vunpack.c.l.b16 %v326
      %v426 = vunpack.c.h.b16 %v326
      %v427 = vunpack.c.l.b16 %v327
      %v428 = vunpack.c.h.b16 %v327
      %v429 = vunpack.c.l.b16 %v328
      %v430 = vunpack.c.h.b16 %v328
      %v431 = vunpack.c.l.b16 %v329
      %v432 = vunpack.c.h.b16 %v329
      %v433 = vunpack.c.l.b16 %v330
      %v434 = vunpack.c.h.b16 %v330
      %v435 = vunpack.c.l.b16 %v331
      %v436 = vunpack.c.h.b16 %v331
      %v437 = vunpack.c.l.b16 %v332
      %v438 = vunpack.c.h.b16 %v332
      %v439 = vunpack.c.l.b16 %v333
      %v440 = vunpack.c.h.b16 %v333
      %v441 = vunpack.c.l.b16 %v334
      %v442 = vunpack.c.h.b16 %v334
      %v443 = vunpack.c.l.b16 %v335
      %v444 = vunpack.c.h.b16 %v335
      %v445 = vunpack.c.l.b16 %v336
      %v446 = vunpack.c.h.b16 %v336
      %v447 = vunpack.c.l.b16 %v337
      %v448 = vunpack.c.h.b16 %v337
      %v449 = vunpack.c.l.b16 %v338
      %v450 = vunpack.c.h.b16 %v338
      %v451 = vunpack.c.l.b16 %v339
      %v452 = vunpack.c.h.b16 %v339
      %v453 = vunpack.c.l.b16 %v340
      %v454 = vunpack.c.h.b16 %v340
      %v455 = vunpack.c.l.b16 %v341
      %v456 = vunpack.c.h.b16 %v341
      %v457 = vunpack.c.l.b16 %v342
      %v458 = vunpack.c.h.b16 %v342
      %v459 = vunpack.c.l.b16 %v343
      %v460 = vunpack.c.h.b16 %v343
      %v461 = vunpack.c.l.b16 %v344
      %v462 = vunpack.c.h.b16 %v344
      %v463 = vunpack.c.l.b16 %v345
      %v464 = vunpack.c.h.b16 %v345
      %v465 = vunpack.c.l.b16 %v346
      %v466 = vunpack.c.h.b16 %v346
      %v467 = vunpack.c.l.b16 %v347
      %v468 = vunpack.c.h.b16 %v347
      %v469 = vunpack.c.l.b16 %v348
      %v470 = vunpack.c.h.b16 %v348
      %v471 = vunpack.c.l.b16 %v349
      %v472 = vunpack.c.h.b16 %v349
      %v473 = vunpack.c.l.b16 %v350
      %v474 = vunpack.c.h.b16 %v350
      %v475 = vunpack.c.l.b16 %v351
      %v476 = vunpack.c.h.b16 %v351
      %v477 = vunpack.c.l.b16 %v352
      %v478 = vunpack.c.h.b16 %v352
      %v479 = vunpack.c.l.b16 %v353
      %v480 = vunpack.c.h.b16 %v353
      %v481 = vunpack.c.l.b16 %v354
      %v482 = vunpack.c.h.b16 %v354
      %v483 = vpack.c.b16 %v421, %v419
      %v484 = vpack.c.b16 %v422, %v420
      %v485 = vpack.c.b16 %v425, %v423
      %v486 = vpack.c.b16 %v426, %v424
      %v487 = vpack.c.b16 %v429, %v427
      %v488 = vpack.c.b16 %v430, %v428
      %v489 = vpack.c.b16 %v433, %v431
      %v490 = vpack.c.b16 %v434, %v432
      %v491 = vpack.c.b16 %v437, %v435
      %v492 = vpack.c.b16 %v438, %v436
      %v493 = vpack.c.b16 %v441, %v439
      %v494 = vpack.c.b16 %v442, %v440
      %v495 = vpack.c.b16 %v445, %v443
      %v496 = vpack.c.b16 %v446, %v444
      %v497 = vpack.c.b16 %v449, %v447
      %v498 = vpack.c.b16 %v450, %v448
      %v499 = vpack.c.b16 %v453, %v451
      %v500 = vpack.c.b16 %v454, %v452
      %v501 = vpack.c.b16 %v457, %v455
      %v502 = vpack.c.b16 %v458, %v456
      %v503 = vpack.c.b16 %v461, %v459
      %v504 = vpack.c.b16 %v462, %v460
      %v505 = vpack.c.b16 %v465, %v463
      %v506 = vpack.c.b16 %v466, %v464
      %v507 = vpack.c.b16 %v469, %v467
      %v508 = vpack.c.b16 %v470, %v468
      %v509 = vpack.c.b16 %v473, %v471
      %v510 = vpack.c.b16 %v474, %v472
      %v511 = vpack.c.b16 %v477, %v475
      %v512 = vpack.c.b16 %v478, %v476
      %v513 = vpack.c.b16 %v481, %v479
      %v514 = vpack.c.b16 %v482, %v480
      %v579 = vunpack.c.l.b16 %v355
      %v580 = vunpack.c.l.b16 %v356
      %v581 = vunpack.c.l.b16 %v357
      %v582 = vunpack.c.l.b16 %v358
      %v583 = vunpack.c.l.b16 %v359
      %v584 = vunpack.c.l.b16 %v360
      %v585 = vunpack.c.l.b16 %v361
      %v586 = vunpack.c.l.b16 %v362
      %v587 = vunpack.c.l.b16 %v363
      %v588 = vunpack.c.l.b16 %v364
      %v589 = vunpack.c.l.b16 %v365
      %v590 = vunpack.c.l.b16 %v366
      %v591 = vunpack.c.l.b16 %v367
      %v592 = vunpack.c.l.b16 %v368
      %v593 = vunpack.c.l.b16 %v369
      %v594 = vunpack.c.l.b16 %v370
      %v595 = vunpack.c.l.b16 %v371
      %v596 = vunpack.c.l.b16 %v372
      %v597 = vunpack.c.l.b16 %v373
      %v598 = vunpack.c.l.b16 %v374
      %v599 = vunpack.c.l.b16 %v375
      %v600 = vunpack.c.l.b16 %v376
      %v601 = vunpack.c.l.b16 %v377
      %v602 = vunpack.c.l.b16 %v378
      %v603 = vunpack.c.l.b16 %v379
      %v604 = vunpack.c.l.b16 %v380
      %v605 = vunpack.c.l.b16 %v381
      %v606 = vunpack.c.l.b16 %v382
      %v607 = vunpack.c.l.b16 %v383
      %v608 = vunpack.c.l.b16 %v384
      %v609 = vunpack.c.l.b16 %v385
      %v610 = vunpack.c.l.b16 %v386
      %v611 = vpack.c.b16 %v580, %v579
      %v612 = vpack.c.b16 %v582, %v581
      %v613 = vpack.c.b16 %v584, %v583
      %v614 = vpack.c.b16 %v586, %v585
      %v615 = vpack.c.b16 %v588, %v587
      %v616 = vpack.c.b16 %v590, %v589
      %v617 = vpack.c.b16 %v592, %v591
      %v618 = vpack.c.b16 %v594, %v593
      %v619 = vpack.c.b16 %v596, %v595
      %v620 = vpack.c.b16 %v598, %v597
      %v621 = vpack.c.b16 %v600, %v599
      %v622 = vpack.c.b16 %v602, %v601
      %v623 = vpack.c.b16 %v604, %v603
      %v624 = vpack.c.b16 %v606, %v605
      %v625 = vpack.c.b16 %v608, %v607
      %v626 = vpack.c.b16 %v610, %v609
      %643 = vmatprep.subr.bf16.mxu0 0
      %644 = vmatpush1.bf16.msra.mxu0 %v611
      %645 = vmatprep.subr.bf16.mxu0 0
      %646 = vmatpush1.bf16.msra.mxu0 %v612
      %647 = vmatprep.subr.bf16.mxu0 0
      %648 = vmatpush1.bf16.msra.mxu0 %v613
      %649 = vmatprep.subr.bf16.mxu0 0
      %650 = vmatpush1.bf16.msra.mxu0 %v614
      %651 = vmatprep.subr.bf16.mxu0 0
      %652 = vmatpush1.bf16.msra.mxu0 %v615
      %653 = vmatprep.subr.bf16.mxu0 0
      %654 = vmatpush1.bf16.msra.mxu0 %v616
      %655 = vmatprep.subr.bf16.mxu0 0
      %656 = vmatpush1.bf16.msra.mxu0 %v617
      %657 = vmatprep.subr.bf16.mxu0 0
      %658 = vmatpush1.bf16.msra.mxu0 %v618
      %659 = vmatprep.subr.bf16.mxu0 0
      %660 = vmatpush1.bf16.msra.mxu0 %v619
      %661 = vmatprep.subr.bf16.mxu0 0
      %662 = vmatpush1.bf16.msra.mxu0 %v620
      %663 = vmatprep.subr.bf16.mxu0 0
      %664 = vmatpush1.bf16.msra.mxu0 %v621
      %665 = vmatprep.subr.bf16.mxu0 0
      %666 = vmatpush1.bf16.msra.mxu0 %v622
      %667 = vmatprep.subr.bf16.mxu0 0
      %668 = vmatpush1.bf16.msra.mxu0 %v623
      %669 = vmatprep.subr.bf16.mxu0 0
      %670 = vmatpush1.bf16.msra.mxu0 %v624
      %671 = vmatprep.subr.bf16.mxu0 0
      %672 = vmatpush1.bf16.msra.mxu0 %v625
      %673 = vmatprep.subr.bf16.mxu0 0
      %674 = vmatpush1.bf16.msra.mxu0 %v626
      %675 = vmatprep.mubr.bf16.mxu0 %v484
      %676 = vmatmul.mubr.bf16.gmra.mrb[0].mxu0 %v483
      %v677 = vpop.f32.mrb[0].mxu0
      %v678 = vadd.f32 0.0, %v677
      %v679 = vpop.f32.mrb[0].mxu0
      %v680 = vpop.f32.mrb[0].mxu0
      %v681 = vadd.f32 0.0, %v680
      %v682 = vpop.f32.mrb[0].mxu0
      %683 = vmatprep.mubr.bf16.mxu0 %v486
      %684 = vmatmul.mubr.bf16.gmra.mrb[0].mxu0 %v485
      %v685 = vpop.f32.mrb[0].mxu0
      %v686 = vadd.f32 0.0, %v685
      %v687 = vpop.f32.mrb[0].mxu0
      %v688 = vpop.f32.mrb[0].mxu0
      %v689 = vadd.f32 0.0, %v688
      %v690 = vpop.f32.mrb[0].mxu0
      %691 = vmatprep.mubr.bf16.mxu0 %v488
      %692 = vmatmul.mubr.bf16.gmra.mrb[0].mxu0 %v487
      %v693 = vpop.f32.mrb[0].mxu0
      %v694 = vadd.f32 0.0, %v693
      %v695 = vpop.f32.mrb[0].mxu0
      %v696 = vpop.f32.mrb[0].mxu0
      %v697 = vadd.f32 0.0, %v696
      %v698 = vpop.f32.mrb[0].mxu0
      %699 = vmatprep.mubr.bf16.mxu0 %v490
      %700 = vmatmul.mubr.bf16.gmra.mrb[0].mxu0 %v489
      %v701 = vpop.f32.mrb[0].mxu0
      %v702 = vadd.f32 0.0, %v701
      %v703 = vpop.f32.mrb[0].mxu0
      %v704 = vpop.f32.mrb[0].mxu0
      %v705 = vadd.f32 0.0, %v704
      %v706 = vpop.f32.mrb[0].mxu0
      %707 = vmatprep.mubr.bf16.mxu0 %v492
      %708 = vmatmul.mubr.bf16.gmra.mrb[0].mxu0 %v491
      %v709 = vpop.f32.mrb[0].mxu0
      %v710 = vadd.f32 0.0, %v709
      %v711 = vpop.f32.mrb[0].mxu0
      %v712 = vpop.f32.mrb[0].mxu0
      %v713 = vadd.f32 0.0, %v712
      %v714 = vpop.f32.mrb[0].mxu0
      %715 = vmatprep.mubr.bf16.mxu0 %v494
      %716 = vmatmul.mubr.bf16.gmra.mrb[0].mxu0 %v493
      %v717 = vpop.f32.mrb[0].mxu0
      %v718 = vadd.f32 0.0, %v717
      %v719 = vpop.f32.mrb[0].mxu0
      %v720 = vpop.f32.mrb[0].mxu0
      %v721 = vadd.f32 0.0, %v720
      %v722 = vpop.f32.mrb[0].mxu0
      %723 = vmatprep.mubr.bf16.mxu0 %v496
      %724 = vmatmul.mubr.bf16.gmra.mrb[0].mxu0 %v495
      %v725 = vpop.f32.mrb[0].mxu0
      %v726 = vadd.f32 0.0, %v725
      %v727 = vpop.f32.mrb[0].mxu0
      %v728 = vpop.f32.mrb[0].mxu0
      %v729 = vadd.f32 0.0, %v728
      %v730 = vpop.f32.mrb[0].mxu0
      %731 = vmatprep.mubr.bf16.mxu0 %v498
      %732 = vmatmul.mubr.bf16.gmra.mrb[0].mxu0 %v497
      %v733 = vpop.f32.mrb[0].mxu0
      %v734 = vadd.f32 0.0, %v733
      %v735 = vpop.f32.mrb[0].mxu0
      %v736 = vpop.f32.mrb[0].mxu0
      %v737 = vadd.f32 0.0, %v736
      %v738 = vpop.f32.mrb[0].mxu0
      %739 = vmatprep.mubr.bf16.mxu0 %v500
      %740 = vmatmul.mubr.bf16.gmra.mrb[0].mxu0 %v499
      %v741 = vpop.f32.mrb[0].mxu0
      %v742 = vadd.f32 0.0, %v741
      %v743 = vpop.f32.mrb[0].mxu0
      %v744 = vpop.f32.mrb[0].mxu0
      %v745 = vadd.f32 0.0, %v744
      %v746 = vpop.f32.mrb[0].mxu0
      %747 = vmatprep.mubr.bf16.mxu0 %v502
      %748 = vmatmul.mubr.bf16.gmra.mrb[0].mxu0 %v501
      %v749 = vpop.f32.mrb[0].mxu0
      %v750 = vadd.f32 0.0, %v749
      %v751 = vpop.f32.mrb[0].mxu0
      %v752 = vpop.f32.mrb[0].mxu0
      %v753 = vadd.f32 0.0, %v752
      %v754 = vpop.f32.mrb[0].mxu0
      %755 = vmatprep.mubr.bf16.mxu0 %v504
      %756 = vmatmul.mubr.bf16.gmra.mrb[0].mxu0 %v503
      %v757 = vpop.f32.mrb[0].mxu0
      %v758 = vadd.f32 0.0, %v757
      %v759 = vpop.f32.mrb[0].mxu0
      %v760 = vpop.f32.mrb[0].mxu0
      %v761 = vadd.f32 0.0, %v760
      %v762 = vpop.f32.mrb[0].mxu0
      %763 = vmatprep.mubr.bf16.mxu0 %v506
      %764 = vmatmul.mubr.bf16.gmra.mrb[0].mxu0 %v505
      %v765 = vpop.f32.mrb[0].mxu0
      %v766 = vadd.f32 0.0, %v765
      %v767 = vpop.f32.mrb[0].mxu0
      %v768 = vpop.f32.mrb[0].mxu0
      %v769 = vadd.f32 0.0, %v768
      %v770 = vpop.f32.mrb[0].mxu0
      %771 = vmatprep.mubr.bf16.mxu0 %v508
      %772 = vmatmul.mubr.bf16.gmra.mrb[0].mxu0 %v507
      %v773 = vpop.f32.mrb[0].mxu0
      %v774 = vadd.f32 0.0, %v773
      %v775 = vpop.f32.mrb[0].mxu0
      %v776 = vpop.f32.mrb[0].mxu0
      %v777 = vadd.f32 0.0, %v776
      %v778 = vpop.f32.mrb[0].mxu0
      %779 = vmatprep.mubr.bf16.mxu0 %v510
      %780 = vmatmul.mubr.bf16.gmra.mrb[0].mxu0 %v509
      %v781 = vpop.f32.mrb[0].mxu0
      %v782 = vadd.f32 0.0, %v781
      %v783 = vpop.f32.mrb[0].mxu0
      %v784 = vpop.f32.mrb[0].mxu0
      %v785 = vadd.f32 0.0, %v784
      %v786 = vpop.f32.mrb[0].mxu0
      %787 = vmatprep.mubr.bf16.mxu0 %v512
      %788 = vmatmul.mubr.bf16.gmra.mrb[0].mxu0 %v511
      %v789 = vpop.f32.mrb[0].mxu0
      %v790 = vadd.f32 0.0, %v789
      %v791 = vpop.f32.mrb[0].mxu0
      %v792 = vpop.f32.mrb[0].mxu0
      %v793 = vadd.f32 0.0, %v792
      %v794 = vpop.f32.mrb[0].mxu0
      %795 = vmatprep.mubr.bf16.mxu0 %v514
      %796 = vmatmul.mubr.bf16.gmra.mrb[0].mxu0 %v513
      %v797 = vpop.f32.mrb[0].mxu0
      %v798 = vadd.f32 0.0, %v797
      %v799 = vpop.f32.mrb[0].mxu0
      %v800 = vpop.f32.mrb[0].mxu0
      %v801 = vadd.f32 0.0, %v800
      %v802 = vpop.f32.mrb[0].mxu0
      %803 = vdwg.mxu0
      %v804 = vadd.f32 %v291, %v678
      %v805 = vadd.f32 %v292, %v681
      %v806 = vadd.f32 %v293, %v686
      %v807 = vadd.f32 %v294, %v689
      %v808 = vadd.f32 %v295, %v694
      %v809 = vadd.f32 %v296, %v697
      %v810 = vadd.f32 %v297, %v702
      %v811 = vadd.f32 %v298, %v705
      %v812 = vadd.f32 %v299, %v710
      %v813 = vadd.f32 %v300, %v713
      %v814 = vadd.f32 %v301, %v718
      %v815 = vadd.f32 %v302, %v721
      %v816 = vadd.f32 %v303, %v726
      %v817 = vadd.f32 %v304, %v729
      %v818 = vadd.f32 %v305, %v734
      %v819 = vadd.f32 %v306, %v737
      %v820 = vadd.f32 %v307, %v742
      %v821 = vadd.f32 %v308, %v745
      %v822 = vadd.f32 %v309, %v750
      %v823 = vadd.f32 %v310, %v753
      %v824 = vadd.f32 %v311, %v758
      %v825 = vadd.f32 %v312, %v761
      %v826 = vadd.f32 %v313, %v766
      %v827 = vadd.f32 %v314, %v769
      %v828 = vadd.f32 %v315, %v774
      %v829 = vadd.f32 %v316, %v777
      %v830 = vadd.f32 %v317, %v782
      %v831 = vadd.f32 %v318, %v785
      %v832 = vadd.f32 %v319, %v790
      %v833 = vadd.f32 %v320, %v793
      %v834 = vadd.f32 %v321, %v798
      %v835 = vadd.f32 %v322, %v801
      %836 = vst [vmem:[%s252] sm:$0xff] %v804
      %837 = vst [vmem:[%s252 + $0x8] sm:$0xff] %v805
      %838 = vst [vmem:[%s252 + $0x10] sm:$0xff] %v806
      %839 = vst [vmem:[%s252 + $0x18] sm:$0xff] %v807
      %840 = vst [vmem:[%s252 + $0x20] sm:$0xff] %v808
      %841 = vst [vmem:[%s252 + $0x28] sm:$0xff] %v809
      %842 = vst [vmem:[%s252 + $0x30] sm:$0xff] %v810
      %843 = vst [vmem:[%s252 + $0x38] sm:$0xff] %v811
      %844 = vst [vmem:[%s252 + $0x40] sm:$0xff] %v812
      %845 = vst [vmem:[%s252 + $0x48] sm:$0xff] %v813
      %846 = vst [vmem:[%s252 + $0x50] sm:$0xff] %v814
      %847 = vst [vmem:[%s252 + $0x58] sm:$0xff] %v815
      %848 = vst [vmem:[%s252 + $0x60] sm:$0xff] %v816
      %849 = vst [vmem:[%s252 + $0x68] sm:$0xff] %v817
      %850 = vst [vmem:[%s252 + $0x70] sm:$0xff] %v818
      %851 = vst [vmem:[%s252 + $0x78] sm:$0xff] %v819
      %852 = vst [vmem:[%s252 + $0x80] sm:$0xff] %v820
      %853 = vst [vmem:[%s252 + $0x88] sm:$0xff] %v821
      %854 = vst [vmem:[%s252 + $0x90] sm:$0xff] %v822
      %855 = vst [vmem:[%s252 + $0x98] sm:$0xff] %v823
      %856 = vst [vmem:[%s252 + $0xa0] sm:$0xff] %v824
      %857 = vst [vmem:[%s252 + $0xa8] sm:$0xff] %v825
      %858 = vst [vmem:[%s252 + $0xb0] sm:$0xff] %v826
      %859 = vst [vmem:[%s252 + $0xb8] sm:$0xff] %v827
      %860 = vst [vmem:[%s252 + $0xc0] sm:$0xff] %v828
      %861 = vst [vmem:[%s252 + $0xc8] sm:$0xff] %v829
      %862 = vst [vmem:[%s252 + $0xd0] sm:$0xff] %v830
      %863 = vst [vmem:[%s252 + $0xd8] sm:$0xff] %v831
      %864 = vst [vmem:[%s252 + $0xe0] sm:$0xff] %v832
      %865 = vst [vmem:[%s252 + $0xe8] sm:$0xff] %v833
      %866 = vst [vmem:[%s252 + $0xf0] sm:$0xff] %v834
      %867 = vst [vmem:[%s252 + $0xf8] sm:$0xff] %v835
      // Predicated region
      $region41: #{_lambda_.14} parent=35 // pred_check
        %p868 = pneg %p255
      $region42: #{_lambda_.14} parent=35 // pred_check_branch
        %870 = sbr.rel (%p868) target = $region44
      $region43: #{_lambda_.14} parent=35 // pred_region
        %v871 = vld [vmem:[%s252] sm:$0xff]
        %v872 = vld [vmem:[%s252 + $0x8] sm:$0xff]
        %v873 = vld [vmem:[%s252 + $0x10] sm:$0xff]
        %v874 = vld [vmem:[%s252 + $0x18] sm:$0xff]
        %v875 = vld [vmem:[%s252 + $0x20] sm:$0xff]
        %v876 = vld [vmem:[%s252 + $0x28] sm:$0xff]
        %v877 = vld [vmem:[%s252 + $0x30] sm:$0xff]
        %v878 = vld [vmem:[%s252 + $0x38] sm:$0xff]
        %v879 = vld [vmem:[%s252 + $0x40] sm:$0xff]
        %v880 = vld [vmem:[%s252 + $0x48] sm:$0xff]
        %v881 = vld [vmem:[%s252 + $0x50] sm:$0xff]
        %v882 = vld [vmem:[%s252 + $0x58] sm:$0xff]
        %v883 = vld [vmem:[%s252 + $0x60] sm:$0xff]
        %v884 = vld [vmem:[%s252 + $0x68] sm:$0xff]
        %v885 = vld [vmem:[%s252 + $0x70] sm:$0xff]
        %v886 = vld [vmem:[%s252 + $0x78] sm:$0xff]
        %v887 = vld [vmem:[%s252 + $0x80] sm:$0xff]
        %v888 = vld [vmem:[%s252 + $0x88] sm:$0xff]
        %v889 = vld [vmem:[%s252 + $0x90] sm:$0xff]
        %v890 = vld [vmem:[%s252 + $0x98] sm:$0xff]
        %v891 = vld [vmem:[%s252 + $0xa0] sm:$0xff]
        %v892 = vld [vmem:[%s252 + $0xa8] sm:$0xff]
        %v893 = vld [vmem:[%s252 + $0xb0] sm:$0xff]
        %v894 = vld [vmem:[%s252 + $0xb8] sm:$0xff]
        %v895 = vld [vmem:[%s252 + $0xc0] sm:$0xff]
        %v896 = vld [vmem:[%s252 + $0xc8] sm:$0xff]
        %v897 = vld [vmem:[%s252 + $0xd0] sm:$0xff]
        %v898 = vld [vmem:[%s252 + $0xd8] sm:$0xff]
        %v899 = vld [vmem:[%s252 + $0xe0] sm:$0xff]
        %v900 = vld [vmem:[%s252 + $0xe8] sm:$0xff]
        %v901 = vld [vmem:[%s252 + $0xf0] sm:$0xff]
        %v902 = vld [vmem:[%s252 + $0xf8] sm:$0xff]
        %v903 = vld [vmem:[%s2] sm:$0x1]
        %v905 = vlaneseq
        %v906 = vshrl.u32 %v905, 7
        %v907 = vsub.s32 0, %v906
        %v908 = vrot.slane %v903, %v907
        %v910 = vmul.f32 %v871, %v908
        %v911 = vmul.f32 %v872, %v908
        %v912 = vmul.f32 %v873, %v908
        %v913 = vmul.f32 %v874, %v908
        %v914 = vmul.f32 %v875, %v908
        %v915 = vmul.f32 %v876, %v908
        %v916 = vmul.f32 %v877, %v908
        %v917 = vmul.f32 %v878, %v908
        %v918 = vmul.f32 %v879, %v908
        %v919 = vmul.f32 %v880, %v908
        %v920 = vmul.f32 %v881, %v908
        %v921 = vmul.f32 %v882, %v908
        %v922 = vmul.f32 %v883, %v908
        %v923 = vmul.f32 %v884, %v908
        %v924 = vmul.f32 %v885, %v908
        %v925 = vmul.f32 %v886, %v908
        %v926 = vmul.f32 %v887, %v908
        %v927 = vmul.f32 %v888, %v908
        %v928 = vmul.f32 %v889, %v908
        %v929 = vmul.f32 %v890, %v908
        %v930 = vmul.f32 %v891, %v908
        %v931 = vmul.f32 %v892, %v908
        %v932 = vmul.f32 %v893, %v908
        %v933 = vmul.f32 %v894, %v908
        %v934 = vmul.f32 %v895, %v908
        %v935 = vmul.f32 %v896, %v908
        %v936 = vmul.f32 %v897, %v908
        %v937 = vmul.f32 %v898, %v908
        %v938 = vmul.f32 %v899, %v908
        %v939 = vmul.f32 %v900, %v908
        %v940 = vmul.f32 %v901, %v908
        %v941 = vmul.f32 %v902, %v908
        %v942 = vld [vmem:[%s3] sm:$0x1]
        %v944 = vlaneseq
        %v945 = vshrl.u32 %v944, 7
        %v946 = vsub.s32 0, %v945
        %v947 = vrot.slane %v942, %v946
        %v949 = vadd.f32 %v910, %v947
        %v950 = vadd.f32 %v911, %v947
        %v951 = vadd.f32 %v912, %v947
        %v952 = vadd.f32 %v913, %v947
        %v953 = vadd.f32 %v914, %v947
        %v954 = vadd.f32 %v915, %v947
        %v955 = vadd.f32 %v916, %v947
        %v956 = vadd.f32 %v917, %v947
        %v957 = vadd.f32 %v918, %v947
        %v958 = vadd.f32 %v919, %v947
        %v959 = vadd.f32 %v920, %v947
        %v960 = vadd.f32 %v921, %v947
        %v961 = vadd.f32 %v922, %v947
        %v962 = vadd.f32 %v923, %v947
        %v963 = vadd.f32 %v924, %v947
        %v964 = vadd.f32 %v925, %v947
        %v965 = vadd.f32 %v926, %v947
        %v966 = vadd.f32 %v927, %v947
        %v967 = vadd.f32 %v928, %v947
        %v968 = vadd.f32 %v929, %v947
        %v969 = vadd.f32 %v930, %v947
        %v970 = vadd.f32 %v931, %v947
        %v971 = vadd.f32 %v932, %v947
        %v972 = vadd.f32 %v933, %v947
        %v973 = vadd.f32 %v934, %v947
        %v974 = vadd.f32 %v935, %v947
        %v975 = vadd.f32 %v936, %v947
        %v976 = vadd.f32 %v937, %v947
        %v977 = vadd.f32 %v938, %v947
        %v978 = vadd.f32 %v939, %v947
        %v979 = vadd.f32 %v940, %v947
        %v980 = vadd.f32 %v941, %v947
        %vm981 = vcmp.ge.f32.partialorder %v949, 0.0
        %vm982 = vcmp.ge.f32.partialorder %v950, 0.0
        %vm983 = vcmp.ge.f32.partialorder %v951, 0.0
        %vm984 = vcmp.ge.f32.partialorder %v952, 0.0
        %vm985 = vcmp.ge.f32.partialorder %v953, 0.0
        %vm986 = vcmp.ge.f32.partialorder %v954, 0.0
        %vm987 = vcmp.ge.f32.partialorder %v955, 0.0
        %vm988 = vcmp.ge.f32.partialorder %v956, 0.0
        %vm989 = vcmp.ge.f32.partialorder %v957, 0.0
        %vm990 = vcmp.ge.f32.partialorder %v958, 0.0
        %vm991 = vcmp.ge.f32.partialorder %v959, 0.0
        %vm992 = vcmp.ge.f32.partialorder %v960, 0.0
        %vm993 = vcmp.ge.f32.partialorder %v961, 0.0
        %vm994 = vcmp.ge.f32.partialorder %v962, 0.0
        %vm995 = vcmp.ge.f32.partialorder %v963, 0.0
        %vm996 = vcmp.ge.f32.partialorder %v964, 0.0
        %vm997 = vcmp.ge.f32.partialorder %v965, 0.0
        %vm998 = vcmp.ge.f32.partialorder %v966, 0.0
        %vm999 = vcmp.ge.f32.partialorder %v967, 0.0
        %vm1000 = vcmp.ge.f32.partialorder %v968, 0.0
        %vm1001 = vcmp.ge.f32.partialorder %v969, 0.0
        %vm1002 = vcmp.ge.f32.partialorder %v970, 0.0
        %vm1003 = vcmp.ge.f32.partialorder %v971, 0.0
        %vm1004 = vcmp.ge.f32.partialorder %v972, 0.0
        %vm1005 = vcmp.ge.f32.partialorder %v973, 0.0
        %vm1006 = vcmp.ge.f32.partialorder %v974, 0.0
        %vm1007 = vcmp.ge.f32.partialorder %v975, 0.0
        %vm1008 = vcmp.ge.f32.partialorder %v976, 0.0
        %vm1009 = vcmp.ge.f32.partialorder %v977, 0.0
        %vm1010 = vcmp.ge.f32.partialorder %v978, 0.0
        %vm1011 = vcmp.ge.f32.partialorder %v979, 0.0
        %vm1012 = vcmp.ge.f32.partialorder %v980, 0.0
        %v1013 = vmul.f32 %v949, 0.01
        %v1014 = vmul.f32 %v950, 0.01
        %v1015 = vmul.f32 %v951, 0.01
        %v1016 = vmul.f32 %v952, 0.01
        %v1017 = vmul.f32 %v953, 0.01
        %v1018 = vmul.f32 %v954, 0.01
        %v1019 = vmul.f32 %v955, 0.01
        %v1020 = vmul.f32 %v956, 0.01
        %v1021 = vmul.f32 %v957, 0.01
        %v1022 = vmul.f32 %v958, 0.01
        %v1023 = vmul.f32 %v959, 0.01
        %v1024 = vmul.f32 %v960, 0.01
        %v1025 = vmul.f32 %v961, 0.01
        %v1026 = vmul.f32 %v962, 0.01
        %v1027 = vmul.f32 %v963, 0.01
        %v1028 = vmul.f32 %v964, 0.01
        %v1029 = vmul.f32 %v965, 0.01
        %v1030 = vmul.f32 %v966, 0.01
        %v1031 = vmul.f32 %v967, 0.01
        %v1032 = vmul.f32 %v968, 0.01
        %v1033 = vmul.f32 %v969, 0.01
        %v1034 = vmul.f32 %v970, 0.01
        %v1035 = vmul.f32 %v971, 0.01
        %v1036 = vmul.f32 %v972, 0.01
        %v1037 = vmul.f32 %v973, 0.01
        %v1038 = vmul.f32 %v974, 0.01
        %v1039 = vmul.f32 %v975, 0.01
        %v1040 = vmul.f32 %v976, 0.01
        %v1041 = vmul.f32 %v977, 0.01
        %v1042 = vmul.f32 %v978, 0.01
        %v1043 = vmul.f32 %v979, 0.01
        %v1044 = vmul.f32 %v980, 0.01
        %v1045 = vsel %vm981, %v949, %v1013
        %v1046 = vsel %vm982, %v950, %v1014
        %v1047 = vsel %vm983, %v951, %v1015
        %v1048 = vsel %vm984, %v952, %v1016
        %v1049 = vsel %vm985, %v953, %v1017
        %v1050 = vsel %vm986, %v954, %v1018
        %v1051 = vsel %vm987, %v955, %v1019
        %v1052 = vsel %vm988, %v956, %v1020
        %v1053 = vsel %vm989, %v957, %v1021
        %v1054 = vsel %vm990, %v958, %v1022
        %v1055 = vsel %vm991, %v959, %v1023
        %v1056 = vsel %vm992, %v960, %v1024
        %v1057 = vsel %vm993, %v961, %v1025
        %v1058 = vsel %vm994, %v962, %v1026
        %v1059 = vsel %vm995, %v963, %v1027
        %v1060 = vsel %vm996, %v964, %v1028
        %v1061 = vsel %vm997, %v965, %v1029
        %v1062 = vsel %vm998, %v966, %v1030
        %v1063 = vsel %vm999, %v967, %v1031
        %v1064 = vsel %vm1000, %v968, %v1032
        %v1065 = vsel %vm1001, %v969, %v1033
        %v1066 = vsel %vm1002, %v970, %v1034
        %v1067 = vsel %vm1003, %v971, %v1035
        %v1068 = vsel %vm1004, %v972, %v1036
        %v1069 = vsel %vm1005, %v973, %v1037
        %v1070 = vsel %vm1006, %v974, %v1038
        %v1071 = vsel %vm1007, %v975, %v1039
        %v1072 = vsel %vm1008, %v976, %v1040
        %v1073 = vsel %vm1009, %v977, %v1041
        %v1074 = vsel %vm1010, %v978, %v1042
        %v1075 = vsel %vm1011, %v979, %v1043
        %v1076 = vsel %vm1012, %v980, %v1044
        %1077 = vst [vmem:[%s252] sm:$0xff] %v1045
        %1078 = vst [vmem:[%s252 + $0x8] sm:$0xff] %v1046
        %1079 = vst [vmem:[%s252 + $0x10] sm:$0xff] %v1047
        %1080 = vst [vmem:[%s252 + $0x18] sm:$0xff] %v1048
        %1081 = vst [vmem:[%s252 + $0x20] sm:$0xff] %v1049
        %1082 = vst [vmem:[%s252 + $0x28] sm:$0xff] %v1050
        %1083 = vst [vmem:[%s252 + $0x30] sm:$0xff] %v1051
        %1084 = vst [vmem:[%s252 + $0x38] sm:$0xff] %v1052
        %1085 = vst [vmem:[%s252 + $0x40] sm:$0xff] %v1053
        %1086 = vst [vmem:[%s252 + $0x48] sm:$0xff] %v1054
        %1087 = vst [vmem:[%s252 + $0x50] sm:$0xff] %v1055
        %1088 = vst [vmem:[%s252 + $0x58] sm:$0xff] %v1056
        %1089 = vst [vmem:[%s252 + $0x60] sm:$0xff] %v1057
        %1090 = vst [vmem:[%s252 + $0x68] sm:$0xff] %v1058
        %1091 = vst [vmem:[%s252 + $0x70] sm:$0xff] %v1059
        %1092 = vst [vmem:[%s252 + $0x78] sm:$0xff] %v1060
        %1093 = vst [vmem:[%s252 + $0x80] sm:$0xff] %v1061
        %1094 = vst [vmem:[%s252 + $0x88] sm:$0xff] %v1062
        %1095 = vst [vmem:[%s252 + $0x90] sm:$0xff] %v1063
        %1096 = vst [vmem:[%s252 + $0x98] sm:$0xff] %v1064
        %1097 = vst [vmem:[%s252 + $0xa0] sm:$0xff] %v1065
        %1098 = vst [vmem:[%s252 + $0xa8] sm:$0xff] %v1066
        %1099 = vst [vmem:[%s252 + $0xb0] sm:$0xff] %v1067
        %1100 = vst [vmem:[%s252 + $0xb8] sm:$0xff] %v1068
        %1101 = vst [vmem:[%s252 + $0xc0] sm:$0xff] %v1069
        %1102 = vst [vmem:[%s252 + $0xc8] sm:$0xff] %v1070
        %1103 = vst [vmem:[%s252 + $0xd0] sm:$0xff] %v1071
        %1104 = vst [vmem:[%s252 + $0xd8] sm:$0xff] %v1072
        %1105 = vst [vmem:[%s252 + $0xe0] sm:$0xff] %v1073
        %1106 = vst [vmem:[%s252 + $0xe8] sm:$0xff] %v1074
        %1107 = vst [vmem:[%s252 + $0xf0] sm:$0xff] %v1075
        %1108 = vst [vmem:[%s252 + $0xf8] sm:$0xff] %v1076
      $region44: #{_lambda_.14} parent=35 // pred_fallthru
        _
      %s1109 = smul.u32 32, %s19
      %p1110 = scmp.lt.s32.totalorder %s1109, 63
      %s1111 = scalar_select %p1110, %s1109, 63
      %s1112 = smul.addr %s1111, 8
      %s1113 = scalar_lea.vmem %s4, %s1112
      // Predicated region
      $region45: #{_lambda_.14} parent=35 // pred_check
        %p1114 = pneg %p141
      $region46: #{_lambda_.14} parent=35 // pred_check_branch
        %1116 = sbr.rel (%p1114) target = $region48
      $region47: #{_lambda_.14} parent=35 // pred_region
        %s1117 = smul.u32 32, %s19
      $region48: #{_lambda_.14} parent=35 // pred_fallthru
        _
    $region36: #{_lambda_.14} parent=5 // pred_fallthru
      _
    %p1118 = scmp.le.s32.totalorder 2, %s10
    // Predicated region
    $region49: #{_lambda_.14} parent=5 // pred_check
      %p1119 = pneg %p1118
    $region50: #{_lambda_.14} parent=5 // pred_check_branch
      %1121 = sbr.rel (%p1119) target = $region52
    $region51: #{_lambda_.14} parent=5 // pred_region
      %s1122 = ssub.s32 %s10, 2
      // Predicated region
      $region53: #{_lambda_.14} parent=51 // pred_check
        %p1123 = pneg %p147
      $region54: #{_lambda_.14} parent=51 // pred_check_branch
        %1125 = sbr.rel (%p1123) target = $region56
      $region55: #{_lambda_.14} parent=51 // pred_region
        %s1126 = smul.u32 32, %s21
        %p1127 = scmp.lt.s32.totalorder %s1126, 63
        %s1128 = scalar_select %p1127, %s1126, 63
        %s1129 = smul.addr %s1128, 8
        %s1130 = scalar_lea.vmem %s4, %s1129
      $region56: #{_lambda_.14} parent=51 // pred_fallthru
        _
    $region52: #{_lambda_.14} parent=5 // pred_fallthru
      _
  $region6: #{_lambda_.14} parent=0 // loop_footer
    %s14 = sadd.s32 1, %s10
  $region7: #{_lambda_.14} parent=0 // loop_footer_branch
    %9 = sbr.rel target = $region3
  $region8: #{_lambda_.14} parent=0 // loop_exit
    _

// kernel: _lambda_.15
$region0: #{_lambda_.15}
  #allocation0 [shape = 'u32[]', space=smem, size = 0x4, offset = 0x4, fixed_abs, tag = 'smem constant byte address 0x4 - core index']
  #allocation1 [shape = 'u32[144,128]{1,0:T(1,128)}', space=vmem, size = 0x12000, scoped, tag = 'internal scratch']
  %s0 = inlined_call_operand.vmem [shape: bf16[128,768], index: 0, kind: input, shape index: {}]
  %s1 = inlined_call_operand.vmem [shape: bf16[768,128], index: 1, kind: input, shape index: {}]
  %s2 = inlined_call_operand.vmem [shape: f32[1,128], index: 2, kind: input, shape index: {}]
  %s3 = inlined_call_operand.vmem [shape: f32[1,128], index: 3, kind: input, shape index: {}]
  %s4 = inlined_call_operand.vmem [shape: f32[128,128], index: 4, kind: output, shape index: {}]
  %s5 = sld [smem:[#allocation0]]
  $region95: #{_lambda_.15} parent=0
    _
  %s7 = ssub.s32 1, %s5
  %s8 = scalar_select 0, %s7, %s5
  $region1: #{_lambda_.15} parent=0
    #allocation2 [shape = 'u8[131072]{0}', space=vmem, size = 0x20000, scoped, tag = 'input window, operand 0']
    loop: start=0, step=1, limit=5
    $region2: #{_lambda_.15} parent=1 // loop_pre_header
      _
    $region3: #{_lambda_.15} parent=1 // loop_header
      %s10 = sphi 0, %s14
      %p11 = scmp.ge.s32.totalorder %s10, 5
      %s17 = sphi 0, %s29
      %s18 = sphi 0, %s25
      %s19 = sphi 0, %s17
      %s20 = sphi 0, %s18
      %s21 = sphi 0, %s19
      %s22 = sphi 0, %s20
      %s34 = sphi 0, %s36
      %s37 = sphi 0, %s34
      %s38 = sphi 0, %s37
      %s54 = sphi 0, %s38
      %s60 = sphi 0, %s62
      %s63 = sphi 0, %s60
      %s64 = sphi 0, %s63
      %s80 = sphi 0, %s64
      %s84 = sphi 0, %s84
      %s86 = sphi 0, %s84
      %s87 = sphi 0, %s86
      %s101 = sphi 0, %s87
      %s105 = sphi 0, %s105
      %s107 = sphi 0, %s105
      %s108 = sphi 0, %s107
      %s122 = sphi 0, %s108
      %s128 = sphi 0, %s130
      %s131 = sphi 0, %s128
      %s132 = sphi 0, %s131
      %s148 = sphi 0, %s132
    $region4: #{_lambda_.15} parent=1 // loop_header_branch
      %13 = sbr.rel (%p11) target = $region8
    $region5: #{_lambda_.15} parent=1 // loop_body
      %s15 = ssub.s32 %s10, 1
      %s16 = ssub.s32 %s10, 2
      %s23 = sadd.s32 1, %s18
      %p24 = scmp.ge.s32.totalorder %s23, 3
      %s25 = scalar_select %p24, 0, %s23
      %s26 = sadd.s32 1, %s17
      %s27 = scalar_select %p24, %s26, %s17
      %p28 = scmp.ge.s32.totalorder %s27, 1
      %s29 = scalar_select %p28, 0, %s27
      %s30 = ssub.s32 %s17, %s29
      %s31 = ssub.s32 %s18, %s25
      %s32 = sor.u32 %s30, %s31
      %p33 = scmp.eq.s32.totalorder %s32, 0
      %s35 = sadd.s32 %s34, 1
      %s36 = scalar_select %p33, %s34, %s35
      %p39 = pneg %p33
      %p40 = scmp.eq.s32.totalorder %s10, 2
      %p41 = por %p39, %p40
      %p42 = scmp.ne.s32.totalorder %s34, %s37
      %p43 = scmp.eq.s32.totalorder %s10, 0
      %p44 = por %p42, %p43
      %p45 = scmp.ne.s32.totalorder %s34, %s37
      %p46 = scmp.eq.s32.totalorder %s15, 2
      %p47 = por %p45, %p46
      %p48 = scmp.ne.s32.totalorder %s37, %s38
      %p49 = scmp.eq.s32.totalorder %s15, 0
      %p50 = por %p48, %p49
      %p51 = scmp.ne.s32.totalorder %s37, %s38
      %p52 = scmp.eq.s32.totalorder %s16, 2
      %p53 = por %p51, %p52
      %p55 = scmp.ne.s32.totalorder %s38, %s54
      %p56 = scmp.eq.s32.totalorder %s16, 0
      %p57 = por %p55, %p56
      %s58 = ssub.s32 %s18, %s25
      %p59 = scmp.eq.s32.totalorder %s58, 0
      %s61 = sadd.s32 %s60, 1
      %s62 = scalar_select %p59, %s60, %s61
      %p65 = pneg %p59
      %p66 = scmp.eq.s32.totalorder %s10, 2
      %p67 = por %p65, %p66
      %p68 = scmp.ne.s32.totalorder %s60, %s63
      %p69 = scmp.eq.s32.totalorder %s10, 0
      %p70 = por %p68, %p69
      %p71 = scmp.ne.s32.totalorder %s60, %s63
      %p72 = scmp.eq.s32.totalorder %s15, 2
      %p73 = por %p71, %p72
      %p74 = scmp.ne.s32.totalorder %s63, %s64
      %p75 = scmp.eq.s32.totalorder %s15, 0
      %p76 = por %p74, %p75
      %p77 = scmp.ne.s32.totalorder %s63, %s64
      %p78 = scmp.eq.s32.totalorder %s16, 2
      %p79 = por %p77, %p78
      %p81 = scmp.ne.s32.totalorder %s64, %s80
      %p82 = scmp.eq.s32.totalorder %s16, 0
      %p83 = por %p81, %p82
      %s85 = sadd.s32 %s84, 1
      %p88 = scmp.eq.s32.totalorder %s10, 2
      %p89 = scmp.ne.s32.totalorder %s84, %s86
      %p90 = scmp.eq.s32.totalorder %s10, 0
      %p91 = por %p89, %p90
      %p92 = scmp.ne.s32.totalorder %s84, %s86
      %p93 = scmp.eq.s32.totalorder %s15, 2
      %p94 = por %p92, %p93
      %p95 = scmp.ne.s32.totalorder %s86, %s87
      %p96 = scmp.eq.s32.totalorder %s15, 0
      %p97 = por %p95, %p96
      %p98 = scmp.ne.s32.totalorder %s86, %s87
      %p99 = scmp.eq.s32.totalorder %s16, 2
      %p100 = por %p98, %p99
      %p102 = scmp.ne.s32.totalorder %s87, %s101
      %p103 = scmp.eq.s32.totalorder %s16, 0
      %p104 = por %p102, %p103
      %s106 = sadd.s32 %s105, 1
      %p109 = scmp.eq.s32.totalorder %s10, 2
      %p110 = scmp.ne.s32.totalorder %s105, %s107
      %p111 = scmp.eq.s32.totalorder %s10, 0
      %p112 = por %p110, %p111
      %p113 = scmp.ne.s32.totalorder %s105, %s107
      %p114 = scmp.eq.s32.totalorder %s15, 2
      %p115 = por %p113, %p114
      %p116 = scmp.ne.s32.totalorder %s107, %s108
      %p117 = scmp.eq.s32.totalorder %s15, 0
      %p118 = por %p116, %p117
      %p119 = scmp.ne.s32.totalorder %s107, %s108
      %p120 = scmp.eq.s32.totalorder %s16, 2
      %p121 = por %p119, %p120
      %p123 = scmp.ne.s32.totalorder %s108, %s122
      %p124 = scmp.eq.s32.totalorder %s16, 0
      %p125 = por %p123, %p124
      %s126 = ssub.s32 %s17, %s29
      %p127 = scmp.eq.s32.totalorder %s126, 0
      %s129 = sadd.s32 %s128, 1
      %s130 = scalar_select %p127, %s128, %s129
      %p133 = pneg %p127
      %p134 = scmp.eq.s32.totalorder %s10, 2
      %p135 = por %p133, %p134
      %p136 = scmp.ne.s32.totalorder %s128, %s131
      %p137 = scmp.eq.s32.totalorder %s10, 0
      %p138 = por %p136, %p137
      %p139 = scmp.ne.s32.totalorder %s128, %s131
      %p140 = scmp.eq.s32.totalorder %s15, 2
      %p141 = por %p139, %p140
      %p142 = scmp.ne.s32.totalorder %s131, %s132
      %p143 = scmp.eq.s32.totalorder %s15, 0
      %p144 = por %p142, %p143
      %p145 = scmp.ne.s32.totalorder %s131, %s132
      %p146 = scmp.eq.s32.totalorder %s16, 2
      %p147 = por %p145, %p146
      %p149 = scmp.ne.s32.totalorder %s132, %s148
      %p150 = scmp.eq.s32.totalorder %s16, 0
      %p151 = por %p149, %p150
      %p152 = scmp.le.s32.totalorder 1, %s10
      %p153 = scmp.lt.s32.totalorder %s10, 4
      %p154 = pnand %p152, %p153
      %p155 = pneg %p154
      // Predicated region
      $region9: #{_lambda_.15} parent=5 // pred_check
        _
      $region10: #{_lambda_.15} parent=5 // pred_check_branch
        %157 = sbr.rel (%p154) target = $region12
      $region11: #{_lambda_.15} parent=5 // pred_region
        %s158 = ssub.s32 %s10, 1
        // Predicated region
        $region13: #{_lambda_.15} parent=11 // pred_check
          %p159 = pneg %p97
        $region14: #{_lambda_.15} parent=11 // pred_check_branch
          %161 = sbr.rel (%p159) target = $region16
        $region15: #{_lambda_.15} parent=11 // pred_region
          _
        $region16: #{_lambda_.15} parent=11 // pred_fallthru
          _
        // Predicated region
        $region17: #{_lambda_.15} parent=11 // pred_check
          %p162 = pneg %p118
        $region18: #{_lambda_.15} parent=11 // pred_check_branch
          %164 = sbr.rel (%p162) target = $region20
        $region19: #{_lambda_.15} parent=11 // pred_region
          _
        $region20: #{_lambda_.15} parent=11 // pred_fallthru
          _
      $region12: #{_lambda_.15} parent=5 // pred_fallthru
        _
      %p165 = scmp.lt.s32.totalorder %s10, 3
      // Predicated region
      $region21: #{_lambda_.15} parent=5 // pred_check
        %p166 = pneg %p165
      $region22: #{_lambda_.15} parent=5 // pred_check_branch
        %168 = sbr.rel (%p166) target = $region24
      $region23: #{_lambda_.15} parent=5 // pred_region
        // Predicated region
        $region25: #{_lambda_.15} parent=23 // pred_check
          %p169 = pneg %p44
        $region26: #{_lambda_.15} parent=23 // pred_check_branch
          %171 = sbr.rel (%p169) target = $region28
        $region27: #{_lambda_.15} parent=23 // pred_region
          %s172 = sand.u32 %s34, 1
          %s173 = sand.u32 %s34, 1
          %s174 = smul.addr %s173, 128
          %s175 = scalar_lea.vmem [#allocation2], %s174
          %s176 = smul.u32 16, %s17
          %s177 = smul.u32 2, %s18
          %s178 = smul.addr %s176, 6
          %s179 = sadd.s32 %s177, %s178
          %s180 = smul.addr %s179, 4
          %s181 = scalar_lea.vmem %s0, %s180
          // Predicated region
          $region29: #{_lambda_.15} parent=27 // pred_check
            _
          $region30: #{_lambda_.15} parent=27 // pred_check_branch
            %183 = sbr.rel (0) target = $region32
          $region31: #{_lambda_.15} parent=27 // pred_region
            // Predicated region
            $region33: #{_lambda_.15} parent=31 // pred_check
              _
            $region34: #{_lambda_.15} parent=31 // pred_check_branch
              %185 = sbr.rel (0) target = $region36
            $region35: #{_lambda_.15} parent=31 // pred_region
              // Predicated region
              $region48: #{_lambda_.15} parent=35 // pred_check
                _
              $region49: #{_lambda_.15} parent=35 // pred_check_branch
                %230 = sbr.rel (0) target = $region51
              $region50: #{_lambda_.15} parent=35 // pred_region
                loop: start=0, step=1, limit=1
                $region52: #{_lambda_.15} parent=50 // loop_pre_header
                  _
                $region53: #{_lambda_.15} parent=50 // loop_header
                  %s232 = sphi 0, %s236
                  %p233 = scmp.ge.s32.totalorder %s232, 1
                  %s237 = sphi %s181, %s181
                  %s238 = sphi %s175, %s175
                $region54: #{_lambda_.15} parent=50 // loop_header_branch
                  %235 = sbr.rel (%p233) target = $region58
                $region55: #{_lambda_.15} parent=50 // loop_body
                  %v239 = vld [vmem:[%s237] sm:$0xff]
                  %240 = vst [vmem:[%s238] sm:$0xff] %v239
                  %v241 = vld [vmem:[%s237 + $0x18] sm:$0xff]
                  %242 = vst [vmem:[%s238 + $0x8] sm:$0xff] %v241
                  %v243 = vld [vmem:[%s237 + $0x30] sm:$0xff]
                  %244 = vst [vmem:[%s238 + $0x10] sm:$0xff] %v243
                  %v245 = vld [vmem:[%s237 + $0x48] sm:$0xff]
                  %246 = vst [vmem:[%s238 + $0x18] sm:$0xff] %v245
                  %v247 = vld [vmem:[%s237 + $0x60] sm:$0xff]
                  %248 = vst [vmem:[%s238 + $0x20] sm:$0xff] %v247
                  %v249 = vld [vmem:[%s237 + $0x78] sm:$0xff]
                  %250 = vst [vmem:[%s238 + $0x28] sm:$0xff] %v249
                  %v251 = vld [vmem:[%s237 + $0x90] sm:$0xff]
                  %252 = vst [vmem:[%s238 + $0x30] sm:$0xff] %v251
                  %v253 = vld [vmem:[%s237 + $0xa8] sm:$0xff]
                  %254 = vst [vmem:[%s238 + $0x38] sm:$0xff] %v253
                  %v255 = vld [vmem:[%s237 + $0xc0] sm:$0xff]
                  %256 = vst [vmem:[%s238 + $0x40] sm:$0xff] %v255
                  %v257 = vld [vmem:[%s237 + $0xd8] sm:$0xff]
                  %258 = vst [vmem:[%s238 + $0x48] sm:$0xff] %v257
                  %v259 = vld [vmem:[%s237 + $0xf0] sm:$0xff]
                  %260 = vst [vmem:[%s238 + $0x50] sm:$0xff] %v259
                  %v261 = vld [vmem:[%s237 + $0x108] sm:$0xff]
                  %262 = vst [vmem:[%s238 + $0x58] sm:$0xff] %v261
                  %v263 = vld [vmem:[%s237 + $0x120] sm:$0xff]
                  %264 = vst [vmem:[%s238 + $0x60] sm:$0xff] %v263
                  %v265 = vld [vmem:[%s237 + $0x138] sm:$0xff]
                  %266 = vst [vmem:[%s238 + $0x68] sm:$0xff] %v265
                  %v267 = vld [vmem:[%s237 + $0x150] sm:$0xff]
                  %268 = vst [vmem:[%s238 + $0x70] sm:$0xff] %v267
                  %v269 = vld [vmem:[%s237 + $0x168] sm:$0xff]
                  %270 = vst [vmem:[%s238 + $0x78] sm:$0xff] %v269
                $region56: #{_lambda_.15} parent=50 // loop_footer
                  %s236 = sadd.s32 1, %s232
                $region57: #{_lambda_.15} parent=50 // loop_footer_branch
                  %231 = sbr.rel target = $region53
                $region58: #{_lambda_.15} parent=50 // loop_exit
                  _
              $region51: #{_lambda_.15} parent=35 // pred_fallthru
                _
              // Predicated region
              $region59: #{_lambda_.15} parent=35 // pred_check
                _
              $region60: #{_lambda_.15} parent=35 // pred_check_branch
                %272 = sbr.rel target = $region62
              $region61: #{_lambda_.15} parent=35 // pred_region
                _
              $region62: #{_lambda_.15} parent=35 // pred_fallthru
                _
            $region36: #{_lambda_.15} parent=31 // pred_fallthru
              _
            // Predicated region
            $region37: #{_lambda_.15} parent=31 // pred_check
              _
            $region38: #{_lambda_.15} parent=31 // pred_check_branch
              %187 = sbr.rel target = $region40
            $region39: #{_lambda_.15} parent=31 // pred_region
              loop: start=0, step=1, limit=1
              $region41: #{_lambda_.15} parent=39 // loop_pre_header
                _
              $region42: #{_lambda_.15} parent=39 // loop_header
                %s190 = sphi 0, %s194
                %p191 = scmp.ge.s32.totalorder %s190, 1
                %s195 = sphi %s181, %s181
                %s196 = sphi %s175, %s175
              $region43: #{_lambda_.15} parent=39 // loop_header_branch
                %193 = sbr.rel (%p191) target = $region47
              $region44: #{_lambda_.15} parent=39 // loop_body
                %v197 = vld [vmem:[%s195] sm:$0xff]
                %198 = vst [vmem:[%s196] sm:$0xff] %v197
                %v199 = vld [vmem:[%s195 + $0x18] sm:$0xff]
                %200 = vst [vmem:[%s196 + $0x8] sm:$0xff] %v199
                %v201 = vld [vmem:[%s195 + $0x30] sm:$0xff]
                %202 = vst [vmem:[%s196 + $0x10] sm:$0xff] %v201
                %v203 = vld [vmem:[%s195 + $0x48] sm:$0xff]
                %204 = vst [vmem:[%s196 + $0x18] sm:$0xff] %v203
                %v205 = vld [vmem:[%s195 + $0x60] sm:$0xff]
                %206 = vst [vmem:[%s196 + $0x20] sm:$0xff] %v205
                %v207 = vld [vmem:[%s195 + $0x78] sm:$0xff]
                %208 = vst [vmem:[%s196 + $0x28] sm:$0xff] %v207
                %v209 = vld [vmem:[%s195 + $0x90] sm:$0xff]
                %210 = vst [vmem:[%s196 + $0x30] sm:$0xff] %v209
                %v211 = vld [vmem:[%s195 + $0xa8] sm:$0xff]
                %212 = vst [vmem:[%s196 + $0x38] sm:$0xff] %v211
                %v213 = vld [vmem:[%s195 + $0xc0] sm:$0xff]
                %214 = vst [vmem:[%s196 + $0x40] sm:$0xff] %v213
                %v215 = vld [vmem:[%s195 + $0xd8] sm:$0xff]
                %216 = vst [vmem:[%s196 + $0x48] sm:$0xff] %v215
                %v217 = vld [vmem:[%s195 + $0xf0] sm:$0xff]
                %218 = vst [vmem:[%s196 + $0x50] sm:$0xff] %v217
                %v219 = vld [vmem:[%s195 + $0x108] sm:$0xff]
                %220 = vst [vmem:[%s196 + $0x58] sm:$0xff] %v219
                %v221 = vld [vmem:[%s195 + $0x120] sm:$0xff]
                %222 = vst [vmem:[%s196 + $0x60] sm:$0xff] %v221
                %v223 = vld [vmem:[%s195 + $0x138] sm:$0xff]
                %224 = vst [vmem:[%s196 + $0x68] sm:$0xff] %v223
                %v225 = vld [vmem:[%s195 + $0x150] sm:$0xff]
                %226 = vst [vmem:[%s196 + $0x70] sm:$0xff] %v225
                %v227 = vld [vmem:[%s195 + $0x168] sm:$0xff]
                %228 = vst [vmem:[%s196 + $0x78] sm:$0xff] %v227
              $region45: #{_lambda_.15} parent=39 // loop_footer
                %s194 = sadd.s32 1, %s190
              $region46: #{_lambda_.15} parent=39 // loop_footer_branch
                %189 = sbr.rel target = $region42
              $region47: #{_lambda_.15} parent=39 // loop_exit
                _
            $region40: #{_lambda_.15} parent=31 // pred_fallthru
              _
          $region32: #{_lambda_.15} parent=27 // pred_fallthru
            _
          %273 = vnop
        $region28: #{_lambda_.15} parent=23 // pred_fallthru
          _
        // Predicated region
        $region63: #{_lambda_.15} parent=23 // pred_check
          %p274 = pneg %p70
        $region64: #{_lambda_.15} parent=23 // pred_check_branch
          %276 = sbr.rel (%p274) target = $region66
        $region65: #{_lambda_.15} parent=23 // pred_region
          %s277 = smul.u32 32, %s18
          %p278 = scmp.lt.s32.totalorder %s277, 95
          %s279 = scalar_select %p278, %s277, 95
          %s280 = smul.addr %s279, 4
          %s281 = scalar_lea.vmem %s1, %s280
          %s282 = smul.u32 32, %s18
        $region66: #{_lambda_.15} parent=23 // pred_fallthru
          _
      $region24: #{_lambda_.15} parent=5 // pred_fallthru
        _
      %p283 = scmp.le.s32.totalorder 1, %s10
      %p284 = scmp.lt.s32.totalorder %s10, 4
      %p285 = pnand %p283, %p284
      %p286 = pneg %p285
      // Predicated region
      $region67: #{_lambda_.15} parent=5 // pred_check
        _
      $region68: #{_lambda_.15} parent=5 // pred_check_branch
        %288 = sbr.rel (%p285) target = $region70
      $region69: #{_lambda_.15} parent=5 // pred_region
        %s289 = ssub.s32 %s10, 1
        %s290 = sand.u32 %s37, 1
        %s291 = sand.u32 %s37, 1
        %s292 = smul.addr %s291, 128
        %s293 = scalar_lea.vmem [#allocation2], %s292
        // Predicated region
        $region71: #{_lambda_.15} parent=69 // pred_check
          %p294 = pneg %p50
        $region72: #{_lambda_.15} parent=69 // pred_check_branch
          %296 = sbr.rel (%p294) target = $region74
        $region73: #{_lambda_.15} parent=69 // pred_region
          _
        $region74: #{_lambda_.15} parent=69 // pred_fallthru
          _
        %s297 = sand.u32 %s37, 1
        %s298 = sand.u32 %s37, 1
        %s299 = smul.addr %s298, 128
        %s300 = scalar_lea.vmem [#allocation2], %s299
        %p301 = pneg %p50
        %p302 = pneg %p47
        %s303 = smul.u32 32, %s20
        %p304 = scmp.lt.s32.totalorder %s303, 95
        %s305 = scalar_select %p304, %s303, 95
        %s306 = smul.addr %s305, 4
        %s307 = scalar_lea.vmem %s1, %s306
        %p308 = pneg %p76
        %p309 = pneg %p73
        %p310 = pneg %p97
        %p311 = pneg %p94
        %p312 = pneg %p118
        %p313 = pneg %p115
        %p314 = pneg %p144
        %p315 = pneg %p141
        %s316 = smul.u32 16, %s19
        %p317 = scmp.lt.s32.totalorder %s316, 15
        %s318 = scalar_select %p317, %s316, 15
        %s319 = smul.addr %s318, 8
        %s320 = scalar_lea.vmem %s4, %s319
        %s321 = smul.u32 16, %s19
        %s322 = smul.u32 2, %s20
        %s323 = smul.u32 32, %s20
        %p324 = scmp.lt.s32.totalorder %s323, 95
        %s325 = scalar_select %p324, %s323, 95
        %s326 = smul.addr %s325, 4
        %s327 = scalar_lea.vmem %s1, %s326
        %s328 = smul.u32 32, %s20
        %s329 = smul.u32 16, %s19
        %p330 = scmp.lt.s32.totalorder %s329, 15
        %s331 = scalar_select %p330, %s329, 15
        %s332 = smul.addr %s331, 8
        %s333 = scalar_lea.vmem %s4, %s332
        %s334 = smul.u32 16, %s19
        %p336 = scmp.eq.s32.totalorder %s20, 0
        // Predicated region
        $region75: #{_lambda_.15} parent=69 // pred_check
          %p337 = pneg %p336
        $region76: #{_lambda_.15} parent=69 // pred_check_branch
          %339 = sbr.rel (%p337) target = $region78
        $region77: #{_lambda_.15} parent=69 // pred_region
          %340 = vst [vmem:[%s333] sm:$0xff] 0.0
          %341 = vst [vmem:[%s333 + $0x8] sm:$0xff] 0.0
          %342 = vst [vmem:[%s333 + $0x10] sm:$0xff] 0.0
          %343 = vst [vmem:[%s333 + $0x18] sm:$0xff] 0.0
          %344 = vst [vmem:[%s333 + $0x20] sm:$0xff] 0.0
          %345 = vst [vmem:[%s333 + $0x28] sm:$0xff] 0.0
          %346 = vst [vmem:[%s333 + $0x30] sm:$0xff] 0.0
          %347 = vst [vmem:[%s333 + $0x38] sm:$0xff] 0.0
          %348 = vst [vmem:[%s333 + $0x40] sm:$0xff] 0.0
          %349 = vst [vmem:[%s333 + $0x48] sm:$0xff] 0.0
          %350 = vst [vmem:[%s333 + $0x50] sm:$0xff] 0.0
          %351 = vst [vmem:[%s333 + $0x58] sm:$0xff] 0.0
          %352 = vst [vmem:[%s333 + $0x60] sm:$0xff] 0.0
          %353 = vst [vmem:[%s333 + $0x68] sm:$0xff] 0.0
          %354 = vst [vmem:[%s333 + $0x70] sm:$0xff] 0.0
          %355 = vst [vmem:[%s333 + $0x78] sm:$0xff] 0.0
        $region78: #{_lambda_.15} parent=69 // pred_fallthru
          _
        %v356 = vld [vmem:[%s333] sm:$0xff]
        %v357 = vld [vmem:[%s333 + $0x8] sm:$0xff]
        %v358 = vld [vmem:[%s333 + $0x10] sm:$0xff]
        %v359 = vld [vmem:[%s333 + $0x18] sm:$0xff]
        %v360 = vld [vmem:[%s333 + $0x20] sm:$0xff]
        %v361 = vld [vmem:[%s333 + $0x28] sm:$0xff]
        %v362 = vld [vmem:[%s333 + $0x30] sm:$0xff]
        %v363 = vld [vmem:[%s333 + $0x38] sm:$0xff]
        %v364 = vld [vmem:[%s333 + $0x40] sm:$0xff]
        %v365 = vld [vmem:[%s333 + $0x48] sm:$0xff]
        %v366 = vld [vmem:[%s333 + $0x50] sm:$0xff]
        %v367 = vld [vmem:[%s333 + $0x58] sm:$0xff]
        %v368 = vld [vmem:[%s333 + $0x60] sm:$0xff]
        %v369 = vld [vmem:[%s333 + $0x68] sm:$0xff]
        %v370 = vld [vmem:[%s333 + $0x70] sm:$0xff]
        %v371 = vld [vmem:[%s333 + $0x78] sm:$0xff]
        %v372 = vld [vmem:[%s293] sm:$0xff]
        %v373 = vld [vmem:[%s293 + $0x8] sm:$0xff]
        %v374 = vld [vmem:[%s293 + $0x10] sm:$0xff]
        %v375 = vld [vmem:[%s293 + $0x18] sm:$0xff]
        %v376 = vld [vmem:[%s293 + $0x20] sm:$0xff]
        %v377 = vld [vmem:[%s293 + $0x28] sm:$0xff]
        %v378 = vld [vmem:[%s293 + $0x30] sm:$0xff]
        %v379 = vld [vmem:[%s293 + $0x38] sm:$0xff]
        %v380 = vld [vmem:[%s293 + $0x40] sm:$0xff]
        %v381 = vld [vmem:[%s293 + $0x48] sm:$0xff]
        %v382 = vld [vmem:[%s293 + $0x50] sm:$0xff]
        %v383 = vld [vmem:[%s293 + $0x58] sm:$0xff]
        %v384 = vld [vmem:[%s293 + $0x60] sm:$0xff]
        %v385 = vld [vmem:[%s293 + $0x68] sm:$0xff]
        %v386 = vld [vmem:[%s293 + $0x70] sm:$0xff]
        %v387 = vld [vmem:[%s293 + $0x78] sm:$0xff]
        %v388 = vld [vmem:[%s327] sm:$0xf]
        %v389 = vld [vmem:[%s327 + $0x4] sm:$0xf]
        %v390 = vld [vmem:[%s327 + $0x8] sm:$0xf]
        %v391 = vld [vmem:[%s327 + $0xc] sm:$0xf]
        %v392 = vld [vmem:[%s327 + $0x10] sm:$0xf]
        %v393 = vld [vmem:[%s327 + $0x14] sm:$0xf]
        %v394 = vld [vmem:[%s327 + $0x18] sm:$0xf]
        %v395 = vld [vmem:[%s327 + $0x1c] sm:$0xf]
        %v396 = vld [vmem:[%s327 + $0x20] sm:$0xf]
        %v397 = vld [vmem:[%s327 + $0x24] sm:$0xf]
        %v398 = vld [vmem:[%s327 + $0x28] sm:$0xf]
        %v399 = vld [vmem:[%s327 + $0x2c] sm:$0xf]
        %v400 = vld [vmem:[%s327 + $0x30] sm:$0xf]
        %v401 = vld [vmem:[%s327 + $0x34] sm:$0xf]
        %v402 = vld [vmem:[%s327 + $0x38] sm:$0xf]
        %v403 = vld [vmem:[%s327 + $0x3c] sm:$0xf]
        %v404 = vld [vmem:[%s327 + $0x40] sm:$0xf]
        %v405 = vld [vmem:[%s327 + $0x44] sm:$0xf]
        %v406 = vld [vmem:[%s327 + $0x48] sm:$0xf]
        %v407 = vld [vmem:[%s327 + $0x4c] sm:$0xf]
        %v408 = vld [vmem:[%s327 + $0x50] sm:$0xf]
        %v409 = vld [vmem:[%s327 + $0x54] sm:$0xf]
        %v410 = vld [vmem:[%s327 + $0x58] sm:$0xf]
        %v411 = vld [vmem:[%s327 + $0x5c] sm:$0xf]
        %v412 = vld [vmem:[%s327 + $0x60] sm:$0xf]
        %v413 = vld [vmem:[%s327 + $0x64] sm:$0xf]
        %v414 = vld [vmem:[%s327 + $0x68] sm:$0xf]
        %v415 = vld [vmem:[%s327 + $0x6c] sm:$0xf]
        %v416 = vld [vmem:[%s327 + $0x70] sm:$0xf]
        %v417 = vld [vmem:[%s327 + $0x74] sm:$0xf]
        %v418 = vld [vmem:[%s327 + $0x78] sm:$0xf]
        %v419 = vld [vmem:[%s327 + $0x7c] sm:$0xf]
        %v436 = vunpack.c.l.b16 %v372
        %v437 = vunpack.c.h.b16 %v372
        %v438 = vunpack.c.l.b16 %v373
        %v439 = vunpack.c.h.b16 %v373
        %v440 = vunpack.c.l.b16 %v374
        %v441 = vunpack.c.h.b16 %v374
        %v442 = vunpack.c.l.b16 %v375
        %v443 = vunpack.c.h.b16 %v375
        %v444 = vunpack.c.l.b16 %v376
        %v445 = vunpack.c.h.b16 %v376
        %v446 = vunpack.c.l.b16 %v377
        %v447 = vunpack.c.h.b16 %v377
        %v448 = vunpack.c.l.b16 %v378
        %v449 = vunpack.c.h.b16 %v378
        %v450 = vunpack.c.l.b16 %v379
        %v451 = vunpack.c.h.b16 %v379
        %v452 = vunpack.c.l.b16 %v380
        %v453 = vunpack.c.h.b16 %v380
        %v454 = vunpack.c.l.b16 %v381
        %v455 = vunpack.c.h.b16 %v381
        %v456 = vunpack.c.l.b16 %v382
        %v457 = vunpack.c.h.b16 %v382
        %v458 = vunpack.c.l.b16 %v383
        %v459 = vunpack.c.h.b16 %v383
        %v460 = vunpack.c.l.b16 %v384
        %v461 = vunpack.c.h.b16 %v384
        %v462 = vunpack.c.l.b16 %v385
        %v463 = vunpack.c.h.b16 %v385
        %v464 = vunpack.c.l.b16 %v386
        %v465 = vunpack.c.h.b16 %v386
        %v466 = vunpack.c.l.b16 %v387
        %v467 = vunpack.c.h.b16 %v387
        %v468 = vpack.c.b16 %v438, %v436
        %v469 = vpack.c.b16 %v439, %v437
        %v470 = vpack.c.b16 %v442, %v440
        %v471 = vpack.c.b16 %v443, %v441
        %v472 = vpack.c.b16 %v446, %v444
        %v473 = vpack.c.b16 %v447, %v445
        %v474 = vpack.c.b16 %v450, %v448
        %v475 = vpack.c.b16 %v451, %v449
        %v476 = vpack.c.b16 %v454, %v452
        %v477 = vpack.c.b16 %v455, %v453
        %v478 = vpack.c.b16 %v458, %v456
        %v479 = vpack.c.b16 %v459, %v457
        %v480 = vpack.c.b16 %v462, %v460
        %v481 = vpack.c.b16 %v463, %v461
        %v482 = vpack.c.b16 %v466, %v464
        %v483 = vpack.c.b16 %v467, %v465
        %v532 = vunpack.c.l.b16 %v388
        %v533 = vunpack.c.l.b16 %v389
        %v534 = vunpack.c.l.b16 %v390
        %v535 = vunpack.c.l.b16 %v391
        %v536 = vunpack.c.l.b16 %v392
        %v537 = vunpack.c.l.b16 %v393
        %v538 = vunpack.c.l.b16 %v394
        %v539 = vunpack.c.l.b16 %v395
        %v540 = vunpack.c.l.b16 %v396
        %v541 = vunpack.c.l.b16 %v397
        %v542 = vunpack.c.l.b16 %v398
        %v543 = vunpack.c.l.b16 %v399
        %v544 = vunpack.c.l.b16 %v400
        %v545 = vunpack.c.l.b16 %v401
        %v546 = vunpack.c.l.b16 %v402
        %v547 = vunpack.c.l.b16 %v403
        %v548 = vunpack.c.l.b16 %v404
        %v549 = vunpack.c.l.b16 %v405
        %v550 = vunpack.c.l.b16 %v406
        %v551 = vunpack.c.l.b16 %v407
        %v552 = vunpack.c.l.b16 %v408
        %v553 = vunpack.c.l.b16 %v409
        %v554 = vunpack.c.l.b16 %v410
        %v555 = vunpack.c.l.b16 %v411
        %v556 = vunpack.c.l.b16 %v412
        %v557 = vunpack.c.l.b16 %v413
        %v558 = vunpack.c.l.b16 %v414
        %v559 = vunpack.c.l.b16 %v415
        %v560 = vunpack.c.l.b16 %v416
        %v561 = vunpack.c.l.b16 %v417
        %v562 = vunpack.c.l.b16 %v418
        %v563 = vunpack.c.l.b16 %v419
        %v564 = vpack.c.b16 %v533, %v532
        %v565 = vpack.c.b16 %v535, %v534
        %v566 = vpack.c.b16 %v537, %v536
        %v567 = vpack.c.b16 %v539, %v538
        %v568 = vpack.c.b16 %v541, %v540
        %v569 = vpack.c.b16 %v543, %v542
        %v570 = vpack.c.b16 %v545, %v544
        %v571 = vpack.c.b16 %v547, %v546
        %v572 = vpack.c.b16 %v549, %v548
        %v573 = vpack.c.b16 %v551, %v550
        %v574 = vpack.c.b16 %v553, %v552
        %v575 = vpack.c.b16 %v555, %v554
        %v576 = vpack.c.b16 %v557, %v556
        %v577 = vpack.c.b16 %v559, %v558
        %v578 = vpack.c.b16 %v561, %v560
        %v579 = vpack.c.b16 %v563, %v562
        %596 = vmatprep.subr.bf16.mxu0 0
        %597 = vmatpush1.bf16.msra.mxu0 %v564
        %598 = vmatprep.subr.bf16.mxu0 0
        %599 = vmatpush1.bf16.msra.mxu0 %v565
        %600 = vmatprep.subr.bf16.mxu0 0
        %601 = vmatpush1.bf16.msra.mxu0 %v566
        %602 = vmatprep.subr.bf16.mxu0 0
        %603 = vmatpush1.bf16.msra.mxu0 %v567
        %604 = vmatprep.subr.bf16.mxu0 0
        %605 = vmatpush1.bf16.msra.mxu0 %v568
        %606 = vmatprep.subr.bf16.mxu0 0
        %607 = vmatpush1.bf16.msra.mxu0 %v569
        %608 = vmatprep.subr.bf16.mxu0 0
        %609 = vmatpush1.bf16.msra.mxu0 %v570
        %610 = vmatprep.subr.bf16.mxu0 0
        %611 = vmatpush1.bf16.msra.mxu0 %v571
        %612 = vmatprep.subr.bf16.mxu0 0
        %613 = vmatpush1.bf16.msra.mxu0 %v572
        %614 = vmatprep.subr.bf16.mxu0 0
        %615 = vmatpush1.bf16.msra.mxu0 %v573
        %616 = vmatprep.subr.bf16.mxu0 0
        %617 = vmatpush1.bf16.msra.mxu0 %v574
        %618 = vmatprep.subr.bf16.mxu0 0
        %619 = vmatpush1.bf16.msra.mxu0 %v575
        %620 = vmatprep.subr.bf16.mxu0 0
        %621 = vmatpush1.bf16.msra.mxu0 %v576
        %622 = vmatprep.subr.bf16.mxu0 0
        %623 = vmatpush1.bf16.msra.mxu0 %v577
        %624 = vmatprep.subr.bf16.mxu0 0
        %625 = vmatpush1.bf16.msra.mxu0 %v578
        %626 = vmatprep.subr.bf16.mxu0 0
        %627 = vmatpush1.bf16.msra.mxu0 %v579
        %628 = vmatprep.mubr.bf16.mxu0 %v469
        %629 = vmatmul.mubr.bf16.gmra.mrb[0].mxu0 %v468
        %v630 = vpop.f32.mrb[0].mxu0
        %v631 = vadd.f32 0.0, %v630
        %v632 = vpop.f32.mrb[0].mxu0
        %v633 = vpop.f32.mrb[0].mxu0
        %v634 = vadd.f32 0.0, %v633
        %v635 = vpop.f32.mrb[0].mxu0
        %636 = vmatprep.mubr.bf16.mxu0 %v471
        %637 = vmatmul.mubr.bf16.gmra.mrb[0].mxu0 %v470
        %v638 = vpop.f32.mrb[0].mxu0
        %v639 = vadd.f32 0.0, %v638
        %v640 = vpop.f32.mrb[0].mxu0
        %v641 = vpop.f32.mrb[0].mxu0
        %v642 = vadd.f32 0.0, %v641
        %v643 = vpop.f32.mrb[0].mxu0
        %644 = vmatprep.mubr.bf16.mxu0 %v473
        %645 = vmatmul.mubr.bf16.gmra.mrb[0].mxu0 %v472
        %v646 = vpop.f32.mrb[0].mxu0
        %v647 = vadd.f32 0.0, %v646
        %v648 = vpop.f32.mrb[0].mxu0
        %v649 = vpop.f32.mrb[0].mxu0
        %v650 = vadd.f32 0.0, %v649
        %v651 = vpop.f32.mrb[0].mxu0
        %652 = vmatprep.mubr.bf16.mxu0 %v475
        %653 = vmatmul.mubr.bf16.gmra.mrb[0].mxu0 %v474
        %v654 = vpop.f32.mrb[0].mxu0
        %v655 = vadd.f32 0.0, %v654
        %v656 = vpop.f32.mrb[0].mxu0
        %v657 = vpop.f32.mrb[0].mxu0
        %v658 = vadd.f32 0.0, %v657
        %v659 = vpop.f32.mrb[0].mxu0
        %660 = vmatprep.mubr.bf16.mxu0 %v477
        %661 = vmatmul.mubr.bf16.gmra.mrb[0].mxu0 %v476
        %v662 = vpop.f32.mrb[0].mxu0
        %v663 = vadd.f32 0.0, %v662
        %v664 = vpop.f32.mrb[0].mxu0
        %v665 = vpop.f32.mrb[0].mxu0
        %v666 = vadd.f32 0.0, %v665
        %v667 = vpop.f32.mrb[0].mxu0
        %668 = vmatprep.mubr.bf16.mxu0 %v479
        %669 = vmatmul.mubr.bf16.gmra.mrb[0].mxu0 %v478
        %v670 = vpop.f32.mrb[0].mxu0
        %v671 = vadd.f32 0.0, %v670
        %v672 = vpop.f32.mrb[0].mxu0
        %v673 = vpop.f32.mrb[0].mxu0
        %v674 = vadd.f32 0.0, %v673
        %v675 = vpop.f32.mrb[0].mxu0
        %676 = vmatprep.mubr.bf16.mxu0 %v481
        %677 = vmatmul.mubr.bf16.gmra.mrb[0].mxu0 %v480
        %v678 = vpop.f32.mrb[0].mxu0
        %v679 = vadd.f32 0.0, %v678
        %v680 = vpop.f32.mrb[0].mxu0
        %v681 = vpop.f32.mrb[0].mxu0
        %v682 = vadd.f32 0.0, %v681
        %v683 = vpop.f32.mrb[0].mxu0
        %684 = vmatprep.mubr.bf16.mxu0 %v483
        %685 = vmatmul.mubr.bf16.gmra.mrb[0].mxu0 %v482
        %v686 = vpop.f32.mrb[0].mxu0
        %v687 = vadd.f32 0.0, %v686
        %v688 = vpop.f32.mrb[0].mxu0
        %v689 = vpop.f32.mrb[0].mxu0
        %v690 = vadd.f32 0.0, %v689
        %v691 = vpop.f32.mrb[0].mxu0
        %692 = vdwg.mxu0
        %v693 = vadd.f32 %v356, %v631
        %v694 = vadd.f32 %v357, %v634
        %v695 = vadd.f32 %v358, %v639
        %v696 = vadd.f32 %v359, %v642
        %v697 = vadd.f32 %v360, %v647
        %v698 = vadd.f32 %v361, %v650
        %v699 = vadd.f32 %v362, %v655
        %v700 = vadd.f32 %v363, %v658
        %v701 = vadd.f32 %v364, %v663
        %v702 = vadd.f32 %v365, %v666
        %v703 = vadd.f32 %v366, %v671
        %v704 = vadd.f32 %v367, %v674
        %v705 = vadd.f32 %v368, %v679
        %v706 = vadd.f32 %v369, %v682
        %v707 = vadd.f32 %v370, %v687
        %v708 = vadd.f32 %v371, %v690
        %709 = vst [vmem:[%s333] sm:$0xff] %v693
        %710 = vst [vmem:[%s333 + $0x8] sm:$0xff] %v694
        %711 = vst [vmem:[%s333 + $0x10] sm:$0xff] %v695
        %712 = vst [vmem:[%s333 + $0x18] sm:$0xff] %v696
        %713 = vst [vmem:[%s333 + $0x20] sm:$0xff] %v697
        %714 = vst [vmem:[%s333 + $0x28] sm:$0xff] %v698
        %715 = vst [vmem:[%s333 + $0x30] sm:$0xff] %v699
        %716 = vst [vmem:[%s333 + $0x38] sm:$0xff] %v700
        %717 = vst [vmem:[%s333 + $0x40] sm:$0xff] %v701
        %718 = vst [vmem:[%s333 + $0x48] sm:$0xff] %v702
        %719 = vst [vmem:[%s333 + $0x50] sm:$0xff] %v703
        %720 = vst [vmem:[%s333 + $0x58] sm:$0xff] %v704
        %721 = vst [vmem:[%s333 + $0x60] sm:$0xff] %v705
        %722 = vst [vmem:[%s333 + $0x68] sm:$0xff] %v706
        %723 = vst [vmem:[%s333 + $0x70] sm:$0xff] %v707
        %724 = vst [vmem:[%s333 + $0x78] sm:$0xff] %v708
        %p725 = scmp.eq.s32.totalorder %s20, 2
        // Predicated region
        $region79: #{_lambda_.15} parent=69 // pred_check
          %p726 = pneg %p725
        $region80: #{_lambda_.15} parent=69 // pred_check_branch
          %728 = sbr.rel (%p726) target = $region82
        $region81: #{_lambda_.15} parent=69 // pred_region
          %v729 = vld [vmem:[%s333] sm:$0xff]
          %v730 = vld [vmem:[%s333 + $0x8] sm:$0xff]
          %v731 = vld [vmem:[%s333 + $0x10] sm:$0xff]
          %v732 = vld [vmem:[%s333 + $0x18] sm:$0xff]
          %v733 = vld [vmem:[%s333 + $0x20] sm:$0xff]
          %v734 = vld [vmem:[%s333 + $0x28] sm:$0xff]
          %v735 = vld [vmem:[%s333 + $0x30] sm:$0xff]
          %v736 = vld [vmem:[%s333 + $0x38] sm:$0xff]
          %v737 = vld [vmem:[%s333 + $0x40] sm:$0xff]
          %v738 = vld [vmem:[%s333 + $0x48] sm:$0xff]
          %v739 = vld [vmem:[%s333 + $0x50] sm:$0xff]
          %v740 = vld [vmem:[%s333 + $0x58] sm:$0xff]
          %v741 = vld [vmem:[%s333 + $0x60] sm:$0xff]
          %v742 = vld [vmem:[%s333 + $0x68] sm:$0xff]
          %v743 = vld [vmem:[%s333 + $0x70] sm:$0xff]
          %v744 = vld [vmem:[%s333 + $0x78] sm:$0xff]
          %v745 = vld [vmem:[%s2] sm:$0x1]
          %v747 = vlaneseq
          %v748 = vshrl.u32 %v747, 7
          %v749 = vsub.s32 0, %v748
          %v750 = vrot.slane %v745, %v749
          %v752 = vmul.f32 %v729, %v750
          %v753 = vmul.f32 %v730, %v750
          %v754 = vmul.f32 %v731, %v750
          %v755 = vmul.f32 %v732, %v750
          %v756 = vmul.f32 %v733, %v750
          %v757 = vmul.f32 %v734, %v750
          %v758 = vmul.f32 %v735, %v750
          %v759 = vmul.f32 %v736, %v750
          %v760 = vmul.f32 %v737, %v750
          %v761 = vmul.f32 %v738, %v750
          %v762 = vmul.f32 %v739, %v750
          %v763 = vmul.f32 %v740, %v750
          %v764 = vmul.f32 %v741, %v750
          %v765 = vmul.f32 %v742, %v750
          %v766 = vmul.f32 %v743, %v750
          %v767 = vmul.f32 %v744, %v750
          %v768 = vld [vmem:[%s3] sm:$0x1]
          %v770 = vlaneseq
          %v771 = vshrl.u32 %v770, 7
          %v772 = vsub.s32 0, %v771
          %v773 = vrot.slane %v768, %v772
          %v775 = vadd.f32 %v752, %v773
          %v776 = vadd.f32 %v753, %v773
          %v777 = vadd.f32 %v754, %v773
          %v778 = vadd.f32 %v755, %v773
          %v779 = vadd.f32 %v756, %v773
          %v780 = vadd.f32 %v757, %v773
          %v781 = vadd.f32 %v758, %v773
          %v782 = vadd.f32 %v759, %v773
          %v783 = vadd.f32 %v760, %v773
          %v784 = vadd.f32 %v761, %v773
          %v785 = vadd.f32 %v762, %v773
          %v786 = vadd.f32 %v763, %v773
          %v787 = vadd.f32 %v764, %v773
          %v788 = vadd.f32 %v765, %v773
          %v789 = vadd.f32 %v766, %v773
          %v790 = vadd.f32 %v767, %v773
          %vm791 = vcmp.ge.f32.partialorder %v775, 0.0
          %vm792 = vcmp.ge.f32.partialorder %v776, 0.0
          %vm793 = vcmp.ge.f32.partialorder %v777, 0.0
          %vm794 = vcmp.ge.f32.partialorder %v778, 0.0
          %vm795 = vcmp.ge.f32.partialorder %v779, 0.0
          %vm796 = vcmp.ge.f32.partialorder %v780, 0.0
          %vm797 = vcmp.ge.f32.partialorder %v781, 0.0
          %vm798 = vcmp.ge.f32.partialorder %v782, 0.0
          %vm799 = vcmp.ge.f32.partialorder %v783, 0.0
          %vm800 = vcmp.ge.f32.partialorder %v784, 0.0
          %vm801 = vcmp.ge.f32.partialorder %v785, 0.0
          %vm802 = vcmp.ge.f32.partialorder %v786, 0.0
          %vm803 = vcmp.ge.f32.partialorder %v787, 0.0
          %vm804 = vcmp.ge.f32.partialorder %v788, 0.0
          %vm805 = vcmp.ge.f32.partialorder %v789, 0.0
          %vm806 = vcmp.ge.f32.partialorder %v790, 0.0
          %v807 = vmul.f32 %v775, 0.01
          %v808 = vmul.f32 %v776, 0.01
          %v809 = vmul.f32 %v777, 0.01
          %v810 = vmul.f32 %v778, 0.01
          %v811 = vmul.f32 %v779, 0.01
          %v812 = vmul.f32 %v780, 0.01
          %v813 = vmul.f32 %v781, 0.01
          %v814 = vmul.f32 %v782, 0.01
          %v815 = vmul.f32 %v783, 0.01
          %v816 = vmul.f32 %v784, 0.01
          %v817 = vmul.f32 %v785, 0.01
          %v818 = vmul.f32 %v786, 0.01
          %v819 = vmul.f32 %v787, 0.01
          %v820 = vmul.f32 %v788, 0.01
          %v821 = vmul.f32 %v789, 0.01
          %v822 = vmul.f32 %v790, 0.01
          %v823 = vsel %vm791, %v775, %v807
          %v824 = vsel %vm792, %v776, %v808
          %v825 = vsel %vm793, %v777, %v809
          %v826 = vsel %vm794, %v778, %v810
          %v827 = vsel %vm795, %v779, %v811
          %v828 = vsel %vm796, %v780, %v812
          %v829 = vsel %vm797, %v781, %v813
          %v830 = vsel %vm798, %v782, %v814
          %v831 = vsel %vm799, %v783, %v815
          %v832 = vsel %vm800, %v784, %v816
          %v833 = vsel %vm801, %v785, %v817
          %v834 = vsel %vm802, %v786, %v818
          %v835 = vsel %vm803, %v787, %v819
          %v836 = vsel %vm804, %v788, %v820
          %v837 = vsel %vm805, %v789, %v821
          %v838 = vsel %vm806, %v790, %v822
          %839 = vst [vmem:[%s333] sm:$0xff] %v823
          %840 = vst [vmem:[%s333 + $0x8] sm:$0xff] %v824
          %841 = vst [vmem:[%s333 + $0x10] sm:$0xff] %v825
          %842 = vst [vmem:[%s333 + $0x18] sm:$0xff] %v826
          %843 = vst [vmem:[%s333 + $0x20] sm:$0xff] %v827
          %844 = vst [vmem:[%s333 + $0x28] sm:$0xff] %v828
          %845 = vst [vmem:[%s333 + $0x30] sm:$0xff] %v829
          %846 = vst [vmem:[%s333 + $0x38] sm:$0xff] %v830
          %847 = vst [vmem:[%s333 + $0x40] sm:$0xff] %v831
          %848 = vst [vmem:[%s333 + $0x48] sm:$0xff] %v832
          %849 = vst [vmem:[%s333 + $0x50] sm:$0xff] %v833
          %850 = vst [vmem:[%s333 + $0x58] sm:$0xff] %v834
          %851 = vst [vmem:[%s333 + $0x60] sm:$0xff] %v835
          %852 = vst [vmem:[%s333 + $0x68] sm:$0xff] %v836
          %853 = vst [vmem:[%s333 + $0x70] sm:$0xff] %v837
          %854 = vst [vmem:[%s333 + $0x78] sm:$0xff] %v838
        $region82: #{_lambda_.15} parent=69 // pred_fallthru
          _
        %s855 = smul.u32 16, %s19
        %p856 = scmp.lt.s32.totalorder %s855, 15
        %s857 = scalar_select %p856, %s855, 15
        %s858 = smul.addr %s857, 8
        %s859 = scalar_lea.vmem %s4, %s858
        // Predicated region
        $region83: #{_lambda_.15} parent=69 // pred_check
          %p860 = pneg %p141
        $region84: #{_lambda_.15} parent=69 // pred_check_branch
          %862 = sbr.rel (%p860) target = $region86
        $region85: #{_lambda_.15} parent=69 // pred_region
          %s863 = smul.u32 16, %s19
        $region86: #{_lambda_.15} parent=69 // pred_fallthru
          _
        // Predicated region
        $region87: #{_lambda_.15} parent=69 // pred_check
          %p864 = pneg %p141
        $region88: #{_lambda_.15} parent=69 // pred_check_branch
          %866 = sbr.rel (%p864) target = $region90
        $region89: #{_lambda_.15} parent=69 // pred_region
          %s867 = smul.u32 16, %s19
          %p868 = scmp.lt.s32.totalorder %s867, 15
          %s869 = scalar_select %p868, %s867, 15
          %s870 = smul.addr %s869, 8
          %s871 = scalar_lea.vmem %s4, %s870
        $region90: #{_lambda_.15} parent=69 // pred_fallthru
          _
      $region70: #{_lambda_.15} parent=5 // pred_fallthru
        _
      %p872 = scmp.le.s32.totalorder 2, %s10
      // Predicated region
      $region91: #{_lambda_.15} parent=5 // pred_check
        %p873 = pneg %p872
      $region92: #{_lambda_.15} parent=5 // pred_check_branch
        %875 = sbr.rel (%p873) target = $region94
      $region93: #{_lambda_.15} parent=5 // pred_region
        %s876 = ssub.s32 %s10, 2
      $region94: #{_lambda_.15} parent=5 // pred_fallthru
        _
    $region6: #{_lambda_.15} parent=1 // loop_footer
      %s14 = sadd.s32 1, %s10
    $region7: #{_lambda_.15} parent=1 // loop_footer_branch
      %9 = sbr.rel target = $region3
    $region8: #{_lambda_.15} parent=1 // loop_exit
      _

// kernel: _lambda_.16
$region0: #{_lambda_.16}
  #allocation0 [shape = 'u32[]', space=smem, size = 0x4, offset = 0x4, fixed_abs, tag = 'smem constant byte address 0x4 - core index']
  #allocation1 [shape = 'u32[144,128]{1,0:T(1,128)}', space=vmem, size = 0x12000, scoped, tag = 'internal scratch']
  %s0 = inlined_call_operand.vmem [shape: bf16[128,768], index: 0, kind: input, shape index: {}]
  %s1 = inlined_call_operand.vmem [shape: bf16[768,128], index: 1, kind: input, shape index: {}]
  %s2 = inlined_call_operand.vmem [shape: f32[1,128], index: 2, kind: input, shape index: {}]
  %s3 = inlined_call_operand.vmem [shape: f32[1,128], index: 3, kind: input, shape index: {}]
  %s4 = inlined_call_operand.vmem [shape: f32[128,128], index: 4, kind: input, shape index: {}]
  %s5 = inlined_call_operand.vmem [shape: f32[128,128], index: 5, kind: output, shape index: {}]
  %s6 = sld [smem:[#allocation0]]
  $region99: #{_lambda_.16} parent=0
    _
  %s8 = ssub.s32 1, %s6
  %s9 = scalar_select 0, %s8, %s6
  $region1: #{_lambda_.16} parent=0
    #allocation2 [shape = 'u8[131072]{0}', space=vmem, size = 0x20000, scoped, tag = 'input window, operand 0']
    loop: start=0, step=1, limit=5
    $region2: #{_lambda_.16} parent=1 // loop_pre_header
      _
    $region3: #{_lambda_.16} parent=1 // loop_header
      %s11 = sphi 0, %s15
      %p12 = scmp.ge.s32.totalorder %s11, 5
      %s18 = sphi 0, %s30
      %s19 = sphi 0, %s26
      %s20 = sphi 0, %s18
      %s21 = sphi 0, %s19
      %s22 = sphi 0, %s20
      %s23 = sphi 0, %s21
      %s35 = sphi 0, %s37
      %s38 = sphi 0, %s35
      %s39 = sphi 0, %s38
      %s55 = sphi 0, %s39
      %s61 = sphi 0, %s63
      %s64 = sphi 0, %s61
      %s65 = sphi 0, %s64
      %s81 = sphi 0, %s65
      %s85 = sphi 0, %s85
      %s87 = sphi 0, %s85
      %s88 = sphi 0, %s87
      %s102 = sphi 0, %s88
      %s106 = sphi 0, %s106
      %s108 = sphi 0, %s106
      %s109 = sphi 0, %s108
      %s123 = sphi 0, %s109
      %s129 = sphi 0, %s131
      %s132 = sphi 0, %s129
      %s133 = sphi 0, %s132
      %s149 = sphi 0, %s133
      %s155 = sphi 0, %s157
      %s158 = sphi 0, %s155
      %s159 = sphi 0, %s158
      %s175 = sphi 0, %s159
    $region4: #{_lambda_.16} parent=1 // loop_header_branch
      %14 = sbr.rel (%p12) target = $region8
    $region5: #{_lambda_.16} parent=1 // loop_body
      %s16 = ssub.s32 %s11, 1
      %s17 = ssub.s32 %s11, 2
      %s24 = sadd.s32 1, %s19
      %p25 = scmp.ge.s32.totalorder %s24, 3
      %s26 = scalar_select %p25, 0, %s24
      %s27 = sadd.s32 1, %s18
      %s28 = scalar_select %p25, %s27, %s18
      %p29 = scmp.ge.s32.totalorder %s28, 1
      %s30 = scalar_select %p29, 0, %s28
      %s31 = ssub.s32 %s18, %s30
      %s32 = ssub.s32 %s19, %s26
      %s33 = sor.u32 %s31, %s32
      %p34 = scmp.eq.s32.totalorder %s33, 0
      %s36 = sadd.s32 %s35, 1
      %s37 = scalar_select %p34, %s35, %s36
      %p40 = pneg %p34
      %p41 = scmp.eq.s32.totalorder %s11, 2
      %p42 = por %p40, %p41
      %p43 = scmp.ne.s32.totalorder %s35, %s38
      %p44 = scmp.eq.s32.totalorder %s11, 0
      %p45 = por %p43, %p44
      %p46 = scmp.ne.s32.totalorder %s35, %s38
      %p47 = scmp.eq.s32.totalorder %s16, 2
      %p48 = por %p46, %p47
      %p49 = scmp.ne.s32.totalorder %s38, %s39
      %p50 = scmp.eq.s32.totalorder %s16, 0
      %p51 = por %p49, %p50
      %p52 = scmp.ne.s32.totalorder %s38, %s39
      %p53 = scmp.eq.s32.totalorder %s17, 2
      %p54 = por %p52, %p53
      %p56 = scmp.ne.s32.totalorder %s39, %s55
      %p57 = scmp.eq.s32.totalorder %s17, 0
      %p58 = por %p56, %p57
      %s59 = ssub.s32 %s19, %s26
      %p60 = scmp.eq.s32.totalorder %s59, 0
      %s62 = sadd.s32 %s61, 1
      %s63 = scalar_select %p60, %s61, %s62
      %p66 = pneg %p60
      %p67 = scmp.eq.s32.totalorder %s11, 2
      %p68 = por %p66, %p67
      %p69 = scmp.ne.s32.totalorder %s61, %s64
      %p70 = scmp.eq.s32.totalorder %s11, 0
      %p71 = por %p69, %p70
      %p72 = scmp.ne.s32.totalorder %s61, %s64
      %p73 = scmp.eq.s32.totalorder %s16, 2
      %p74 = por %p72, %p73
      %p75 = scmp.ne.s32.totalorder %s64, %s65
      %p76 = scmp.eq.s32.totalorder %s16, 0
      %p77 = por %p75, %p76
      %p78 = scmp.ne.s32.totalorder %s64, %s65
      %p79 = scmp.eq.s32.totalorder %s17, 2
      %p80 = por %p78, %p79
      %p82 = scmp.ne.s32.totalorder %s65, %s81
      %p83 = scmp.eq.s32.totalorder %s17, 0
      %p84 = por %p82, %p83
      %s86 = sadd.s32 %s85, 1
      %p89 = scmp.eq.s32.totalorder %s11, 2
      %p90 = scmp.ne.s32.totalorder %s85, %s87
      %p91 = scmp.eq.s32.totalorder %s11, 0
      %p92 = por %p90, %p91
      %p93 = scmp.ne.s32.totalorder %s85, %s87
      %p94 = scmp.eq.s32.totalorder %s16, 2
      %p95 = por %p93, %p94
      %p96 = scmp.ne.s32.totalorder %s87, %s88
      %p97 = scmp.eq.s32.totalorder %s16, 0
      %p98 = por %p96, %p97
      %p99 = scmp.ne.s32.totalorder %s87, %s88
      %p100 = scmp.eq.s32.totalorder %s17, 2
      %p101 = por %p99, %p100
      %p103 = scmp.ne.s32.totalorder %s88, %s102
      %p104 = scmp.eq.s32.totalorder %s17, 0
      %p105 = por %p103, %p104
      %s107 = sadd.s32 %s106, 1
      %p110 = scmp.eq.s32.totalorder %s11, 2
      %p111 = scmp.ne.s32.totalorder %s106, %s108
      %p112 = scmp.eq.s32.totalorder %s11, 0
      %p113 = por %p111, %p112
      %p114 = scmp.ne.s32.totalorder %s106, %s108
      %p115 = scmp.eq.s32.totalorder %s16, 2
      %p116 = por %p114, %p115
      %p117 = scmp.ne.s32.totalorder %s108, %s109
      %p118 = scmp.eq.s32.totalorder %s16, 0
      %p119 = por %p117, %p118
      %p120 = scmp.ne.s32.totalorder %s108, %s109
      %p121 = scmp.eq.s32.totalorder %s17, 2
      %p122 = por %p120, %p121
      %p124 = scmp.ne.s32.totalorder %s109, %s123
      %p125 = scmp.eq.s32.totalorder %s17, 0
      %p126 = por %p124, %p125
      %s127 = ssub.s32 %s18, %s30
      %p128 = scmp.eq.s32.totalorder %s127, 0
      %s130 = sadd.s32 %s129, 1
      %s131 = scalar_select %p128, %s129, %s130
      %p134 = pneg %p128
      %p135 = scmp.eq.s32.totalorder %s11, 2
      %p136 = por %p134, %p135
      %p137 = scmp.ne.s32.totalorder %s129, %s132
      %p138 = scmp.eq.s32.totalorder %s11, 0
      %p139 = por %p137, %p138
      %p140 = scmp.ne.s32.totalorder %s129, %s132
      %p141 = scmp.eq.s32.totalorder %s16, 2
      %p142 = por %p140, %p141
      %p143 = scmp.ne.s32.totalorder %s132, %s133
      %p144 = scmp.eq.s32.totalorder %s16, 0
      %p145 = por %p143, %p144
      %p146 = scmp.ne.s32.totalorder %s132, %s133
      %p147 = scmp.eq.s32.totalorder %s17, 2
      %p148 = por %p146, %p147
      %p150 = scmp.ne.s32.totalorder %s133, %s149
      %p151 = scmp.eq.s32.totalorder %s17, 0
      %p152 = por %p150, %p151
      %s153 = ssub.s32 %s18, %s30
      %p154 = scmp.eq.s32.totalorder %s153, 0
      %s156 = sadd.s32 %s155, 1
      %s157 = scalar_select %p154, %s155, %s156
      %p160 = pneg %p154
      %p161 = scmp.eq.s32.totalorder %s11, 2
      %p162 = por %p160, %p161
      %p163 = scmp.ne.s32.totalorder %s155, %s158
      %p164 = scmp.eq.s32.totalorder %s11, 0
      %p165 = por %p163, %p164
      %p166 = scmp.ne.s32.totalorder %s155, %s158
      %p167 = scmp.eq.s32.totalorder %s16, 2
      %p168 = por %p166, %p167
      %p169 = scmp.ne.s32.totalorder %s158, %s159
      %p170 = scmp.eq.s32.totalorder %s16, 0
      %p171 = por %p169, %p170
      %p172 = scmp.ne.s32.totalorder %s158, %s159
      %p173 = scmp.eq.s32.totalorder %s17, 2
      %p174 = por %p172, %p173
      %p176 = scmp.ne.s32.totalorder %s159, %s175
      %p177 = scmp.eq.s32.totalorder %s17, 0
      %p178 = por %p176, %p177
      %p179 = scmp.le.s32.totalorder 1, %s11
      %p180 = scmp.lt.s32.totalorder %s11, 4
      %p181 = pnand %p179, %p180
      %p182 = pneg %p181
      // Predicated region
      $region9: #{_lambda_.16} parent=5 // pred_check
        _
      $region10: #{_lambda_.16} parent=5 // pred_check_branch
        %184 = sbr.rel (%p181) target = $region12
      $region11: #{_lambda_.16} parent=5 // pred_region
        %s185 = ssub.s32 %s11, 1
        // Predicated region
        $region13: #{_lambda_.16} parent=11 // pred_check
          %p186 = pneg %p98
        $region14: #{_lambda_.16} parent=11 // pred_check_branch
          %188 = sbr.rel (%p186) target = $region16
        $region15: #{_lambda_.16} parent=11 // pred_region
          _
        $region16: #{_lambda_.16} parent=11 // pred_fallthru
          _
        // Predicated region
        $region17: #{_lambda_.16} parent=11 // pred_check
          %p189 = pneg %p119
        $region18: #{_lambda_.16} parent=11 // pred_check_branch
          %191 = sbr.rel (%p189) target = $region20
        $region19: #{_lambda_.16} parent=11 // pred_region
          _
        $region20: #{_lambda_.16} parent=11 // pred_fallthru
          _
        // Predicated region
        $region21: #{_lambda_.16} parent=11 // pred_check
          %p192 = pneg %p145
        $region22: #{_lambda_.16} parent=11 // pred_check_branch
          %194 = sbr.rel (%p192) target = $region24
        $region23: #{_lambda_.16} parent=11 // pred_region
          %s195 = smul.u32 16, %s20
          %p196 = scmp.lt.s32.totalorder %s195, 15
          %s197 = scalar_select %p196, %s195, 15
          %s198 = smul.addr %s197, 8
          %s199 = scalar_lea.vmem %s4, %s198
          %s200 = smul.u32 16, %s20
        $region24: #{_lambda_.16} parent=11 // pred_fallthru
          _
      $region12: #{_lambda_.16} parent=5 // pred_fallthru
        _
      %p201 = scmp.lt.s32.totalorder %s11, 3
      // Predicated region
      $region25: #{_lambda_.16} parent=5 // pred_check
        %p202 = pneg %p201
      $region26: #{_lambda_.16} parent=5 // pred_check_branch
        %204 = sbr.rel (%p202) target = $region28
      $region27: #{_lambda_.16} parent=5 // pred_region
        // Predicated region
        $region29: #{_lambda_.16} parent=27 // pred_check
          %p205 = pneg %p45
        $region30: #{_lambda_.16} parent=27 // pred_check_branch
          %207 = sbr.rel (%p205) target = $region32
        $region31: #{_lambda_.16} parent=27 // pred_region
          %s208 = sand.u32 %s35, 1
          %s209 = sand.u32 %s35, 1
          %s210 = smul.addr %s209, 128
          %s211 = scalar_lea.vmem [#allocation2], %s210
          %s212 = smul.u32 16, %s18
          %s213 = smul.u32 2, %s19
          %s214 = smul.addr %s212, 6
          %s215 = sadd.s32 %s213, %s214
          %s216 = smul.addr %s215, 4
          %s217 = scalar_lea.vmem %s0, %s216
          // Predicated region
          $region33: #{_lambda_.16} parent=31 // pred_check
            _
          $region34: #{_lambda_.16} parent=31 // pred_check_branch
            %219 = sbr.rel (0) target = $region36
          $region35: #{_lambda_.16} parent=31 // pred_region
            // Predicated region
            $region37: #{_lambda_.16} parent=35 // pred_check
              _
            $region38: #{_lambda_.16} parent=35 // pred_check_branch
              %221 = sbr.rel (0) target = $region40
            $region39: #{_lambda_.16} parent=35 // pred_region
              // Predicated region
              $region52: #{_lambda_.16} parent=39 // pred_check
                _
              $region53: #{_lambda_.16} parent=39 // pred_check_branch
                %266 = sbr.rel (0) target = $region55
              $region54: #{_lambda_.16} parent=39 // pred_region
                loop: start=0, step=1, limit=1
                $region56: #{_lambda_.16} parent=54 // loop_pre_header
                  _
                $region57: #{_lambda_.16} parent=54 // loop_header
                  %s268 = sphi 0, %s272
                  %p269 = scmp.ge.s32.totalorder %s268, 1
                  %s273 = sphi %s217, %s217
                  %s274 = sphi %s211, %s211
                $region58: #{_lambda_.16} parent=54 // loop_header_branch
                  %271 = sbr.rel (%p269) target = $region62
                $region59: #{_lambda_.16} parent=54 // loop_body
                  %v275 = vld [vmem:[%s273] sm:$0xff]
                  %276 = vst [vmem:[%s274] sm:$0xff] %v275
                  %v277 = vld [vmem:[%s273 + $0x18] sm:$0xff]
                  %278 = vst [vmem:[%s274 + $0x8] sm:$0xff] %v277
                  %v279 = vld [vmem:[%s273 + $0x30] sm:$0xff]
                  %280 = vst [vmem:[%s274 + $0x10] sm:$0xff] %v279
                  %v281 = vld [vmem:[%s273 + $0x48] sm:$0xff]
                  %282 = vst [vmem:[%s274 + $0x18] sm:$0xff] %v281
                  %v283 = vld [vmem:[%s273 + $0x60] sm:$0xff]
                  %284 = vst [vmem:[%s274 + $0x20] sm:$0xff] %v283
                  %v285 = vld [vmem:[%s273 + $0x78] sm:$0xff]
                  %286 = vst [vmem:[%s274 + $0x28] sm:$0xff] %v285
                  %v287 = vld [vmem:[%s273 + $0x90] sm:$0xff]
                  %288 = vst [vmem:[%s274 + $0x30] sm:$0xff] %v287
                  %v289 = vld [vmem:[%s273 + $0xa8] sm:$0xff]
                  %290 = vst [vmem:[%s274 + $0x38] sm:$0xff] %v289
                  %v291 = vld [vmem:[%s273 + $0xc0] sm:$0xff]
                  %292 = vst [vmem:[%s274 + $0x40] sm:$0xff] %v291
                  %v293 = vld [vmem:[%s273 + $0xd8] sm:$0xff]
                  %294 = vst [vmem:[%s274 + $0x48] sm:$0xff] %v293
                  %v295 = vld [vmem:[%s273 + $0xf0] sm:$0xff]
                  %296 = vst [vmem:[%s274 + $0x50] sm:$0xff] %v295
                  %v297 = vld [vmem:[%s273 + $0x108] sm:$0xff]
                  %298 = vst [vmem:[%s274 + $0x58] sm:$0xff] %v297
                  %v299 = vld [vmem:[%s273 + $0x120] sm:$0xff]
                  %300 = vst [vmem:[%s274 + $0x60] sm:$0xff] %v299
                  %v301 = vld [vmem:[%s273 + $0x138] sm:$0xff]
                  %302 = vst [vmem:[%s274 + $0x68] sm:$0xff] %v301
                  %v303 = vld [vmem:[%s273 + $0x150] sm:$0xff]
                  %304 = vst [vmem:[%s274 + $0x70] sm:$0xff] %v303
                  %v305 = vld [vmem:[%s273 + $0x168] sm:$0xff]
                  %306 = vst [vmem:[%s274 + $0x78] sm:$0xff] %v305
                $region60: #{_lambda_.16} parent=54 // loop_footer
                  %s272 = sadd.s32 1, %s268
                $region61: #{_lambda_.16} parent=54 // loop_footer_branch
                  %267 = sbr.rel target = $region57
                $region62: #{_lambda_.16} parent=54 // loop_exit
                  _
              $region55: #{_lambda_.16} parent=39 // pred_fallthru
                _
              // Predicated region
              $region63: #{_lambda_.16} parent=39 // pred_check
                _
              $region64: #{_lambda_.16} parent=39 // pred_check_branch
                %308 = sbr.rel target = $region66
              $region65: #{_lambda_.16} parent=39 // pred_region
                _
              $region66: #{_lambda_.16} parent=39 // pred_fallthru
                _
            $region40: #{_lambda_.16} parent=35 // pred_fallthru
              _
            // Predicated region
            $region41: #{_lambda_.16} parent=35 // pred_check
              _
            $region42: #{_lambda_.16} parent=35 // pred_check_branch
              %223 = sbr.rel target = $region44
            $region43: #{_lambda_.16} parent=35 // pred_region
              loop: start=0, step=1, limit=1
              $region45: #{_lambda_.16} parent=43 // loop_pre_header
                _
              $region46: #{_lambda_.16} parent=43 // loop_header
                %s226 = sphi 0, %s230
                %p227 = scmp.ge.s32.totalorder %s226, 1
                %s231 = sphi %s217, %s217
                %s232 = sphi %s211, %s211
              $region47: #{_lambda_.16} parent=43 // loop_header_branch
                %229 = sbr.rel (%p227) target = $region51
              $region48: #{_lambda_.16} parent=43 // loop_body
                %v233 = vld [vmem:[%s231] sm:$0xff]
                %234 = vst [vmem:[%s232] sm:$0xff] %v233
                %v235 = vld [vmem:[%s231 + $0x18] sm:$0xff]
                %236 = vst [vmem:[%s232 + $0x8] sm:$0xff] %v235
                %v237 = vld [vmem:[%s231 + $0x30] sm:$0xff]
                %238 = vst [vmem:[%s232 + $0x10] sm:$0xff] %v237
                %v239 = vld [vmem:[%s231 + $0x48] sm:$0xff]
                %240 = vst [vmem:[%s232 + $0x18] sm:$0xff] %v239
                %v241 = vld [vmem:[%s231 + $0x60] sm:$0xff]
                %242 = vst [vmem:[%s232 + $0x20] sm:$0xff] %v241
                %v243 = vld [vmem:[%s231 + $0x78] sm:$0xff]
                %244 = vst [vmem:[%s232 + $0x28] sm:$0xff] %v243
                %v245 = vld [vmem:[%s231 + $0x90] sm:$0xff]
                %246 = vst [vmem:[%s232 + $0x30] sm:$0xff] %v245
                %v247 = vld [vmem:[%s231 + $0xa8] sm:$0xff]
                %248 = vst [vmem:[%s232 + $0x38] sm:$0xff] %v247
                %v249 = vld [vmem:[%s231 + $0xc0] sm:$0xff]
                %250 = vst [vmem:[%s232 + $0x40] sm:$0xff] %v249
                %v251 = vld [vmem:[%s231 + $0xd8] sm:$0xff]
                %252 = vst [vmem:[%s232 + $0x48] sm:$0xff] %v251
                %v253 = vld [vmem:[%s231 + $0xf0] sm:$0xff]
                %254 = vst [vmem:[%s232 + $0x50] sm:$0xff] %v253
                %v255 = vld [vmem:[%s231 + $0x108] sm:$0xff]
                %256 = vst [vmem:[%s232 + $0x58] sm:$0xff] %v255
                %v257 = vld [vmem:[%s231 + $0x120] sm:$0xff]
                %258 = vst [vmem:[%s232 + $0x60] sm:$0xff] %v257
                %v259 = vld [vmem:[%s231 + $0x138] sm:$0xff]
                %260 = vst [vmem:[%s232 + $0x68] sm:$0xff] %v259
                %v261 = vld [vmem:[%s231 + $0x150] sm:$0xff]
                %262 = vst [vmem:[%s232 + $0x70] sm:$0xff] %v261
                %v263 = vld [vmem:[%s231 + $0x168] sm:$0xff]
                %264 = vst [vmem:[%s232 + $0x78] sm:$0xff] %v263
              $region49: #{_lambda_.16} parent=43 // loop_footer
                %s230 = sadd.s32 1, %s226
              $region50: #{_lambda_.16} parent=43 // loop_footer_branch
                %225 = sbr.rel target = $region46
              $region51: #{_lambda_.16} parent=43 // loop_exit
                _
            $region44: #{_lambda_.16} parent=35 // pred_fallthru
              _
          $region36: #{_lambda_.16} parent=31 // pred_fallthru
            _
          %309 = vnop
        $region32: #{_lambda_.16} parent=27 // pred_fallthru
          _
        // Predicated region
        $region67: #{_lambda_.16} parent=27 // pred_check
          %p310 = pneg %p71
        $region68: #{_lambda_.16} parent=27 // pred_check_branch
          %312 = sbr.rel (%p310) target = $region70
        $region69: #{_lambda_.16} parent=27 // pred_region
          %s313 = smul.u32 32, %s19
          %p314 = scmp.lt.s32.totalorder %s313, 95
          %s315 = scalar_select %p314, %s313, 95
          %s316 = smul.addr %s315, 4
          %s317 = scalar_lea.vmem %s1, %s316
          %s318 = smul.u32 32, %s19
        $region70: #{_lambda_.16} parent=27 // pred_fallthru
          _
      $region28: #{_lambda_.16} parent=5 // pred_fallthru
        _
      %p319 = scmp.le.s32.totalorder 1, %s11
      %p320 = scmp.lt.s32.totalorder %s11, 4
      %p321 = pnand %p319, %p320
      %p322 = pneg %p321
      // Predicated region
      $region71: #{_lambda_.16} parent=5 // pred_check
        _
      $region72: #{_lambda_.16} parent=5 // pred_check_branch
        %324 = sbr.rel (%p321) target = $region74
      $region73: #{_lambda_.16} parent=5 // pred_region
        %s325 = ssub.s32 %s11, 1
        %s326 = sand.u32 %s38, 1
        %s327 = sand.u32 %s38, 1
        %s328 = smul.addr %s327, 128
        %s329 = scalar_lea.vmem [#allocation2], %s328
        // Predicated region
        $region75: #{_lambda_.16} parent=73 // pred_check
          %p330 = pneg %p51
        $region76: #{_lambda_.16} parent=73 // pred_check_branch
          %332 = sbr.rel (%p330) target = $region78
        $region77: #{_lambda_.16} parent=73 // pred_region
          _
        $region78: #{_lambda_.16} parent=73 // pred_fallthru
          _
        %s333 = sand.u32 %s38, 1
        %s334 = sand.u32 %s38, 1
        %s335 = smul.addr %s334, 128
        %s336 = scalar_lea.vmem [#allocation2], %s335
        %p337 = pneg %p51
        %p338 = pneg %p48
        %s339 = smul.u32 32, %s21
        %p340 = scmp.lt.s32.totalorder %s339, 95
        %s341 = scalar_select %p340, %s339, 95
        %s342 = smul.addr %s341, 4
        %s343 = scalar_lea.vmem %s1, %s342
        %p344 = pneg %p77
        %p345 = pneg %p74
        %p346 = pneg %p98
        %p347 = pneg %p95
        %p348 = pneg %p119
        %p349 = pneg %p116
        %s350 = smul.u32 16, %s20
        %p351 = scmp.lt.s32.totalorder %s350, 15
        %s352 = scalar_select %p351, %s350, 15
        %s353 = smul.addr %s352, 8
        %s354 = scalar_lea.vmem %s4, %s353
        %p355 = pneg %p145
        %p356 = pneg %p142
        %p357 = pneg %p171
        %p358 = pneg %p168
        %s359 = smul.u32 16, %s20
        %p360 = scmp.lt.s32.totalorder %s359, 15
        %s361 = scalar_select %p360, %s359, 15
        %s362 = smul.addr %s361, 8
        %s363 = scalar_lea.vmem %s5, %s362
        %s364 = smul.u32 16, %s20
        %s365 = smul.u32 2, %s21
        %s366 = smul.u32 32, %s21
        %p367 = scmp.lt.s32.totalorder %s366, 95
        %s368 = scalar_select %p367, %s366, 95
        %s369 = smul.addr %s368, 4
        %s370 = scalar_lea.vmem %s1, %s369
        %s371 = smul.u32 32, %s21
        %s372 = smul.u32 16, %s20
        %p373 = scmp.lt.s32.totalorder %s372, 15
        %s374 = scalar_select %p373, %s372, 15
        %s375 = smul.addr %s374, 8
        %s376 = scalar_lea.vmem %s4, %s375
        %s377 = smul.u32 16, %s20
        %s378 = smul.u32 16, %s20
        %p379 = scmp.lt.s32.totalorder %s378, 15
        %s380 = scalar_select %p379, %s378, 15
        %s381 = smul.addr %s380, 8
        %s382 = scalar_lea.vmem %s5, %s381
        %s383 = smul.u32 16, %s20
        %p385 = scmp.eq.s32.totalorder %s21, 0
        // Predicated region
        $region79: #{_lambda_.16} parent=73 // pred_check
          %p386 = pneg %p385
        $region80: #{_lambda_.16} parent=73 // pred_check_branch
          %388 = sbr.rel (%p386) target = $region82
        $region81: #{_lambda_.16} parent=73 // pred_region
          %389 = vst [vmem:[%s382] sm:$0xff] 0.0
          %390 = vst [vmem:[%s382 + $0x8] sm:$0xff] 0.0
          %391 = vst [vmem:[%s382 + $0x10] sm:$0xff] 0.0
          %392 = vst [vmem:[%s382 + $0x18] sm:$0xff] 0.0
          %393 = vst [vmem:[%s382 + $0x20] sm:$0xff] 0.0
          %394 = vst [vmem:[%s382 + $0x28] sm:$0xff] 0.0
          %395 = vst [vmem:[%s382 + $0x30] sm:$0xff] 0.0
          %396 = vst [vmem:[%s382 + $0x38] sm:$0xff] 0.0
          %397 = vst [vmem:[%s382 + $0x40] sm:$0xff] 0.0
          %398 = vst [vmem:[%s382 + $0x48] sm:$0xff] 0.0
          %399 = vst [vmem:[%s382 + $0x50] sm:$0xff] 0.0
          %400 = vst [vmem:[%s382 + $0x58] sm:$0xff] 0.0
          %401 = vst [vmem:[%s382 + $0x60] sm:$0xff] 0.0
          %402 = vst [vmem:[%s382 + $0x68] sm:$0xff] 0.0
          %403 = vst [vmem:[%s382 + $0x70] sm:$0xff] 0.0
          %404 = vst [vmem:[%s382 + $0x78] sm:$0xff] 0.0
        $region82: #{_lambda_.16} parent=73 // pred_fallthru
          _
        %v405 = vld [vmem:[%s382] sm:$0xff]
        %v406 = vld [vmem:[%s382 + $0x8] sm:$0xff]
        %v407 = vld [vmem:[%s382 + $0x10] sm:$0xff]
        %v408 = vld [vmem:[%s382 + $0x18] sm:$0xff]
        %v409 = vld [vmem:[%s382 + $0x20] sm:$0xff]
        %v410 = vld [vmem:[%s382 + $0x28] sm:$0xff]
        %v411 = vld [vmem:[%s382 + $0x30] sm:$0xff]
        %v412 = vld [vmem:[%s382 + $0x38] sm:$0xff]
        %v413 = vld [vmem:[%s382 + $0x40] sm:$0xff]
        %v414 = vld [vmem:[%s382 + $0x48] sm:$0xff]
        %v415 = vld [vmem:[%s382 + $0x50] sm:$0xff]
        %v416 = vld [vmem:[%s382 + $0x58] sm:$0xff]
        %v417 = vld [vmem:[%s382 + $0x60] sm:$0xff]
        %v418 = vld [vmem:[%s382 + $0x68] sm:$0xff]
        %v419 = vld [vmem:[%s382 + $0x70] sm:$0xff]
        %v420 = vld [vmem:[%s382 + $0x78] sm:$0xff]
        %v421 = vld [vmem:[%s329] sm:$0xff]
        %v422 = vld [vmem:[%s329 + $0x8] sm:$0xff]
        %v423 = vld [vmem:[%s329 + $0x10] sm:$0xff]
        %v424 = vld [vmem:[%s329 + $0x18] sm:$0xff]
        %v425 = vld [vmem:[%s329 + $0x20] sm:$0xff]
        %v426 = vld [vmem:[%s329 + $0x28] sm:$0xff]
        %v427 = vld [vmem:[%s329 + $0x30] sm:$0xff]
        %v428 = vld [vmem:[%s329 + $0x38] sm:$0xff]
        %v429 = vld [vmem:[%s329 + $0x40] sm:$0xff]
        %v430 = vld [vmem:[%s329 + $0x48] sm:$0xff]
        %v431 = vld [vmem:[%s329 + $0x50] sm:$0xff]
        %v432 = vld [vmem:[%s329 + $0x58] sm:$0xff]
        %v433 = vld [vmem:[%s329 + $0x60] sm:$0xff]
        %v434 = vld [vmem:[%s329 + $0x68] sm:$0xff]
        %v435 = vld [vmem:[%s329 + $0x70] sm:$0xff]
        %v436 = vld [vmem:[%s329 + $0x78] sm:$0xff]
        %v437 = vld [vmem:[%s370] sm:$0xf]
        %v438 = vld [vmem:[%s370 + $0x4] sm:$0xf]
        %v439 = vld [vmem:[%s370 + $0x8] sm:$0xf]
        %v440 = vld [vmem:[%s370 + $0xc] sm:$0xf]
        %v441 = vld [vmem:[%s370 + $0x10] sm:$0xf]
        %v442 = vld [vmem:[%s370 + $0x14] sm:$0xf]
        %v443 = vld [vmem:[%s370 + $0x18] sm:$0xf]
        %v444 = vld [vmem:[%s370 + $0x1c] sm:$0xf]
        %v445 = vld [vmem:[%s370 + $0x20] sm:$0xf]
        %v446 = vld [vmem:[%s370 + $0x24] sm:$0xf]
        %v447 = vld [vmem:[%s370 + $0x28] sm:$0xf]
        %v448 = vld [vmem:[%s370 + $0x2c] sm:$0xf]
        %v449 = vld [vmem:[%s370 + $0x30] sm:$0xf]
        %v450 = vld [vmem:[%s370 + $0x34] sm:$0xf]
        %v451 = vld [vmem:[%s370 + $0x38] sm:$0xf]
        %v452 = vld [vmem:[%s370 + $0x3c] sm:$0xf]
        %v453 = vld [vmem:[%s370 + $0x40] sm:$0xf]
        %v454 = vld [vmem:[%s370 + $0x44] sm:$0xf]
        %v455 = vld [vmem:[%s370 + $0x48] sm:$0xf]
        %v456 = vld [vmem:[%s370 + $0x4c] sm:$0xf]
        %v457 = vld [vmem:[%s370 + $0x50] sm:$0xf]
        %v458 = vld [vmem:[%s370 + $0x54] sm:$0xf]
        %v459 = vld [vmem:[%s370 + $0x58] sm:$0xf]
        %v460 = vld [vmem:[%s370 + $0x5c] sm:$0xf]
        %v461 = vld [vmem:[%s370 + $0x60] sm:$0xf]
        %v462 = vld [vmem:[%s370 + $0x64] sm:$0xf]
        %v463 = vld [vmem:[%s370 + $0x68] sm:$0xf]
        %v464 = vld [vmem:[%s370 + $0x6c] sm:$0xf]
        %v465 = vld [vmem:[%s370 + $0x70] sm:$0xf]
        %v466 = vld [vmem:[%s370 + $0x74] sm:$0xf]
        %v467 = vld [vmem:[%s370 + $0x78] sm:$0xf]
        %v468 = vld [vmem:[%s370 + $0x7c] sm:$0xf]
        %v485 = vunpack.c.l.b16 %v421
        %v486 = vunpack.c.h.b16 %v421
        %v487 = vunpack.c.l.b16 %v422
        %v488 = vunpack.c.h.b16 %v422
        %v489 = vunpack.c.l.b16 %v423
        %v490 = vunpack.c.h.b16 %v423
        %v491 = vunpack.c.l.b16 %v424
        %v492 = vunpack.c.h.b16 %v424
        %v493 = vunpack.c.l.b16 %v425
        %v494 = vunpack.c.h.b16 %v425
        %v495 = vunpack.c.l.b16 %v426
        %v496 = vunpack.c.h.b16 %v426
        %v497 = vunpack.c.l.b16 %v427
        %v498 = vunpack.c.h.b16 %v427
        %v499 = vunpack.c.l.b16 %v428
        %v500 = vunpack.c.h.b16 %v428
        %v501 = vunpack.c.l.b16 %v429
        %v502 = vunpack.c.h.b16 %v429
        %v503 = vunpack.c.l.b16 %v430
        %v504 = vunpack.c.h.b16 %v430
        %v505 = vunpack.c.l.b16 %v431
        %v506 = vunpack.c.h.b16 %v431
        %v507 = vunpack.c.l.b16 %v432
        %v508 = vunpack.c.h.b16 %v432
        %v509 = vunpack.c.l.b16 %v433
        %v510 = vunpack.c.h.b16 %v433
        %v511 = vunpack.c.l.b16 %v434
        %v512 = vunpack.c.h.b16 %v434
        %v513 = vunpack.c.l.b16 %v435
        %v514 = vunpack.c.h.b16 %v435
        %v515 = vunpack.c.l.b16 %v436
        %v516 = vunpack.c.h.b16 %v436
        %v517 = vpack.c.b16 %v487, %v485
        %v518 = vpack.c.b16 %v488, %v486
        %v519 = vpack.c.b16 %v491, %v489
        %v520 = vpack.c.b16 %v492, %v490
        %v521 = vpack.c.b16 %v495, %v493
        %v522 = vpack.c.b16 %v496, %v494
        %v523 = vpack.c.b16 %v499, %v497
        %v524 = vpack.c.b16 %v500, %v498
        %v525 = vpack.c.b16 %v503, %v501
        %v526 = vpack.c.b16 %v504, %v502
        %v527 = vpack.c.b16 %v507, %v505
        %v528 = vpack.c.b16 %v508, %v506
        %v529 = vpack.c.b16 %v511, %v509
        %v530 = vpack.c.b16 %v512, %v510
        %v531 = vpack.c.b16 %v515, %v513
        %v532 = vpack.c.b16 %v516, %v514
        %v581 = vunpack.c.l.b16 %v437
        %v582 = vunpack.c.l.b16 %v438
        %v583 = vunpack.c.l.b16 %v439
        %v584 = vunpack.c.l.b16 %v440
        %v585 = vunpack.c.l.b16 %v441
        %v586 = vunpack.c.l.b16 %v442
        %v587 = vunpack.c.l.b16 %v443
        %v588 = vunpack.c.l.b16 %v444
        %v589 = vunpack.c.l.b16 %v445
        %v590 = vunpack.c.l.b16 %v446
        %v591 = vunpack.c.l.b16 %v447
        %v592 = vunpack.c.l.b16 %v448
        %v593 = vunpack.c.l.b16 %v449
        %v594 = vunpack.c.l.b16 %v450
        %v595 = vunpack.c.l.b16 %v451
        %v596 = vunpack.c.l.b16 %v452
        %v597 = vunpack.c.l.b16 %v453
        %v598 = vunpack.c.l.b16 %v454
        %v599 = vunpack.c.l.b16 %v455
        %v600 = vunpack.c.l.b16 %v456
        %v601 = vunpack.c.l.b16 %v457
        %v602 = vunpack.c.l.b16 %v458
        %v603 = vunpack.c.l.b16 %v459
        %v604 = vunpack.c.l.b16 %v460
        %v605 = vunpack.c.l.b16 %v461
        %v606 = vunpack.c.l.b16 %v462
        %v607 = vunpack.c.l.b16 %v463
        %v608 = vunpack.c.l.b16 %v464
        %v609 = vunpack.c.l.b16 %v465
        %v610 = vunpack.c.l.b16 %v466
        %v611 = vunpack.c.l.b16 %v467
        %v612 = vunpack.c.l.b16 %v468
        %v613 = vpack.c.b16 %v582, %v581
        %v614 = vpack.c.b16 %v584, %v583
        %v615 = vpack.c.b16 %v586, %v585
        %v616 = vpack.c.b16 %v588, %v587
        %v617 = vpack.c.b16 %v590, %v589
        %v618 = vpack.c.b16 %v592, %v591
        %v619 = vpack.c.b16 %v594, %v593
        %v620 = vpack.c.b16 %v596, %v595
        %v621 = vpack.c.b16 %v598, %v597
        %v622 = vpack.c.b16 %v600, %v599
        %v623 = vpack.c.b16 %v602, %v601
        %v624 = vpack.c.b16 %v604, %v603
        %v625 = vpack.c.b16 %v606, %v605
        %v626 = vpack.c.b16 %v608, %v607
        %v627 = vpack.c.b16 %v610, %v609
        %v628 = vpack.c.b16 %v612, %v611
        %645 = vmatprep.subr.bf16.mxu0 0
        %646 = vmatpush1.bf16.msra.mxu0 %v613
        %647 = vmatprep.subr.bf16.mxu0 0
        %648 = vmatpush1.bf16.msra.mxu0 %v614
        %649 = vmatprep.subr.bf16.mxu0 0
        %650 = vmatpush1.bf16.msra.mxu0 %v615
        %651 = vmatprep.subr.bf16.mxu0 0
        %652 = vmatpush1.bf16.msra.mxu0 %v616
        %653 = vmatprep.subr.bf16.mxu0 0
        %654 = vmatpush1.bf16.msra.mxu0 %v617
        %655 = vmatprep.subr.bf16.mxu0 0
        %656 = vmatpush1.bf16.msra.mxu0 %v618
        %657 = vmatprep.subr.bf16.mxu0 0
        %658 = vmatpush1.bf16.msra.mxu0 %v619
        %659 = vmatprep.subr.bf16.mxu0 0
        %660 = vmatpush1.bf16.msra.mxu0 %v620
        %661 = vmatprep.subr.bf16.mxu0 0
        %662 = vmatpush1.bf16.msra.mxu0 %v621
        %663 = vmatprep.subr.bf16.mxu0 0
        %664 = vmatpush1.bf16.msra.mxu0 %v622
        %665 = vmatprep.subr.bf16.mxu0 0
        %666 = vmatpush1.bf16.msra.mxu0 %v623
        %667 = vmatprep.subr.bf16.mxu0 0
        %668 = vmatpush1.bf16.msra.mxu0 %v624
        %669 = vmatprep.subr.bf16.mxu0 0
        %670 = vmatpush1.bf16.msra.mxu0 %v625
        %671 = vmatprep.subr.bf16.mxu0 0
        %672 = vmatpush1.bf16.msra.mxu0 %v626
        %673 = vmatprep.subr.bf16.mxu0 0
        %674 = vmatpush1.bf16.msra.mxu0 %v627
        %675 = vmatprep.subr.bf16.mxu0 0
        %676 = vmatpush1.bf16.msra.mxu0 %v628
        %677 = vmatprep.mubr.bf16.mxu0 %v518
        %678 = vmatmul.mubr.bf16.gmra.mrb[0].mxu0 %v517
        %v679 = vpop.f32.mrb[0].mxu0
        %v680 = vadd.f32 0.0, %v679
        %v681 = vpop.f32.mrb[0].mxu0
        %v682 = vpop.f32.mrb[0].mxu0
        %v683 = vadd.f32 0.0, %v682
        %v684 = vpop.f32.mrb[0].mxu0
        %685 = vmatprep.mubr.bf16.mxu0 %v520
        %686 = vmatmul.mubr.bf16.gmra.mrb[0].mxu0 %v519
        %v687 = vpop.f32.mrb[0].mxu0
        %v688 = vadd.f32 0.0, %v687
        %v689 = vpop.f32.mrb[0].mxu0
        %v690 = vpop.f32.mrb[0].mxu0
        %v691 = vadd.f32 0.0, %v690
        %v692 = vpop.f32.mrb[0].mxu0
        %693 = vmatprep.mubr.bf16.mxu0 %v522
        %694 = vmatmul.mubr.bf16.gmra.mrb[0].mxu0 %v521
        %v695 = vpop.f32.mrb[0].mxu0
        %v696 = vadd.f32 0.0, %v695
        %v697 = vpop.f32.mrb[0].mxu0
        %v698 = vpop.f32.mrb[0].mxu0
        %v699 = vadd.f32 0.0, %v698
        %v700 = vpop.f32.mrb[0].mxu0
        %701 = vmatprep.mubr.bf16.mxu0 %v524
        %702 = vmatmul.mubr.bf16.gmra.mrb[0].mxu0 %v523
        %v703 = vpop.f32.mrb[0].mxu0
        %v704 = vadd.f32 0.0, %v703
        %v705 = vpop.f32.mrb[0].mxu0
        %v706 = vpop.f32.mrb[0].mxu0
        %v707 = vadd.f32 0.0, %v706
        %v708 = vpop.f32.mrb[0].mxu0
        %709 = vmatprep.mubr.bf16.mxu0 %v526
        %710 = vmatmul.mubr.bf16.gmra.mrb[0].mxu0 %v525
        %v711 = vpop.f32.mrb[0].mxu0
        %v712 = vadd.f32 0.0, %v711
        %v713 = vpop.f32.mrb[0].mxu0
        %v714 = vpop.f32.mrb[0].mxu0
        %v715 = vadd.f32 0.0, %v714
        %v716 = vpop.f32.mrb[0].mxu0
        %717 = vmatprep.mubr.bf16.mxu0 %v528
        %718 = vmatmul.mubr.bf16.gmra.mrb[0].mxu0 %v527
        %v719 = vpop.f32.mrb[0].mxu0
        %v720 = vadd.f32 0.0, %v719
        %v721 = vpop.f32.mrb[0].mxu0
        %v722 = vpop.f32.mrb[0].mxu0
        %v723 = vadd.f32 0.0, %v722
        %v724 = vpop.f32.mrb[0].mxu0
        %725 = vmatprep.mubr.bf16.mxu0 %v530
        %726 = vmatmul.mubr.bf16.gmra.mrb[0].mxu0 %v529
        %v727 = vpop.f32.mrb[0].mxu0
        %v728 = vadd.f32 0.0, %v727
        %v729 = vpop.f32.mrb[0].mxu0
        %v730 = vpop.f32.mrb[0].mxu0
        %v731 = vadd.f32 0.0, %v730
        %v732 = vpop.f32.mrb[0].mxu0
        %733 = vmatprep.mubr.bf16.mxu0 %v532
        %734 = vmatmul.mubr.bf16.gmra.mrb[0].mxu0 %v531
        %v735 = vpop.f32.mrb[0].mxu0
        %v736 = vadd.f32 0.0, %v735
        %v737 = vpop.f32.mrb[0].mxu0
        %v738 = vpop.f32.mrb[0].mxu0
        %v739 = vadd.f32 0.0, %v738
        %v740 = vpop.f32.mrb[0].mxu0
        %741 = vdwg.mxu0
        %v742 = vadd.f32 %v405, %v680
        %v743 = vadd.f32 %v406, %v683
        %v744 = vadd.f32 %v407, %v688
        %v745 = vadd.f32 %v408, %v691
        %v746 = vadd.f32 %v409, %v696
        %v747 = vadd.f32 %v410, %v699
        %v748 = vadd.f32 %v411, %v704
        %v749 = vadd.f32 %v412, %v707
        %v750 = vadd.f32 %v413, %v712
        %v751 = vadd.f32 %v414, %v715
        %v752 = vadd.f32 %v415, %v720
        %v753 = vadd.f32 %v416, %v723
        %v754 = vadd.f32 %v417, %v728
        %v755 = vadd.f32 %v418, %v731
        %v756 = vadd.f32 %v419, %v736
        %v757 = vadd.f32 %v420, %v739
        %758 = vst [vmem:[%s382] sm:$0xff] %v742
        %759 = vst [vmem:[%s382 + $0x8] sm:$0xff] %v743
        %760 = vst [vmem:[%s382 + $0x10] sm:$0xff] %v744
        %761 = vst [vmem:[%s382 + $0x18] sm:$0xff] %v745
        %762 = vst [vmem:[%s382 + $0x20] sm:$0xff] %v746
        %763 = vst [vmem:[%s382 + $0x28] sm:$0xff] %v747
        %764 = vst [vmem:[%s382 + $0x30] sm:$0xff] %v748
        %765 = vst [vmem:[%s382 + $0x38] sm:$0xff] %v749
        %766 = vst [vmem:[%s382 + $0x40] sm:$0xff] %v750
        %767 = vst [vmem:[%s382 + $0x48] sm:$0xff] %v751
        %768 = vst [vmem:[%s382 + $0x50] sm:$0xff] %v752
        %769 = vst [vmem:[%s382 + $0x58] sm:$0xff] %v753
        %770 = vst [vmem:[%s382 + $0x60] sm:$0xff] %v754
        %771 = vst [vmem:[%s382 + $0x68] sm:$0xff] %v755
        %772 = vst [vmem:[%s382 + $0x70] sm:$0xff] %v756
        %773 = vst [vmem:[%s382 + $0x78] sm:$0xff] %v757
        %p774 = scmp.eq.s32.totalorder %s21, 2
        // Predicated region
        $region83: #{_lambda_.16} parent=73 // pred_check
          %p775 = pneg %p774
        $region84: #{_lambda_.16} parent=73 // pred_check_branch
          %777 = sbr.rel (%p775) target = $region86
        $region85: #{_lambda_.16} parent=73 // pred_region
          %v778 = vld [vmem:[%s382] sm:$0xff]
          %v779 = vld [vmem:[%s382 + $0x8] sm:$0xff]
          %v780 = vld [vmem:[%s382 + $0x10] sm:$0xff]
          %v781 = vld [vmem:[%s382 + $0x18] sm:$0xff]
          %v782 = vld [vmem:[%s382 + $0x20] sm:$0xff]
          %v783 = vld [vmem:[%s382 + $0x28] sm:$0xff]
          %v784 = vld [vmem:[%s382 + $0x30] sm:$0xff]
          %v785 = vld [vmem:[%s382 + $0x38] sm:$0xff]
          %v786 = vld [vmem:[%s382 + $0x40] sm:$0xff]
          %v787 = vld [vmem:[%s382 + $0x48] sm:$0xff]
          %v788 = vld [vmem:[%s382 + $0x50] sm:$0xff]
          %v789 = vld [vmem:[%s382 + $0x58] sm:$0xff]
          %v790 = vld [vmem:[%s382 + $0x60] sm:$0xff]
          %v791 = vld [vmem:[%s382 + $0x68] sm:$0xff]
          %v792 = vld [vmem:[%s382 + $0x70] sm:$0xff]
          %v793 = vld [vmem:[%s382 + $0x78] sm:$0xff]
          %v794 = vld [vmem:[%s2] sm:$0x1]
          %v796 = vlaneseq
          %v797 = vshrl.u32 %v796, 7
          %v798 = vsub.s32 0, %v797
          %v799 = vrot.slane %v794, %v798
          %v801 = vmul.f32 %v778, %v799
          %v802 = vmul.f32 %v779, %v799
          %v803 = vmul.f32 %v780, %v799
          %v804 = vmul.f32 %v781, %v799
          %v805 = vmul.f32 %v782, %v799
          %v806 = vmul.f32 %v783, %v799
          %v807 = vmul.f32 %v784, %v799
          %v808 = vmul.f32 %v785, %v799
          %v809 = vmul.f32 %v786, %v799
          %v810 = vmul.f32 %v787, %v799
          %v811 = vmul.f32 %v788, %v799
          %v812 = vmul.f32 %v789, %v799
          %v813 = vmul.f32 %v790, %v799
          %v814 = vmul.f32 %v791, %v799
          %v815 = vmul.f32 %v792, %v799
          %v816 = vmul.f32 %v793, %v799
          %v817 = vld [vmem:[%s3] sm:$0x1]
          %v819 = vlaneseq
          %v820 = vshrl.u32 %v819, 7
          %v821 = vsub.s32 0, %v820
          %v822 = vrot.slane %v817, %v821
          %v824 = vadd.f32 %v801, %v822
          %v825 = vadd.f32 %v802, %v822
          %v826 = vadd.f32 %v803, %v822
          %v827 = vadd.f32 %v804, %v822
          %v828 = vadd.f32 %v805, %v822
          %v829 = vadd.f32 %v806, %v822
          %v830 = vadd.f32 %v807, %v822
          %v831 = vadd.f32 %v808, %v822
          %v832 = vadd.f32 %v809, %v822
          %v833 = vadd.f32 %v810, %v822
          %v834 = vadd.f32 %v811, %v822
          %v835 = vadd.f32 %v812, %v822
          %v836 = vadd.f32 %v813, %v822
          %v837 = vadd.f32 %v814, %v822
          %v838 = vadd.f32 %v815, %v822
          %v839 = vadd.f32 %v816, %v822
          %v840 = vld [vmem:[%s376] sm:$0xff]
          %v841 = vld [vmem:[%s376 + $0x8] sm:$0xff]
          %v842 = vld [vmem:[%s376 + $0x10] sm:$0xff]
          %v843 = vld [vmem:[%s376 + $0x18] sm:$0xff]
          %v844 = vld [vmem:[%s376 + $0x20] sm:$0xff]
          %v845 = vld [vmem:[%s376 + $0x28] sm:$0xff]
          %v846 = vld [vmem:[%s376 + $0x30] sm:$0xff]
          %v847 = vld [vmem:[%s376 + $0x38] sm:$0xff]
          %v848 = vld [vmem:[%s376 + $0x40] sm:$0xff]
          %v849 = vld [vmem:[%s376 + $0x48] sm:$0xff]
          %v850 = vld [vmem:[%s376 + $0x50] sm:$0xff]
          %v851 = vld [vmem:[%s376 + $0x58] sm:$0xff]
          %v852 = vld [vmem:[%s376 + $0x60] sm:$0xff]
          %v853 = vld [vmem:[%s376 + $0x68] sm:$0xff]
          %v854 = vld [vmem:[%s376 + $0x70] sm:$0xff]
          %v855 = vld [vmem:[%s376 + $0x78] sm:$0xff]
          %v856 = vadd.f32 %v824, %v840
          %v857 = vadd.f32 %v825, %v841
          %v858 = vadd.f32 %v826, %v842
          %v859 = vadd.f32 %v827, %v843
          %v860 = vadd.f32 %v828, %v844
          %v861 = vadd.f32 %v829, %v845
          %v862 = vadd.f32 %v830, %v846
          %v863 = vadd.f32 %v831, %v847
          %v864 = vadd.f32 %v832, %v848
          %v865 = vadd.f32 %v833, %v849
          %v866 = vadd.f32 %v834, %v850
          %v867 = vadd.f32 %v835, %v851
          %v868 = vadd.f32 %v836, %v852
          %v869 = vadd.f32 %v837, %v853
          %v870 = vadd.f32 %v838, %v854
          %v871 = vadd.f32 %v839, %v855
          %vm872 = vcmp.ge.f32.partialorder %v856, 0.0
          %vm873 = vcmp.ge.f32.partialorder %v857, 0.0
          %vm874 = vcmp.ge.f32.partialorder %v858, 0.0
          %vm875 = vcmp.ge.f32.partialorder %v859, 0.0
          %vm876 = vcmp.ge.f32.partialorder %v860, 0.0
          %vm877 = vcmp.ge.f32.partialorder %v861, 0.0
          %vm878 = vcmp.ge.f32.partialorder %v862, 0.0
          %vm879 = vcmp.ge.f32.partialorder %v863, 0.0
          %vm880 = vcmp.ge.f32.partialorder %v864, 0.0
          %vm881 = vcmp.ge.f32.partialorder %v865, 0.0
          %vm882 = vcmp.ge.f32.partialorder %v866, 0.0
          %vm883 = vcmp.ge.f32.partialorder %v867, 0.0
          %vm884 = vcmp.ge.f32.partialorder %v868, 0.0
          %vm885 = vcmp.ge.f32.partialorder %v869, 0.0
          %vm886 = vcmp.ge.f32.partialorder %v870, 0.0
          %vm887 = vcmp.ge.f32.partialorder %v871, 0.0
          %v888 = vmul.f32 %v856, 0.01
          %v889 = vmul.f32 %v857, 0.01
          %v890 = vmul.f32 %v858, 0.01
          %v891 = vmul.f32 %v859, 0.01
          %v892 = vmul.f32 %v860, 0.01
          %v893 = vmul.f32 %v861, 0.01
          %v894 = vmul.f32 %v862, 0.01
          %v895 = vmul.f32 %v863, 0.01
          %v896 = vmul.f32 %v864, 0.01
          %v897 = vmul.f32 %v865, 0.01
          %v898 = vmul.f32 %v866, 0.01
          %v899 = vmul.f32 %v867, 0.01
          %v900 = vmul.f32 %v868, 0.01
          %v901 = vmul.f32 %v869, 0.01
          %v902 = vmul.f32 %v870, 0.01
          %v903 = vmul.f32 %v871, 0.01
          %v904 = vsel %vm872, %v856, %v888
          %v905 = vsel %vm873, %v857, %v889
          %v906 = vsel %vm874, %v858, %v890
          %v907 = vsel %vm875, %v859, %v891
          %v908 = vsel %vm876, %v860, %v892
          %v909 = vsel %vm877, %v861, %v893
          %v910 = vsel %vm878, %v862, %v894
          %v911 = vsel %vm879, %v863, %v895
          %v912 = vsel %vm880, %v864, %v896
          %v913 = vsel %vm881, %v865, %v897
          %v914 = vsel %vm882, %v866, %v898
          %v915 = vsel %vm883, %v867, %v899
          %v916 = vsel %vm884, %v868, %v900
          %v917 = vsel %vm885, %v869, %v901
          %v918 = vsel %vm886, %v870, %v902
          %v919 = vsel %vm887, %v871, %v903
          %920 = vst [vmem:[%s382] sm:$0xff] %v904
          %921 = vst [vmem:[%s382 + $0x8] sm:$0xff] %v905
          %922 = vst [vmem:[%s382 + $0x10] sm:$0xff] %v906
          %923 = vst [vmem:[%s382 + $0x18] sm:$0xff] %v907
          %924 = vst [vmem:[%s382 + $0x20] sm:$0xff] %v908
          %925 = vst [vmem:[%s382 + $0x28] sm:$0xff] %v909
          %926 = vst [vmem:[%s382 + $0x30] sm:$0xff] %v910
          %927 = vst [vmem:[%s382 + $0x38] sm:$0xff] %v911
          %928 = vst [vmem:[%s382 + $0x40] sm:$0xff] %v912
          %929 = vst [vmem:[%s382 + $0x48] sm:$0xff] %v913
          %930 = vst [vmem:[%s382 + $0x50] sm:$0xff] %v914
          %931 = vst [vmem:[%s382 + $0x58] sm:$0xff] %v915
          %932 = vst [vmem:[%s382 + $0x60] sm:$0xff] %v916
          %933 = vst [vmem:[%s382 + $0x68] sm:$0xff] %v917
          %934 = vst [vmem:[%s382 + $0x70] sm:$0xff] %v918
          %935 = vst [vmem:[%s382 + $0x78] sm:$0xff] %v919
        $region86: #{_lambda_.16} parent=73 // pred_fallthru
          _
        %s936 = smul.u32 16, %s20
        %p937 = scmp.lt.s32.totalorder %s936, 15
        %s938 = scalar_select %p937, %s936, 15
        %s939 = smul.addr %s938, 8
        %s940 = scalar_lea.vmem %s5, %s939
        // Predicated region
        $region87: #{_lambda_.16} parent=73 // pred_check
          %p941 = pneg %p168
        $region88: #{_lambda_.16} parent=73 // pred_check_branch
          %943 = sbr.rel (%p941) target = $region90
        $region89: #{_lambda_.16} parent=73 // pred_region
          %s944 = smul.u32 16, %s20
        $region90: #{_lambda_.16} parent=73 // pred_fallthru
          _
        // Predicated region
        $region91: #{_lambda_.16} parent=73 // pred_check
          %p945 = pneg %p168
        $region92: #{_lambda_.16} parent=73 // pred_check_branch
          %947 = sbr.rel (%p945) target = $region94
        $region93: #{_lambda_.16} parent=73 // pred_region
          %s948 = smul.u32 16, %s20
          %p949 = scmp.lt.s32.totalorder %s948, 15
          %s950 = scalar_select %p949, %s948, 15
          %s951 = smul.addr %s950, 8
          %s952 = scalar_lea.vmem %s5, %s951
        $region94: #{_lambda_.16} parent=73 // pred_fallthru
          _
      $region74: #{_lambda_.16} parent=5 // pred_fallthru
        _
      %p953 = scmp.le.s32.totalorder 2, %s11
      // Predicated region
      $region95: #{_lambda_.16} parent=5 // pred_check
        %p954 = pneg %p953
      $region96: #{_lambda_.16} parent=5 // pred_check_branch
        %956 = sbr.rel (%p954) target = $region98
      $region97: #{_lambda_.16} parent=5 // pred_region
        %s957 = ssub.s32 %s11, 2
      $region98: #{_lambda_.16} parent=5 // pred_fallthru
        _
    $region6: #{_lambda_.16} parent=1 // loop_footer
      %s15 = sadd.s32 1, %s11
    $region7: #{_lambda_.16} parent=1 // loop_footer_branch
      %10 = sbr.rel target = $region3
    $region8: #{_lambda_.16} parent=1 // loop_exit
      _

// kernel: _lambda_.18
$region0: #{_lambda_.18}
  #allocation0 [shape = 'u32[]', space=smem, size = 0x4, offset = 0x4, fixed_abs, tag = 'smem constant byte address 0x4 - core index']
  #allocation1 [shape = 'u32[144,128]{1,0:T(1,128)}', space=vmem, size = 0x12000, scoped, tag = 'internal scratch']
  %s0 = inlined_call_operand.vmem [shape: bf16[128,768], index: 0, kind: input, shape index: {}]
  %s1 = inlined_call_operand.vmem [shape: bf16[768,128], index: 1, kind: input, shape index: {}]
  %s2 = inlined_call_operand.vmem [shape: f32[1,128], index: 2, kind: input, shape index: {}]
  %s3 = inlined_call_operand.vmem [shape: f32[1,128], index: 3, kind: input, shape index: {}]
  %s4 = inlined_call_operand.vmem [shape: f32[128,128], index: 4, kind: input, shape index: {}]
  %s5 = inlined_call_operand.vmem [shape: f32[128,128], index: 5, kind: output, shape index: {0}]
  %s6 = inlined_call_operand.hbm [shape: f32[128,128], index: 6, kind: output, shape index: {1}]
  %7 = xla_tuple %s5, %s6
  %s8 = sld [smem:[#allocation0]]
  $region107: #{_lambda_.18} parent=0
    _
  %s10 = ssub.s32 1, %s8
  %s11 = scalar_select 0, %s10, %s8
  $region1: #{_lambda_.18} parent=0
    #allocation2 [shape = 'u8[131072]{0}', space=vmem, size = 0x20000, scoped, tag = 'input window, operand 0']
    #allocation3 [shape = 'u8[65536]{0}', space=vmem, size = 0x10000, scoped, tag = 'output window, operand 1, single buffered']
    #allocation4 [shape = 's32[2]{0}', space=sflag, size = 0x8, scoped, tag = 'scoped memory for _lambda_.18']
    %12 = vsyncpa [#allocation4], 0
    loop: start=0, step=1, limit=5
    $region2: #{_lambda_.18} parent=1 // loop_pre_header
      _
    $region3: #{_lambda_.18} parent=1 // loop_header
      %s14 = sphi 0, %s18
      %p15 = scmp.ge.s32.totalorder %s14, 5
      %s21 = sphi 0, %s33
      %s22 = sphi 0, %s29
      %s23 = sphi 0, %s21
      %s24 = sphi 0, %s22
      %s25 = sphi 0, %s23
      %s26 = sphi 0, %s24
      %s38 = sphi 0, %s40
      %s41 = sphi 0, %s38
      %s42 = sphi 0, %s41
      %s58 = sphi 0, %s42
      %s64 = sphi 0, %s66
      %s67 = sphi 0, %s64
      %s68 = sphi 0, %s67
      %s84 = sphi 0, %s68
      %s88 = sphi 0, %s88
      %s90 = sphi 0, %s88
      %s91 = sphi 0, %s90
      %s105 = sphi 0, %s91
      %s109 = sphi 0, %s109
      %s111 = sphi 0, %s109
      %s112 = sphi 0, %s111
      %s126 = sphi 0, %s112
      %s132 = sphi 0, %s134
      %s135 = sphi 0, %s132
      %s136 = sphi 0, %s135
      %s152 = sphi 0, %s136
      %s158 = sphi 0, %s160
      %s161 = sphi 0, %s158
      %s162 = sphi 0, %s161
      %s178 = sphi 0, %s162
      %s184 = sphi 0, %s186
      %s187 = sphi 0, %s184
      %s188 = sphi 0, %s187
      %s204 = sphi 0, %s188
    $region4: #{_lambda_.18} parent=1 // loop_header_branch
      %17 = sbr.rel (%p15) target = $region8
    $region5: #{_lambda_.18} parent=1 // loop_body
      %s19 = ssub.s32 %s14, 1
      %s20 = ssub.s32 %s14, 2
      %s27 = sadd.s32 1, %s22
      %p28 = scmp.ge.s32.totalorder %s27, 3
      %s29 = scalar_select %p28, 0, %s27
      %s30 = sadd.s32 1, %s21
      %s31 = scalar_select %p28, %s30, %s21
      %p32 = scmp.ge.s32.totalorder %s31, 1
      %s33 = scalar_select %p32, 0, %s31
      %s34 = ssub.s32 %s21, %s33
      %s35 = ssub.s32 %s22, %s29
      %s36 = sor.u32 %s34, %s35
      %p37 = scmp.eq.s32.totalorder %s36, 0
      %s39 = sadd.s32 %s38, 1
      %s40 = scalar_select %p37, %s38, %s39
      %p43 = pneg %p37
      %p44 = scmp.eq.s32.totalorder %s14, 2
      %p45 = por %p43, %p44
      %p46 = scmp.ne.s32.totalorder %s38, %s41
      %p47 = scmp.eq.s32.totalorder %s14, 0
      %p48 = por %p46, %p47
      %p49 = scmp.ne.s32.totalorder %s38, %s41
      %p50 = scmp.eq.s32.totalorder %s19, 2
      %p51 = por %p49, %p50
      %p52 = scmp.ne.s32.totalorder %s41, %s42
      %p53 = scmp.eq.s32.totalorder %s19, 0
      %p54 = por %p52, %p53
      %p55 = scmp.ne.s32.totalorder %s41, %s42
      %p56 = scmp.eq.s32.totalorder %s20, 2
      %p57 = por %p55, %p56
      %p59 = scmp.ne.s32.totalorder %s42, %s58
      %p60 = scmp.eq.s32.totalorder %s20, 0
      %p61 = por %p59, %p60
      %s62 = ssub.s32 %s22, %s29
      %p63 = scmp.eq.s32.totalorder %s62, 0
      %s65 = sadd.s32 %s64, 1
      %s66 = scalar_select %p63, %s64, %s65
      %p69 = pneg %p63
      %p70 = scmp.eq.s32.totalorder %s14, 2
      %p71 = por %p69, %p70
      %p72 = scmp.ne.s32.totalorder %s64, %s67
      %p73 = scmp.eq.s32.totalorder %s14, 0
      %p74 = por %p72, %p73
      %p75 = scmp.ne.s32.totalorder %s64, %s67
      %p76 = scmp.eq.s32.totalorder %s19, 2
      %p77 = por %p75, %p76
      %p78 = scmp.ne.s32.totalorder %s67, %s68
      %p79 = scmp.eq.s32.totalorder %s19, 0
      %p80 = por %p78, %p79
      %p81 = scmp.ne.s32.totalorder %s67, %s68
      %p82 = scmp.eq.s32.totalorder %s20, 2
      %p83 = por %p81, %p82
      %p85 = scmp.ne.s32.totalorder %s68, %s84
      %p86 = scmp.eq.s32.totalorder %s20, 0
      %p87 = por %p85, %p86
      %s89 = sadd.s32 %s88, 1
      %p92 = scmp.eq.s32.totalorder %s14, 2
      %p93 = scmp.ne.s32.totalorder %s88, %s90
      %p94 = scmp.eq.s32.totalorder %s14, 0
      %p95 = por %p93, %p94
      %p96 = scmp.ne.s32.totalorder %s88, %s90
      %p97 = scmp.eq.s32.totalorder %s19, 2
      %p98 = por %p96, %p97
      %p99 = scmp.ne.s32.totalorder %s90, %s91
      %p100 = scmp.eq.s32.totalorder %s19, 0
      %p101 = por %p99, %p100
      %p102 = scmp.ne.s32.totalorder %s90, %s91
      %p103 = scmp.eq.s32.totalorder %s20, 2
      %p104 = por %p102, %p103
      %p106 = scmp.ne.s32.totalorder %s91, %s105
      %p107 = scmp.eq.s32.totalorder %s20, 0
      %p108 = por %p106, %p107
      %s110 = sadd.s32 %s109, 1
      %p113 = scmp.eq.s32.totalorder %s14, 2
      %p114 = scmp.ne.s32.totalorder %s109, %s111
      %p115 = scmp.eq.s32.totalorder %s14, 0
      %p116 = por %p114, %p115
      %p117 = scmp.ne.s32.totalorder %s109, %s111
      %p118 = scmp.eq.s32.totalorder %s19, 2
      %p119 = por %p117, %p118
      %p120 = scmp.ne.s32.totalorder %s111, %s112
      %p121 = scmp.eq.s32.totalorder %s19, 0
      %p122 = por %p120, %p121
      %p123 = scmp.ne.s32.totalorder %s111, %s112
      %p124 = scmp.eq.s32.totalorder %s20, 2
      %p125 = por %p123, %p124
      %p127 = scmp.ne.s32.totalorder %s112, %s126
      %p128 = scmp.eq.s32.totalorder %s20, 0
      %p129 = por %p127, %p128
      %s130 = ssub.s32 %s21, %s33
      %p131 = scmp.eq.s32.totalorder %s130, 0
      %s133 = sadd.s32 %s132, 1
      %s134 = scalar_select %p131, %s132, %s133
      %p137 = pneg %p131
      %p138 = scmp.eq.s32.totalorder %s14, 2
      %p139 = por %p137, %p138
      %p140 = scmp.ne.s32.totalorder %s132, %s135
      %p141 = scmp.eq.s32.totalorder %s14, 0
      %p142 = por %p140, %p141
      %p143 = scmp.ne.s32.totalorder %s132, %s135
      %p144 = scmp.eq.s32.totalorder %s19, 2
      %p145 = por %p143, %p144
      %p146 = scmp.ne.s32.totalorder %s135, %s136
      %p147 = scmp.eq.s32.totalorder %s19, 0
      %p148 = por %p146, %p147
      %p149 = scmp.ne.s32.totalorder %s135, %s136
      %p150 = scmp.eq.s32.totalorder %s20, 2
      %p151 = por %p149, %p150
      %p153 = scmp.ne.s32.totalorder %s136, %s152
      %p154 = scmp.eq.s32.totalorder %s20, 0
      %p155 = por %p153, %p154
      %s156 = ssub.s32 %s21, %s33
      %p157 = scmp.eq.s32.totalorder %s156, 0
      %s159 = sadd.s32 %s158, 1
      %s160 = scalar_select %p157, %s158, %s159
      %p163 = pneg %p157
      %p164 = scmp.eq.s32.totalorder %s14, 2
      %p165 = por %p163, %p164
      %p166 = scmp.ne.s32.totalorder %s158, %s161
      %p167 = scmp.eq.s32.totalorder %s14, 0
      %p168 = por %p166, %p167
      %p169 = scmp.ne.s32.totalorder %s158, %s161
      %p170 = scmp.eq.s32.totalorder %s19, 2
      %p171 = por %p169, %p170
      %p172 = scmp.ne.s32.totalorder %s161, %s162
      %p173 = scmp.eq.s32.totalorder %s19, 0
      %p174 = por %p172, %p173
      %p175 = scmp.ne.s32.totalorder %s161, %s162
      %p176 = scmp.eq.s32.totalorder %s20, 2
      %p177 = por %p175, %p176
      %p179 = scmp.ne.s32.totalorder %s162, %s178
      %p180 = scmp.eq.s32.totalorder %s20, 0
      %p181 = por %p179, %p180
      %s182 = ssub.s32 %s21, %s33
      %p183 = scmp.eq.s32.totalorder %s182, 0
      %s185 = sadd.s32 %s184, 1
      %s186 = scalar_select %p183, %s184, %s185
      %p189 = pneg %p183
      %p190 = scmp.eq.s32.totalorder %s14, 2
      %p191 = por %p189, %p190
      %p192 = scmp.ne.s32.totalorder %s184, %s187
      %p193 = scmp.eq.s32.totalorder %s14, 0
      %p194 = por %p192, %p193
      %p195 = scmp.ne.s32.totalorder %s184, %s187
      %p196 = scmp.eq.s32.totalorder %s19, 2
      %p197 = por %p195, %p196
      %p198 = scmp.ne.s32.totalorder %s187, %s188
      %p199 = scmp.eq.s32.totalorder %s19, 0
      %p200 = por %p198, %p199
      %p201 = scmp.ne.s32.totalorder %s187, %s188
      %p202 = scmp.eq.s32.totalorder %s20, 2
      %p203 = por %p201, %p202
      %p205 = scmp.ne.s32.totalorder %s188, %s204
      %p206 = scmp.eq.s32.totalorder %s20, 0
      %p207 = por %p205, %p206
      %p208 = scmp.le.s32.totalorder 1, %s14
      %p209 = scmp.lt.s32.totalorder %s14, 4
      %p210 = pnand %p208, %p209
      %p211 = pneg %p210
      // Predicated region
      $region9: #{_lambda_.18} parent=5 // pred_check
        _
      $region10: #{_lambda_.18} parent=5 // pred_check_branch
        %213 = sbr.rel (%p210) target = $region12
      $region11: #{_lambda_.18} parent=5 // pred_region
        %s214 = ssub.s32 %s14, 1
        // Predicated region
        $region13: #{_lambda_.18} parent=11 // pred_check
          %p215 = pneg %p101
        $region14: #{_lambda_.18} parent=11 // pred_check_branch
          %217 = sbr.rel (%p215) target = $region16
        $region15: #{_lambda_.18} parent=11 // pred_region
          _
        $region16: #{_lambda_.18} parent=11 // pred_fallthru
          _
        // Predicated region
        $region17: #{_lambda_.18} parent=11 // pred_check
          %p218 = pneg %p122
        $region18: #{_lambda_.18} parent=11 // pred_check_branch
          %220 = sbr.rel (%p218) target = $region20
        $region19: #{_lambda_.18} parent=11 // pred_region
          _
        $region20: #{_lambda_.18} parent=11 // pred_fallthru
          _
        // Predicated region
        $region21: #{_lambda_.18} parent=11 // pred_check
          %p221 = pneg %p148
        $region22: #{_lambda_.18} parent=11 // pred_check_branch
          %223 = sbr.rel (%p221) target = $region24
        $region23: #{_lambda_.18} parent=11 // pred_region
          %s224 = smul.u32 16, %s23
          %p225 = scmp.lt.s32.totalorder %s224, 15
          %s226 = scalar_select %p225, %s224, 15
          %s227 = smul.addr %s226, 8
          %s228 = scalar_lea.vmem %s4, %s227
          %s229 = smul.u32 16, %s23
        $region24: #{_lambda_.18} parent=11 // pred_fallthru
          _
      $region12: #{_lambda_.18} parent=5 // pred_fallthru
        _
      %p230 = scmp.lt.s32.totalorder %s14, 3
      // Predicated region
      $region25: #{_lambda_.18} parent=5 // pred_check
        %p231 = pneg %p230
      $region26: #{_lambda_.18} parent=5 // pred_check_branch
        %233 = sbr.rel (%p231) target = $region28
      $region27: #{_lambda_.18} parent=5 // pred_region
        // Predicated region
        $region29: #{_lambda_.18} parent=27 // pred_check
          %p234 = pneg %p48
        $region30: #{_lambda_.18} parent=27 // pred_check_branch
          %236 = sbr.rel (%p234) target = $region32
        $region31: #{_lambda_.18} parent=27 // pred_region
          %s237 = sand.u32 %s38, 1
          %s238 = sand.u32 %s38, 1
          %s239 = smul.addr %s238, 128
          %s240 = scalar_lea.vmem [#allocation2], %s239
          %s241 = smul.u32 16, %s21
          %s242 = smul.u32 2, %s22
          %s243 = smul.addr %s241, 6
          %s244 = sadd.s32 %s242, %s243
          %s245 = smul.addr %s244, 4
          %s246 = scalar_lea.vmem %s0, %s245
          // Predicated region
          $region33: #{_lambda_.18} parent=31 // pred_check
            _
          $region34: #{_lambda_.18} parent=31 // pred_check_branch
            %248 = sbr.rel (0) target = $region36
          $region35: #{_lambda_.18} parent=31 // pred_region
            // Predicated region
            $region37: #{_lambda_.18} parent=35 // pred_check
              _
            $region38: #{_lambda_.18} parent=35 // pred_check_branch
              %250 = sbr.rel (0) target = $region40
            $region39: #{_lambda_.18} parent=35 // pred_region
              // Predicated region
              $region52: #{_lambda_.18} parent=39 // pred_check
                _
              $region53: #{_lambda_.18} parent=39 // pred_check_branch
                %295 = sbr.rel (0) target = $region55
              $region54: #{_lambda_.18} parent=39 // pred_region
                loop: start=0, step=1, limit=1
                $region56: #{_lambda_.18} parent=54 // loop_pre_header
                  _
                $region57: #{_lambda_.18} parent=54 // loop_header
                  %s297 = sphi 0, %s301
                  %p298 = scmp.ge.s32.totalorder %s297, 1
                  %s302 = sphi %s246, %s246
                  %s303 = sphi %s240, %s240
                $region58: #{_lambda_.18} parent=54 // loop_header_branch
                  %300 = sbr.rel (%p298) target = $region62
                $region59: #{_lambda_.18} parent=54 // loop_body
                  %v304 = vld [vmem:[%s302] sm:$0xff]
                  %305 = vst [vmem:[%s303] sm:$0xff] %v304
                  %v306 = vld [vmem:[%s302 + $0x18] sm:$0xff]
                  %307 = vst [vmem:[%s303 + $0x8] sm:$0xff] %v306
                  %v308 = vld [vmem:[%s302 + $0x30] sm:$0xff]
                  %309 = vst [vmem:[%s303 + $0x10] sm:$0xff] %v308
                  %v310 = vld [vmem:[%s302 + $0x48] sm:$0xff]
                  %311 = vst [vmem:[%s303 + $0x18] sm:$0xff] %v310
                  %v312 = vld [vmem:[%s302 + $0x60] sm:$0xff]
                  %313 = vst [vmem:[%s303 + $0x20] sm:$0xff] %v312
                  %v314 = vld [vmem:[%s302 + $0x78] sm:$0xff]
                  %315 = vst [vmem:[%s303 + $0x28] sm:$0xff] %v314
                  %v316 = vld [vmem:[%s302 + $0x90] sm:$0xff]
                  %317 = vst [vmem:[%s303 + $0x30] sm:$0xff] %v316
                  %v318 = vld [vmem:[%s302 + $0xa8] sm:$0xff]
                  %319 = vst [vmem:[%s303 + $0x38] sm:$0xff] %v318
                  %v320 = vld [vmem:[%s302 + $0xc0] sm:$0xff]
                  %321 = vst [vmem:[%s303 + $0x40] sm:$0xff] %v320
                  %v322 = vld [vmem:[%s302 + $0xd8] sm:$0xff]
                  %323 = vst [vmem:[%s303 + $0x48] sm:$0xff] %v322
                  %v324 = vld [vmem:[%s302 + $0xf0] sm:$0xff]
                  %325 = vst [vmem:[%s303 + $0x50] sm:$0xff] %v324
                  %v326 = vld [vmem:[%s302 + $0x108] sm:$0xff]
                  %327 = vst [vmem:[%s303 + $0x58] sm:$0xff] %v326
                  %v328 = vld [vmem:[%s302 + $0x120] sm:$0xff]
                  %329 = vst [vmem:[%s303 + $0x60] sm:$0xff] %v328
                  %v330 = vld [vmem:[%s302 + $0x138] sm:$0xff]
                  %331 = vst [vmem:[%s303 + $0x68] sm:$0xff] %v330
                  %v332 = vld [vmem:[%s302 + $0x150] sm:$0xff]
                  %333 = vst [vmem:[%s303 + $0x70] sm:$0xff] %v332
                  %v334 = vld [vmem:[%s302 + $0x168] sm:$0xff]
                  %335 = vst [vmem:[%s303 + $0x78] sm:$0xff] %v334
                $region60: #{_lambda_.18} parent=54 // loop_footer
                  %s301 = sadd.s32 1, %s297
                $region61: #{_lambda_.18} parent=54 // loop_footer_branch
                  %296 = sbr.rel target = $region57
                $region62: #{_lambda_.18} parent=54 // loop_exit
                  _
              $region55: #{_lambda_.18} parent=39 // pred_fallthru
                _
              // Predicated region
              $region63: #{_lambda_.18} parent=39 // pred_check
                _
              $region64: #{_lambda_.18} parent=39 // pred_check_branch
                %337 = sbr.rel target = $region66
              $region65: #{_lambda_.18} parent=39 // pred_region
                _
              $region66: #{_lambda_.18} parent=39 // pred_fallthru
                _
            $region40: #{_lambda_.18} parent=35 // pred_fallthru
              _
            // Predicated region
            $region41: #{_lambda_.18} parent=35 // pred_check
              _
            $region42: #{_lambda_.18} parent=35 // pred_check_branch
              %252 = sbr.rel target = $region44
            $region43: #{_lambda_.18} parent=35 // pred_region
              loop: start=0, step=1, limit=1
              $region45: #{_lambda_.18} parent=43 // loop_pre_header
                _
              $region46: #{_lambda_.18} parent=43 // loop_header
                %s255 = sphi 0, %s259
                %p256 = scmp.ge.s32.totalorder %s255, 1
                %s260 = sphi %s246, %s246
                %s261 = sphi %s240, %s240
              $region47: #{_lambda_.18} parent=43 // loop_header_branch
                %258 = sbr.rel (%p256) target = $region51
              $region48: #{_lambda_.18} parent=43 // loop_body
                %v262 = vld [vmem:[%s260] sm:$0xff]
                %263 = vst [vmem:[%s261] sm:$0xff] %v262
                %v264 = vld [vmem:[%s260 + $0x18] sm:$0xff]
                %265 = vst [vmem:[%s261 + $0x8] sm:$0xff] %v264
                %v266 = vld [vmem:[%s260 + $0x30] sm:$0xff]
                %267 = vst [vmem:[%s261 + $0x10] sm:$0xff] %v266
                %v268 = vld [vmem:[%s260 + $0x48] sm:$0xff]
                %269 = vst [vmem:[%s261 + $0x18] sm:$0xff] %v268
                %v270 = vld [vmem:[%s260 + $0x60] sm:$0xff]
                %271 = vst [vmem:[%s261 + $0x20] sm:$0xff] %v270
                %v272 = vld [vmem:[%s260 + $0x78] sm:$0xff]
                %273 = vst [vmem:[%s261 + $0x28] sm:$0xff] %v272
                %v274 = vld [vmem:[%s260 + $0x90] sm:$0xff]
                %275 = vst [vmem:[%s261 + $0x30] sm:$0xff] %v274
                %v276 = vld [vmem:[%s260 + $0xa8] sm:$0xff]
                %277 = vst [vmem:[%s261 + $0x38] sm:$0xff] %v276
                %v278 = vld [vmem:[%s260 + $0xc0] sm:$0xff]
                %279 = vst [vmem:[%s261 + $0x40] sm:$0xff] %v278
                %v280 = vld [vmem:[%s260 + $0xd8] sm:$0xff]
                %281 = vst [vmem:[%s261 + $0x48] sm:$0xff] %v280
                %v282 = vld [vmem:[%s260 + $0xf0] sm:$0xff]
                %283 = vst [vmem:[%s261 + $0x50] sm:$0xff] %v282
                %v284 = vld [vmem:[%s260 + $0x108] sm:$0xff]
                %285 = vst [vmem:[%s261 + $0x58] sm:$0xff] %v284
                %v286 = vld [vmem:[%s260 + $0x120] sm:$0xff]
                %287 = vst [vmem:[%s261 + $0x60] sm:$0xff] %v286
                %v288 = vld [vmem:[%s260 + $0x138] sm:$0xff]
                %289 = vst [vmem:[%s261 + $0x68] sm:$0xff] %v288
                %v290 = vld [vmem:[%s260 + $0x150] sm:$0xff]
                %291 = vst [vmem:[%s261 + $0x70] sm:$0xff] %v290
                %v292 = vld [vmem:[%s260 + $0x168] sm:$0xff]
                %293 = vst [vmem:[%s261 + $0x78] sm:$0xff] %v292
              $region49: #{_lambda_.18} parent=43 // loop_footer
                %s259 = sadd.s32 1, %s255
              $region50: #{_lambda_.18} parent=43 // loop_footer_branch
                %254 = sbr.rel target = $region46
              $region51: #{_lambda_.18} parent=43 // loop_exit
                _
            $region44: #{_lambda_.18} parent=35 // pred_fallthru
              _
          $region36: #{_lambda_.18} parent=31 // pred_fallthru
            _
          %338 = vnop
        $region32: #{_lambda_.18} parent=27 // pred_fallthru
          _
        // Predicated region
        $region67: #{_lambda_.18} parent=27 // pred_check
          %p339 = pneg %p74
        $region68: #{_lambda_.18} parent=27 // pred_check_branch
          %341 = sbr.rel (%p339) target = $region70
        $region69: #{_lambda_.18} parent=27 // pred_region
          %s342 = smul.u32 32, %s22
          %p343 = scmp.lt.s32.totalorder %s342, 95
          %s344 = scalar_select %p343, %s342, 95
          %s345 = smul.addr %s344, 4
          %s346 = scalar_lea.vmem %s1, %s345
          %s347 = smul.u32 32, %s22
        $region70: #{_lambda_.18} parent=27 // pred_fallthru
          _
      $region28: #{_lambda_.18} parent=5 // pred_fallthru
        _
      %p348 = scmp.le.s32.totalorder 1, %s14
      %p349 = scmp.lt.s32.totalorder %s14, 4
      %p350 = pnand %p348, %p349
      %p351 = pneg %p350
      // Predicated region
      $region71: #{_lambda_.18} parent=5 // pred_check
        _
      $region72: #{_lambda_.18} parent=5 // pred_check_branch
        %353 = sbr.rel (%p350) target = $region74
      $region73: #{_lambda_.18} parent=5 // pred_region
        %s354 = ssub.s32 %s14, 1
        %s355 = sand.u32 %s41, 1
        %s356 = sand.u32 %s41, 1
        %s357 = smul.addr %s356, 128
        %s358 = scalar_lea.vmem [#allocation2], %s357
        // Predicated region
        $region75: #{_lambda_.18} parent=73 // pred_check
          %p359 = pneg %p54
        $region76: #{_lambda_.18} parent=73 // pred_check_branch
          %361 = sbr.rel (%p359) target = $region78
        $region77: #{_lambda_.18} parent=73 // pred_region
          _
        $region78: #{_lambda_.18} parent=73 // pred_fallthru
          _
        %s362 = sand.u32 %s41, 1
        %s363 = sand.u32 %s41, 1
        %s364 = smul.addr %s363, 128
        %s365 = scalar_lea.vmem [#allocation2], %s364
        %p366 = pneg %p54
        %p367 = pneg %p51
        %s368 = smul.u32 32, %s24
        %p369 = scmp.lt.s32.totalorder %s368, 95
        %s370 = scalar_select %p369, %s368, 95
        %s371 = smul.addr %s370, 4
        %s372 = scalar_lea.vmem %s1, %s371
        %p373 = pneg %p80
        %p374 = pneg %p77
        %p375 = pneg %p101
        %p376 = pneg %p98
        %p377 = pneg %p122
        %p378 = pneg %p119
        %s379 = smul.u32 16, %s23
        %p380 = scmp.lt.s32.totalorder %s379, 15
        %s381 = scalar_select %p380, %s379, 15
        %s382 = smul.addr %s381, 8
        %s383 = scalar_lea.vmem %s4, %s382
        %p384 = pneg %p148
        %p385 = pneg %p145
        %p386 = pneg %p174
        %p387 = pneg %p171
        %s388 = smul.u32 16, %s23
        %p389 = scmp.lt.s32.totalorder %s388, 15
        %s390 = scalar_select %p389, %s388, 15
        %s391 = smul.addr %s390, 8
        %s392 = scalar_lea.vmem %s5, %s391
        %p393 = pneg %p200
        %p394 = pneg %p197
        %s395 = smul.u32 16, %s23
        %s396 = smul.u32 2, %s24
        %s397 = smul.u32 32, %s24
        %p398 = scmp.lt.s32.totalorder %s397, 95
        %s399 = scalar_select %p398, %s397, 95
        %s400 = smul.addr %s399, 4
        %s401 = scalar_lea.vmem %s1, %s400
        %s402 = smul.u32 32, %s24
        %s403 = smul.u32 16, %s23
        %p404 = scmp.lt.s32.totalorder %s403, 15
        %s405 = scalar_select %p404, %s403, 15
        %s406 = smul.addr %s405, 8
        %s407 = scalar_lea.vmem %s4, %s406
        %s408 = smul.u32 16, %s23
        %s409 = smul.u32 16, %s23
        %p410 = scmp.lt.s32.totalorder %s409, 15
        %s411 = scalar_select %p410, %s409, 15
        %s412 = smul.addr %s411, 8
        %s413 = scalar_lea.vmem %s5, %s412
        %s414 = smul.u32 16, %s23
        %s415 = smul.u32 16, %s23
        %p417 = scmp.eq.s32.totalorder %s24, 0
        // Predicated region
        $region79: #{_lambda_.18} parent=73 // pred_check
          %p418 = pneg %p417
        $region80: #{_lambda_.18} parent=73 // pred_check_branch
          %420 = sbr.rel (%p418) target = $region82
        $region81: #{_lambda_.18} parent=73 // pred_region
          %421 = vst [vmem:[#allocation3] sm:$0xff] 0.0
          %422 = vst [vmem:[#allocation3 + $0x8] sm:$0xff] 0.0
          %423 = vst [vmem:[#allocation3 + $0x10] sm:$0xff] 0.0
          %424 = vst [vmem:[#allocation3 + $0x18] sm:$0xff] 0.0
          %425 = vst [vmem:[#allocation3 + $0x20] sm:$0xff] 0.0
          %426 = vst [vmem:[#allocation3 + $0x28] sm:$0xff] 0.0
          %427 = vst [vmem:[#allocation3 + $0x30] sm:$0xff] 0.0
          %428 = vst [vmem:[#allocation3 + $0x38] sm:$0xff] 0.0
          %429 = vst [vmem:[#allocation3 + $0x40] sm:$0xff] 0.0
          %430 = vst [vmem:[#allocation3 + $0x48] sm:$0xff] 0.0
          %431 = vst [vmem:[#allocation3 + $0x50] sm:$0xff] 0.0
          %432 = vst [vmem:[#allocation3 + $0x58] sm:$0xff] 0.0
          %433 = vst [vmem:[#allocation3 + $0x60] sm:$0xff] 0.0
          %434 = vst [vmem:[#allocation3 + $0x68] sm:$0xff] 0.0
          %435 = vst [vmem:[#allocation3 + $0x70] sm:$0xff] 0.0
          %436 = vst [vmem:[#allocation3 + $0x78] sm:$0xff] 0.0
        $region82: #{_lambda_.18} parent=73 // pred_fallthru
          _
        %v437 = vld [vmem:[#allocation3] sm:$0xff]
        %v438 = vld [vmem:[#allocation3 + $0x8] sm:$0xff]
        %v439 = vld [vmem:[#allocation3 + $0x10] sm:$0xff]
        %v440 = vld [vmem:[#allocation3 + $0x18] sm:$0xff]
        %v441 = vld [vmem:[#allocation3 + $0x20] sm:$0xff]
        %v442 = vld [vmem:[#allocation3 + $0x28] sm:$0xff]
        %v443 = vld [vmem:[#allocation3 + $0x30] sm:$0xff]
        %v444 = vld [vmem:[#allocation3 + $0x38] sm:$0xff]
        %v445 = vld [vmem:[#allocation3 + $0x40] sm:$0xff]
        %v446 = vld [vmem:[#allocation3 + $0x48] sm:$0xff]
        %v447 = vld [vmem:[#allocation3 + $0x50] sm:$0xff]
        %v448 = vld [vmem:[#allocation3 + $0x58] sm:$0xff]
        %v449 = vld [vmem:[#allocation3 + $0x60] sm:$0xff]
        %v450 = vld [vmem:[#allocation3 + $0x68] sm:$0xff]
        %v451 = vld [vmem:[#allocation3 + $0x70] sm:$0xff]
        %v452 = vld [vmem:[#allocation3 + $0x78] sm:$0xff]
        %v453 = vld [vmem:[%s358] sm:$0xff]
        %v454 = vld [vmem:[%s358 + $0x8] sm:$0xff]
        %v455 = vld [vmem:[%s358 + $0x10] sm:$0xff]
        %v456 = vld [vmem:[%s358 + $0x18] sm:$0xff]
        %v457 = vld [vmem:[%s358 + $0x20] sm:$0xff]
        %v458 = vld [vmem:[%s358 + $0x28] sm:$0xff]
        %v459 = vld [vmem:[%s358 + $0x30] sm:$0xff]
        %v460 = vld [vmem:[%s358 + $0x38] sm:$0xff]
        %v461 = vld [vmem:[%s358 + $0x40] sm:$0xff]
        %v462 = vld [vmem:[%s358 + $0x48] sm:$0xff]
        %v463 = vld [vmem:[%s358 + $0x50] sm:$0xff]
        %v464 = vld [vmem:[%s358 + $0x58] sm:$0xff]
        %v465 = vld [vmem:[%s358 + $0x60] sm:$0xff]
        %v466 = vld [vmem:[%s358 + $0x68] sm:$0xff]
        %v467 = vld [vmem:[%s358 + $0x70] sm:$0xff]
        %v468 = vld [vmem:[%s358 + $0x78] sm:$0xff]
        %v469 = vld [vmem:[%s401] sm:$0xf]
        %v470 = vld [vmem:[%s401 + $0x4] sm:$0xf]
        %v471 = vld [vmem:[%s401 + $0x8] sm:$0xf]
        %v472 = vld [vmem:[%s401 + $0xc] sm:$0xf]
        %v473 = vld [vmem:[%s401 + $0x10] sm:$0xf]
        %v474 = vld [vmem:[%s401 + $0x14] sm:$0xf]
        %v475 = vld [vmem:[%s401 + $0x18] sm:$0xf]
        %v476 = vld [vmem:[%s401 + $0x1c] sm:$0xf]
        %v477 = vld [vmem:[%s401 + $0x20] sm:$0xf]
        %v478 = vld [vmem:[%s401 + $0x24] sm:$0xf]
        %v479 = vld [vmem:[%s401 + $0x28] sm:$0xf]
        %v480 = vld [vmem:[%s401 + $0x2c] sm:$0xf]
        %v481 = vld [vmem:[%s401 + $0x30] sm:$0xf]
        %v482 = vld [vmem:[%s401 + $0x34] sm:$0xf]
        %v483 = vld [vmem:[%s401 + $0x38] sm:$0xf]
        %v484 = vld [vmem:[%s401 + $0x3c] sm:$0xf]
        %v485 = vld [vmem:[%s401 + $0x40] sm:$0xf]
        %v486 = vld [vmem:[%s401 + $0x44] sm:$0xf]
        %v487 = vld [vmem:[%s401 + $0x48] sm:$0xf]
        %v488 = vld [vmem:[%s401 + $0x4c] sm:$0xf]
        %v489 = vld [vmem:[%s401 + $0x50] sm:$0xf]
        %v490 = vld [vmem:[%s401 + $0x54] sm:$0xf]
        %v491 = vld [vmem:[%s401 + $0x58] sm:$0xf]
        %v492 = vld [vmem:[%s401 + $0x5c] sm:$0xf]
        %v493 = vld [vmem:[%s401 + $0x60] sm:$0xf]
        %v494 = vld [vmem:[%s401 + $0x64] sm:$0xf]
        %v495 = vld [vmem:[%s401 + $0x68] sm:$0xf]
        %v496 = vld [vmem:[%s401 + $0x6c] sm:$0xf]
        %v497 = vld [vmem:[%s401 + $0x70] sm:$0xf]
        %v498 = vld [vmem:[%s401 + $0x74] sm:$0xf]
        %v499 = vld [vmem:[%s401 + $0x78] sm:$0xf]
        %v500 = vld [vmem:[%s401 + $0x7c] sm:$0xf]
        %v517 = vunpack.c.l.b16 %v453
        %v518 = vunpack.c.h.b16 %v453
        %v519 = vunpack.c.l.b16 %v454
        %v520 = vunpack.c.h.b16 %v454
        %v521 = vunpack.c.l.b16 %v455
        %v522 = vunpack.c.h.b16 %v455
        %v523 = vunpack.c.l.b16 %v456
        %v524 = vunpack.c.h.b16 %v456
        %v525 = vunpack.c.l.b16 %v457
        %v526 = vunpack.c.h.b16 %v457
        %v527 = vunpack.c.l.b16 %v458
        %v528 = vunpack.c.h.b16 %v458
        %v529 = vunpack.c.l.b16 %v459
        %v530 = vunpack.c.h.b16 %v459
        %v531 = vunpack.c.l.b16 %v460
        %v532 = vunpack.c.h.b16 %v460
        %v533 = vunpack.c.l.b16 %v461
        %v534 = vunpack.c.h.b16 %v461
        %v535 = vunpack.c.l.b16 %v462
        %v536 = vunpack.c.h.b16 %v462
        %v537 = vunpack.c.l.b16 %v463
        %v538 = vunpack.c.h.b16 %v463
        %v539 = vunpack.c.l.b16 %v464
        %v540 = vunpack.c.h.b16 %v464
        %v541 = vunpack.c.l.b16 %v465
        %v542 = vunpack.c.h.b16 %v465
        %v543 = vunpack.c.l.b16 %v466
        %v544 = vunpack.c.h.b16 %v466
        %v545 = vunpack.c.l.b16 %v467
        %v546 = vunpack.c.h.b16 %v467
        %v547 = vunpack.c.l.b16 %v468
        %v548 = vunpack.c.h.b16 %v468
        %v549 = vpack.c.b16 %v519, %v517
        %v550 = vpack.c.b16 %v520, %v518
        %v551 = vpack.c.b16 %v523, %v521
        %v552 = vpack.c.b16 %v524, %v522
        %v553 = vpack.c.b16 %v527, %v525
        %v554 = vpack.c.b16 %v528, %v526
        %v555 = vpack.c.b16 %v531, %v529
        %v556 = vpack.c.b16 %v532, %v530
        %v557 = vpack.c.b16 %v535, %v533
        %v558 = vpack.c.b16 %v536, %v534
        %v559 = vpack.c.b16 %v539, %v537
        %v560 = vpack.c.b16 %v540, %v538
        %v561 = vpack.c.b16 %v543, %v541
        %v562 = vpack.c.b16 %v544, %v542
        %v563 = vpack.c.b16 %v547, %v545
        %v564 = vpack.c.b16 %v548, %v546
        %v613 = vunpack.c.l.b16 %v469
        %v614 = vunpack.c.l.b16 %v470
        %v615 = vunpack.c.l.b16 %v471
        %v616 = vunpack.c.l.b16 %v472
        %v617 = vunpack.c.l.b16 %v473
        %v618 = vunpack.c.l.b16 %v474
        %v619 = vunpack.c.l.b16 %v475
        %v620 = vunpack.c.l.b16 %v476
        %v621 = vunpack.c.l.b16 %v477
        %v622 = vunpack.c.l.b16 %v478
        %v623 = vunpack.c.l.b16 %v479
        %v624 = vunpack.c.l.b16 %v480
        %v625 = vunpack.c.l.b16 %v481
        %v626 = vunpack.c.l.b16 %v482
        %v627 = vunpack.c.l.b16 %v483
        %v628 = vunpack.c.l.b16 %v484
        %v629 = vunpack.c.l.b16 %v485
        %v630 = vunpack.c.l.b16 %v486
        %v631 = vunpack.c.l.b16 %v487
        %v632 = vunpack.c.l.b16 %v488
        %v633 = vunpack.c.l.b16 %v489
        %v634 = vunpack.c.l.b16 %v490
        %v635 = vunpack.c.l.b16 %v491
        %v636 = vunpack.c.l.b16 %v492
        %v637 = vunpack.c.l.b16 %v493
        %v638 = vunpack.c.l.b16 %v494
        %v639 = vunpack.c.l.b16 %v495
        %v640 = vunpack.c.l.b16 %v496
        %v641 = vunpack.c.l.b16 %v497
        %v642 = vunpack.c.l.b16 %v498
        %v643 = vunpack.c.l.b16 %v499
        %v644 = vunpack.c.l.b16 %v500
        %v645 = vpack.c.b16 %v614, %v613
        %v646 = vpack.c.b16 %v616, %v615
        %v647 = vpack.c.b16 %v618, %v617
        %v648 = vpack.c.b16 %v620, %v619
        %v649 = vpack.c.b16 %v622, %v621
        %v650 = vpack.c.b16 %v624, %v623
        %v651 = vpack.c.b16 %v626, %v625
        %v652 = vpack.c.b16 %v628, %v627
        %v653 = vpack.c.b16 %v630, %v629
        %v654 = vpack.c.b16 %v632, %v631
        %v655 = vpack.c.b16 %v634, %v633
        %v656 = vpack.c.b16 %v636, %v635
        %v657 = vpack.c.b16 %v638, %v637
        %v658 = vpack.c.b16 %v640, %v639
        %v659 = vpack.c.b16 %v642, %v641
        %v660 = vpack.c.b16 %v644, %v643
        %677 = vmatprep.subr.bf16.mxu0 0
        %678 = vmatpush1.bf16.msra.mxu0 %v645
        %679 = vmatprep.subr.bf16.mxu0 0
        %680 = vmatpush1.bf16.msra.mxu0 %v646
        %681 = vmatprep.subr.bf16.mxu0 0
        %682 = vmatpush1.bf16.msra.mxu0 %v647
        %683 = vmatprep.subr.bf16.mxu0 0
        %684 = vmatpush1.bf16.msra.mxu0 %v648
        %685 = vmatprep.subr.bf16.mxu0 0
        %686 = vmatpush1.bf16.msra.mxu0 %v649
        %687 = vmatprep.subr.bf16.mxu0 0
        %688 = vmatpush1.bf16.msra.mxu0 %v650
        %689 = vmatprep.subr.bf16.mxu0 0
        %690 = vmatpush1.bf16.msra.mxu0 %v651
        %691 = vmatprep.subr.bf16.mxu0 0
        %692 = vmatpush1.bf16.msra.mxu0 %v652
        %693 = vmatprep.subr.bf16.mxu0 0
        %694 = vmatpush1.bf16.msra.mxu0 %v653
        %695 = vmatprep.subr.bf16.mxu0 0
        %696 = vmatpush1.bf16.msra.mxu0 %v654
        %697 = vmatprep.subr.bf16.mxu0 0
        %698 = vmatpush1.bf16.msra.mxu0 %v655
        %699 = vmatprep.subr.bf16.mxu0 0
        %700 = vmatpush1.bf16.msra.mxu0 %v656
        %701 = vmatprep.subr.bf16.mxu0 0
        %702 = vmatpush1.bf16.msra.mxu0 %v657
        %703 = vmatprep.subr.bf16.mxu0 0
        %704 = vmatpush1.bf16.msra.mxu0 %v658
        %705 = vmatprep.subr.bf16.mxu0 0
        %706 = vmatpush1.bf16.msra.mxu0 %v659
        %707 = vmatprep.subr.bf16.mxu0 0
        %708 = vmatpush1.bf16.msra.mxu0 %v660
        %709 = vmatprep.mubr.bf16.mxu0 %v550
        %710 = vmatmul.mubr.bf16.gmra.mrb[0].mxu0 %v549
        %v711 = vpop.f32.mrb[0].mxu0
        %v712 = vadd.f32 0.0, %v711
        %v713 = vpop.f32.mrb[0].mxu0
        %v714 = vpop.f32.mrb[0].mxu0
        %v715 = vadd.f32 0.0, %v714
        %v716 = vpop.f32.mrb[0].mxu0
        %717 = vmatprep.mubr.bf16.mxu0 %v552
        %718 = vmatmul.mubr.bf16.gmra.mrb[0].mxu0 %v551
        %v719 = vpop.f32.mrb[0].mxu0
        %v720 = vadd.f32 0.0, %v719
        %v721 = vpop.f32.mrb[0].mxu0
        %v722 = vpop.f32.mrb[0].mxu0
        %v723 = vadd.f32 0.0, %v722
        %v724 = vpop.f32.mrb[0].mxu0
        %725 = vmatprep.mubr.bf16.mxu0 %v554
        %726 = vmatmul.mubr.bf16.gmra.mrb[0].mxu0 %v553
        %v727 = vpop.f32.mrb[0].mxu0
        %v728 = vadd.f32 0.0, %v727
        %v729 = vpop.f32.mrb[0].mxu0
        %v730 = vpop.f32.mrb[0].mxu0
        %v731 = vadd.f32 0.0, %v730
        %v732 = vpop.f32.mrb[0].mxu0
        %733 = vmatprep.mubr.bf16.mxu0 %v556
        %734 = vmatmul.mubr.bf16.gmra.mrb[0].mxu0 %v555
        %v735 = vpop.f32.mrb[0].mxu0
        %v736 = vadd.f32 0.0, %v735
        %v737 = vpop.f32.mrb[0].mxu0
        %v738 = vpop.f32.mrb[0].mxu0
        %v739 = vadd.f32 0.0, %v738
        %v740 = vpop.f32.mrb[0].mxu0
        %741 = vmatprep.mubr.bf16.mxu0 %v558
        %742 = vmatmul.mubr.bf16.gmra.mrb[0].mxu0 %v557
        %v743 = vpop.f32.mrb[0].mxu0
        %v744 = vadd.f32 0.0, %v743
        %v745 = vpop.f32.mrb[0].mxu0
        %v746 = vpop.f32.mrb[0].mxu0
        %v747 = vadd.f32 0.0, %v746
        %v748 = vpop.f32.mrb[0].mxu0
        %749 = vmatprep.mubr.bf16.mxu0 %v560
        %750 = vmatmul.mubr.bf16.gmra.mrb[0].mxu0 %v559
        %v751 = vpop.f32.mrb[0].mxu0
        %v752 = vadd.f32 0.0, %v751
        %v753 = vpop.f32.mrb[0].mxu0
        %v754 = vpop.f32.mrb[0].mxu0
        %v755 = vadd.f32 0.0, %v754
        %v756 = vpop.f32.mrb[0].mxu0
        %757 = vmatprep.mubr.bf16.mxu0 %v562
        %758 = vmatmul.mubr.bf16.gmra.mrb[0].mxu0 %v561
        %v759 = vpop.f32.mrb[0].mxu0
        %v760 = vadd.f32 0.0, %v759
        %v761 = vpop.f32.mrb[0].mxu0
        %v762 = vpop.f32.mrb[0].mxu0
        %v763 = vadd.f32 0.0, %v762
        %v764 = vpop.f32.mrb[0].mxu0
        %765 = vmatprep.mubr.bf16.mxu0 %v564
        %766 = vmatmul.mubr.bf16.gmra.mrb[0].mxu0 %v563
        %v767 = vpop.f32.mrb[0].mxu0
        %v768 = vadd.f32 0.0, %v767
        %v769 = vpop.f32.mrb[0].mxu0
        %v770 = vpop.f32.mrb[0].mxu0
        %v771 = vadd.f32 0.0, %v770
        %v772 = vpop.f32.mrb[0].mxu0
        %773 = vdwg.mxu0
        %v774 = vadd.f32 %v437, %v712
        %v775 = vadd.f32 %v438, %v715
        %v776 = vadd.f32 %v439, %v720
        %v777 = vadd.f32 %v440, %v723
        %v778 = vadd.f32 %v441, %v728
        %v779 = vadd.f32 %v442, %v731
        %v780 = vadd.f32 %v443, %v736
        %v781 = vadd.f32 %v444, %v739
        %v782 = vadd.f32 %v445, %v744
        %v783 = vadd.f32 %v446, %v747
        %v784 = vadd.f32 %v447, %v752
        %v785 = vadd.f32 %v448, %v755
        %v786 = vadd.f32 %v449, %v760
        %v787 = vadd.f32 %v450, %v763
        %v788 = vadd.f32 %v451, %v768
        %v789 = vadd.f32 %v452, %v771
        %790 = vst [vmem:[#allocation3] sm:$0xff] %v774
        %791 = vst [vmem:[#allocation3 + $0x8] sm:$0xff] %v775
        %792 = vst [vmem:[#allocation3 + $0x10] sm:$0xff] %v776
        %793 = vst [vmem:[#allocation3 + $0x18] sm:$0xff] %v777
        %794 = vst [vmem:[#allocation3 + $0x20] sm:$0xff] %v778
        %795 = vst [vmem:[#allocation3 + $0x28] sm:$0xff] %v779
        %796 = vst [vmem:[#allocation3 + $0x30] sm:$0xff] %v780
        %797 = vst [vmem:[#allocation3 + $0x38] sm:$0xff] %v781
        %798 = vst [vmem:[#allocation3 + $0x40] sm:$0xff] %v782
        %799 = vst [vmem:[#allocation3 + $0x48] sm:$0xff] %v783
        %800 = vst [vmem:[#allocation3 + $0x50] sm:$0xff] %v784
        %801 = vst [vmem:[#allocation3 + $0x58] sm:$0xff] %v785
        %802 = vst [vmem:[#allocation3 + $0x60] sm:$0xff] %v786
        %803 = vst [vmem:[#allocation3 + $0x68] sm:$0xff] %v787
        %804 = vst [vmem:[#allocation3 + $0x70] sm:$0xff] %v788
        %805 = vst [vmem:[#allocation3 + $0x78] sm:$0xff] %v789
        %p806 = scmp.eq.s32.totalorder %s24, 2
        // Predicated region
        $region83: #{_lambda_.18} parent=73 // pred_check
          %p807 = pneg %p806
        $region84: #{_lambda_.18} parent=73 // pred_check_branch
          %809 = sbr.rel (%p807) target = $region86
        $region85: #{_lambda_.18} parent=73 // pred_region
          %v810 = vld [vmem:[#allocation3] sm:$0xff]
          %v811 = vld [vmem:[#allocation3 + $0x8] sm:$0xff]
          %v812 = vld [vmem:[#allocation3 + $0x10] sm:$0xff]
          %v813 = vld [vmem:[#allocation3 + $0x18] sm:$0xff]
          %v814 = vld [vmem:[#allocation3 + $0x20] sm:$0xff]
          %v815 = vld [vmem:[#allocation3 + $0x28] sm:$0xff]
          %v816 = vld [vmem:[#allocation3 + $0x30] sm:$0xff]
          %v817 = vld [vmem:[#allocation3 + $0x38] sm:$0xff]
          %v818 = vld [vmem:[#allocation3 + $0x40] sm:$0xff]
          %v819 = vld [vmem:[#allocation3 + $0x48] sm:$0xff]
          %v820 = vld [vmem:[#allocation3 + $0x50] sm:$0xff]
          %v821 = vld [vmem:[#allocation3 + $0x58] sm:$0xff]
          %v822 = vld [vmem:[#allocation3 + $0x60] sm:$0xff]
          %v823 = vld [vmem:[#allocation3 + $0x68] sm:$0xff]
          %v824 = vld [vmem:[#allocation3 + $0x70] sm:$0xff]
          %v825 = vld [vmem:[#allocation3 + $0x78] sm:$0xff]
          %v826 = vld [vmem:[%s2] sm:$0x1]
          %v828 = vlaneseq
          %v829 = vshrl.u32 %v828, 7
          %v830 = vsub.s32 0, %v829
          %v831 = vrot.slane %v826, %v830
          %v833 = vmul.f32 %v810, %v831
          %v834 = vmul.f32 %v811, %v831
          %v835 = vmul.f32 %v812, %v831
          %v836 = vmul.f32 %v813, %v831
          %v837 = vmul.f32 %v814, %v831
          %v838 = vmul.f32 %v815, %v831
          %v839 = vmul.f32 %v816, %v831
          %v840 = vmul.f32 %v817, %v831
          %v841 = vmul.f32 %v818, %v831
          %v842 = vmul.f32 %v819, %v831
          %v843 = vmul.f32 %v820, %v831
          %v844 = vmul.f32 %v821, %v831
          %v845 = vmul.f32 %v822, %v831
          %v846 = vmul.f32 %v823, %v831
          %v847 = vmul.f32 %v824, %v831
          %v848 = vmul.f32 %v825, %v831
          %v849 = vld [vmem:[%s3] sm:$0x1]
          %v851 = vlaneseq
          %v852 = vshrl.u32 %v851, 7
          %v853 = vsub.s32 0, %v852
          %v854 = vrot.slane %v849, %v853
          %v856 = vadd.f32 %v833, %v854
          %v857 = vadd.f32 %v834, %v854
          %v858 = vadd.f32 %v835, %v854
          %v859 = vadd.f32 %v836, %v854
          %v860 = vadd.f32 %v837, %v854
          %v861 = vadd.f32 %v838, %v854
          %v862 = vadd.f32 %v839, %v854
          %v863 = vadd.f32 %v840, %v854
          %v864 = vadd.f32 %v841, %v854
          %v865 = vadd.f32 %v842, %v854
          %v866 = vadd.f32 %v843, %v854
          %v867 = vadd.f32 %v844, %v854
          %v868 = vadd.f32 %v845, %v854
          %v869 = vadd.f32 %v846, %v854
          %v870 = vadd.f32 %v847, %v854
          %v871 = vadd.f32 %v848, %v854
          %v872 = vld [vmem:[%s407] sm:$0xff]
          %v873 = vld [vmem:[%s407 + $0x8] sm:$0xff]
          %v874 = vld [vmem:[%s407 + $0x10] sm:$0xff]
          %v875 = vld [vmem:[%s407 + $0x18] sm:$0xff]
          %v876 = vld [vmem:[%s407 + $0x20] sm:$0xff]
          %v877 = vld [vmem:[%s407 + $0x28] sm:$0xff]
          %v878 = vld [vmem:[%s407 + $0x30] sm:$0xff]
          %v879 = vld [vmem:[%s407 + $0x38] sm:$0xff]
          %v880 = vld [vmem:[%s407 + $0x40] sm:$0xff]
          %v881 = vld [vmem:[%s407 + $0x48] sm:$0xff]
          %v882 = vld [vmem:[%s407 + $0x50] sm:$0xff]
          %v883 = vld [vmem:[%s407 + $0x58] sm:$0xff]
          %v884 = vld [vmem:[%s407 + $0x60] sm:$0xff]
          %v885 = vld [vmem:[%s407 + $0x68] sm:$0xff]
          %v886 = vld [vmem:[%s407 + $0x70] sm:$0xff]
          %v887 = vld [vmem:[%s407 + $0x78] sm:$0xff]
          %v888 = vadd.f32 %v856, %v872
          %v889 = vadd.f32 %v857, %v873
          %v890 = vadd.f32 %v858, %v874
          %v891 = vadd.f32 %v859, %v875
          %v892 = vadd.f32 %v860, %v876
          %v893 = vadd.f32 %v861, %v877
          %v894 = vadd.f32 %v862, %v878
          %v895 = vadd.f32 %v863, %v879
          %v896 = vadd.f32 %v864, %v880
          %v897 = vadd.f32 %v865, %v881
          %v898 = vadd.f32 %v866, %v882
          %v899 = vadd.f32 %v867, %v883
          %v900 = vadd.f32 %v868, %v884
          %v901 = vadd.f32 %v869, %v885
          %v902 = vadd.f32 %v870, %v886
          %v903 = vadd.f32 %v871, %v887
          %904 = vst [vmem:[#allocation3] sm:$0xff] %v888
          %905 = vst [vmem:[#allocation3 + $0x8] sm:$0xff] %v889
          %906 = vst [vmem:[#allocation3 + $0x10] sm:$0xff] %v890
          %907 = vst [vmem:[#allocation3 + $0x18] sm:$0xff] %v891
          %908 = vst [vmem:[#allocation3 + $0x20] sm:$0xff] %v892
          %909 = vst [vmem:[#allocation3 + $0x28] sm:$0xff] %v893
          %910 = vst [vmem:[#allocation3 + $0x30] sm:$0xff] %v894
          %911 = vst [vmem:[#allocation3 + $0x38] sm:$0xff] %v895
          %912 = vst [vmem:[#allocation3 + $0x40] sm:$0xff] %v896
          %913 = vst [vmem:[#allocation3 + $0x48] sm:$0xff] %v897
          %914 = vst [vmem:[#allocation3 + $0x50] sm:$0xff] %v898
          %915 = vst [vmem:[#allocation3 + $0x58] sm:$0xff] %v899
          %916 = vst [vmem:[#allocation3 + $0x60] sm:$0xff] %v900
          %917 = vst [vmem:[#allocation3 + $0x68] sm:$0xff] %v901
          %918 = vst [vmem:[#allocation3 + $0x70] sm:$0xff] %v902
          %919 = vst [vmem:[#allocation3 + $0x78] sm:$0xff] %v903
          %vm920 = vcmp.ge.f32.partialorder %v888, 0.0
          %vm921 = vcmp.ge.f32.partialorder %v889, 0.0
          %vm922 = vcmp.ge.f32.partialorder %v890, 0.0
          %vm923 = vcmp.ge.f32.partialorder %v891, 0.0
          %vm924 = vcmp.ge.f32.partialorder %v892, 0.0
          %vm925 = vcmp.ge.f32.partialorder %v893, 0.0
          %vm926 = vcmp.ge.f32.partialorder %v894, 0.0
          %vm927 = vcmp.ge.f32.partialorder %v895, 0.0
          %vm928 = vcmp.ge.f32.partialorder %v896, 0.0
          %vm929 = vcmp.ge.f32.partialorder %v897, 0.0
          %vm930 = vcmp.ge.f32.partialorder %v898, 0.0
          %vm931 = vcmp.ge.f32.partialorder %v899, 0.0
          %vm932 = vcmp.ge.f32.partialorder %v900, 0.0
          %vm933 = vcmp.ge.f32.partialorder %v901, 0.0
          %vm934 = vcmp.ge.f32.partialorder %v902, 0.0
          %vm935 = vcmp.ge.f32.partialorder %v903, 0.0
          %v936 = vmul.f32 %v888, 0.01
          %v937 = vmul.f32 %v889, 0.01
          %v938 = vmul.f32 %v890, 0.01
          %v939 = vmul.f32 %v891, 0.01
          %v940 = vmul.f32 %v892, 0.01
          %v941 = vmul.f32 %v893, 0.01
          %v942 = vmul.f32 %v894, 0.01
          %v943 = vmul.f32 %v895, 0.01
          %v944 = vmul.f32 %v896, 0.01
          %v945 = vmul.f32 %v897, 0.01
          %v946 = vmul.f32 %v898, 0.01
          %v947 = vmul.f32 %v899, 0.01
          %v948 = vmul.f32 %v900, 0.01
          %v949 = vmul.f32 %v901, 0.01
          %v950 = vmul.f32 %v902, 0.01
          %v951 = vmul.f32 %v903, 0.01
          %v952 = vsel %vm920, %v888, %v936
          %v953 = vsel %vm921, %v889, %v937
          %v954 = vsel %vm922, %v890, %v938
          %v955 = vsel %vm923, %v891, %v939
          %v956 = vsel %vm924, %v892, %v940
          %v957 = vsel %vm925, %v893, %v941
          %v958 = vsel %vm926, %v894, %v942
          %v959 = vsel %vm927, %v895, %v943
          %v960 = vsel %vm928, %v896, %v944
          %v961 = vsel %vm929, %v897, %v945
          %v962 = vsel %vm930, %v898, %v946
          %v963 = vsel %vm931, %v899, %v947
          %v964 = vsel %vm932, %v900, %v948
          %v965 = vsel %vm933, %v901, %v949
          %v966 = vsel %vm934, %v902, %v950
          %v967 = vsel %vm935, %v903, %v951
          %968 = vst [vmem:[%s413] sm:$0xff] %v952
          %969 = vst [vmem:[%s413 + $0x8] sm:$0xff] %v953
          %970 = vst [vmem:[%s413 + $0x10] sm:$0xff] %v954
          %971 = vst [vmem:[%s413 + $0x18] sm:$0xff] %v955
          %972 = vst [vmem:[%s413 + $0x20] sm:$0xff] %v956
          %973 = vst [vmem:[%s413 + $0x28] sm:$0xff] %v957
          %974 = vst [vmem:[%s413 + $0x30] sm:$0xff] %v958
          %975 = vst [vmem:[%s413 + $0x38] sm:$0xff] %v959
          %976 = vst [vmem:[%s413 + $0x40] sm:$0xff] %v960
          %977 = vst [vmem:[%s413 + $0x48] sm:$0xff] %v961
          %978 = vst [vmem:[%s413 + $0x50] sm:$0xff] %v962
          %979 = vst [vmem:[%s413 + $0x58] sm:$0xff] %v963
          %980 = vst [vmem:[%s413 + $0x60] sm:$0xff] %v964
          %981 = vst [vmem:[%s413 + $0x68] sm:$0xff] %v965
          %982 = vst [vmem:[%s413 + $0x70] sm:$0xff] %v966
          %983 = vst [vmem:[%s413 + $0x78] sm:$0xff] %v967
        $region86: #{_lambda_.18} parent=73 // pred_fallthru
          _
        %s984 = smul.u32 16, %s23
        %p985 = scmp.lt.s32.totalorder %s984, 15
        %s986 = scalar_select %p985, %s984, 15
        %s987 = smul.addr %s986, 8
        %s988 = scalar_lea.vmem %s5, %s987
        // Predicated region
        $region87: #{_lambda_.18} parent=73 // pred_check
          %p989 = pneg %p171
        $region88: #{_lambda_.18} parent=73 // pred_check_branch
          %991 = sbr.rel (%p989) target = $region90
        $region89: #{_lambda_.18} parent=73 // pred_region
          %s992 = smul.u32 16, %s23
        $region90: #{_lambda_.18} parent=73 // pred_fallthru
          _
        // Predicated region
        $region91: #{_lambda_.18} parent=73 // pred_check
          %p993 = pneg %p197
        $region92: #{_lambda_.18} parent=73 // pred_check_branch
          %995 = sbr.rel (%p993) target = $region94
        $region93: #{_lambda_.18} parent=73 // pred_region
          %s996 = smul.u32 16, %s23
          %s998 = ssub.s32 2048, 2048
          %999 = vsyncadd [#allocation4], %s998
          %s1000 = smul.addr %s996, 128
          %s1001 = scalar_lea.hbm %s6, %s1000
          %s1002 = sshll.u32 [#allocation3], 4
          %s1003 = int_to_ptr.vmem [resolvable:$true] %s1002
          %1008 = dma.vmem_to_hbm [thread:$0]  %s1003, 2048, %s1001, [#allocation4], 128, 128, 8
        $region94: #{_lambda_.18} parent=73 // pred_fallthru
          _
        // Predicated region
        $region95: #{_lambda_.18} parent=73 // pred_check
          %p1009 = pneg %p171
        $region96: #{_lambda_.18} parent=73 // pred_check_branch
          %1011 = sbr.rel (%p1009) target = $region98
        $region97: #{_lambda_.18} parent=73 // pred_region
          %s1012 = smul.u32 16, %s23
          %p1013 = scmp.lt.s32.totalorder %s1012, 15
          %s1014 = scalar_select %p1013, %s1012, 15
          %s1015 = smul.addr %s1014, 8
          %s1016 = scalar_lea.vmem %s5, %s1015
        $region98: #{_lambda_.18} parent=73 // pred_fallthru
          _
        // Predicated region
        $region99: #{_lambda_.18} parent=73 // pred_check
          %p1017 = pneg %p197
        $region100: #{_lambda_.18} parent=73 // pred_check_branch
          %1019 = sbr.rel (%p1017) target = $region102
        $region101: #{_lambda_.18} parent=73 // pred_region
          %1020 = dma.done [#allocation4], 2048
        $region102: #{_lambda_.18} parent=73 // pred_fallthru
          _
      $region74: #{_lambda_.18} parent=5 // pred_fallthru
        _
      %p1021 = scmp.le.s32.totalorder 2, %s14
      // Predicated region
      $region103: #{_lambda_.18} parent=5 // pred_check
        %p1022 = pneg %p1021
      $region104: #{_lambda_.18} parent=5 // pred_check_branch
        %1024 = sbr.rel (%p1022) target = $region106
      $region105: #{_lambda_.18} parent=5 // pred_region
        %s1025 = ssub.s32 %s14, 2
      $region106: #{_lambda_.18} parent=5 // pred_fallthru
        _
    $region6: #{_lambda_.18} parent=1 // loop_footer
      %s18 = sadd.s32 1, %s14
    $region7: #{_lambda_.18} parent=1 // loop_footer_branch
      %13 = sbr.rel target = $region3
    $region8: #{_lambda_.18} parent=1 // loop_exit
      _
    %1026 = vsyncpa [#allocation4], 1
    %s1027 = scalar_lea.sflag [#allocation4], 1
    %1028 = vsyncpa %s1027, 1

// kernel: _lambda_.20
$region0: #{_lambda_.20}
  #allocation0 [shape = 'u32[]', space=smem, size = 0x4, offset = 0x4, fixed_abs, tag = 'smem constant byte address 0x4 - core index']
  #allocation1 [shape = 'u32[144,128]{1,0:T(1,128)}', space=vmem, size = 0x12000, scoped, tag = 'internal scratch']
  %s0 = inlined_call_operand.vmem [shape: bf16[32,768], index: 0, kind: input, shape index: {}]
  %s1 = inlined_call_operand.vmem [shape: bf16[768,128], index: 1, kind: input, shape index: {}]
  %s2 = inlined_call_operand.vmem [shape: f32[1,128], index: 2, kind: input, shape index: {}]
  %s3 = inlined_call_operand.vmem [shape: f32[1,128], index: 3, kind: input, shape index: {}]
  %s4 = inlined_call_operand.vmem [shape: f32[32,128], index: 4, kind: output, shape index: {}]
  %s5 = sld [smem:[#allocation0]]
  $region95: #{_lambda_.20} parent=0
    _
  %s7 = ssub.s32 1, %s5
  %s8 = scalar_select 0, %s7, %s5
  $region1: #{_lambda_.20} parent=0
    #allocation2 [shape = 'u8[32768]{0}', space=vmem, size = 0x8000, scoped, tag = 'input window, operand 0']
    loop: start=0, step=1, limit=5
    $region2: #{_lambda_.20} parent=1 // loop_pre_header
      _
    $region3: #{_lambda_.20} parent=1 // loop_header
      %s10 = sphi 0, %s14
      %p11 = scmp.ge.s32.totalorder %s10, 5
      %s17 = sphi 0, %s29
      %s18 = sphi 0, %s25
      %s19 = sphi 0, %s17
      %s20 = sphi 0, %s18
      %s21 = sphi 0, %s19
      %s22 = sphi 0, %s20
      %s34 = sphi 0, %s36
      %s37 = sphi 0, %s34
      %s38 = sphi 0, %s37
      %s54 = sphi 0, %s38
      %s60 = sphi 0, %s62
      %s63 = sphi 0, %s60
      %s64 = sphi 0, %s63
      %s80 = sphi 0, %s64
      %s84 = sphi 0, %s84
      %s86 = sphi 0, %s84
      %s87 = sphi 0, %s86
      %s101 = sphi 0, %s87
      %s105 = sphi 0, %s105
      %s107 = sphi 0, %s105
      %s108 = sphi 0, %s107
      %s122 = sphi 0, %s108
      %s128 = sphi 0, %s130
      %s131 = sphi 0, %s128
      %s132 = sphi 0, %s131
      %s148 = sphi 0, %s132
    $region4: #{_lambda_.20} parent=1 // loop_header_branch
      %13 = sbr.rel (%p11) target = $region8
    $region5: #{_lambda_.20} parent=1 // loop_body
      %s15 = ssub.s32 %s10, 1
      %s16 = ssub.s32 %s10, 2
      %s23 = sadd.s32 1, %s18
      %p24 = scmp.ge.s32.totalorder %s23, 3
      %s25 = scalar_select %p24, 0, %s23
      %s26 = sadd.s32 1, %s17
      %s27 = scalar_select %p24, %s26, %s17
      %p28 = scmp.ge.s32.totalorder %s27, 1
      %s29 = scalar_select %p28, 0, %s27
      %s30 = ssub.s32 %s17, %s29
      %s31 = ssub.s32 %s18, %s25
      %s32 = sor.u32 %s30, %s31
      %p33 = scmp.eq.s32.totalorder %s32, 0
      %s35 = sadd.s32 %s34, 1
      %s36 = scalar_select %p33, %s34, %s35
      %p39 = pneg %p33
      %p40 = scmp.eq.s32.totalorder %s10, 2
      %p41 = por %p39, %p40
      %p42 = scmp.ne.s32.totalorder %s34, %s37
      %p43 = scmp.eq.s32.totalorder %s10, 0
      %p44 = por %p42, %p43
      %p45 = scmp.ne.s32.totalorder %s34, %s37
      %p46 = scmp.eq.s32.totalorder %s15, 2
      %p47 = por %p45, %p46
      %p48 = scmp.ne.s32.totalorder %s37, %s38
      %p49 = scmp.eq.s32.totalorder %s15, 0
      %p50 = por %p48, %p49
      %p51 = scmp.ne.s32.totalorder %s37, %s38
      %p52 = scmp.eq.s32.totalorder %s16, 2
      %p53 = por %p51, %p52
      %p55 = scmp.ne.s32.totalorder %s38, %s54
      %p56 = scmp.eq.s32.totalorder %s16, 0
      %p57 = por %p55, %p56
      %s58 = ssub.s32 %s18, %s25
      %p59 = scmp.eq.s32.totalorder %s58, 0
      %s61 = sadd.s32 %s60, 1
      %s62 = scalar_select %p59, %s60, %s61
      %p65 = pneg %p59
      %p66 = scmp.eq.s32.totalorder %s10, 2
      %p67 = por %p65, %p66
      %p68 = scmp.ne.s32.totalorder %s60, %s63
      %p69 = scmp.eq.s32.totalorder %s10, 0
      %p70 = por %p68, %p69
      %p71 = scmp.ne.s32.totalorder %s60, %s63
      %p72 = scmp.eq.s32.totalorder %s15, 2
      %p73 = por %p71, %p72
      %p74 = scmp.ne.s32.totalorder %s63, %s64
      %p75 = scmp.eq.s32.totalorder %s15, 0
      %p76 = por %p74, %p75
      %p77 = scmp.ne.s32.totalorder %s63, %s64
      %p78 = scmp.eq.s32.totalorder %s16, 2
      %p79 = por %p77, %p78
      %p81 = scmp.ne.s32.totalorder %s64, %s80
      %p82 = scmp.eq.s32.totalorder %s16, 0
      %p83 = por %p81, %p82
      %s85 = sadd.s32 %s84, 1
      %p88 = scmp.eq.s32.totalorder %s10, 2
      %p89 = scmp.ne.s32.totalorder %s84, %s86
      %p90 = scmp.eq.s32.totalorder %s10, 0
      %p91 = por %p89, %p90
      %p92 = scmp.ne.s32.totalorder %s84, %s86
      %p93 = scmp.eq.s32.totalorder %s15, 2
      %p94 = por %p92, %p93
      %p95 = scmp.ne.s32.totalorder %s86, %s87
      %p96 = scmp.eq.s32.totalorder %s15, 0
      %p97 = por %p95, %p96
      %p98 = scmp.ne.s32.totalorder %s86, %s87
      %p99 = scmp.eq.s32.totalorder %s16, 2
      %p100 = por %p98, %p99
      %p102 = scmp.ne.s32.totalorder %s87, %s101
      %p103 = scmp.eq.s32.totalorder %s16, 0
      %p104 = por %p102, %p103
      %s106 = sadd.s32 %s105, 1
      %p109 = scmp.eq.s32.totalorder %s10, 2
      %p110 = scmp.ne.s32.totalorder %s105, %s107
      %p111 = scmp.eq.s32.totalorder %s10, 0
      %p112 = por %p110, %p111
      %p113 = scmp.ne.s32.totalorder %s105, %s107
      %p114 = scmp.eq.s32.totalorder %s15, 2
      %p115 = por %p113, %p114
      %p116 = scmp.ne.s32.totalorder %s107, %s108
      %p117 = scmp.eq.s32.totalorder %s15, 0
      %p118 = por %p116, %p117
      %p119 = scmp.ne.s32.totalorder %s107, %s108
      %p120 = scmp.eq.s32.totalorder %s16, 2
      %p121 = por %p119, %p120
      %p123 = scmp.ne.s32.totalorder %s108, %s122
      %p124 = scmp.eq.s32.totalorder %s16, 0
      %p125 = por %p123, %p124
      %s126 = ssub.s32 %s17, %s29
      %p127 = scmp.eq.s32.totalorder %s126, 0
      %s129 = sadd.s32 %s128, 1
      %s130 = scalar_select %p127, %s128, %s129
      %p133 = pneg %p127
      %p134 = scmp.eq.s32.totalorder %s10, 2
      %p135 = por %p133, %p134
      %p136 = scmp.ne.s32.totalorder %s128, %s131
      %p137 = scmp.eq.s32.totalorder %s10, 0
      %p138 = por %p136, %p137
      %p139 = scmp.ne.s32.totalorder %s128, %s131
      %p140 = scmp.eq.s32.totalorder %s15, 2
      %p141 = por %p139, %p140
      %p142 = scmp.ne.s32.totalorder %s131, %s132
      %p143 = scmp.eq.s32.totalorder %s15, 0
      %p144 = por %p142, %p143
      %p145 = scmp.ne.s32.totalorder %s131, %s132
      %p146 = scmp.eq.s32.totalorder %s16, 2
      %p147 = por %p145, %p146
      %p149 = scmp.ne.s32.totalorder %s132, %s148
      %p150 = scmp.eq.s32.totalorder %s16, 0
      %p151 = por %p149, %p150
      %p152 = scmp.le.s32.totalorder 1, %s10
      %p153 = scmp.lt.s32.totalorder %s10, 4
      %p154 = pnand %p152, %p153
      %p155 = pneg %p154
      // Predicated region
      $region9: #{_lambda_.20} parent=5 // pred_check
        _
      $region10: #{_lambda_.20} parent=5 // pred_check_branch
        %157 = sbr.rel (%p154) target = $region12
      $region11: #{_lambda_.20} parent=5 // pred_region
        %s158 = ssub.s32 %s10, 1
        // Predicated region
        $region13: #{_lambda_.20} parent=11 // pred_check
          %p159 = pneg %p97
        $region14: #{_lambda_.20} parent=11 // pred_check_branch
          %161 = sbr.rel (%p159) target = $region16
        $region15: #{_lambda_.20} parent=11 // pred_region
          _
        $region16: #{_lambda_.20} parent=11 // pred_fallthru
          _
        // Predicated region
        $region17: #{_lambda_.20} parent=11 // pred_check
          %p162 = pneg %p118
        $region18: #{_lambda_.20} parent=11 // pred_check_branch
          %164 = sbr.rel (%p162) target = $region20
        $region19: #{_lambda_.20} parent=11 // pred_region
          _
        $region20: #{_lambda_.20} parent=11 // pred_fallthru
          _
      $region12: #{_lambda_.20} parent=5 // pred_fallthru
        _
      %p165 = scmp.lt.s32.totalorder %s10, 3
      // Predicated region
      $region21: #{_lambda_.20} parent=5 // pred_check
        %p166 = pneg %p165
      $region22: #{_lambda_.20} parent=5 // pred_check_branch
        %168 = sbr.rel (%p166) target = $region24
      $region23: #{_lambda_.20} parent=5 // pred_region
        // Predicated region
        $region25: #{_lambda_.20} parent=23 // pred_check
          %p169 = pneg %p44
        $region26: #{_lambda_.20} parent=23 // pred_check_branch
          %171 = sbr.rel (%p169) target = $region28
        $region27: #{_lambda_.20} parent=23 // pred_region
          %s172 = sand.u32 %s34, 1
          %s173 = sand.u32 %s34, 1
          %s174 = smul.addr %s173, 32
          %s175 = scalar_lea.vmem [#allocation2], %s174
          %s176 = smul.u32 4, %s17
          %s177 = smul.u32 2, %s18
          %s178 = smul.addr %s176, 6
          %s179 = sadd.s32 %s177, %s178
          %s180 = smul.addr %s179, 4
          %s181 = scalar_lea.vmem %s0, %s180
          // Predicated region
          $region29: #{_lambda_.20} parent=27 // pred_check
            _
          $region30: #{_lambda_.20} parent=27 // pred_check_branch
            %183 = sbr.rel (0) target = $region32
          $region31: #{_lambda_.20} parent=27 // pred_region
            // Predicated region
            $region33: #{_lambda_.20} parent=31 // pred_check
              _
            $region34: #{_lambda_.20} parent=31 // pred_check_branch
              %185 = sbr.rel (0) target = $region36
            $region35: #{_lambda_.20} parent=31 // pred_region
              // Predicated region
              $region48: #{_lambda_.20} parent=35 // pred_check
                _
              $region49: #{_lambda_.20} parent=35 // pred_check_branch
                %206 = sbr.rel (0) target = $region51
              $region50: #{_lambda_.20} parent=35 // pred_region
                loop: start=0, step=1, limit=1
                $region52: #{_lambda_.20} parent=50 // loop_pre_header
                  _
                $region53: #{_lambda_.20} parent=50 // loop_header
                  %s208 = sphi 0, %s212
                  %p209 = scmp.ge.s32.totalorder %s208, 1
                  %s213 = sphi %s181, %s181
                  %s214 = sphi %s175, %s175
                $region54: #{_lambda_.20} parent=50 // loop_header_branch
                  %211 = sbr.rel (%p209) target = $region58
                $region55: #{_lambda_.20} parent=50 // loop_body
                  %v215 = vld [vmem:[%s213] sm:$0xff]
                  %216 = vst [vmem:[%s214] sm:$0xff] %v215
                  %v217 = vld [vmem:[%s213 + $0x18] sm:$0xff]
                  %218 = vst [vmem:[%s214 + $0x8] sm:$0xff] %v217
                  %v219 = vld [vmem:[%s213 + $0x30] sm:$0xff]
                  %220 = vst [vmem:[%s214 + $0x10] sm:$0xff] %v219
                  %v221 = vld [vmem:[%s213 + $0x48] sm:$0xff]
                  %222 = vst [vmem:[%s214 + $0x18] sm:$0xff] %v221
                $region56: #{_lambda_.20} parent=50 // loop_footer
                  %s212 = sadd.s32 1, %s208
                $region57: #{_lambda_.20} parent=50 // loop_footer_branch
                  %207 = sbr.rel target = $region53
                $region58: #{_lambda_.20} parent=50 // loop_exit
                  _
              $region51: #{_lambda_.20} parent=35 // pred_fallthru
                _
              // Predicated region
              $region59: #{_lambda_.20} parent=35 // pred_check
                _
              $region60: #{_lambda_.20} parent=35 // pred_check_branch
                %224 = sbr.rel target = $region62
              $region61: #{_lambda_.20} parent=35 // pred_region
                _
              $region62: #{_lambda_.20} parent=35 // pred_fallthru
                _
            $region36: #{_lambda_.20} parent=31 // pred_fallthru
              _
            // Predicated region
            $region37: #{_lambda_.20} parent=31 // pred_check
              _
            $region38: #{_lambda_.20} parent=31 // pred_check_branch
              %187 = sbr.rel target = $region40
            $region39: #{_lambda_.20} parent=31 // pred_region
              loop: start=0, step=1, limit=1
              $region41: #{_lambda_.20} parent=39 // loop_pre_header
                _
              $region42: #{_lambda_.20} parent=39 // loop_header
                %s190 = sphi 0, %s194
                %p191 = scmp.ge.s32.totalorder %s190, 1
                %s195 = sphi %s181, %s181
                %s196 = sphi %s175, %s175
              $region43: #{_lambda_.20} parent=39 // loop_header_branch
                %193 = sbr.rel (%p191) target = $region47
              $region44: #{_lambda_.20} parent=39 // loop_body
                %v197 = vld [vmem:[%s195] sm:$0xff]
                %198 = vst [vmem:[%s196] sm:$0xff] %v197
                %v199 = vld [vmem:[%s195 + $0x18] sm:$0xff]
                %200 = vst [vmem:[%s196 + $0x8] sm:$0xff] %v199
                %v201 = vld [vmem:[%s195 + $0x30] sm:$0xff]
                %202 = vst [vmem:[%s196 + $0x10] sm:$0xff] %v201
                %v203 = vld [vmem:[%s195 + $0x48] sm:$0xff]
                %204 = vst [vmem:[%s196 + $0x18] sm:$0xff] %v203
              $region45: #{_lambda_.20} parent=39 // loop_footer
                %s194 = sadd.s32 1, %s190
              $region46: #{_lambda_.20} parent=39 // loop_footer_branch
                %189 = sbr.rel target = $region42
              $region47: #{_lambda_.20} parent=39 // loop_exit
                _
            $region40: #{_lambda_.20} parent=31 // pred_fallthru
              _
          $region32: #{_lambda_.20} parent=27 // pred_fallthru
            _
          %225 = vnop
        $region28: #{_lambda_.20} parent=23 // pred_fallthru
          _
        // Predicated region
        $region63: #{_lambda_.20} parent=23 // pred_check
          %p226 = pneg %p70
        $region64: #{_lambda_.20} parent=23 // pred_check_branch
          %228 = sbr.rel (%p226) target = $region66
        $region65: #{_lambda_.20} parent=23 // pred_region
          %s229 = smul.u32 32, %s18
          %p230 = scmp.lt.s32.totalorder %s229, 95
          %s231 = scalar_select %p230, %s229, 95
          %s232 = smul.addr %s231, 4
          %s233 = scalar_lea.vmem %s1, %s232
          %s234 = smul.u32 32, %s18
        $region66: #{_lambda_.20} parent=23 // pred_fallthru
          _
      $region24: #{_lambda_.20} parent=5 // pred_fallthru
        _
      %p235 = scmp.le.s32.totalorder 1, %s10
      %p236 = scmp.lt.s32.totalorder %s10, 4
      %p237 = pnand %p235, %p236
      %p238 = pneg %p237
      // Predicated region
      $region67: #{_lambda_.20} parent=5 // pred_check
        _
      $region68: #{_lambda_.20} parent=5 // pred_check_branch
        %240 = sbr.rel (%p237) target = $region70
      $region69: #{_lambda_.20} parent=5 // pred_region
        %s241 = ssub.s32 %s10, 1
        %s242 = sand.u32 %s37, 1
        %s243 = sand.u32 %s37, 1
        %s244 = smul.addr %s243, 32
        %s245 = scalar_lea.vmem [#allocation2], %s244
        // Predicated region
        $region71: #{_lambda_.20} parent=69 // pred_check
          %p246 = pneg %p50
        $region72: #{_lambda_.20} parent=69 // pred_check_branch
          %248 = sbr.rel (%p246) target = $region74
        $region73: #{_lambda_.20} parent=69 // pred_region
          _
        $region74: #{_lambda_.20} parent=69 // pred_fallthru
          _
        %s249 = sand.u32 %s37, 1
        %s250 = sand.u32 %s37, 1
        %s251 = smul.addr %s250, 32
        %s252 = scalar_lea.vmem [#allocation2], %s251
        %p253 = pneg %p50
        %p254 = pneg %p47
        %s255 = smul.u32 32, %s20
        %p256 = scmp.lt.s32.totalorder %s255, 95
        %s257 = scalar_select %p256, %s255, 95
        %s258 = smul.addr %s257, 4
        %s259 = scalar_lea.vmem %s1, %s258
        %p260 = pneg %p76
        %p261 = pneg %p73
        %p262 = pneg %p97
        %p263 = pneg %p94
        %p264 = pneg %p118
        %p265 = pneg %p115
        %p266 = pneg %p144
        %p267 = pneg %p141
        %s268 = smul.u32 4, %s19
        %p269 = scmp.lt.s32.totalorder %s268, 3
        %s270 = scalar_select %p269, %s268, 3
        %s271 = smul.addr %s270, 8
        %s272 = scalar_lea.vmem %s4, %s271
        %s273 = smul.u32 4, %s19
        %s274 = smul.u32 2, %s20
        %s275 = smul.u32 32, %s20
        %p276 = scmp.lt.s32.totalorder %s275, 95
        %s277 = scalar_select %p276, %s275, 95
        %s278 = smul.addr %s277, 4
        %s279 = scalar_lea.vmem %s1, %s278
        %s280 = smul.u32 32, %s20
        %s281 = smul.u32 4, %s19
        %p282 = scmp.lt.s32.totalorder %s281, 3
        %s283 = scalar_select %p282, %s281, 3
        %s284 = smul.addr %s283, 8
        %s285 = scalar_lea.vmem %s4, %s284
        %s286 = smul.u32 4, %s19
        %p288 = scmp.eq.s32.totalorder %s20, 0
        // Predicated region
        $region75: #{_lambda_.20} parent=69 // pred_check
          %p289 = pneg %p288
        $region76: #{_lambda_.20} parent=69 // pred_check_branch
          %291 = sbr.rel (%p289) target = $region78
        $region77: #{_lambda_.20} parent=69 // pred_region
          %292 = vst [vmem:[%s285] sm:$0xff] 0.0
          %293 = vst [vmem:[%s285 + $0x8] sm:$0xff] 0.0
          %294 = vst [vmem:[%s285 + $0x10] sm:$0xff] 0.0
          %295 = vst [vmem:[%s285 + $0x18] sm:$0xff] 0.0
        $region78: #{_lambda_.20} parent=69 // pred_fallthru
          _
        %v296 = vld [vmem:[%s285] sm:$0xff]
        %v297 = vld [vmem:[%s285 + $0x8] sm:$0xff]
        %v298 = vld [vmem:[%s285 + $0x10] sm:$0xff]
        %v299 = vld [vmem:[%s285 + $0x18] sm:$0xff]
        %v300 = vld [vmem:[%s245] sm:$0xff]
        %v301 = vld [vmem:[%s245 + $0x8] sm:$0xff]
        %v302 = vld [vmem:[%s245 + $0x10] sm:$0xff]
        %v303 = vld [vmem:[%s245 + $0x18] sm:$0xff]
        %v304 = vld [vmem:[%s279] sm:$0xf]
        %v305 = vld [vmem:[%s279 + $0x4] sm:$0xf]
        %v306 = vld [vmem:[%s279 + $0x8] sm:$0xf]
        %v307 = vld [vmem:[%s279 + $0xc] sm:$0xf]
        %v308 = vld [vmem:[%s279 + $0x10] sm:$0xf]
        %v309 = vld [vmem:[%s279 + $0x14] sm:$0xf]
        %v310 = vld [vmem:[%s279 + $0x18] sm:$0xf]
        %v311 = vld [vmem:[%s279 + $0x1c] sm:$0xf]
        %v312 = vld [vmem:[%s279 + $0x20] sm:$0xf]
        %v313 = vld [vmem:[%s279 + $0x24] sm:$0xf]
        %v314 = vld [vmem:[%s279 + $0x28] sm:$0xf]
        %v315 = vld [vmem:[%s279 + $0x2c] sm:$0xf]
        %v316 = vld [vmem:[%s279 + $0x30] sm:$0xf]
        %v317 = vld [vmem:[%s279 + $0x34] sm:$0xf]
        %v318 = vld [vmem:[%s279 + $0x38] sm:$0xf]
        %v319 = vld [vmem:[%s279 + $0x3c] sm:$0xf]
        %v320 = vld [vmem:[%s279 + $0x40] sm:$0xf]
        %v321 = vld [vmem:[%s279 + $0x44] sm:$0xf]
        %v322 = vld [vmem:[%s279 + $0x48] sm:$0xf]
        %v323 = vld [vmem:[%s279 + $0x4c] sm:$0xf]
        %v324 = vld [vmem:[%s279 + $0x50] sm:$0xf]
        %v325 = vld [vmem:[%s279 + $0x54] sm:$0xf]
        %v326 = vld [vmem:[%s279 + $0x58] sm:$0xf]
        %v327 = vld [vmem:[%s279 + $0x5c] sm:$0xf]
        %v328 = vld [vmem:[%s279 + $0x60] sm:$0xf]
        %v329 = vld [vmem:[%s279 + $0x64] sm:$0xf]
        %v330 = vld [vmem:[%s279 + $0x68] sm:$0xf]
        %v331 = vld [vmem:[%s279 + $0x6c] sm:$0xf]
        %v332 = vld [vmem:[%s279 + $0x70] sm:$0xf]
        %v333 = vld [vmem:[%s279 + $0x74] sm:$0xf]
        %v334 = vld [vmem:[%s279 + $0x78] sm:$0xf]
        %v335 = vld [vmem:[%s279 + $0x7c] sm:$0xf]
        %v340 = vunpack.c.l.b16 %v300
        %v341 = vunpack.c.h.b16 %v300
        %v342 = vunpack.c.l.b16 %v301
        %v343 = vunpack.c.h.b16 %v301
        %v344 = vunpack.c.l.b16 %v302
        %v345 = vunpack.c.h.b16 %v302
        %v346 = vunpack.c.l.b16 %v303
        %v347 = vunpack.c.h.b16 %v303
        %v348 = vpack.c.b16 %v342, %v340
        %v349 = vpack.c.b16 %v343, %v341
        %v350 = vpack.c.b16 %v346, %v344
        %v351 = vpack.c.b16 %v347, %v345
        %v388 = vunpack.c.l.b16 %v304
        %v389 = vunpack.c.l.b16 %v305
        %v390 = vunpack.c.l.b16 %v306
        %v391 = vunpack.c.l.b16 %v307
        %v392 = vunpack.c.l.b16 %v308
        %v393 = vunpack.c.l.b16 %v309
        %v394 = vunpack.c.l.b16 %v310
        %v395 = vunpack.c.l.b16 %v311
        %v396 = vunpack.c.l.b16 %v312
        %v397 = vunpack.c.l.b16 %v313
        %v398 = vunpack.c.l.b16 %v314
        %v399 = vunpack.c.l.b16 %v315
        %v400 = vunpack.c.l.b16 %v316
        %v401 = vunpack.c.l.b16 %v317
        %v402 = vunpack.c.l.b16 %v318
        %v403 = vunpack.c.l.b16 %v319
        %v404 = vunpack.c.l.b16 %v320
        %v405 = vunpack.c.l.b16 %v321
        %v406 = vunpack.c.l.b16 %v322
        %v407 = vunpack.c.l.b16 %v323
        %v408 = vunpack.c.l.b16 %v324
        %v409 = vunpack.c.l.b16 %v325
        %v410 = vunpack.c.l.b16 %v326
        %v411 = vunpack.c.l.b16 %v327
        %v412 = vunpack.c.l.b16 %v328
        %v413 = vunpack.c.l.b16 %v329
        %v414 = vunpack.c.l.b16 %v330
        %v415 = vunpack.c.l.b16 %v331
        %v416 = vunpack.c.l.b16 %v332
        %v417 = vunpack.c.l.b16 %v333
        %v418 = vunpack.c.l.b16 %v334
        %v419 = vunpack.c.l.b16 %v335
        %v420 = vpack.c.b16 %v389, %v388
        %v421 = vpack.c.b16 %v391, %v390
        %v422 = vpack.c.b16 %v393, %v392
        %v423 = vpack.c.b16 %v395, %v394
        %v424 = vpack.c.b16 %v397, %v396
        %v425 = vpack.c.b16 %v399, %v398
        %v426 = vpack.c.b16 %v401, %v400
        %v427 = vpack.c.b16 %v403, %v402
        %v428 = vpack.c.b16 %v405, %v404
        %v429 = vpack.c.b16 %v407, %v406
        %v430 = vpack.c.b16 %v409, %v408
        %v431 = vpack.c.b16 %v411, %v410
        %v432 = vpack.c.b16 %v413, %v412
        %v433 = vpack.c.b16 %v415, %v414
        %v434 = vpack.c.b16 %v417, %v416
        %v435 = vpack.c.b16 %v419, %v418
        %452 = vmatprep.subr.bf16.mxu0 0
        %453 = vmatpush1.bf16.msra.mxu0 %v420
        %454 = vmatprep.subr.bf16.mxu0 0
        %455 = vmatpush1.bf16.msra.mxu0 %v421
        %456 = vmatprep.subr.bf16.mxu0 0
        %457 = vmatpush1.bf16.msra.mxu0 %v422
        %458 = vmatprep.subr.bf16.mxu0 0
        %459 = vmatpush1.bf16.msra.mxu0 %v423
        %460 = vmatprep.subr.bf16.mxu0 0
        %461 = vmatpush1.bf16.msra.mxu0 %v424
        %462 = vmatprep.subr.bf16.mxu0 0
        %463 = vmatpush1.bf16.msra.mxu0 %v425
        %464 = vmatprep.subr.bf16.mxu0 0
        %465 = vmatpush1.bf16.msra.mxu0 %v426
        %466 = vmatprep.subr.bf16.mxu0 0
        %467 = vmatpush1.bf16.msra.mxu0 %v427
        %468 = vmatprep.subr.bf16.mxu0 0
        %469 = vmatpush1.bf16.msra.mxu0 %v428
        %470 = vmatprep.subr.bf16.mxu0 0
        %471 = vmatpush1.bf16.msra.mxu0 %v429
        %472 = vmatprep.subr.bf16.mxu0 0
        %473 = vmatpush1.bf16.msra.mxu0 %v430
        %474 = vmatprep.subr.bf16.mxu0 0
        %475 = vmatpush1.bf16.msra.mxu0 %v431
        %476 = vmatprep.subr.bf16.mxu0 0
        %477 = vmatpush1.bf16.msra.mxu0 %v432
        %478 = vmatprep.subr.bf16.mxu0 0
        %479 = vmatpush1.bf16.msra.mxu0 %v433
        %480 = vmatprep.subr.bf16.mxu0 0
        %481 = vmatpush1.bf16.msra.mxu0 %v434
        %482 = vmatprep.subr.bf16.mxu0 0
        %483 = vmatpush1.bf16.msra.mxu0 %v435
        %484 = vmatprep.mubr.bf16.mxu0 %v349
        %485 = vmatmul.mubr.bf16.gmra.mrb[0].mxu0 %v348
        %v486 = vpop.f32.mrb[0].mxu0
        %v487 = vadd.f32 0.0, %v486
        %v488 = vpop.f32.mrb[0].mxu0
        %v489 = vpop.f32.mrb[0].mxu0
        %v490 = vadd.f32 0.0, %v489
        %v491 = vpop.f32.mrb[0].mxu0
        %492 = vmatprep.mubr.bf16.mxu0 %v351
        %493 = vmatmul.mubr.bf16.gmra.mrb[0].mxu0 %v350
        %v494 = vpop.f32.mrb[0].mxu0
        %v495 = vadd.f32 0.0, %v494
        %v496 = vpop.f32.mrb[0].mxu0
        %v497 = vpop.f32.mrb[0].mxu0
        %v498 = vadd.f32 0.0, %v497
        %v499 = vpop.f32.mrb[0].mxu0
        %500 = vdwg.mxu0
        %v501 = vadd.f32 %v296, %v487
        %v502 = vadd.f32 %v297, %v490
        %v503 = vadd.f32 %v298, %v495
        %v504 = vadd.f32 %v299, %v498
        %505 = vst [vmem:[%s285] sm:$0xff] %v501
        %506 = vst [vmem:[%s285 + $0x8] sm:$0xff] %v502
        %507 = vst [vmem:[%s285 + $0x10] sm:$0xff] %v503
        %508 = vst [vmem:[%s285 + $0x18] sm:$0xff] %v504
        %p509 = scmp.eq.s32.totalorder %s20, 2
        // Predicated region
        $region79: #{_lambda_.20} parent=69 // pred_check
          %p510 = pneg %p509
        $region80: #{_lambda_.20} parent=69 // pred_check_branch
          %512 = sbr.rel (%p510) target = $region82
        $region81: #{_lambda_.20} parent=69 // pred_region
          %v513 = vld [vmem:[%s285] sm:$0xff]
          %v514 = vld [vmem:[%s285 + $0x8] sm:$0xff]
          %v515 = vld [vmem:[%s285 + $0x10] sm:$0xff]
          %v516 = vld [vmem:[%s285 + $0x18] sm:$0xff]
          %v517 = vld [vmem:[%s2] sm:$0x1]
          %v519 = vlaneseq
          %v520 = vshrl.u32 %v519, 7
          %v521 = vsub.s32 0, %v520
          %v522 = vrot.slane %v517, %v521
          %v524 = vmul.f32 %v513, %v522
          %v525 = vmul.f32 %v514, %v522
          %v526 = vmul.f32 %v515, %v522
          %v527 = vmul.f32 %v516, %v522
          %v528 = vld [vmem:[%s3] sm:$0x1]
          %v530 = vlaneseq
          %v531 = vshrl.u32 %v530, 7
          %v532 = vsub.s32 0, %v531
          %v533 = vrot.slane %v528, %v532
          %v535 = vadd.f32 %v524, %v533
          %v536 = vadd.f32 %v525, %v533
          %v537 = vadd.f32 %v526, %v533
          %v538 = vadd.f32 %v527, %v533
          %vm539 = vcmp.ge.f32.partialorder %v535, 0.0
          %vm540 = vcmp.ge.f32.partialorder %v536, 0.0
          %vm541 = vcmp.ge.f32.partialorder %v537, 0.0
          %vm542 = vcmp.ge.f32.partialorder %v538, 0.0
          %v543 = vmul.f32 %v535, 0.01
          %v544 = vmul.f32 %v536, 0.01
          %v545 = vmul.f32 %v537, 0.01
          %v546 = vmul.f32 %v538, 0.01
          %v547 = vsel %vm539, %v535, %v543
          %v548 = vsel %vm540, %v536, %v544
          %v549 = vsel %vm541, %v537, %v545
          %v550 = vsel %vm542, %v538, %v546
          %551 = vst [vmem:[%s285] sm:$0xff] %v547
          %552 = vst [vmem:[%s285 + $0x8] sm:$0xff] %v548
          %553 = vst [vmem:[%s285 + $0x10] sm:$0xff] %v549
          %554 = vst [vmem:[%s285 + $0x18] sm:$0xff] %v550
        $region82: #{_lambda_.20} parent=69 // pred_fallthru
          _
        %s555 = smul.u32 4, %s19
        %p556 = scmp.lt.s32.totalorder %s555, 3
        %s557 = scalar_select %p556, %s555, 3
        %s558 = smul.addr %s557, 8
        %s559 = scalar_lea.vmem %s4, %s558
        // Predicated region
        $region83: #{_lambda_.20} parent=69 // pred_check
          %p560 = pneg %p141
        $region84: #{_lambda_.20} parent=69 // pred_check_branch
          %562 = sbr.rel (%p560) target = $region86
        $region85: #{_lambda_.20} parent=69 // pred_region
          %s563 = smul.u32 4, %s19
        $region86: #{_lambda_.20} parent=69 // pred_fallthru
          _
        // Predicated region
        $region87: #{_lambda_.20} parent=69 // pred_check
          %p564 = pneg %p141
        $region88: #{_lambda_.20} parent=69 // pred_check_branch
          %566 = sbr.rel (%p564) target = $region90
        $region89: #{_lambda_.20} parent=69 // pred_region
          %s567 = smul.u32 4, %s19
          %p568 = scmp.lt.s32.totalorder %s567, 3
          %s569 = scalar_select %p568, %s567, 3
          %s570 = smul.addr %s569, 8
          %s571 = scalar_lea.vmem %s4, %s570
        $region90: #{_lambda_.20} parent=69 // pred_fallthru
          _
      $region70: #{_lambda_.20} parent=5 // pred_fallthru
        _
      %p572 = scmp.le.s32.totalorder 2, %s10
      // Predicated region
      $region91: #{_lambda_.20} parent=5 // pred_check
        %p573 = pneg %p572
      $region92: #{_lambda_.20} parent=5 // pred_check_branch
        %575 = sbr.rel (%p573) target = $region94
      $region93: #{_lambda_.20} parent=5 // pred_region
        %s576 = ssub.s32 %s10, 2
      $region94: #{_lambda_.20} parent=5 // pred_fallthru
        _
    $region6: #{_lambda_.20} parent=1 // loop_footer
      %s14 = sadd.s32 1, %s10
    $region7: #{_lambda_.20} parent=1 // loop_footer_branch
      %9 = sbr.rel target = $region3
    $region8: #{_lambda_.20} parent=1 // loop_exit
      _

// kernel: _lambda_.19
$region0: #{_lambda_.19}
  #allocation0 [shape = 'u32[]', space=smem, size = 0x4, offset = 0x4, fixed_abs, tag = 'smem constant byte address 0x4 - core index']
  #allocation1 [shape = 'u32[144,128]{1,0:T(1,128)}', space=vmem, size = 0x12000, scoped, tag = 'internal scratch']
  %s0 = inlined_call_operand.vmem [shape: f32[32,64], index: 0, kind: input, shape index: {}]
  %s1 = inlined_call_operand.vmem [shape: bf16[64,128], index: 1, kind: input, shape index: {}]
  %s2 = inlined_call_operand.vmem [shape: f32[1,128], index: 2, kind: input, shape index: {}]
  %s3 = inlined_call_operand.vmem [shape: f32[1,128], index: 3, kind: input, shape index: {}]
  %s4 = inlined_call_operand.vmem [shape: f32[32,128], index: 4, kind: output, shape index: {}]
  %s5 = sld [smem:[#allocation0]]
  $region34: #{_lambda_.19} parent=0
    _
  %s7 = ssub.s32 1, %s5
  %s8 = scalar_select 0, %s7, %s5
  // Predicated region
  $region2: #{_lambda_.19} parent=0 // pred_check
    _
  $region3: #{_lambda_.19} parent=0 // pred_check_branch
    %10 = sbr.rel (0) target = $region5
  $region4: #{_lambda_.19} parent=0 // pred_region
    _
  $region5: #{_lambda_.19} parent=0 // pred_fallthru
    _
  // Predicated region
  $region6: #{_lambda_.19} parent=0 // pred_check
    _
  $region7: #{_lambda_.19} parent=0 // pred_check_branch
    %12 = sbr.rel (0) target = $region9
  $region8: #{_lambda_.19} parent=0 // pred_region
    _
  $region9: #{_lambda_.19} parent=0 // pred_fallthru
    _
  // Predicated region
  $region10: #{_lambda_.19} parent=0 // pred_check
    _
  $region11: #{_lambda_.19} parent=0 // pred_check_branch
    %14 = sbr.rel (0) target = $region13
  $region12: #{_lambda_.19} parent=0 // pred_region
    _
  $region13: #{_lambda_.19} parent=0 // pred_fallthru
    _
  // Predicated region
  $region14: #{_lambda_.19} parent=0 // pred_check
    _
  $region15: #{_lambda_.19} parent=0 // pred_check_branch
    %16 = sbr.rel (0) target = $region17
  $region16: #{_lambda_.19} parent=0 // pred_region
    _
  $region17: #{_lambda_.19} parent=0 // pred_fallthru
    _
  %p18 = scmp.eq.s32.totalorder 0, 0
  // Predicated region
  $region18: #{_lambda_.19} parent=0 // pred_check
    %p19 = pneg %p18
  $region19: #{_lambda_.19} parent=0 // pred_check_branch
    %21 = sbr.rel (%p19) target = $region21
  $region20: #{_lambda_.19} parent=0 // pred_region
    %22 = vst [vmem:[%s4] sm:$0xff] 0.0
    %23 = vst [vmem:[%s4 + $0x8] sm:$0xff] 0.0
    %24 = vst [vmem:[%s4 + $0x10] sm:$0xff] 0.0
    %25 = vst [vmem:[%s4 + $0x18] sm:$0xff] 0.0
  $region21: #{_lambda_.19} parent=0 // pred_fallthru
    _
  %v26 = vld [vmem:[%s4] sm:$0xff]
  %v27 = vld [vmem:[%s4 + $0x8] sm:$0xff]
  %v28 = vld [vmem:[%s4 + $0x10] sm:$0xff]
  %v29 = vld [vmem:[%s4 + $0x18] sm:$0xff]
  %v30 = vld [vmem:[%s0] sm:$0xff]
  %v31 = vld [vmem:[%s0 + $0x8] sm:$0xff]
  %v32 = vld [vmem:[%s0 + $0x10] sm:$0xff]
  %v33 = vld [vmem:[%s0 + $0x18] sm:$0xff]
  %v34 = vpack.c.bf16 %v31, %v30
  %v35 = vpack.c.bf16 %v33, %v32
  %v36 = vld [vmem:[%s1] sm:$0xf]
  %v37 = vld [vmem:[%s1 + $0x4] sm:$0xf]
  %v38 = vld [vmem:[%s1 + $0x8] sm:$0xf]
  %v39 = vld [vmem:[%s1 + $0xc] sm:$0xf]
  %v40 = vld [vmem:[%s1 + $0x10] sm:$0xf]
  %v41 = vld [vmem:[%s1 + $0x14] sm:$0xf]
  %v42 = vld [vmem:[%s1 + $0x18] sm:$0xf]
  %v43 = vld [vmem:[%s1 + $0x1c] sm:$0xf]
  %v52 = vunpack.c.l.b16 %v36
  %v53 = vunpack.c.l.b16 %v37
  %v54 = vunpack.c.l.b16 %v38
  %v55 = vunpack.c.l.b16 %v39
  %v56 = vunpack.c.l.b16 %v40
  %v57 = vunpack.c.l.b16 %v41
  %v58 = vunpack.c.l.b16 %v42
  %v59 = vunpack.c.l.b16 %v43
  %v60 = vpack.c.b16 %v53, %v52
  %v61 = vpack.c.b16 %v55, %v54
  %v62 = vpack.c.b16 %v57, %v56
  %v63 = vpack.c.b16 %v59, %v58
  %vm68 = vcmask 523264
  %v70 = vsel %vm68, %v34, 0
  %v73 = vsel %vm68, %v35, 0
  %75 = vmatprep.subr.bf16.mxu0 0
  %76 = vmatpush1.bf16.msra.mxu0 %v60
  %77 = vmatprep.subr.bf16.mxu0 0
  %78 = vmatpush1.bf16.msra.mxu0 %v61
  %79 = vmatprep.subr.bf16.mxu0 0
  %80 = vmatpush1.bf16.msra.mxu0 %v62
  %81 = vmatprep.subr.bf16.mxu0 0
  %82 = vmatpush1.bf16.msra.mxu0 %v63
  %83 = vmatprep.subr.bf16.mxu0 0
  %84 = vmatpush1.bf16.msra.mxu0 0
  %85 = vmatprep.subr.bf16.mxu0 0
  %86 = vmatpush1.bf16.msra.mxu0 0
  %87 = vmatprep.subr.bf16.mxu0 0
  %88 = vmatpush1.bf16.msra.mxu0 0
  %89 = vmatprep.subr.bf16.mxu0 0
  %90 = vmatpush1.bf16.msra.mxu0 0
  %91 = vmatprep.subr.bf16.mxu0 0
  %92 = vmatpush1.bf16.msra.mxu0 0
  %93 = vmatprep.subr.bf16.mxu0 0
  %94 = vmatpush1.bf16.msra.mxu0 0
  %95 = vmatprep.subr.bf16.mxu0 0
  %96 = vmatpush1.bf16.msra.mxu0 0
  %97 = vmatprep.subr.bf16.mxu0 0
  %98 = vmatpush1.bf16.msra.mxu0 0
  %99 = vmatprep.subr.bf16.mxu0 0
  %100 = vmatpush1.bf16.msra.mxu0 0
  %101 = vmatprep.subr.bf16.mxu0 0
  %102 = vmatpush1.bf16.msra.mxu0 0
  %103 = vmatprep.subr.bf16.mxu0 0
  %104 = vmatpush1.bf16.msra.mxu0 0
  %105 = vmatprep.subr.bf16.mxu0 0
  %106 = vmatpush1.bf16.msra.mxu0 0
  %107 = vmatprep.mubr.bf16.mxu0 0
  %108 = vmatmul.mubr.bf16.gmra.mrb[0].mxu0 %v70
  %v109 = vpop.f32.mrb[0].mxu0
  %v110 = vadd.f32 0.0, %v109
  %v111 = vpop.f32.mrb[0].mxu0
  %v112 = vpop.f32.mrb[0].mxu0
  %v113 = vadd.f32 0.0, %v112
  %v114 = vpop.f32.mrb[0].mxu0
  %115 = vmatprep.mubr.bf16.mxu0 0
  %116 = vmatmul.mubr.bf16.gmra.mrb[0].mxu0 %v73
  %v117 = vpop.f32.mrb[0].mxu0
  %v118 = vadd.f32 0.0, %v117
  %v119 = vpop.f32.mrb[0].mxu0
  %v120 = vpop.f32.mrb[0].mxu0
  %v121 = vadd.f32 0.0, %v120
  %v122 = vpop.f32.mrb[0].mxu0
  %123 = vdwg.mxu0
  %v124 = vadd.f32 %v26, %v110
  %v125 = vadd.f32 %v27, %v113
  %v126 = vadd.f32 %v28, %v118
  %v127 = vadd.f32 %v29, %v121
  %128 = vst [vmem:[%s4] sm:$0xff] %v124
  %129 = vst [vmem:[%s4 + $0x8] sm:$0xff] %v125
  %130 = vst [vmem:[%s4 + $0x10] sm:$0xff] %v126
  %131 = vst [vmem:[%s4 + $0x18] sm:$0xff] %v127
  // Predicated region
  $region22: #{_lambda_.19} parent=0 // pred_check
    %p132 = pneg %p18
  $region23: #{_lambda_.19} parent=0 // pred_check_branch
    %134 = sbr.rel (%p132) target = $region25
  $region24: #{_lambda_.19} parent=0 // pred_region
    %v135 = vld [vmem:[%s4] sm:$0xff]
    %v136 = vld [vmem:[%s4 + $0x8] sm:$0xff]
    %v137 = vld [vmem:[%s4 + $0x10] sm:$0xff]
    %v138 = vld [vmem:[%s4 + $0x18] sm:$0xff]
    %v139 = vld [vmem:[%s2] sm:$0x1]
    %v141 = vlaneseq
    %v142 = vshrl.u32 %v141, 7
    %v143 = vsub.s32 0, %v142
    %v144 = vrot.slane %v139, %v143
    %v146 = vmul.f32 %v135, %v144
    %v147 = vmul.f32 %v136, %v144
    %v148 = vmul.f32 %v137, %v144
    %v149 = vmul.f32 %v138, %v144
    %v150 = vld [vmem:[%s3] sm:$0x1]
    %v152 = vlaneseq
    %v153 = vshrl.u32 %v152, 7
    %v154 = vsub.s32 0, %v153
    %v155 = vrot.slane %v150, %v154
    %v157 = vadd.f32 %v146, %v155
    %v158 = vadd.f32 %v147, %v155
    %v159 = vadd.f32 %v148, %v155
    %v160 = vadd.f32 %v149, %v155
    %161 = vst [vmem:[%s4] sm:$0xff] %v157
    %162 = vst [vmem:[%s4 + $0x8] sm:$0xff] %v158
    %163 = vst [vmem:[%s4 + $0x10] sm:$0xff] %v159
    %164 = vst [vmem:[%s4 + $0x18] sm:$0xff] %v160
  $region25: #{_lambda_.19} parent=0 // pred_fallthru
    _
  // Predicated region
  $region26: #{_lambda_.19} parent=0 // pred_check
    _
  $region27: #{_lambda_.19} parent=0 // pred_check_branch
    %166 = sbr.rel (0) target = $region29
  $region28: #{_lambda_.19} parent=0 // pred_region
    _
  $region29: #{_lambda_.19} parent=0 // pred_fallthru
    _
  // Predicated region
  $region30: #{_lambda_.19} parent=0 // pred_check
    _
  $region31: #{_lambda_.19} parent=0 // pred_check_branch
    %168 = sbr.rel (0) target = $region33
  $region32: #{_lambda_.19} parent=0 // pred_region
    _
  $region33: #{_lambda_.19} parent=0 // pred_fallthru
    _

// kernel: _lambda_.21
$region0: #{_lambda_.21}
  #allocation0 [shape = 'u32[]', space=smem, size = 0x4, offset = 0x4, fixed_abs, tag = 'smem constant byte address 0x4 - core index']
  #allocation1 [shape = 'u32[144,128]{1,0:T(1,128)}', space=vmem, size = 0x12000, scoped, tag = 'internal scratch']
  %s0 = inlined_call_operand.vmem [shape: bf16[32,1280], index: 0, kind: input, shape index: {}]
  %s1 = inlined_call_operand.vmem [shape: bf16[1280,128], index: 1, kind: input, shape index: {}]
  %s2 = inlined_call_operand.vmem [shape: f32[1,128], index: 2, kind: input, shape index: {}]
  %s3 = inlined_call_operand.vmem [shape: f32[1,128], index: 3, kind: input, shape index: {}]
  %s4 = inlined_call_operand.vmem [shape: f32[32,128], index: 4, kind: input, shape index: {}]
  %s5 = inlined_call_operand.vmem [shape: f32[32,128], index: 5, kind: output, shape index: {0}]
  %s6 = inlined_call_operand.hbm [shape: f32[32,128], index: 6, kind: output, shape index: {1}]
  %7 = xla_tuple %s5, %s6
  %s8 = sld [smem:[#allocation0]]
  $region107: #{_lambda_.21} parent=0
    _
  %s10 = ssub.s32 1, %s8
  %s11 = scalar_select 0, %s10, %s8
  $region1: #{_lambda_.21} parent=0
    #allocation2 [shape = 'u8[32768]{0}', space=vmem, size = 0x8000, scoped, tag = 'input window, operand 0']
    #allocation3 [shape = 'u8[16384]{0}', space=vmem, size = 0x4000, scoped, tag = 'output window, operand 1, single buffered']
    #allocation4 [shape = 's32[2]{0}', space=sflag, size = 0x8, scoped, tag = 'scoped memory for _lambda_.21']
    %12 = vsyncpa [#allocation4], 0
    loop: start=0, step=1, limit=7
    $region2: #{_lambda_.21} parent=1 // loop_pre_header
      _
    $region3: #{_lambda_.21} parent=1 // loop_header
      %s14 = sphi 0, %s18
      %p15 = scmp.ge.s32.totalorder %s14, 7
      %s21 = sphi 0, %s33
      %s22 = sphi 0, %s29
      %s23 = sphi 0, %s21
      %s24 = sphi 0, %s22
      %s25 = sphi 0, %s23
      %s26 = sphi 0, %s24
      %s38 = sphi 0, %s40
      %s41 = sphi 0, %s38
      %s42 = sphi 0, %s41
      %s58 = sphi 0, %s42
      %s64 = sphi 0, %s66
      %s67 = sphi 0, %s64
      %s68 = sphi 0, %s67
      %s84 = sphi 0, %s68
      %s88 = sphi 0, %s88
      %s90 = sphi 0, %s88
      %s91 = sphi 0, %s90
      %s105 = sphi 0, %s91
      %s109 = sphi 0, %s109
      %s111 = sphi 0, %s109
      %s112 = sphi 0, %s111
      %s126 = sphi 0, %s112
      %s132 = sphi 0, %s134
      %s135 = sphi 0, %s132
      %s136 = sphi 0, %s135
      %s152 = sphi 0, %s136
      %s158 = sphi 0, %s160
      %s161 = sphi 0, %s158
      %s162 = sphi 0, %s161
      %s178 = sphi 0, %s162
      %s184 = sphi 0, %s186
      %s187 = sphi 0, %s184
      %s188 = sphi 0, %s187
      %s204 = sphi 0, %s188
    $region4: #{_lambda_.21} parent=1 // loop_header_branch
      %17 = sbr.rel (%p15) target = $region8
    $region5: #{_lambda_.21} parent=1 // loop_body
      %s19 = ssub.s32 %s14, 1
      %s20 = ssub.s32 %s14, 2
      %s27 = sadd.s32 1, %s22
      %p28 = scmp.ge.s32.totalorder %s27, 5
      %s29 = scalar_select %p28, 0, %s27
      %s30 = sadd.s32 1, %s21
      %s31 = scalar_select %p28, %s30, %s21
      %p32 = scmp.ge.s32.totalorder %s31, 1
      %s33 = scalar_select %p32, 0, %s31
      %s34 = ssub.s32 %s21, %s33
      %s35 = ssub.s32 %s22, %s29
      %s36 = sor.u32 %s34, %s35
      %p37 = scmp.eq.s32.totalorder %s36, 0
      %s39 = sadd.s32 %s38, 1
      %s40 = scalar_select %p37, %s38, %s39
      %p43 = pneg %p37
      %p44 = scmp.eq.s32.totalorder %s14, 4
      %p45 = por %p43, %p44
      %p46 = scmp.ne.s32.totalorder %s38, %s41
      %p47 = scmp.eq.s32.totalorder %s14, 0
      %p48 = por %p46, %p47
      %p49 = scmp.ne.s32.totalorder %s38, %s41
      %p50 = scmp.eq.s32.totalorder %s19, 4
      %p51 = por %p49, %p50
      %p52 = scmp.ne.s32.totalorder %s41, %s42
      %p53 = scmp.eq.s32.totalorder %s19, 0
      %p54 = por %p52, %p53
      %p55 = scmp.ne.s32.totalorder %s41, %s42
      %p56 = scmp.eq.s32.totalorder %s20, 4
      %p57 = por %p55, %p56
      %p59 = scmp.ne.s32.totalorder %s42, %s58
      %p60 = scmp.eq.s32.totalorder %s20, 0
      %p61 = por %p59, %p60
      %s62 = ssub.s32 %s22, %s29
      %p63 = scmp.eq.s32.totalorder %s62, 0
      %s65 = sadd.s32 %s64, 1
      %s66 = scalar_select %p63, %s64, %s65
      %p69 = pneg %p63
      %p70 = scmp.eq.s32.totalorder %s14, 4
      %p71 = por %p69, %p70
      %p72 = scmp.ne.s32.totalorder %s64, %s67
      %p73 = scmp.eq.s32.totalorder %s14, 0
      %p74 = por %p72, %p73
      %p75 = scmp.ne.s32.totalorder %s64, %s67
      %p76 = scmp.eq.s32.totalorder %s19, 4
      %p77 = por %p75, %p76
      %p78 = scmp.ne.s32.totalorder %s67, %s68
      %p79 = scmp.eq.s32.totalorder %s19, 0
      %p80 = por %p78, %p79
      %p81 = scmp.ne.s32.totalorder %s67, %s68
      %p82 = scmp.eq.s32.totalorder %s20, 4
      %p83 = por %p81, %p82
      %p85 = scmp.ne.s32.totalorder %s68, %s84
      %p86 = scmp.eq.s32.totalorder %s20, 0
      %p87 = por %p85, %p86
      %s89 = sadd.s32 %s88, 1
      %p92 = scmp.eq.s32.totalorder %s14, 4
      %p93 = scmp.ne.s32.totalorder %s88, %s90
      %p94 = scmp.eq.s32.totalorder %s14, 0
      %p95 = por %p93, %p94
      %p96 = scmp.ne.s32.totalorder %s88, %s90
      %p97 = scmp.eq.s32.totalorder %s19, 4
      %p98 = por %p96, %p97
      %p99 = scmp.ne.s32.totalorder %s90, %s91
      %p100 = scmp.eq.s32.totalorder %s19, 0
      %p101 = por %p99, %p100
      %p102 = scmp.ne.s32.totalorder %s90, %s91
      %p103 = scmp.eq.s32.totalorder %s20, 4
      %p104 = por %p102, %p103
      %p106 = scmp.ne.s32.totalorder %s91, %s105
      %p107 = scmp.eq.s32.totalorder %s20, 0
      %p108 = por %p106, %p107
      %s110 = sadd.s32 %s109, 1
      %p113 = scmp.eq.s32.totalorder %s14, 4
      %p114 = scmp.ne.s32.totalorder %s109, %s111
      %p115 = scmp.eq.s32.totalorder %s14, 0
      %p116 = por %p114, %p115
      %p117 = scmp.ne.s32.totalorder %s109, %s111
      %p118 = scmp.eq.s32.totalorder %s19, 4
      %p119 = por %p117, %p118
      %p120 = scmp.ne.s32.totalorder %s111, %s112
      %p121 = scmp.eq.s32.totalorder %s19, 0
      %p122 = por %p120, %p121
      %p123 = scmp.ne.s32.totalorder %s111, %s112
      %p124 = scmp.eq.s32.totalorder %s20, 4
      %p125 = por %p123, %p124
      %p127 = scmp.ne.s32.totalorder %s112, %s126
      %p128 = scmp.eq.s32.totalorder %s20, 0
      %p129 = por %p127, %p128
      %s130 = ssub.s32 %s21, %s33
      %p131 = scmp.eq.s32.totalorder %s130, 0
      %s133 = sadd.s32 %s132, 1
      %s134 = scalar_select %p131, %s132, %s133
      %p137 = pneg %p131
      %p138 = scmp.eq.s32.totalorder %s14, 4
      %p139 = por %p137, %p138
      %p140 = scmp.ne.s32.totalorder %s132, %s135
      %p141 = scmp.eq.s32.totalorder %s14, 0
      %p142 = por %p140, %p141
      %p143 = scmp.ne.s32.totalorder %s132, %s135
      %p144 = scmp.eq.s32.totalorder %s19, 4
      %p145 = por %p143, %p144
      %p146 = scmp.ne.s32.totalorder %s135, %s136
      %p147 = scmp.eq.s32.totalorder %s19, 0
      %p148 = por %p146, %p147
      %p149 = scmp.ne.s32.totalorder %s135, %s136
      %p150 = scmp.eq.s32.totalorder %s20, 4
      %p151 = por %p149, %p150
      %p153 = scmp.ne.s32.totalorder %s136, %s152
      %p154 = scmp.eq.s32.totalorder %s20, 0
      %p155 = por %p153, %p154
      %s156 = ssub.s32 %s21, %s33
      %p157 = scmp.eq.s32.totalorder %s156, 0
      %s159 = sadd.s32 %s158, 1
      %s160 = scalar_select %p157, %s158, %s159
      %p163 = pneg %p157
      %p164 = scmp.eq.s32.totalorder %s14, 4
      %p165 = por %p163, %p164
      %p166 = scmp.ne.s32.totalorder %s158, %s161
      %p167 = scmp.eq.s32.totalorder %s14, 0
      %p168 = por %p166, %p167
      %p169 = scmp.ne.s32.totalorder %s158, %s161
      %p170 = scmp.eq.s32.totalorder %s19, 4
      %p171 = por %p169, %p170
      %p172 = scmp.ne.s32.totalorder %s161, %s162
      %p173 = scmp.eq.s32.totalorder %s19, 0
      %p174 = por %p172, %p173
      %p175 = scmp.ne.s32.totalorder %s161, %s162
      %p176 = scmp.eq.s32.totalorder %s20, 4
      %p177 = por %p175, %p176
      %p179 = scmp.ne.s32.totalorder %s162, %s178
      %p180 = scmp.eq.s32.totalorder %s20, 0
      %p181 = por %p179, %p180
      %s182 = ssub.s32 %s21, %s33
      %p183 = scmp.eq.s32.totalorder %s182, 0
      %s185 = sadd.s32 %s184, 1
      %s186 = scalar_select %p183, %s184, %s185
      %p189 = pneg %p183
      %p190 = scmp.eq.s32.totalorder %s14, 4
      %p191 = por %p189, %p190
      %p192 = scmp.ne.s32.totalorder %s184, %s187
      %p193 = scmp.eq.s32.totalorder %s14, 0
      %p194 = por %p192, %p193
      %p195 = scmp.ne.s32.totalorder %s184, %s187
      %p196 = scmp.eq.s32.totalorder %s19, 4
      %p197 = por %p195, %p196
      %p198 = scmp.ne.s32.totalorder %s187, %s188
      %p199 = scmp.eq.s32.totalorder %s19, 0
      %p200 = por %p198, %p199
      %p201 = scmp.ne.s32.totalorder %s187, %s188
      %p202 = scmp.eq.s32.totalorder %s20, 4
      %p203 = por %p201, %p202
      %p205 = scmp.ne.s32.totalorder %s188, %s204
      %p206 = scmp.eq.s32.totalorder %s20, 0
      %p207 = por %p205, %p206
      %p208 = scmp.le.s32.totalorder 1, %s14
      %p209 = scmp.lt.s32.totalorder %s14, 6
      %p210 = pnand %p208, %p209
      %p211 = pneg %p210
      // Predicated region
      $region9: #{_lambda_.21} parent=5 // pred_check
        _
      $region10: #{_lambda_.21} parent=5 // pred_check_branch
        %213 = sbr.rel (%p210) target = $region12
      $region11: #{_lambda_.21} parent=5 // pred_region
        %s214 = ssub.s32 %s14, 1
        // Predicated region
        $region13: #{_lambda_.21} parent=11 // pred_check
          %p215 = pneg %p101
        $region14: #{_lambda_.21} parent=11 // pred_check_branch
          %217 = sbr.rel (%p215) target = $region16
        $region15: #{_lambda_.21} parent=11 // pred_region
          _
        $region16: #{_lambda_.21} parent=11 // pred_fallthru
          _
        // Predicated region
        $region17: #{_lambda_.21} parent=11 // pred_check
          %p218 = pneg %p122
        $region18: #{_lambda_.21} parent=11 // pred_check_branch
          %220 = sbr.rel (%p218) target = $region20
        $region19: #{_lambda_.21} parent=11 // pred_region
          _
        $region20: #{_lambda_.21} parent=11 // pred_fallthru
          _
        // Predicated region
        $region21: #{_lambda_.21} parent=11 // pred_check
          %p221 = pneg %p148
        $region22: #{_lambda_.21} parent=11 // pred_check_branch
          %223 = sbr.rel (%p221) target = $region24
        $region23: #{_lambda_.21} parent=11 // pred_region
          %s224 = smul.u32 4, %s23
          %p225 = scmp.lt.s32.totalorder %s224, 3
          %s226 = scalar_select %p225, %s224, 3
          %s227 = smul.addr %s226, 8
          %s228 = scalar_lea.vmem %s4, %s227
          %s229 = smul.u32 4, %s23
        $region24: #{_lambda_.21} parent=11 // pred_fallthru
          _
      $region12: #{_lambda_.21} parent=5 // pred_fallthru
        _
      %p230 = scmp.lt.s32.totalorder %s14, 5
      // Predicated region
      $region25: #{_lambda_.21} parent=5 // pred_check
        %p231 = pneg %p230
      $region26: #{_lambda_.21} parent=5 // pred_check_branch
        %233 = sbr.rel (%p231) target = $region28
      $region27: #{_lambda_.21} parent=5 // pred_region
        // Predicated region
        $region29: #{_lambda_.21} parent=27 // pred_check
          %p234 = pneg %p48
        $region30: #{_lambda_.21} parent=27 // pred_check_branch
          %236 = sbr.rel (%p234) target = $region32
        $region31: #{_lambda_.21} parent=27 // pred_region
          %s237 = sand.u32 %s38, 1
          %s238 = sand.u32 %s38, 1
          %s239 = smul.addr %s238, 32
          %s240 = scalar_lea.vmem [#allocation2], %s239
          %s241 = smul.u32 4, %s21
          %s242 = smul.u32 2, %s22
          %s243 = smul.addr %s241, 10
          %s244 = sadd.s32 %s242, %s243
          %s245 = smul.addr %s244, 4
          %s246 = scalar_lea.vmem %s0, %s245
          // Predicated region
          $region33: #{_lambda_.21} parent=31 // pred_check
            _
          $region34: #{_lambda_.21} parent=31 // pred_check_branch
            %248 = sbr.rel (0) target = $region36
          $region35: #{_lambda_.21} parent=31 // pred_region
            // Predicated region
            $region37: #{_lambda_.21} parent=35 // pred_check
              _
            $region38: #{_lambda_.21} parent=35 // pred_check_branch
              %250 = sbr.rel (0) target = $region40
            $region39: #{_lambda_.21} parent=35 // pred_region
              // Predicated region
              $region52: #{_lambda_.21} parent=39 // pred_check
                _
              $region53: #{_lambda_.21} parent=39 // pred_check_branch
                %271 = sbr.rel (0) target = $region55
              $region54: #{_lambda_.21} parent=39 // pred_region
                loop: start=0, step=1, limit=1
                $region56: #{_lambda_.21} parent=54 // loop_pre_header
                  _
                $region57: #{_lambda_.21} parent=54 // loop_header
                  %s273 = sphi 0, %s277
                  %p274 = scmp.ge.s32.totalorder %s273, 1
                  %s278 = sphi %s246, %s246
                  %s279 = sphi %s240, %s240
                $region58: #{_lambda_.21} parent=54 // loop_header_branch
                  %276 = sbr.rel (%p274) target = $region62
                $region59: #{_lambda_.21} parent=54 // loop_body
                  %v280 = vld [vmem:[%s278] sm:$0xff]
                  %281 = vst [vmem:[%s279] sm:$0xff] %v280
                  %v282 = vld [vmem:[%s278 + $0x28] sm:$0xff]
                  %283 = vst [vmem:[%s279 + $0x8] sm:$0xff] %v282
                  %v284 = vld [vmem:[%s278 + $0x50] sm:$0xff]
                  %285 = vst [vmem:[%s279 + $0x10] sm:$0xff] %v284
                  %v286 = vld [vmem:[%s278 + $0x78] sm:$0xff]
                  %287 = vst [vmem:[%s279 + $0x18] sm:$0xff] %v286
                $region60: #{_lambda_.21} parent=54 // loop_footer
                  %s277 = sadd.s32 1, %s273
                $region61: #{_lambda_.21} parent=54 // loop_footer_branch
                  %272 = sbr.rel target = $region57
                $region62: #{_lambda_.21} parent=54 // loop_exit
                  _
              $region55: #{_lambda_.21} parent=39 // pred_fallthru
                _
              // Predicated region
              $region63: #{_lambda_.21} parent=39 // pred_check
                _
              $region64: #{_lambda_.21} parent=39 // pred_check_branch
                %289 = sbr.rel target = $region66
              $region65: #{_lambda_.21} parent=39 // pred_region
                _
              $region66: #{_lambda_.21} parent=39 // pred_fallthru
                _
            $region40: #{_lambda_.21} parent=35 // pred_fallthru
              _
            // Predicated region
            $region41: #{_lambda_.21} parent=35 // pred_check
              _
            $region42: #{_lambda_.21} parent=35 // pred_check_branch
              %252 = sbr.rel target = $region44
            $region43: #{_lambda_.21} parent=35 // pred_region
              loop: start=0, step=1, limit=1
              $region45: #{_lambda_.21} parent=43 // loop_pre_header
                _
              $region46: #{_lambda_.21} parent=43 // loop_header
                %s255 = sphi 0, %s259
                %p256 = scmp.ge.s32.totalorder %s255, 1
                %s260 = sphi %s246, %s246
                %s261 = sphi %s240, %s240
              $region47: #{_lambda_.21} parent=43 // loop_header_branch
                %258 = sbr.rel (%p256) target = $region51
              $region48: #{_lambda_.21} parent=43 // loop_body
                %v262 = vld [vmem:[%s260] sm:$0xff]
                %263 = vst [vmem:[%s261] sm:$0xff] %v262
                %v264 = vld [vmem:[%s260 + $0x28] sm:$0xff]
                %265 = vst [vmem:[%s261 + $0x8] sm:$0xff] %v264
                %v266 = vld [vmem:[%s260 + $0x50] sm:$0xff]
                %267 = vst [vmem:[%s261 + $0x10] sm:$0xff] %v266
                %v268 = vld [vmem:[%s260 + $0x78] sm:$0xff]
                %269 = vst [vmem:[%s261 + $0x18] sm:$0xff] %v268
              $region49: #{_lambda_.21} parent=43 // loop_footer
                %s259 = sadd.s32 1, %s255
              $region50: #{_lambda_.21} parent=43 // loop_footer_branch
                %254 = sbr.rel target = $region46
              $region51: #{_lambda_.21} parent=43 // loop_exit
                _
            $region44: #{_lambda_.21} parent=35 // pred_fallthru
              _
          $region36: #{_lambda_.21} parent=31 // pred_fallthru
            _
          %290 = vnop
        $region32: #{_lambda_.21} parent=27 // pred_fallthru
          _
        // Predicated region
        $region67: #{_lambda_.21} parent=27 // pred_check
          %p291 = pneg %p74
        $region68: #{_lambda_.21} parent=27 // pred_check_branch
          %293 = sbr.rel (%p291) target = $region70
        $region69: #{_lambda_.21} parent=27 // pred_region
          %s294 = smul.u32 32, %s22
          %p295 = scmp.lt.s32.totalorder %s294, 159
          %s296 = scalar_select %p295, %s294, 159
          %s297 = smul.addr %s296, 4
          %s298 = scalar_lea.vmem %s1, %s297
          %s299 = smul.u32 32, %s22
        $region70: #{_lambda_.21} parent=27 // pred_fallthru
          _
      $region28: #{_lambda_.21} parent=5 // pred_fallthru
        _
      %p300 = scmp.le.s32.totalorder 1, %s14
      %p301 = scmp.lt.s32.totalorder %s14, 6
      %p302 = pnand %p300, %p301
      %p303 = pneg %p302
      // Predicated region
      $region71: #{_lambda_.21} parent=5 // pred_check
        _
      $region72: #{_lambda_.21} parent=5 // pred_check_branch
        %305 = sbr.rel (%p302) target = $region74
      $region73: #{_lambda_.21} parent=5 // pred_region
        %s306 = ssub.s32 %s14, 1
        %s307 = sand.u32 %s41, 1
        %s308 = sand.u32 %s41, 1
        %s309 = smul.addr %s308, 32
        %s310 = scalar_lea.vmem [#allocation2], %s309
        // Predicated region
        $region75: #{_lambda_.21} parent=73 // pred_check
          %p311 = pneg %p54
        $region76: #{_lambda_.21} parent=73 // pred_check_branch
          %313 = sbr.rel (%p311) target = $region78
        $region77: #{_lambda_.21} parent=73 // pred_region
          _
        $region78: #{_lambda_.21} parent=73 // pred_fallthru
          _
        %s314 = sand.u32 %s41, 1
        %s315 = sand.u32 %s41, 1
        %s316 = smul.addr %s315, 32
        %s317 = scalar_lea.vmem [#allocation2], %s316
        %p318 = pneg %p54
        %p319 = pneg %p51
        %s320 = smul.u32 32, %s24
        %p321 = scmp.lt.s32.totalorder %s320, 159
        %s322 = scalar_select %p321, %s320, 159
        %s323 = smul.addr %s322, 4
        %s324 = scalar_lea.vmem %s1, %s323
        %p325 = pneg %p80
        %p326 = pneg %p77
        %p327 = pneg %p101
        %p328 = pneg %p98
        %p329 = pneg %p122
        %p330 = pneg %p119
        %s331 = smul.u32 4, %s23
        %p332 = scmp.lt.s32.totalorder %s331, 3
        %s333 = scalar_select %p332, %s331, 3
        %s334 = smul.addr %s333, 8
        %s335 = scalar_lea.vmem %s4, %s334
        %p336 = pneg %p148
        %p337 = pneg %p145
        %p338 = pneg %p174
        %p339 = pneg %p171
        %s340 = smul.u32 4, %s23
        %p341 = scmp.lt.s32.totalorder %s340, 3
        %s342 = scalar_select %p341, %s340, 3
        %s343 = smul.addr %s342, 8
        %s344 = scalar_lea.vmem %s5, %s343
        %p345 = pneg %p200
        %p346 = pneg %p197
        %s347 = smul.u32 4, %s23
        %s348 = smul.u32 2, %s24
        %s349 = smul.u32 32, %s24
        %p350 = scmp.lt.s32.totalorder %s349, 159
        %s351 = scalar_select %p350, %s349, 159
        %s352 = smul.addr %s351, 4
        %s353 = scalar_lea.vmem %s1, %s352
        %s354 = smul.u32 32, %s24
        %s355 = smul.u32 4, %s23
        %p356 = scmp.lt.s32.totalorder %s355, 3
        %s357 = scalar_select %p356, %s355, 3
        %s358 = smul.addr %s357, 8
        %s359 = scalar_lea.vmem %s4, %s358
        %s360 = smul.u32 4, %s23
        %s361 = smul.u32 4, %s23
        %p362 = scmp.lt.s32.totalorder %s361, 3
        %s363 = scalar_select %p362, %s361, 3
        %s364 = smul.addr %s363, 8
        %s365 = scalar_lea.vmem %s5, %s364
        %s366 = smul.u32 4, %s23
        %s367 = smul.u32 4, %s23
        %p369 = scmp.eq.s32.totalorder %s24, 0
        // Predicated region
        $region79: #{_lambda_.21} parent=73 // pred_check
          %p370 = pneg %p369
        $region80: #{_lambda_.21} parent=73 // pred_check_branch
          %372 = sbr.rel (%p370) target = $region82
        $region81: #{_lambda_.21} parent=73 // pred_region
          %373 = vst [vmem:[#allocation3] sm:$0xff] 0.0
          %374 = vst [vmem:[#allocation3 + $0x8] sm:$0xff] 0.0
          %375 = vst [vmem:[#allocation3 + $0x10] sm:$0xff] 0.0
          %376 = vst [vmem:[#allocation3 + $0x18] sm:$0xff] 0.0
        $region82: #{_lambda_.21} parent=73 // pred_fallthru
          _
        %v377 = vld [vmem:[#allocation3] sm:$0xff]
        %v378 = vld [vmem:[#allocation3 + $0x8] sm:$0xff]
        %v379 = vld [vmem:[#allocation3 + $0x10] sm:$0xff]
        %v380 = vld [vmem:[#allocation3 + $0x18] sm:$0xff]
        %v381 = vld [vmem:[%s310] sm:$0xff]
        %v382 = vld [vmem:[%s310 + $0x8] sm:$0xff]
        %v383 = vld [vmem:[%s310 + $0x10] sm:$0xff]
        %v384 = vld [vmem:[%s310 + $0x18] sm:$0xff]
        %v385 = vld [vmem:[%s353] sm:$0xf]
        %v386 = vld [vmem:[%s353 + $0x4] sm:$0xf]
        %v387 = vld [vmem:[%s353 + $0x8] sm:$0xf]
        %v388 = vld [vmem:[%s353 + $0xc] sm:$0xf]
        %v389 = vld [vmem:[%s353 + $0x10] sm:$0xf]
        %v390 = vld [vmem:[%s353 + $0x14] sm:$0xf]
        %v391 = vld [vmem:[%s353 + $0x18] sm:$0xf]
        %v392 = vld [vmem:[%s353 + $0x1c] sm:$0xf]
        %v393 = vld [vmem:[%s353 + $0x20] sm:$0xf]
        %v394 = vld [vmem:[%s353 + $0x24] sm:$0xf]
        %v395 = vld [vmem:[%s353 + $0x28] sm:$0xf]
        %v396 = vld [vmem:[%s353 + $0x2c] sm:$0xf]
        %v397 = vld [vmem:[%s353 + $0x30] sm:$0xf]
        %v398 = vld [vmem:[%s353 + $0x34] sm:$0xf]
        %v399 = vld [vmem:[%s353 + $0x38] sm:$0xf]
        %v400 = vld [vmem:[%s353 + $0x3c] sm:$0xf]
        %v401 = vld [vmem:[%s353 + $0x40] sm:$0xf]
        %v402 = vld [vmem:[%s353 + $0x44] sm:$0xf]
        %v403 = vld [vmem:[%s353 + $0x48] sm:$0xf]
        %v404 = vld [vmem:[%s353 + $0x4c] sm:$0xf]
        %v405 = vld [vmem:[%s353 + $0x50] sm:$0xf]
        %v406 = vld [vmem:[%s353 + $0x54] sm:$0xf]
        %v407 = vld [vmem:[%s353 + $0x58] sm:$0xf]
        %v408 = vld [vmem:[%s353 + $0x5c] sm:$0xf]
        %v409 = vld [vmem:[%s353 + $0x60] sm:$0xf]
        %v410 = vld [vmem:[%s353 + $0x64] sm:$0xf]
        %v411 = vld [vmem:[%s353 + $0x68] sm:$0xf]
        %v412 = vld [vmem:[%s353 + $0x6c] sm:$0xf]
        %v413 = vld [vmem:[%s353 + $0x70] sm:$0xf]
        %v414 = vld [vmem:[%s353 + $0x74] sm:$0xf]
        %v415 = vld [vmem:[%s353 + $0x78] sm:$0xf]
        %v416 = vld [vmem:[%s353 + $0x7c] sm:$0xf]
        %v421 = vunpack.c.l.b16 %v381
        %v422 = vunpack.c.h.b16 %v381
        %v423 = vunpack.c.l.b16 %v382
        %v424 = vunpack.c.h.b16 %v382
        %v425 = vunpack.c.l.b16 %v383
        %v426 = vunpack.c.h.b16 %v383
        %v427 = vunpack.c.l.b16 %v384
        %v428 = vunpack.c.h.b16 %v384
        %v429 = vpack.c.b16 %v423, %v421
        %v430 = vpack.c.b16 %v424, %v422
        %v431 = vpack.c.b16 %v427, %v425
        %v432 = vpack.c.b16 %v428, %v426
        %v469 = vunpack.c.l.b16 %v385
        %v470 = vunpack.c.l.b16 %v386
        %v471 = vunpack.c.l.b16 %v387
        %v472 = vunpack.c.l.b16 %v388
        %v473 = vunpack.c.l.b16 %v389
        %v474 = vunpack.c.l.b16 %v390
        %v475 = vunpack.c.l.b16 %v391
        %v476 = vunpack.c.l.b16 %v392
        %v477 = vunpack.c.l.b16 %v393
        %v478 = vunpack.c.l.b16 %v394
        %v479 = vunpack.c.l.b16 %v395
        %v480 = vunpack.c.l.b16 %v396
        %v481 = vunpack.c.l.b16 %v397
        %v482 = vunpack.c.l.b16 %v398
        %v483 = vunpack.c.l.b16 %v399
        %v484 = vunpack.c.l.b16 %v400
        %v485 = vunpack.c.l.b16 %v401
        %v486 = vunpack.c.l.b16 %v402
        %v487 = vunpack.c.l.b16 %v403
        %v488 = vunpack.c.l.b16 %v404
        %v489 = vunpack.c.l.b16 %v405
        %v490 = vunpack.c.l.b16 %v406
        %v491 = vunpack.c.l.b16 %v407
        %v492 = vunpack.c.l.b16 %v408
        %v493 = vunpack.c.l.b16 %v409
        %v494 = vunpack.c.l.b16 %v410
        %v495 = vunpack.c.l.b16 %v411
        %v496 = vunpack.c.l.b16 %v412
        %v497 = vunpack.c.l.b16 %v413
        %v498 = vunpack.c.l.b16 %v414
        %v499 = vunpack.c.l.b16 %v415
        %v500 = vunpack.c.l.b16 %v416
        %v501 = vpack.c.b16 %v470, %v469
        %v502 = vpack.c.b16 %v472, %v471
        %v503 = vpack.c.b16 %v474, %v473
        %v504 = vpack.c.b16 %v476, %v475
        %v505 = vpack.c.b16 %v478, %v477
        %v506 = vpack.c.b16 %v480, %v479
        %v507 = vpack.c.b16 %v482, %v481
        %v508 = vpack.c.b16 %v484, %v483
        %v509 = vpack.c.b16 %v486, %v485
        %v510 = vpack.c.b16 %v488, %v487
        %v511 = vpack.c.b16 %v490, %v489
        %v512 = vpack.c.b16 %v492, %v491
        %v513 = vpack.c.b16 %v494, %v493
        %v514 = vpack.c.b16 %v496, %v495
        %v515 = vpack.c.b16 %v498, %v497
        %v516 = vpack.c.b16 %v500, %v499
        %533 = vmatprep.subr.bf16.mxu0 0
        %534 = vmatpush1.bf16.msra.mxu0 %v501
        %535 = vmatprep.subr.bf16.mxu0 0
        %536 = vmatpush1.bf16.msra.mxu0 %v502
        %537 = vmatprep.subr.bf16.mxu0 0
        %538 = vmatpush1.bf16.msra.mxu0 %v503
        %539 = vmatprep.subr.bf16.mxu0 0
        %540 = vmatpush1.bf16.msra.mxu0 %v504
        %541 = vmatprep.subr.bf16.mxu0 0
        %542 = vmatpush1.bf16.msra.mxu0 %v505
        %543 = vmatprep.subr.bf16.mxu0 0
        %544 = vmatpush1.bf16.msra.mxu0 %v506
        %545 = vmatprep.subr.bf16.mxu0 0
        %546 = vmatpush1.bf16.msra.mxu0 %v507
        %547 = vmatprep.subr.bf16.mxu0 0
        %548 = vmatpush1.bf16.msra.mxu0 %v508
        %549 = vmatprep.subr.bf16.mxu0 0
        %550 = vmatpush1.bf16.msra.mxu0 %v509
        %551 = vmatprep.subr.bf16.mxu0 0
        %552 = vmatpush1.bf16.msra.mxu0 %v510
        %553 = vmatprep.subr.bf16.mxu0 0
        %554 = vmatpush1.bf16.msra.mxu0 %v511
        %555 = vmatprep.subr.bf16.mxu0 0
        %556 = vmatpush1.bf16.msra.mxu0 %v512
        %557 = vmatprep.subr.bf16.mxu0 0
        %558 = vmatpush1.bf16.msra.mxu0 %v513
        %559 = vmatprep.subr.bf16.mxu0 0
        %560 = vmatpush1.bf16.msra.mxu0 %v514
        %561 = vmatprep.subr.bf16.mxu0 0
        %562 = vmatpush1.bf16.msra.mxu0 %v515
        %563 = vmatprep.subr.bf16.mxu0 0
        %564 = vmatpush1.bf16.msra.mxu0 %v516
        %565 = vmatprep.mubr.bf16.mxu0 %v430
        %566 = vmatmul.mubr.bf16.gmra.mrb[0].mxu0 %v429
        %v567 = vpop.f32.mrb[0].mxu0
        %v568 = vadd.f32 0.0, %v567
        %v569 = vpop.f32.mrb[0].mxu0
        %v570 = vpop.f32.mrb[0].mxu0
        %v571 = vadd.f32 0.0, %v570
        %v572 = vpop.f32.mrb[0].mxu0
        %573 = vmatprep.mubr.bf16.mxu0 %v432
        %574 = vmatmul.mubr.bf16.gmra.mrb[0].mxu0 %v431
        %v575 = vpop.f32.mrb[0].mxu0
        %v576 = vadd.f32 0.0, %v575
        %v577 = vpop.f32.mrb[0].mxu0
        %v578 = vpop.f32.mrb[0].mxu0
        %v579 = vadd.f32 0.0, %v578
        %v580 = vpop.f32.mrb[0].mxu0
        %581 = vdwg.mxu0
        %v582 = vadd.f32 %v377, %v568
        %v583 = vadd.f32 %v378, %v571
        %v584 = vadd.f32 %v379, %v576
        %v585 = vadd.f32 %v380, %v579
        %586 = vst [vmem:[#allocation3] sm:$0xff] %v582
        %587 = vst [vmem:[#allocation3 + $0x8] sm:$0xff] %v583
        %588 = vst [vmem:[#allocation3 + $0x10] sm:$0xff] %v584
        %589 = vst [vmem:[#allocation3 + $0x18] sm:$0xff] %v585
        %p590 = scmp.eq.s32.totalorder %s24, 4
        // Predicated region
        $region83: #{_lambda_.21} parent=73 // pred_check
          %p591 = pneg %p590
        $region84: #{_lambda_.21} parent=73 // pred_check_branch
          %593 = sbr.rel (%p591) target = $region86
        $region85: #{_lambda_.21} parent=73 // pred_region
          %v594 = vld [vmem:[#allocation3] sm:$0xff]
          %v595 = vld [vmem:[#allocation3 + $0x8] sm:$0xff]
          %v596 = vld [vmem:[#allocation3 + $0x10] sm:$0xff]
          %v597 = vld [vmem:[#allocation3 + $0x18] sm:$0xff]
          %v598 = vld [vmem:[%s2] sm:$0x1]
          %v600 = vlaneseq
          %v601 = vshrl.u32 %v600, 7
          %v602 = vsub.s32 0, %v601
          %v603 = vrot.slane %v598, %v602
          %v605 = vmul.f32 %v594, %v603
          %v606 = vmul.f32 %v595, %v603
          %v607 = vmul.f32 %v596, %v603
          %v608 = vmul.f32 %v597, %v603
          %v609 = vld [vmem:[%s3] sm:$0x1]
          %v611 = vlaneseq
          %v612 = vshrl.u32 %v611, 7
          %v613 = vsub.s32 0, %v612
          %v614 = vrot.slane %v609, %v613
          %v616 = vadd.f32 %v605, %v614
          %v617 = vadd.f32 %v606, %v614
          %v618 = vadd.f32 %v607, %v614
          %v619 = vadd.f32 %v608, %v614
          %v620 = vld [vmem:[%s359] sm:$0xff]
          %v621 = vld [vmem:[%s359 + $0x8] sm:$0xff]
          %v622 = vld [vmem:[%s359 + $0x10] sm:$0xff]
          %v623 = vld [vmem:[%s359 + $0x18] sm:$0xff]
          %v624 = vadd.f32 %v616, %v620
          %v625 = vadd.f32 %v617, %v621
          %v626 = vadd.f32 %v618, %v622
          %v627 = vadd.f32 %v619, %v623
          %628 = vst [vmem:[#allocation3] sm:$0xff] %v624
          %629 = vst [vmem:[#allocation3 + $0x8] sm:$0xff] %v625
          %630 = vst [vmem:[#allocation3 + $0x10] sm:$0xff] %v626
          %631 = vst [vmem:[#allocation3 + $0x18] sm:$0xff] %v627
          %vm632 = vcmp.ge.f32.partialorder %v624, 0.0
          %vm633 = vcmp.ge.f32.partialorder %v625, 0.0
          %vm634 = vcmp.ge.f32.partialorder %v626, 0.0
          %vm635 = vcmp.ge.f32.partialorder %v627, 0.0
          %v636 = vmul.f32 %v624, 0.01
          %v637 = vmul.f32 %v625, 0.01
          %v638 = vmul.f32 %v626, 0.01
          %v639 = vmul.f32 %v627, 0.01
          %v640 = vsel %vm632, %v624, %v636
          %v641 = vsel %vm633, %v625, %v637
          %v642 = vsel %vm634, %v626, %v638
          %v643 = vsel %vm635, %v627, %v639
          %644 = vst [vmem:[%s365] sm:$0xff] %v640
          %645 = vst [vmem:[%s365 + $0x8] sm:$0xff] %v641
          %646 = vst [vmem:[%s365 + $0x10] sm:$0xff] %v642
          %647 = vst [vmem:[%s365 + $0x18] sm:$0xff] %v643
        $region86: #{_lambda_.21} parent=73 // pred_fallthru
          _
        %s648 = smul.u32 4, %s23
        %p649 = scmp.lt.s32.totalorder %s648, 3
        %s650 = scalar_select %p649, %s648, 3
        %s651 = smul.addr %s650, 8
        %s652 = scalar_lea.vmem %s5, %s651
        // Predicated region
        $region87: #{_lambda_.21} parent=73 // pred_check
          %p653 = pneg %p171
        $region88: #{_lambda_.21} parent=73 // pred_check_branch
          %655 = sbr.rel (%p653) target = $region90
        $region89: #{_lambda_.21} parent=73 // pred_region
          %s656 = smul.u32 4, %s23
        $region90: #{_lambda_.21} parent=73 // pred_fallthru
          _
        // Predicated region
        $region91: #{_lambda_.21} parent=73 // pred_check
          %p657 = pneg %p197
        $region92: #{_lambda_.21} parent=73 // pred_check_branch
          %659 = sbr.rel (%p657) target = $region94
        $region93: #{_lambda_.21} parent=73 // pred_region
          %s660 = smul.u32 4, %s23
          %s662 = ssub.s32 512, 512
          %663 = vsyncadd [#allocation4], %s662
          %s664 = smul.addr %s660, 128
          %s665 = scalar_lea.hbm %s6, %s664
          %s666 = sshll.u32 [#allocation3], 4
          %s667 = int_to_ptr.vmem [resolvable:$true] %s666
          %672 = dma.vmem_to_hbm [thread:$0]  %s667, 512, %s665, [#allocation4], 128, 128, 8
        $region94: #{_lambda_.21} parent=73 // pred_fallthru
          _
        // Predicated region
        $region95: #{_lambda_.21} parent=73 // pred_check
          %p673 = pneg %p171
        $region96: #{_lambda_.21} parent=73 // pred_check_branch
          %675 = sbr.rel (%p673) target = $region98
        $region97: #{_lambda_.21} parent=73 // pred_region
          %s676 = smul.u32 4, %s23
          %p677 = scmp.lt.s32.totalorder %s676, 3
          %s678 = scalar_select %p677, %s676, 3
          %s679 = smul.addr %s678, 8
          %s680 = scalar_lea.vmem %s5, %s679
        $region98: #{_lambda_.21} parent=73 // pred_fallthru
          _
        // Predicated region
        $region99: #{_lambda_.21} parent=73 // pred_check
          %p681 = pneg %p197
        $region100: #{_lambda_.21} parent=73 // pred_check_branch
          %683 = sbr.rel (%p681) target = $region102
        $region101: #{_lambda_.21} parent=73 // pred_region
          %684 = dma.done [#allocation4], 512
        $region102: #{_lambda_.21} parent=73 // pred_fallthru
          _
      $region74: #{_lambda_.21} parent=5 // pred_fallthru
        _
      %p685 = scmp.le.s32.totalorder 2, %s14
      // Predicated region
      $region103: #{_lambda_.21} parent=5 // pred_check
        %p686 = pneg %p685
      $region104: #{_lambda_.21} parent=5 // pred_check_branch
        %688 = sbr.rel (%p686) target = $region106
      $region105: #{_lambda_.21} parent=5 // pred_region
        %s689 = ssub.s32 %s14, 2
      $region106: #{_lambda_.21} parent=5 // pred_fallthru
        _
    $region6: #{_lambda_.21} parent=1 // loop_footer
      %s18 = sadd.s32 1, %s14
    $region7: #{_lambda_.21} parent=1 // loop_footer_branch
      %13 = sbr.rel target = $region3
    $region8: #{_lambda_.21} parent=1 // loop_exit
      _
    %690 = vsyncpa [#allocation4], 1
    %s691 = scalar_lea.sflag [#allocation4], 1
    %692 = vsyncpa %s691, 1

// kernel: _lambda_.23
$region0: #{_lambda_.23}
  #allocation0 [shape = 'u32[]', space=smem, size = 0x4, offset = 0x4, fixed_abs, tag = 'smem constant byte address 0x4 - core index']
  #allocation1 [shape = 'u32[144,128]{1,0:T(1,128)}', space=vmem, size = 0x12000, scoped, tag = 'internal scratch']
  %s0 = inlined_call_operand.vmem [shape: bf16[8,1280], index: 0, kind: input, shape index: {}]
  %s1 = inlined_call_operand.vmem [shape: bf16[1280,256], index: 1, kind: input, shape index: {}]
  %s2 = inlined_call_operand.vmem [shape: f32[1,256], index: 2, kind: input, shape index: {}]
  %s3 = inlined_call_operand.vmem [shape: f32[1,256], index: 3, kind: input, shape index: {}]
  %s4 = inlined_call_operand.vmem [shape: f32[8,256], index: 4, kind: output, shape index: {}]
  %s5 = sld [smem:[#allocation0]]
  $region57: #{_lambda_.23} parent=0
    _
  %s7 = ssub.s32 1, %s5
  %s8 = scalar_select 0, %s7, %s5
  loop: start=0, step=1, limit=7
  $region2: #{_lambda_.23} parent=0 // loop_pre_header
    _
  $region3: #{_lambda_.23} parent=0 // loop_header
    %s10 = sphi 0, %s14
    %p11 = scmp.ge.s32.totalorder %s10, 7
    %s17 = sphi 0, %s29
    %s18 = sphi 0, %s25
    %s19 = sphi 0, %s17
    %s20 = sphi 0, %s18
    %s21 = sphi 0, %s19
    %s22 = sphi 0, %s20
    %s34 = sphi 0, %s36
    %s37 = sphi 0, %s34
    %s38 = sphi 0, %s37
    %s54 = sphi 0, %s38
    %s60 = sphi 0, %s62
    %s63 = sphi 0, %s60
    %s64 = sphi 0, %s63
    %s80 = sphi 0, %s64
    %s84 = sphi 0, %s84
    %s86 = sphi 0, %s84
    %s87 = sphi 0, %s86
    %s101 = sphi 0, %s87
    %s105 = sphi 0, %s105
    %s107 = sphi 0, %s105
    %s108 = sphi 0, %s107
    %s122 = sphi 0, %s108
    %s128 = sphi 0, %s130
    %s131 = sphi 0, %s128
    %s132 = sphi 0, %s131
    %s148 = sphi 0, %s132
  $region4: #{_lambda_.23} parent=0 // loop_header_branch
    %13 = sbr.rel (%p11) target = $region8
  $region5: #{_lambda_.23} parent=0 // loop_body
    %s15 = ssub.s32 %s10, 1
    %s16 = ssub.s32 %s10, 2
    %s23 = sadd.s32 1, %s18
    %p24 = scmp.ge.s32.totalorder %s23, 5
    %s25 = scalar_select %p24, 0, %s23
    %s26 = sadd.s32 1, %s17
    %s27 = scalar_select %p24, %s26, %s17
    %p28 = scmp.ge.s32.totalorder %s27, 1
    %s29 = scalar_select %p28, 0, %s27
    %s30 = ssub.s32 %s17, %s29
    %s31 = ssub.s32 %s18, %s25
    %s32 = sor.u32 %s30, %s31
    %p33 = scmp.eq.s32.totalorder %s32, 0
    %s35 = sadd.s32 %s34, 1
    %s36 = scalar_select %p33, %s34, %s35
    %p39 = pneg %p33
    %p40 = scmp.eq.s32.totalorder %s10, 4
    %p41 = por %p39, %p40
    %p42 = scmp.ne.s32.totalorder %s34, %s37
    %p43 = scmp.eq.s32.totalorder %s10, 0
    %p44 = por %p42, %p43
    %p45 = scmp.ne.s32.totalorder %s34, %s37
    %p46 = scmp.eq.s32.totalorder %s15, 4
    %p47 = por %p45, %p46
    %p48 = scmp.ne.s32.totalorder %s37, %s38
    %p49 = scmp.eq.s32.totalorder %s15, 0
    %p50 = por %p48, %p49
    %p51 = scmp.ne.s32.totalorder %s37, %s38
    %p52 = scmp.eq.s32.totalorder %s16, 4
    %p53 = por %p51, %p52
    %p55 = scmp.ne.s32.totalorder %s38, %s54
    %p56 = scmp.eq.s32.totalorder %s16, 0
    %p57 = por %p55, %p56
    %s58 = ssub.s32 %s18, %s25
    %p59 = scmp.eq.s32.totalorder %s58, 0
    %s61 = sadd.s32 %s60, 1
    %s62 = scalar_select %p59, %s60, %s61
    %p65 = pneg %p59
    %p66 = scmp.eq.s32.totalorder %s10, 4
    %p67 = por %p65, %p66
    %p68 = scmp.ne.s32.totalorder %s60, %s63
    %p69 = scmp.eq.s32.totalorder %s10, 0
    %p70 = por %p68, %p69
    %p71 = scmp.ne.s32.totalorder %s60, %s63
    %p72 = scmp.eq.s32.totalorder %s15, 4
    %p73 = por %p71, %p72
    %p74 = scmp.ne.s32.totalorder %s63, %s64
    %p75 = scmp.eq.s32.totalorder %s15, 0
    %p76 = por %p74, %p75
    %p77 = scmp.ne.s32.totalorder %s63, %s64
    %p78 = scmp.eq.s32.totalorder %s16, 4
    %p79 = por %p77, %p78
    %p81 = scmp.ne.s32.totalorder %s64, %s80
    %p82 = scmp.eq.s32.totalorder %s16, 0
    %p83 = por %p81, %p82
    %s85 = sadd.s32 %s84, 1
    %p88 = scmp.eq.s32.totalorder %s10, 4
    %p89 = scmp.ne.s32.totalorder %s84, %s86
    %p90 = scmp.eq.s32.totalorder %s10, 0
    %p91 = por %p89, %p90
    %p92 = scmp.ne.s32.totalorder %s84, %s86
    %p93 = scmp.eq.s32.totalorder %s15, 4
    %p94 = por %p92, %p93
    %p95 = scmp.ne.s32.totalorder %s86, %s87
    %p96 = scmp.eq.s32.totalorder %s15, 0
    %p97 = por %p95, %p96
    %p98 = scmp.ne.s32.totalorder %s86, %s87
    %p99 = scmp.eq.s32.totalorder %s16, 4
    %p100 = por %p98, %p99
    %p102 = scmp.ne.s32.totalorder %s87, %s101
    %p103 = scmp.eq.s32.totalorder %s16, 0
    %p104 = por %p102, %p103
    %s106 = sadd.s32 %s105, 1
    %p109 = scmp.eq.s32.totalorder %s10, 4
    %p110 = scmp.ne.s32.totalorder %s105, %s107
    %p111 = scmp.eq.s32.totalorder %s10, 0
    %p112 = por %p110, %p111
    %p113 = scmp.ne.s32.totalorder %s105, %s107
    %p114 = scmp.eq.s32.totalorder %s15, 4
    %p115 = por %p113, %p114
    %p116 = scmp.ne.s32.totalorder %s107, %s108
    %p117 = scmp.eq.s32.totalorder %s15, 0
    %p118 = por %p116, %p117
    %p119 = scmp.ne.s32.totalorder %s107, %s108
    %p120 = scmp.eq.s32.totalorder %s16, 4
    %p121 = por %p119, %p120
    %p123 = scmp.ne.s32.totalorder %s108, %s122
    %p124 = scmp.eq.s32.totalorder %s16, 0
    %p125 = por %p123, %p124
    %s126 = ssub.s32 %s17, %s29
    %p127 = scmp.eq.s32.totalorder %s126, 0
    %s129 = sadd.s32 %s128, 1
    %s130 = scalar_select %p127, %s128, %s129
    %p133 = pneg %p127
    %p134 = scmp.eq.s32.totalorder %s10, 4
    %p135 = por %p133, %p134
    %p136 = scmp.ne.s32.totalorder %s128, %s131
    %p137 = scmp.eq.s32.totalorder %s10, 0
    %p138 = por %p136, %p137
    %p139 = scmp.ne.s32.totalorder %s128, %s131
    %p140 = scmp.eq.s32.totalorder %s15, 4
    %p141 = por %p139, %p140
    %p142 = scmp.ne.s32.totalorder %s131, %s132
    %p143 = scmp.eq.s32.totalorder %s15, 0
    %p144 = por %p142, %p143
    %p145 = scmp.ne.s32.totalorder %s131, %s132
    %p146 = scmp.eq.s32.totalorder %s16, 4
    %p147 = por %p145, %p146
    %p149 = scmp.ne.s32.totalorder %s132, %s148
    %p150 = scmp.eq.s32.totalorder %s16, 0
    %p151 = por %p149, %p150
    %p152 = scmp.le.s32.totalorder 1, %s10
    %p153 = scmp.lt.s32.totalorder %s10, 6
    %p154 = pnand %p152, %p153
    %p155 = pneg %p154
    // Predicated region
    $region9: #{_lambda_.23} parent=5 // pred_check
      _
    $region10: #{_lambda_.23} parent=5 // pred_check_branch
      %157 = sbr.rel (%p154) target = $region12
    $region11: #{_lambda_.23} parent=5 // pred_region
      %s158 = ssub.s32 %s10, 1
      // Predicated region
      $region13: #{_lambda_.23} parent=11 // pred_check
        %p159 = pneg %p97
      $region14: #{_lambda_.23} parent=11 // pred_check_branch
        %161 = sbr.rel (%p159) target = $region16
      $region15: #{_lambda_.23} parent=11 // pred_region
        _
      $region16: #{_lambda_.23} parent=11 // pred_fallthru
        _
      // Predicated region
      $region17: #{_lambda_.23} parent=11 // pred_check
        %p162 = pneg %p118
      $region18: #{_lambda_.23} parent=11 // pred_check_branch
        %164 = sbr.rel (%p162) target = $region20
      $region19: #{_lambda_.23} parent=11 // pred_region
        _
      $region20: #{_lambda_.23} parent=11 // pred_fallthru
        _
    $region12: #{_lambda_.23} parent=5 // pred_fallthru
      _
    %p165 = scmp.lt.s32.totalorder %s10, 5
    // Predicated region
    $region21: #{_lambda_.23} parent=5 // pred_check
      %p166 = pneg %p165
    $region22: #{_lambda_.23} parent=5 // pred_check_branch
      %168 = sbr.rel (%p166) target = $region24
    $region23: #{_lambda_.23} parent=5 // pred_region
      // Predicated region
      $region25: #{_lambda_.23} parent=23 // pred_check
        %p169 = pneg %p44
      $region26: #{_lambda_.23} parent=23 // pred_check_branch
        %171 = sbr.rel (%p169) target = $region28
      $region27: #{_lambda_.23} parent=23 // pred_region
        %s172 = smul.u32 2, %s18
        %p173 = scmp.lt.s32.totalorder %s17, 0
        %s174 = scalar_select %p173, %s17, 0
        %p175 = scmp.lt.s32.totalorder %s172, 9
        %s176 = scalar_select %p175, %s172, 9
        %s177 = smul.addr %s174, 10
        %s178 = sadd.s32 %s176, %s177
        %s179 = smul.addr %s178, 4
        %s180 = scalar_lea.vmem %s0, %s179
        %s181 = smul.u32 2, %s18
      $region28: #{_lambda_.23} parent=23 // pred_fallthru
        _
      // Predicated region
      $region29: #{_lambda_.23} parent=23 // pred_check
        %p182 = pneg %p70
      $region30: #{_lambda_.23} parent=23 // pred_check_branch
        %184 = sbr.rel (%p182) target = $region32
      $region31: #{_lambda_.23} parent=23 // pred_region
        %s185 = smul.u32 32, %s18
        %p186 = scmp.lt.s32.totalorder %s185, 159
        %s187 = scalar_select %p186, %s185, 159
        %s188 = smul.addr %s187, 2
        %s189 = smul.addr %s188, 4
        %s190 = scalar_lea.vmem %s1, %s189
        %s191 = smul.u32 32, %s18
      $region32: #{_lambda_.23} parent=23 // pred_fallthru
        _
    $region24: #{_lambda_.23} parent=5 // pred_fallthru
      _
    %p192 = scmp.le.s32.totalorder 1, %s10
    %p193 = scmp.lt.s32.totalorder %s10, 6
    %p194 = pnand %p192, %p193
    %p195 = pneg %p194
    // Predicated region
    $region33: #{_lambda_.23} parent=5 // pred_check
      _
    $region34: #{_lambda_.23} parent=5 // pred_check_branch
      %197 = sbr.rel (%p194) target = $region36
    $region35: #{_lambda_.23} parent=5 // pred_region
      %s198 = ssub.s32 %s10, 1
      %s199 = smul.u32 2, %s20
      %p200 = scmp.lt.s32.totalorder %s19, 0
      %s201 = scalar_select %p200, %s19, 0
      %p202 = scmp.lt.s32.totalorder %s199, 9
      %s203 = scalar_select %p202, %s199, 9
      %s204 = smul.addr %s201, 10
      %s205 = sadd.s32 %s203, %s204
      %s206 = smul.addr %s205, 4
      %s207 = scalar_lea.vmem %s0, %s206
      %p208 = pneg %p50
      %p209 = pneg %p47
      %s210 = smul.u32 32, %s20
      %p211 = scmp.lt.s32.totalorder %s210, 159
      %s212 = scalar_select %p211, %s210, 159
      %s213 = smul.addr %s212, 2
      %s214 = smul.addr %s213, 4
      %s215 = scalar_lea.vmem %s1, %s214
      %p216 = pneg %p76
      %p217 = pneg %p73
      %p218 = pneg %p97
      %p219 = pneg %p94
      %p220 = pneg %p118
      %p221 = pneg %p115
      %p222 = pneg %p144
      %p223 = pneg %p141
      %p224 = scmp.lt.s32.totalorder %s19, 0
      %s225 = scalar_select %p224, %s19, 0
      %s226 = smul.addr %s225, 2
      %s227 = smul.addr %s226, 8
      %s228 = scalar_lea.vmem %s4, %s227
      %s229 = smul.u32 2, %s20
      %p230 = scmp.lt.s32.totalorder %s19, 0
      %s231 = scalar_select %p230, %s19, 0
      %p232 = scmp.lt.s32.totalorder %s229, 9
      %s233 = scalar_select %p232, %s229, 9
      %s234 = smul.addr %s231, 10
      %s235 = sadd.s32 %s233, %s234
      %s236 = smul.addr %s235, 4
      %s237 = scalar_lea.vmem %s0, %s236
      %s238 = smul.u32 2, %s20
      %s239 = smul.u32 32, %s20
      %p240 = scmp.lt.s32.totalorder %s239, 159
      %s241 = scalar_select %p240, %s239, 159
      %s242 = smul.addr %s241, 2
      %s243 = smul.addr %s242, 4
      %s244 = scalar_lea.vmem %s1, %s243
      %s245 = smul.u32 32, %s20
      %p246 = scmp.lt.s32.totalorder %s19, 0
      %s247 = scalar_select %p246, %s19, 0
      %s248 = smul.addr %s247, 2
      %s249 = smul.addr %s248, 8
      %s250 = scalar_lea.vmem %s4, %s249
      %p251 = scmp.eq.s32.totalorder %s20, 0
      // Predicated region
      $region37: #{_lambda_.23} parent=35 // pred_check
        %p252 = pneg %p251
      $region38: #{_lambda_.23} parent=35 // pred_check_branch
        %254 = sbr.rel (%p252) target = $region40
      $region39: #{_lambda_.23} parent=35 // pred_region
        %255 = vst [vmem:[%s250] sm:$0xff] 0.0
        %256 = vst [vmem:[%s250 + $0x8] sm:$0xff] 0.0
      $region40: #{_lambda_.23} parent=35 // pred_fallthru
        _
      %v257 = vld [vmem:[%s250] sm:$0xff]
      %v258 = vld [vmem:[%s250 + $0x8] sm:$0xff]
      %v259 = vld [vmem:[%s237] sm:$0xff]
      %v260 = vld [vmem:[%s244] sm:$0xff]
      %v261 = vld [vmem:[%s244 + $0x8] sm:$0xff]
      %v262 = vld [vmem:[%s244 + $0x10] sm:$0xff]
      %v263 = vld [vmem:[%s244 + $0x18] sm:$0xff]
      %v264 = vld [vmem:[%s244 + $0x20] sm:$0xff]
      %v265 = vld [vmem:[%s244 + $0x28] sm:$0xff]
      %v266 = vld [vmem:[%s244 + $0x30] sm:$0xff]
      %v267 = vld [vmem:[%s244 + $0x38] sm:$0xff]
      %v268 = vld [vmem:[%s244 + $0x40] sm:$0xff]
      %v269 = vld [vmem:[%s244 + $0x48] sm:$0xff]
      %v270 = vld [vmem:[%s244 + $0x50] sm:$0xff]
      %v271 = vld [vmem:[%s244 + $0x58] sm:$0xff]
      %v272 = vld [vmem:[%s244 + $0x60] sm:$0xff]
      %v273 = vld [vmem:[%s244 + $0x68] sm:$0xff]
      %v274 = vld [vmem:[%s244 + $0x70] sm:$0xff]
      %v275 = vld [vmem:[%s244 + $0x78] sm:$0xff]
      %v276 = vld [vmem:[%s244 + $0x80] sm:$0xff]
      %v277 = vld [vmem:[%s244 + $0x88] sm:$0xff]
      %v278 = vld [vmem:[%s244 + $0x90] sm:$0xff]
      %v279 = vld [vmem:[%s244 + $0x98] sm:$0xff]
      %v280 = vld [vmem:[%s244 + $0xa0] sm:$0xff]
      %v281 = vld [vmem:[%s244 + $0xa8] sm:$0xff]
      %v282 = vld [vmem:[%s244 + $0xb0] sm:$0xff]
      %v283 = vld [vmem:[%s244 + $0xb8] sm:$0xff]
      %v284 = vld [vmem:[%s244 + $0xc0] sm:$0xff]
      %v285 = vld [vmem:[%s244 + $0xc8] sm:$0xff]
      %v286 = vld [vmem:[%s244 + $0xd0] sm:$0xff]
      %v287 = vld [vmem:[%s244 + $0xd8] sm:$0xff]
      %v288 = vld [vmem:[%s244 + $0xe0] sm:$0xff]
      %v289 = vld [vmem:[%s244 + $0xe8] sm:$0xff]
      %v290 = vld [vmem:[%s244 + $0xf0] sm:$0xff]
      %v291 = vld [vmem:[%s244 + $0xf8] sm:$0xff]
      %v293 = vunpack.c.l.b16 %v259
      %v294 = vunpack.c.h.b16 %v259
      %v295 = vpack.c.b16 %v293, %v293
      %v296 = vpack.c.b16 %v294, %v294
      %v331 = vunpack.c.l.b16 %v260
      %v332 = vunpack.c.h.b16 %v260
      %v333 = vunpack.c.l.b16 %v261
      %v334 = vunpack.c.h.b16 %v261
      %v335 = vunpack.c.l.b16 %v262
      %v336 = vunpack.c.h.b16 %v262
      %v337 = vunpack.c.l.b16 %v263
      %v338 = vunpack.c.h.b16 %v263
      %v339 = vunpack.c.l.b16 %v264
      %v340 = vunpack.c.h.b16 %v264
      %v341 = vunpack.c.l.b16 %v265
      %v342 = vunpack.c.h.b16 %v265
      %v343 = vunpack.c.l.b16 %v266
      %v344 = vunpack.c.h.b16 %v266
      %v345 = vunpack.c.l.b16 %v267
      %v346 = vunpack.c.h.b16 %v267
      %v347 = vunpack.c.l.b16 %v268
      %v348 = vunpack.c.h.b16 %v268
      %v349 = vunpack.c.l.b16 %v269
      %v350 = vunpack.c.h.b16 %v269
      %v351 = vunpack.c.l.b16 %v270
      %v352 = vunpack.c.h.b16 %v270
      %v353 = vunpack.c.l.b16 %v271
      %v354 = vunpack.c.h.b16 %v271
      %v355 = vunpack.c.l.b16 %v272
      %v356 = vunpack.c.h.b16 %v272
      %v357 = vunpack.c.l.b16 %v273
      %v358 = vunpack.c.h.b16 %v273
      %v359 = vunpack.c.l.b16 %v274
      %v360 = vunpack.c.h.b16 %v274
      %v361 = vunpack.c.l.b16 %v275
      %v362 = vunpack.c.h.b16 %v275
      %v363 = vunpack.c.l.b16 %v276
      %v364 = vunpack.c.h.b16 %v276
      %v365 = vunpack.c.l.b16 %v277
      %v366 = vunpack.c.h.b16 %v277
      %v367 = vunpack.c.l.b16 %v278
      %v368 = vunpack.c.h.b16 %v278
      %v369 = vunpack.c.l.b16 %v279
      %v370 = vunpack.c.h.b16 %v279
      %v371 = vunpack.c.l.b16 %v280
      %v372 = vunpack.c.h.b16 %v280
      %v373 = vunpack.c.l.b16 %v281
      %v374 = vunpack.c.h.b16 %v281
      %v375 = vunpack.c.l.b16 %v282
      %v376 = vunpack.c.h.b16 %v282
      %v377 = vunpack.c.l.b16 %v283
      %v378 = vunpack.c.h.b16 %v283
      %v379 = vunpack.c.l.b16 %v284
      %v380 = vunpack.c.h.b16 %v284
      %v381 = vunpack.c.l.b16 %v285
      %v382 = vunpack.c.h.b16 %v285
      %v383 = vunpack.c.l.b16 %v286
      %v384 = vunpack.c.h.b16 %v286
      %v385 = vunpack.c.l.b16 %v287
      %v386 = vunpack.c.h.b16 %v287
      %v387 = vunpack.c.l.b16 %v288
      %v388 = vunpack.c.h.b16 %v288
      %v389 = vunpack.c.l.b16 %v289
      %v390 = vunpack.c.h.b16 %v289
      %v391 = vunpack.c.l.b16 %v290
      %v392 = vunpack.c.h.b16 %v290
      %v393 = vunpack.c.l.b16 %v291
      %v394 = vunpack.c.h.b16 %v291
      %v395 = vpack.c.b16 %v333, %v331
      %v396 = vpack.c.b16 %v334, %v332
      %v397 = vpack.c.b16 %v337, %v335
      %v398 = vpack.c.b16 %v338, %v336
      %v399 = vpack.c.b16 %v341, %v339
      %v400 = vpack.c.b16 %v342, %v340
      %v401 = vpack.c.b16 %v345, %v343
      %v402 = vpack.c.b16 %v346, %v344
      %v403 = vpack.c.b16 %v349, %v347
      %v404 = vpack.c.b16 %v350, %v348
      %v405 = vpack.c.b16 %v353, %v351
      %v406 = vpack.c.b16 %v354, %v352
      %v407 = vpack.c.b16 %v357, %v355
      %v408 = vpack.c.b16 %v358, %v356
      %v409 = vpack.c.b16 %v361, %v359
      %v410 = vpack.c.b16 %v362, %v360
      %v411 = vpack.c.b16 %v365, %v363
      %v412 = vpack.c.b16 %v366, %v364
      %v413 = vpack.c.b16 %v369, %v367
      %v414 = vpack.c.b16 %v370, %v368
      %v415 = vpack.c.b16 %v373, %v371
      %v416 = vpack.c.b16 %v374, %v372
      %v417 = vpack.c.b16 %v377, %v375
      %v418 = vpack.c.b16 %v378, %v376
      %v419 = vpack.c.b16 %v381, %v379
      %v420 = vpack.c.b16 %v382, %v380
      %v421 = vpack.c.b16 %v385, %v383
      %v422 = vpack.c.b16 %v386, %v384
      %v423 = vpack.c.b16 %v389, %v387
      %v424 = vpack.c.b16 %v390, %v388
      %v425 = vpack.c.b16 %v393, %v391
      %v426 = vpack.c.b16 %v394, %v392
      %459 = vmatprep.subr.bf16.mxu0 %v396
      %460 = vmatpush1.bf16.msra.mxu0 %v395
      %461 = vmatprep.subr.bf16.mxu0 %v398
      %462 = vmatpush1.bf16.msra.mxu0 %v397
      %463 = vmatprep.subr.bf16.mxu0 %v400
      %464 = vmatpush1.bf16.msra.mxu0 %v399
      %465 = vmatprep.subr.bf16.mxu0 %v402
      %466 = vmatpush1.bf16.msra.mxu0 %v401
      %467 = vmatprep.subr.bf16.mxu0 %v404
      %468 = vmatpush1.bf16.msra.mxu0 %v403
      %469 = vmatprep.subr.bf16.mxu0 %v406
      %470 = vmatpush1.bf16.msra.mxu0 %v405
      %471 = vmatprep.subr.bf16.mxu0 %v408
      %472 = vmatpush1.bf16.msra.mxu0 %v407
      %473 = vmatprep.subr.bf16.mxu0 %v410
      %474 = vmatpush1.bf16.msra.mxu0 %v409
      %475 = vmatprep.subr.bf16.mxu0 %v412
      %476 = vmatpush1.bf16.msra.mxu0 %v411
      %477 = vmatprep.subr.bf16.mxu0 %v414
      %478 = vmatpush1.bf16.msra.mxu0 %v413
      %479 = vmatprep.subr.bf16.mxu0 %v416
      %480 = vmatpush1.bf16.msra.mxu0 %v415
      %481 = vmatprep.subr.bf16.mxu0 %v418
      %482 = vmatpush1.bf16.msra.mxu0 %v417
      %483 = vmatprep.subr.bf16.mxu0 %v420
      %484 = vmatpush1.bf16.msra.mxu0 %v419
      %485 = vmatprep.subr.bf16.mxu0 %v422
      %486 = vmatpush1.bf16.msra.mxu0 %v421
      %487 = vmatprep.subr.bf16.mxu0 %v424
      %488 = vmatpush1.bf16.msra.mxu0 %v423
      %489 = vmatprep.subr.bf16.mxu0 %v426
      %490 = vmatpush1.bf16.msra.mxu0 %v425
      %491 = vmatprep.mubr.bf16.mxu0 %v296
      %492 = vmatmul.mubr.bf16.gmra.mrb[0].mxu0 %v295
      %v493 = vpop.f32.mrb[0].mxu0
      %v494 = vadd.f32 0.0, %v493
      %v495 = vpop.f32.mrb[0].mxu0
      %v496 = vadd.f32 0.0, %v495
      %v497 = vpop.f32.mrb[0].mxu0
      %v498 = vpop.f32.mrb[0].mxu0
      %499 = vdwg.mxu0
      %v500 = vadd.f32 %v257, %v494
      %v501 = vadd.f32 %v258, %v496
      %502 = vst [vmem:[%s250] sm:$0xff] %v500
      %503 = vst [vmem:[%s250 + $0x8] sm:$0xff] %v501
      %p504 = scmp.eq.s32.totalorder %s20, 4
      // Predicated region
      $region41: #{_lambda_.23} parent=35 // pred_check
        %p505 = pneg %p504
      $region42: #{_lambda_.23} parent=35 // pred_check_branch
        %507 = sbr.rel (%p505) target = $region44
      $region43: #{_lambda_.23} parent=35 // pred_region
        %v508 = vld [vmem:[%s250] sm:$0xff]
        %v509 = vld [vmem:[%s250 + $0x8] sm:$0xff]
        %v510 = vld [vmem:[%s2] sm:$0x3]
        %v512 = vlaneseq
        %v513 = vshrl.u32 %v512, 7
        %v514 = vsub.s32 0, %v513
        %v515 = vrot.slane %v510, %v514
        %v516 = vlaneseq
        %v517 = vshrl.u32 %v516, 7
        %v518 = vsub.s32 1, %v517
        %v519 = vrot.slane %v510, %v518
        %v522 = vmul.f32 %v508, %v515
        %v523 = vmul.f32 %v509, %v519
        %v524 = vld [vmem:[%s3] sm:$0x3]
        %v526 = vlaneseq
        %v527 = vshrl.u32 %v526, 7
        %v528 = vsub.s32 0, %v527
        %v529 = vrot.slane %v524, %v528
        %v530 = vlaneseq
        %v531 = vshrl.u32 %v530, 7
        %v532 = vsub.s32 1, %v531
        %v533 = vrot.slane %v524, %v532
        %v536 = vadd.f32 %v522, %v529
        %v537 = vadd.f32 %v523, %v533
        %vm538 = vcmp.ge.f32.partialorder %v536, 0.0
        %vm539 = vcmp.ge.f32.partialorder %v537, 0.0
        %v540 = vmul.f32 %v536, 0.01
        %v541 = vmul.f32 %v537, 0.01
        %v542 = vsel %vm538, %v536, %v540
        %v543 = vsel %vm539, %v537, %v541
        %544 = vst [vmem:[%s250] sm:$0xff] %v542
        %545 = vst [vmem:[%s250 + $0x8] sm:$0xff] %v543
      $region44: #{_lambda_.23} parent=35 // pred_fallthru
        _
      %p546 = scmp.lt.s32.totalorder %s19, 0
      %s547 = scalar_select %p546, %s19, 0
      %s548 = smul.addr %s547, 2
      %s549 = smul.addr %s548, 8
      %s550 = scalar_lea.vmem %s4, %s549
      // Predicated region
      $region45: #{_lambda_.23} parent=35 // pred_check
        %p551 = pneg %p141
      $region46: #{_lambda_.23} parent=35 // pred_check_branch
        %553 = sbr.rel (%p551) target = $region48
      $region47: #{_lambda_.23} parent=35 // pred_region
        _
      $region48: #{_lambda_.23} parent=35 // pred_fallthru
        _
      // Predicated region
      $region49: #{_lambda_.23} parent=35 // pred_check
        %p554 = pneg %p141
      $region50: #{_lambda_.23} parent=35 // pred_check_branch
        %556 = sbr.rel (%p554) target = $region52
      $region51: #{_lambda_.23} parent=35 // pred_region
        %p557 = scmp.lt.s32.totalorder %s19, 0
        %s558 = scalar_select %p557, %s19, 0
        %s559 = smul.addr %s558, 2
        %s560 = smul.addr %s559, 8
        %s561 = scalar_lea.vmem %s4, %s560
      $region52: #{_lambda_.23} parent=35 // pred_fallthru
        _
    $region36: #{_lambda_.23} parent=5 // pred_fallthru
      _
    %p562 = scmp.le.s32.totalorder 2, %s10
    // Predicated region
    $region53: #{_lambda_.23} parent=5 // pred_check
      %p563 = pneg %p562
    $region54: #{_lambda_.23} parent=5 // pred_check_branch
      %565 = sbr.rel (%p563) target = $region56
    $region55: #{_lambda_.23} parent=5 // pred_region
      %s566 = ssub.s32 %s10, 2
    $region56: #{_lambda_.23} parent=5 // pred_fallthru
      _
  $region6: #{_lambda_.23} parent=0 // loop_footer
    %s14 = sadd.s32 1, %s10
  $region7: #{_lambda_.23} parent=0 // loop_footer_branch
    %9 = sbr.rel target = $region3
  $region8: #{_lambda_.23} parent=0 // loop_exit
    _

// kernel: _lambda_.22
$region0: #{_lambda_.22}
  #allocation0 [shape = 'u32[]', space=smem, size = 0x4, offset = 0x4, fixed_abs, tag = 'smem constant byte address 0x4 - core index']
  #allocation1 [shape = 'u32[144,128]{1,0:T(1,128)}', space=vmem, size = 0x12000, scoped, tag = 'internal scratch']
  %s0 = inlined_call_operand.vmem [shape: f32[8,128], index: 0, kind: input, shape index: {}]
  %s1 = inlined_call_operand.vmem [shape: bf16[128,256], index: 1, kind: input, shape index: {}]
  %s2 = inlined_call_operand.vmem [shape: f32[1,256], index: 2, kind: input, shape index: {}]
  %s3 = inlined_call_operand.vmem [shape: f32[1,256], index: 3, kind: input, shape index: {}]
  %s4 = inlined_call_operand.vmem [shape: f32[8,256], index: 4, kind: output, shape index: {}]
  %s5 = sld [smem:[#allocation0]]
  $region34: #{_lambda_.22} parent=0
    _
  %s7 = ssub.s32 1, %s5
  %s8 = scalar_select 0, %s7, %s5
  // Predicated region
  $region2: #{_lambda_.22} parent=0 // pred_check
    _
  $region3: #{_lambda_.22} parent=0 // pred_check_branch
    %10 = sbr.rel (0) target = $region5
  $region4: #{_lambda_.22} parent=0 // pred_region
    _
  $region5: #{_lambda_.22} parent=0 // pred_fallthru
    _
  // Predicated region
  $region6: #{_lambda_.22} parent=0 // pred_check
    _
  $region7: #{_lambda_.22} parent=0 // pred_check_branch
    %12 = sbr.rel (0) target = $region9
  $region8: #{_lambda_.22} parent=0 // pred_region
    _
  $region9: #{_lambda_.22} parent=0 // pred_fallthru
    _
  // Predicated region
  $region10: #{_lambda_.22} parent=0 // pred_check
    _
  $region11: #{_lambda_.22} parent=0 // pred_check_branch
    %14 = sbr.rel (0) target = $region13
  $region12: #{_lambda_.22} parent=0 // pred_region
    _
  $region13: #{_lambda_.22} parent=0 // pred_fallthru
    _
  // Predicated region
  $region14: #{_lambda_.22} parent=0 // pred_check
    _
  $region15: #{_lambda_.22} parent=0 // pred_check_branch
    %16 = sbr.rel (0) target = $region17
  $region16: #{_lambda_.22} parent=0 // pred_region
    _
  $region17: #{_lambda_.22} parent=0 // pred_fallthru
    _
  %p18 = scmp.eq.s32.totalorder 0, 0
  // Predicated region
  $region18: #{_lambda_.22} parent=0 // pred_check
    %p19 = pneg %p18
  $region19: #{_lambda_.22} parent=0 // pred_check_branch
    %21 = sbr.rel (%p19) target = $region21
  $region20: #{_lambda_.22} parent=0 // pred_region
    %22 = vst [vmem:[%s4] sm:$0xff] 0.0
    %23 = vst [vmem:[%s4 + $0x8] sm:$0xff] 0.0
  $region21: #{_lambda_.22} parent=0 // pred_fallthru
    _
  %v24 = vld [vmem:[%s4] sm:$0xff]
  %v25 = vld [vmem:[%s4 + $0x8] sm:$0xff]
  %v26 = vld [vmem:[%s0] sm:$0xff]
  %v27 = vpack.c.bf16 %v26, %v26
  %v28 = vld [vmem:[%s1] sm:$0xff]
  %v29 = vld [vmem:[%s1 + $0x8] sm:$0xff]
  %v30 = vld [vmem:[%s1 + $0x10] sm:$0xff]
  %v31 = vld [vmem:[%s1 + $0x18] sm:$0xff]
  %v32 = vld [vmem:[%s1 + $0x20] sm:$0xff]
  %v33 = vld [vmem:[%s1 + $0x28] sm:$0xff]
  %v34 = vld [vmem:[%s1 + $0x30] sm:$0xff]
  %v35 = vld [vmem:[%s1 + $0x38] sm:$0xff]
  %v36 = vld [vmem:[%s1 + $0x40] sm:$0xff]
  %v37 = vld [vmem:[%s1 + $0x48] sm:$0xff]
  %v38 = vld [vmem:[%s1 + $0x50] sm:$0xff]
  %v39 = vld [vmem:[%s1 + $0x58] sm:$0xff]
  %v40 = vld [vmem:[%s1 + $0x60] sm:$0xff]
  %v41 = vld [vmem:[%s1 + $0x68] sm:$0xff]
  %v42 = vld [vmem:[%s1 + $0x70] sm:$0xff]
  %v43 = vld [vmem:[%s1 + $0x78] sm:$0xff]
  %v60 = vunpack.c.l.b16 %v28
  %v61 = vunpack.c.h.b16 %v28
  %v62 = vunpack.c.l.b16 %v29
  %v63 = vunpack.c.h.b16 %v29
  %v64 = vunpack.c.l.b16 %v30
  %v65 = vunpack.c.h.b16 %v30
  %v66 = vunpack.c.l.b16 %v31
  %v67 = vunpack.c.h.b16 %v31
  %v68 = vunpack.c.l.b16 %v32
  %v69 = vunpack.c.h.b16 %v32
  %v70 = vunpack.c.l.b16 %v33
  %v71 = vunpack.c.h.b16 %v33
  %v72 = vunpack.c.l.b16 %v34
  %v73 = vunpack.c.h.b16 %v34
  %v74 = vunpack.c.l.b16 %v35
  %v75 = vunpack.c.h.b16 %v35
  %v76 = vunpack.c.l.b16 %v36
  %v77 = vunpack.c.h.b16 %v36
  %v78 = vunpack.c.l.b16 %v37
  %v79 = vunpack.c.h.b16 %v37
  %v80 = vunpack.c.l.b16 %v38
  %v81 = vunpack.c.h.b16 %v38
  %v82 = vunpack.c.l.b16 %v39
  %v83 = vunpack.c.h.b16 %v39
  %v84 = vunpack.c.l.b16 %v40
  %v85 = vunpack.c.h.b16 %v40
  %v86 = vunpack.c.l.b16 %v41
  %v87 = vunpack.c.h.b16 %v41
  %v88 = vunpack.c.l.b16 %v42
  %v89 = vunpack.c.h.b16 %v42
  %v90 = vunpack.c.l.b16 %v43
  %v91 = vunpack.c.h.b16 %v43
  %v92 = vpack.c.b16 %v62, %v60
  %v93 = vpack.c.b16 %v63, %v61
  %v94 = vpack.c.b16 %v66, %v64
  %v95 = vpack.c.b16 %v67, %v65
  %v96 = vpack.c.b16 %v70, %v68
  %v97 = vpack.c.b16 %v71, %v69
  %v98 = vpack.c.b16 %v74, %v72
  %v99 = vpack.c.b16 %v75, %v73
  %v100 = vpack.c.b16 %v78, %v76
  %v101 = vpack.c.b16 %v79, %v77
  %v102 = vpack.c.b16 %v82, %v80
  %v103 = vpack.c.b16 %v83, %v81
  %v104 = vpack.c.b16 %v86, %v84
  %v105 = vpack.c.b16 %v87, %v85
  %v106 = vpack.c.b16 %v90, %v88
  %v107 = vpack.c.b16 %v91, %v89
  %124 = vmatprep.subr.bf16.mxu0 %v93
  %125 = vmatpush1.bf16.msra.mxu0 %v92
  %126 = vmatprep.subr.bf16.mxu0 %v95
  %127 = vmatpush1.bf16.msra.mxu0 %v94
  %128 = vmatprep.subr.bf16.mxu0 %v97
  %129 = vmatpush1.bf16.msra.mxu0 %v96
  %130 = vmatprep.subr.bf16.mxu0 %v99
  %131 = vmatpush1.bf16.msra.mxu0 %v98
  %132 = vmatprep.subr.bf16.mxu0 %v101
  %133 = vmatpush1.bf16.msra.mxu0 %v100
  %134 = vmatprep.subr.bf16.mxu0 %v103
  %135 = vmatpush1.bf16.msra.mxu0 %v102
  %136 = vmatprep.subr.bf16.mxu0 %v105
  %137 = vmatpush1.bf16.msra.mxu0 %v104
  %138 = vmatprep.subr.bf16.mxu0 %v107
  %139 = vmatpush1.bf16.msra.mxu0 %v106
  %140 = vmatprep.subr.bf16.mxu0 0
  %141 = vmatpush1.bf16.msra.mxu0 0
  %142 = vmatprep.subr.bf16.mxu0 0
  %143 = vmatpush1.bf16.msra.mxu0 0
  %144 = vmatprep.subr.bf16.mxu0 0
  %145 = vmatpush1.bf16.msra.mxu0 0
  %146 = vmatprep.subr.bf16.mxu0 0
  %147 = vmatpush1.bf16.msra.mxu0 0
  %148 = vmatprep.subr.bf16.mxu0 0
  %149 = vmatpush1.bf16.msra.mxu0 0
  %150 = vmatprep.subr.bf16.mxu0 0
  %151 = vmatpush1.bf16.msra.mxu0 0
  %152 = vmatprep.subr.bf16.mxu0 0
  %153 = vmatpush1.bf16.msra.mxu0 0
  %154 = vmatprep.subr.bf16.mxu0 0
  %155 = vmatpush1.bf16.msra.mxu0 0
  %156 = vmatprep.mubr.bf16.mxu0 0
  %157 = vmatmul.mubr.bf16.gmra.mrb[0].mxu0 %v27
  %v158 = vpop.f32.mrb[0].mxu0
  %v159 = vadd.f32 0.0, %v158
  %v160 = vpop.f32.mrb[0].mxu0
  %v161 = vadd.f32 0.0, %v160
  %v162 = vpop.f32.mrb[0].mxu0
  %v163 = vpop.f32.mrb[0].mxu0
  %164 = vdwg.mxu0
  %v165 = vadd.f32 %v24, %v159
  %v166 = vadd.f32 %v25, %v161
  %167 = vst [vmem:[%s4] sm:$0xff] %v165
  %168 = vst [vmem:[%s4 + $0x8] sm:$0xff] %v166
  // Predicated region
  $region22: #{_lambda_.22} parent=0 // pred_check
    %p169 = pneg %p18
  $region23: #{_lambda_.22} parent=0 // pred_check_branch
    %171 = sbr.rel (%p169) target = $region25
  $region24: #{_lambda_.22} parent=0 // pred_region
    %v172 = vld [vmem:[%s4] sm:$0xff]
    %v173 = vld [vmem:[%s4 + $0x8] sm:$0xff]
    %v174 = vld [vmem:[%s2] sm:$0x3]
    %v176 = vlaneseq
    %v177 = vshrl.u32 %v176, 7
    %v178 = vsub.s32 0, %v177
    %v179 = vrot.slane %v174, %v178
    %v180 = vlaneseq
    %v181 = vshrl.u32 %v180, 7
    %v182 = vsub.s32 1, %v181
    %v183 = vrot.slane %v174, %v182
    %v186 = vmul.f32 %v172, %v179
    %v187 = vmul.f32 %v173, %v183
    %v188 = vld [vmem:[%s3] sm:$0x3]
    %v190 = vlaneseq
    %v191 = vshrl.u32 %v190, 7
    %v192 = vsub.s32 0, %v191
    %v193 = vrot.slane %v188, %v192
    %v194 = vlaneseq
    %v195 = vshrl.u32 %v194, 7
    %v196 = vsub.s32 1, %v195
    %v197 = vrot.slane %v188, %v196
    %v200 = vadd.f32 %v186, %v193
    %v201 = vadd.f32 %v187, %v197
    %202 = vst [vmem:[%s4] sm:$0xff] %v200
    %203 = vst [vmem:[%s4 + $0x8] sm:$0xff] %v201
  $region25: #{_lambda_.22} parent=0 // pred_fallthru
    _
  // Predicated region
  $region26: #{_lambda_.22} parent=0 // pred_check
    _
  $region27: #{_lambda_.22} parent=0 // pred_check_branch
    %205 = sbr.rel (0) target = $region29
  $region28: #{_lambda_.22} parent=0 // pred_region
    _
  $region29: #{_lambda_.22} parent=0 // pred_fallthru
    _
  // Predicated region
  $region30: #{_lambda_.22} parent=0 // pred_check
    _
  $region31: #{_lambda_.22} parent=0 // pred_check_branch
    %207 = sbr.rel (0) target = $region33
  $region32: #{_lambda_.22} parent=0 // pred_region
    _
  $region33: #{_lambda_.22} parent=0 // pred_fallthru
    _

// kernel: _lambda_.24
$region0: #{_lambda_.24}
  #allocation0 [shape = 'u32[]', space=smem, size = 0x4, offset = 0x4, fixed_abs, tag = 'smem constant byte address 0x4 - core index']
  #allocation1 [shape = 'u32[144,128]{1,0:T(1,128)}', space=vmem, size = 0x12000, scoped, tag = 'internal scratch']
  %s0 = inlined_call_operand.vmem [shape: bf16[8,2304], index: 0, kind: input, shape index: {}]
  %s1 = inlined_call_operand.vmem [shape: bf16[2304,256], index: 1, kind: input, shape index: {}]
  %s2 = inlined_call_operand.vmem [shape: f32[1,256], index: 2, kind: input, shape index: {}]
  %s3 = inlined_call_operand.vmem [shape: f32[1,256], index: 3, kind: input, shape index: {}]
  %s4 = inlined_call_operand.vmem [shape: f32[8,256], index: 4, kind: input, shape index: {}]
  %s5 = inlined_call_operand.vmem [shape: f32[8,256], index: 5, kind: output, shape index: {0}]
  %s6 = inlined_call_operand.vmem [shape: f32[8,256], index: 6, kind: output, shape index: {1}]
  %7 = xla_tuple %s5, %s6
  %s8 = sld [smem:[#allocation0]]
  $region69: #{_lambda_.24} parent=0
    _
  %s10 = ssub.s32 1, %s8
  %s11 = scalar_select 0, %s10, %s8
  loop: start=0, step=1, limit=11
  $region2: #{_lambda_.24} parent=0 // loop_pre_header
    _
  $region3: #{_lambda_.24} parent=0 // loop_header
    %s13 = sphi 0, %s17
    %p14 = scmp.ge.s32.totalorder %s13, 11
    %s20 = sphi 0, %s32
    %s21 = sphi 0, %s28
    %s22 = sphi 0, %s20
    %s23 = sphi 0, %s21
    %s24 = sphi 0, %s22
    %s25 = sphi 0, %s23
    %s37 = sphi 0, %s39
    %s40 = sphi 0, %s37
    %s41 = sphi 0, %s40
    %s57 = sphi 0, %s41
    %s63 = sphi 0, %s65
    %s66 = sphi 0, %s63
    %s67 = sphi 0, %s66
    %s83 = sphi 0, %s67
    %s87 = sphi 0, %s87
    %s89 = sphi 0, %s87
    %s90 = sphi 0, %s89
    %s104 = sphi 0, %s90
    %s108 = sphi 0, %s108
    %s110 = sphi 0, %s108
    %s111 = sphi 0, %s110
    %s125 = sphi 0, %s111
    %s131 = sphi 0, %s133
    %s134 = sphi 0, %s131
    %s135 = sphi 0, %s134
    %s151 = sphi 0, %s135
    %s157 = sphi 0, %s159
    %s160 = sphi 0, %s157
    %s161 = sphi 0, %s160
    %s177 = sphi 0, %s161
    %s183 = sphi 0, %s185
    %s186 = sphi 0, %s183
    %s187 = sphi 0, %s186
    %s203 = sphi 0, %s187
  $region4: #{_lambda_.24} parent=0 // loop_header_branch
    %16 = sbr.rel (%p14) target = $region8
  $region5: #{_lambda_.24} parent=0 // loop_body
    %s18 = ssub.s32 %s13, 1
    %s19 = ssub.s32 %s13, 2
    %s26 = sadd.s32 1, %s21
    %p27 = scmp.ge.s32.totalorder %s26, 9
    %s28 = scalar_select %p27, 0, %s26
    %s29 = sadd.s32 1, %s20
    %s30 = scalar_select %p27, %s29, %s20
    %p31 = scmp.ge.s32.totalorder %s30, 1
    %s32 = scalar_select %p31, 0, %s30
    %s33 = ssub.s32 %s20, %s32
    %s34 = ssub.s32 %s21, %s28
    %s35 = sor.u32 %s33, %s34
    %p36 = scmp.eq.s32.totalorder %s35, 0
    %s38 = sadd.s32 %s37, 1
    %s39 = scalar_select %p36, %s37, %s38
    %p42 = pneg %p36
    %p43 = scmp.eq.s32.totalorder %s13, 8
    %p44 = por %p42, %p43
    %p45 = scmp.ne.s32.totalorder %s37, %s40
    %p46 = scmp.eq.s32.totalorder %s13, 0
    %p47 = por %p45, %p46
    %p48 = scmp.ne.s32.totalorder %s37, %s40
    %p49 = scmp.eq.s32.totalorder %s18, 8
    %p50 = por %p48, %p49
    %p51 = scmp.ne.s32.totalorder %s40, %s41
    %p52 = scmp.eq.s32.totalorder %s18, 0
    %p53 = por %p51, %p52
    %p54 = scmp.ne.s32.totalorder %s40, %s41
    %p55 = scmp.eq.s32.totalorder %s19, 8
    %p56 = por %p54, %p55
    %p58 = scmp.ne.s32.totalorder %s41, %s57
    %p59 = scmp.eq.s32.totalorder %s19, 0
    %p60 = por %p58, %p59
    %s61 = ssub.s32 %s21, %s28
    %p62 = scmp.eq.s32.totalorder %s61, 0
    %s64 = sadd.s32 %s63, 1
    %s65 = scalar_select %p62, %s63, %s64
    %p68 = pneg %p62
    %p69 = scmp.eq.s32.totalorder %s13, 8
    %p70 = por %p68, %p69
    %p71 = scmp.ne.s32.totalorder %s63, %s66
    %p72 = scmp.eq.s32.totalorder %s13, 0
    %p73 = por %p71, %p72
    %p74 = scmp.ne.s32.totalorder %s63, %s66
    %p75 = scmp.eq.s32.totalorder %s18, 8
    %p76 = por %p74, %p75
    %p77 = scmp.ne.s32.totalorder %s66, %s67
    %p78 = scmp.eq.s32.totalorder %s18, 0
    %p79 = por %p77, %p78
    %p80 = scmp.ne.s32.totalorder %s66, %s67
    %p81 = scmp.eq.s32.totalorder %s19, 8
    %p82 = por %p80, %p81
    %p84 = scmp.ne.s32.totalorder %s67, %s83
    %p85 = scmp.eq.s32.totalorder %s19, 0
    %p86 = por %p84, %p85
    %s88 = sadd.s32 %s87, 1
    %p91 = scmp.eq.s32.totalorder %s13, 8
    %p92 = scmp.ne.s32.totalorder %s87, %s89
    %p93 = scmp.eq.s32.totalorder %s13, 0
    %p94 = por %p92, %p93
    %p95 = scmp.ne.s32.totalorder %s87, %s89
    %p96 = scmp.eq.s32.totalorder %s18, 8
    %p97 = por %p95, %p96
    %p98 = scmp.ne.s32.totalorder %s89, %s90
    %p99 = scmp.eq.s32.totalorder %s18, 0
    %p100 = por %p98, %p99
    %p101 = scmp.ne.s32.totalorder %s89, %s90
    %p102 = scmp.eq.s32.totalorder %s19, 8
    %p103 = por %p101, %p102
    %p105 = scmp.ne.s32.totalorder %s90, %s104
    %p106 = scmp.eq.s32.totalorder %s19, 0
    %p107 = por %p105, %p106
    %s109 = sadd.s32 %s108, 1
    %p112 = scmp.eq.s32.totalorder %s13, 8
    %p113 = scmp.ne.s32.totalorder %s108, %s110
    %p114 = scmp.eq.s32.totalorder %s13, 0
    %p115 = por %p113, %p114
    %p116 = scmp.ne.s32.totalorder %s108, %s110
    %p117 = scmp.eq.s32.totalorder %s18, 8
    %p118 = por %p116, %p117
    %p119 = scmp.ne.s32.totalorder %s110, %s111
    %p120 = scmp.eq.s32.totalorder %s18, 0
    %p121 = por %p119, %p120
    %p122 = scmp.ne.s32.totalorder %s110, %s111
    %p123 = scmp.eq.s32.totalorder %s19, 8
    %p124 = por %p122, %p123
    %p126 = scmp.ne.s32.totalorder %s111, %s125
    %p127 = scmp.eq.s32.totalorder %s19, 0
    %p128 = por %p126, %p127
    %s129 = ssub.s32 %s20, %s32
    %p130 = scmp.eq.s32.totalorder %s129, 0
    %s132 = sadd.s32 %s131, 1
    %s133 = scalar_select %p130, %s131, %s132
    %p136 = pneg %p130
    %p137 = scmp.eq.s32.totalorder %s13, 8
    %p138 = por %p136, %p137
    %p139 = scmp.ne.s32.totalorder %s131, %s134
    %p140 = scmp.eq.s32.totalorder %s13, 0
    %p141 = por %p139, %p140
    %p142 = scmp.ne.s32.totalorder %s131, %s134
    %p143 = scmp.eq.s32.totalorder %s18, 8
    %p144 = por %p142, %p143
    %p145 = scmp.ne.s32.totalorder %s134, %s135
    %p146 = scmp.eq.s32.totalorder %s18, 0
    %p147 = por %p145, %p146
    %p148 = scmp.ne.s32.totalorder %s134, %s135
    %p149 = scmp.eq.s32.totalorder %s19, 8
    %p150 = por %p148, %p149
    %p152 = scmp.ne.s32.totalorder %s135, %s151
    %p153 = scmp.eq.s32.totalorder %s19, 0
    %p154 = por %p152, %p153
    %s155 = ssub.s32 %s20, %s32
    %p156 = scmp.eq.s32.totalorder %s155, 0
    %s158 = sadd.s32 %s157, 1
    %s159 = scalar_select %p156, %s157, %s158
    %p162 = pneg %p156
    %p163 = scmp.eq.s32.totalorder %s13, 8
    %p164 = por %p162, %p163
    %p165 = scmp.ne.s32.totalorder %s157, %s160
    %p166 = scmp.eq.s32.totalorder %s13, 0
    %p167 = por %p165, %p166
    %p168 = scmp.ne.s32.totalorder %s157, %s160
    %p169 = scmp.eq.s32.totalorder %s18, 8
    %p170 = por %p168, %p169
    %p171 = scmp.ne.s32.totalorder %s160, %s161
    %p172 = scmp.eq.s32.totalorder %s18, 0
    %p173 = por %p171, %p172
    %p174 = scmp.ne.s32.totalorder %s160, %s161
    %p175 = scmp.eq.s32.totalorder %s19, 8
    %p176 = por %p174, %p175
    %p178 = scmp.ne.s32.totalorder %s161, %s177
    %p179 = scmp.eq.s32.totalorder %s19, 0
    %p180 = por %p178, %p179
    %s181 = ssub.s32 %s20, %s32
    %p182 = scmp.eq.s32.totalorder %s181, 0
    %s184 = sadd.s32 %s183, 1
    %s185 = scalar_select %p182, %s183, %s184
    %p188 = pneg %p182
    %p189 = scmp.eq.s32.totalorder %s13, 8
    %p190 = por %p188, %p189
    %p191 = scmp.ne.s32.totalorder %s183, %s186
    %p192 = scmp.eq.s32.totalorder %s13, 0
    %p193 = por %p191, %p192
    %p194 = scmp.ne.s32.totalorder %s183, %s186
    %p195 = scmp.eq.s32.totalorder %s18, 8
    %p196 = por %p194, %p195
    %p197 = scmp.ne.s32.totalorder %s186, %s187
    %p198 = scmp.eq.s32.totalorder %s18, 0
    %p199 = por %p197, %p198
    %p200 = scmp.ne.s32.totalorder %s186, %s187
    %p201 = scmp.eq.s32.totalorder %s19, 8
    %p202 = por %p200, %p201
    %p204 = scmp.ne.s32.totalorder %s187, %s203
    %p205 = scmp.eq.s32.totalorder %s19, 0
    %p206 = por %p204, %p205
    %p207 = scmp.le.s32.totalorder 1, %s13
    %p208 = scmp.lt.s32.totalorder %s13, 10
    %p209 = pnand %p207, %p208
    %p210 = pneg %p209
    // Predicated region
    $region9: #{_lambda_.24} parent=5 // pred_check
      _
    $region10: #{_lambda_.24} parent=5 // pred_check_branch
      %212 = sbr.rel (%p209) target = $region12
    $region11: #{_lambda_.24} parent=5 // pred_region
      %s213 = ssub.s32 %s13, 1
      // Predicated region
      $region13: #{_lambda_.24} parent=11 // pred_check
        %p214 = pneg %p100
      $region14: #{_lambda_.24} parent=11 // pred_check_branch
        %216 = sbr.rel (%p214) target = $region16
      $region15: #{_lambda_.24} parent=11 // pred_region
        _
      $region16: #{_lambda_.24} parent=11 // pred_fallthru
        _
      // Predicated region
      $region17: #{_lambda_.24} parent=11 // pred_check
        %p217 = pneg %p121
      $region18: #{_lambda_.24} parent=11 // pred_check_branch
        %219 = sbr.rel (%p217) target = $region20
      $region19: #{_lambda_.24} parent=11 // pred_region
        _
      $region20: #{_lambda_.24} parent=11 // pred_fallthru
        _
      // Predicated region
      $region21: #{_lambda_.24} parent=11 // pred_check
        %p220 = pneg %p147
      $region22: #{_lambda_.24} parent=11 // pred_check_branch
        %222 = sbr.rel (%p220) target = $region24
      $region23: #{_lambda_.24} parent=11 // pred_region
        %p223 = scmp.lt.s32.totalorder %s22, 0
        %s224 = scalar_select %p223, %s22, 0
        %s225 = smul.addr %s224, 2
        %s226 = smul.addr %s225, 8
        %s227 = scalar_lea.vmem %s4, %s226
      $region24: #{_lambda_.24} parent=11 // pred_fallthru
        _
    $region12: #{_lambda_.24} parent=5 // pred_fallthru
      _
    %p228 = scmp.lt.s32.totalorder %s13, 9
    // Predicated region
    $region25: #{_lambda_.24} parent=5 // pred_check
      %p229 = pneg %p228
    $region26: #{_lambda_.24} parent=5 // pred_check_branch
      %231 = sbr.rel (%p229) target = $region28
    $region27: #{_lambda_.24} parent=5 // pred_region
      // Predicated region
      $region29: #{_lambda_.24} parent=27 // pred_check
        %p232 = pneg %p47
      $region30: #{_lambda_.24} parent=27 // pred_check_branch
        %234 = sbr.rel (%p232) target = $region32
      $region31: #{_lambda_.24} parent=27 // pred_region
        %s235 = smul.u32 2, %s21
        %p236 = scmp.lt.s32.totalorder %s20, 0
        %s237 = scalar_select %p236, %s20, 0
        %p238 = scmp.lt.s32.totalorder %s235, 17
        %s239 = scalar_select %p238, %s235, 17
        %s240 = smul.addr %s237, 18
        %s241 = sadd.s32 %s239, %s240
        %s242 = smul.addr %s241, 4
        %s243 = scalar_lea.vmem %s0, %s242
        %s244 = smul.u32 2, %s21
      $region32: #{_lambda_.24} parent=27 // pred_fallthru
        _
      // Predicated region
      $region33: #{_lambda_.24} parent=27 // pred_check
        %p245 = pneg %p73
      $region34: #{_lambda_.24} parent=27 // pred_check_branch
        %247 = sbr.rel (%p245) target = $region36
      $region35: #{_lambda_.24} parent=27 // pred_region
        %s248 = smul.u32 32, %s21
        %p249 = scmp.lt.s32.totalorder %s248, 287
        %s250 = scalar_select %p249, %s248, 287
        %s251 = smul.addr %s250, 2
        %s252 = smul.addr %s251, 4
        %s253 = scalar_lea.vmem %s1, %s252
        %s254 = smul.u32 32, %s21
      $region36: #{_lambda_.24} parent=27 // pred_fallthru
        _
    $region28: #{_lambda_.24} parent=5 // pred_fallthru
      _
    %p255 = scmp.le.s32.totalorder 1, %s13
    %p256 = scmp.lt.s32.totalorder %s13, 10
    %p257 = pnand %p255, %p256
    %p258 = pneg %p257
    // Predicated region
    $region37: #{_lambda_.24} parent=5 // pred_check
      _
    $region38: #{_lambda_.24} parent=5 // pred_check_branch
      %260 = sbr.rel (%p257) target = $region40
    $region39: #{_lambda_.24} parent=5 // pred_region
      %s261 = ssub.s32 %s13, 1
      %s262 = smul.u32 2, %s23
      %p263 = scmp.lt.s32.totalorder %s22, 0
      %s264 = scalar_select %p263, %s22, 0
      %p265 = scmp.lt.s32.totalorder %s262, 17
      %s266 = scalar_select %p265, %s262, 17
      %s267 = smul.addr %s264, 18
      %s268 = sadd.s32 %s266, %s267
      %s269 = smul.addr %s268, 4
      %s270 = scalar_lea.vmem %s0, %s269
      %p271 = pneg %p53
      %p272 = pneg %p50
      %s273 = smul.u32 32, %s23
      %p274 = scmp.lt.s32.totalorder %s273, 287
      %s275 = scalar_select %p274, %s273, 287
      %s276 = smul.addr %s275, 2
      %s277 = smul.addr %s276, 4
      %s278 = scalar_lea.vmem %s1, %s277
      %p279 = pneg %p79
      %p280 = pneg %p76
      %p281 = pneg %p100
      %p282 = pneg %p97
      %p283 = pneg %p121
      %p284 = pneg %p118
      %p285 = scmp.lt.s32.totalorder %s22, 0
      %s286 = scalar_select %p285, %s22, 0
      %s287 = smul.addr %s286, 2
      %s288 = smul.addr %s287, 8
      %s289 = scalar_lea.vmem %s4, %s288
      %p290 = pneg %p147
      %p291 = pneg %p144
      %p292 = pneg %p173
      %p293 = pneg %p170
      %p294 = scmp.lt.s32.totalorder %s22, 0
      %s295 = scalar_select %p294, %s22, 0
      %s296 = smul.addr %s295, 2
      %s297 = smul.addr %s296, 8
      %s298 = scalar_lea.vmem %s5, %s297
      %p299 = pneg %p199
      %p300 = pneg %p196
      %p301 = scmp.lt.s32.totalorder %s22, 0
      %s302 = scalar_select %p301, %s22, 0
      %s303 = smul.addr %s302, 2
      %s304 = smul.addr %s303, 8
      %s305 = scalar_lea.vmem %s6, %s304
      %s306 = smul.u32 2, %s23
      %p307 = scmp.lt.s32.totalorder %s22, 0
      %s308 = scalar_select %p307, %s22, 0
      %p309 = scmp.lt.s32.totalorder %s306, 17
      %s310 = scalar_select %p309, %s306, 17
      %s311 = smul.addr %s308, 18
      %s312 = sadd.s32 %s310, %s311
      %s313 = smul.addr %s312, 4
      %s314 = scalar_lea.vmem %s0, %s313
      %s315 = smul.u32 2, %s23
      %s316 = smul.u32 32, %s23
      %p317 = scmp.lt.s32.totalorder %s316, 287
      %s318 = scalar_select %p317, %s316, 287
      %s319 = smul.addr %s318, 2
      %s320 = smul.addr %s319, 4
      %s321 = scalar_lea.vmem %s1, %s320
      %s322 = smul.u32 32, %s23
      %p323 = scmp.lt.s32.totalorder %s22, 0
      %s324 = scalar_select %p323, %s22, 0
      %s325 = smul.addr %s324, 2
      %s326 = smul.addr %s325, 8
      %s327 = scalar_lea.vmem %s4, %s326
      %p328 = scmp.lt.s32.totalorder %s22, 0
      %s329 = scalar_select %p328, %s22, 0
      %s330 = smul.addr %s329, 2
      %s331 = smul.addr %s330, 8
      %s332 = scalar_lea.vmem %s5, %s331
      %p333 = scmp.lt.s32.totalorder %s22, 0
      %s334 = scalar_select %p333, %s22, 0
      %s335 = smul.addr %s334, 2
      %s336 = smul.addr %s335, 8
      %s337 = scalar_lea.vmem %s6, %s336
      %p338 = scmp.eq.s32.totalorder %s23, 0
      // Predicated region
      $region41: #{_lambda_.24} parent=39 // pred_check
        %p339 = pneg %p338
      $region42: #{_lambda_.24} parent=39 // pred_check_branch
        %341 = sbr.rel (%p339) target = $region44
      $region43: #{_lambda_.24} parent=39 // pred_region
        %342 = vst [vmem:[%s337] sm:$0xff] 0.0
        %343 = vst [vmem:[%s337 + $0x8] sm:$0xff] 0.0
      $region44: #{_lambda_.24} parent=39 // pred_fallthru
        _
      %v344 = vld [vmem:[%s337] sm:$0xff]
      %v345 = vld [vmem:[%s337 + $0x8] sm:$0xff]
      %v346 = vld [vmem:[%s314] sm:$0xff]
      %v347 = vld [vmem:[%s321] sm:$0xff]
      %v348 = vld [vmem:[%s321 + $0x8] sm:$0xff]
      %v349 = vld [vmem:[%s321 + $0x10] sm:$0xff]
      %v350 = vld [vmem:[%s321 + $0x18] sm:$0xff]
      %v351 = vld [vmem:[%s321 + $0x20] sm:$0xff]
      %v352 = vld [vmem:[%s321 + $0x28] sm:$0xff]
      %v353 = vld [vmem:[%s321 + $0x30] sm:$0xff]
      %v354 = vld [vmem:[%s321 + $0x38] sm:$0xff]
      %v355 = vld [vmem:[%s321 + $0x40] sm:$0xff]
      %v356 = vld [vmem:[%s321 + $0x48] sm:$0xff]
      %v357 = vld [vmem:[%s321 + $0x50] sm:$0xff]
      %v358 = vld [vmem:[%s321 + $0x58] sm:$0xff]
      %v359 = vld [vmem:[%s321 + $0x60] sm:$0xff]
      %v360 = vld [vmem:[%s321 + $0x68] sm:$0xff]
      %v361 = vld [vmem:[%s321 + $0x70] sm:$0xff]
      %v362 = vld [vmem:[%s321 + $0x78] sm:$0xff]
      %v363 = vld [vmem:[%s321 + $0x80] sm:$0xff]
      %v364 = vld [vmem:[%s321 + $0x88] sm:$0xff]
      %v365 = vld [vmem:[%s321 + $0x90] sm:$0xff]
      %v366 = vld [vmem:[%s321 + $0x98] sm:$0xff]
      %v367 = vld [vmem:[%s321 + $0xa0] sm:$0xff]
      %v368 = vld [vmem:[%s321 + $0xa8] sm:$0xff]
      %v369 = vld [vmem:[%s321 + $0xb0] sm:$0xff]
      %v370 = vld [vmem:[%s321 + $0xb8] sm:$0xff]
      %v371 = vld [vmem:[%s321 + $0xc0] sm:$0xff]
      %v372 = vld [vmem:[%s321 + $0xc8] sm:$0xff]
      %v373 = vld [vmem:[%s321 + $0xd0] sm:$0xff]
      %v374 = vld [vmem:[%s321 + $0xd8] sm:$0xff]
      %v375 = vld [vmem:[%s321 + $0xe0] sm:$0xff]
      %v376 = vld [vmem:[%s321 + $0xe8] sm:$0xff]
      %v377 = vld [vmem:[%s321 + $0xf0] sm:$0xff]
      %v378 = vld [vmem:[%s321 + $0xf8] sm:$0xff]
      %v380 = vunpack.c.l.b16 %v346
      %v381 = vunpack.c.h.b16 %v346
      %v382 = vpack.c.b16 %v380, %v380
      %v383 = vpack.c.b16 %v381, %v381
      %v418 = vunpack.c.l.b16 %v347
      %v419 = vunpack.c.h.b16 %v347
      %v420 = vunpack.c.l.b16 %v348
      %v421 = vunpack.c.h.b16 %v348
      %v422 = vunpack.c.l.b16 %v349
      %v423 = vunpack.c.h.b16 %v349
      %v424 = vunpack.c.l.b16 %v350
      %v425 = vunpack.c.h.b16 %v350
      %v426 = vunpack.c.l.b16 %v351
      %v427 = vunpack.c.h.b16 %v351
      %v428 = vunpack.c.l.b16 %v352
      %v429 = vunpack.c.h.b16 %v352
      %v430 = vunpack.c.l.b16 %v353
      %v431 = vunpack.c.h.b16 %v353
      %v432 = vunpack.c.l.b16 %v354
      %v433 = vunpack.c.h.b16 %v354
      %v434 = vunpack.c.l.b16 %v355
      %v435 = vunpack.c.h.b16 %v355
      %v436 = vunpack.c.l.b16 %v356
      %v437 = vunpack.c.h.b16 %v356
      %v438 = vunpack.c.l.b16 %v357
      %v439 = vunpack.c.h.b16 %v357
      %v440 = vunpack.c.l.b16 %v358
      %v441 = vunpack.c.h.b16 %v358
      %v442 = vunpack.c.l.b16 %v359
      %v443 = vunpack.c.h.b16 %v359
      %v444 = vunpack.c.l.b16 %v360
      %v445 = vunpack.c.h.b16 %v360
      %v446 = vunpack.c.l.b16 %v361
      %v447 = vunpack.c.h.b16 %v361
      %v448 = vunpack.c.l.b16 %v362
      %v449 = vunpack.c.h.b16 %v362
      %v450 = vunpack.c.l.b16 %v363
      %v451 = vunpack.c.h.b16 %v363
      %v452 = vunpack.c.l.b16 %v364
      %v453 = vunpack.c.h.b16 %v364
      %v454 = vunpack.c.l.b16 %v365
      %v455 = vunpack.c.h.b16 %v365
      %v456 = vunpack.c.l.b16 %v366
      %v457 = vunpack.c.h.b16 %v366
      %v458 = vunpack.c.l.b16 %v367
      %v459 = vunpack.c.h.b16 %v367
      %v460 = vunpack.c.l.b16 %v368
      %v461 = vunpack.c.h.b16 %v368
      %v462 = vunpack.c.l.b16 %v369
      %v463 = vunpack.c.h.b16 %v369
      %v464 = vunpack.c.l.b16 %v370
      %v465 = vunpack.c.h.b16 %v370
      %v466 = vunpack.c.l.b16 %v371
      %v467 = vunpack.c.h.b16 %v371
      %v468 = vunpack.c.l.b16 %v372
      %v469 = vunpack.c.h.b16 %v372
      %v470 = vunpack.c.l.b16 %v373
      %v471 = vunpack.c.h.b16 %v373
      %v472 = vunpack.c.l.b16 %v374
      %v473 = vunpack.c.h.b16 %v374
      %v474 = vunpack.c.l.b16 %v375
      %v475 = vunpack.c.h.b16 %v375
      %v476 = vunpack.c.l.b16 %v376
      %v477 = vunpack.c.h.b16 %v376
      %v478 = vunpack.c.l.b16 %v377
      %v479 = vunpack.c.h.b16 %v377
      %v480 = vunpack.c.l.b16 %v378
      %v481 = vunpack.c.h.b16 %v378
      %v482 = vpack.c.b16 %v420, %v418
      %v483 = vpack.c.b16 %v421, %v419
      %v484 = vpack.c.b16 %v424, %v422
      %v485 = vpack.c.b16 %v425, %v423
      %v486 = vpack.c.b16 %v428, %v426
      %v487 = vpack.c.b16 %v429, %v427
      %v488 = vpack.c.b16 %v432, %v430
      %v489 = vpack.c.b16 %v433, %v431
      %v490 = vpack.c.b16 %v436, %v434
      %v491 = vpack.c.b16 %v437, %v435
      %v492 = vpack.c.b16 %v440, %v438
      %v493 = vpack.c.b16 %v441, %v439
      %v494 = vpack.c.b16 %v444, %v442
      %v495 = vpack.c.b16 %v445, %v443
      %v496 = vpack.c.b16 %v448, %v446
      %v497 = vpack.c.b16 %v449, %v447
      %v498 = vpack.c.b16 %v452, %v450
      %v499 = vpack.c.b16 %v453, %v451
      %v500 = vpack.c.b16 %v456, %v454
      %v501 = vpack.c.b16 %v457, %v455
      %v502 = vpack.c.b16 %v460, %v458
      %v503 = vpack.c.b16 %v461, %v459
      %v504 = vpack.c.b16 %v464, %v462
      %v505 = vpack.c.b16 %v465, %v463
      %v506 = vpack.c.b16 %v468, %v466
      %v507 = vpack.c.b16 %v469, %v467
      %v508 = vpack.c.b16 %v472, %v470
      %v509 = vpack.c.b16 %v473, %v471
      %v510 = vpack.c.b16 %v476, %v474
      %v511 = vpack.c.b16 %v477, %v475
      %v512 = vpack.c.b16 %v480, %v478
      %v513 = vpack.c.b16 %v481, %v479
      %546 = vmatprep.subr.bf16.mxu0 %v483
      %547 = vmatpush1.bf16.msra.mxu0 %v482
      %548 = vmatprep.subr.bf16.mxu0 %v485
      %549 = vmatpush1.bf16.msra.mxu0 %v484
      %550 = vmatprep.subr.bf16.mxu0 %v487
      %551 = vmatpush1.bf16.msra.mxu0 %v486
      %552 = vmatprep.subr.bf16.mxu0 %v489
      %553 = vmatpush1.bf16.msra.mxu0 %v488
      %554 = vmatprep.subr.bf16.mxu0 %v491
      %555 = vmatpush1.bf16.msra.mxu0 %v490
      %556 = vmatprep.subr.bf16.mxu0 %v493
      %557 = vmatpush1.bf16.msra.mxu0 %v492
      %558 = vmatprep.subr.bf16.mxu0 %v495
      %559 = vmatpush1.bf16.msra.mxu0 %v494
      %560 = vmatprep.subr.bf16.mxu0 %v497
      %561 = vmatpush1.bf16.msra.mxu0 %v496
      %562 = vmatprep.subr.bf16.mxu0 %v499
      %563 = vmatpush1.bf16.msra.mxu0 %v498
      %564 = vmatprep.subr.bf16.mxu0 %v501
      %565 = vmatpush1.bf16.msra.mxu0 %v500
      %566 = vmatprep.subr.bf16.mxu0 %v503
      %567 = vmatpush1.bf16.msra.mxu0 %v502
      %568 = vmatprep.subr.bf16.mxu0 %v505
      %569 = vmatpush1.bf16.msra.mxu0 %v504
      %570 = vmatprep.subr.bf16.mxu0 %v507
      %571 = vmatpush1.bf16.msra.mxu0 %v506
      %572 = vmatprep.subr.bf16.mxu0 %v509
      %573 = vmatpush1.bf16.msra.mxu0 %v508
      %574 = vmatprep.subr.bf16.mxu0 %v511
      %575 = vmatpush1.bf16.msra.mxu0 %v510
      %576 = vmatprep.subr.bf16.mxu0 %v513
      %577 = vmatpush1.bf16.msra.mxu0 %v512
      %578 = vmatprep.mubr.bf16.mxu0 %v383
      %579 = vmatmul.mubr.bf16.gmra.mrb[0].mxu0 %v382
      %v580 = vpop.f32.mrb[0].mxu0
      %v581 = vadd.f32 0.0, %v580
      %v582 = vpop.f32.mrb[0].mxu0
      %v583 = vadd.f32 0.0, %v582
      %v584 = vpop.f32.mrb[0].mxu0
      %v585 = vpop.f32.mrb[0].mxu0
      %586 = vdwg.mxu0
      %v587 = vadd.f32 %v344, %v581
      %v588 = vadd.f32 %v345, %v583
      %589 = vst [vmem:[%s337] sm:$0xff] %v587
      %590 = vst [vmem:[%s337 + $0x8] sm:$0xff] %v588
      %p591 = scmp.eq.s32.totalorder %s23, 8
      // Predicated region
      $region45: #{_lambda_.24} parent=39 // pred_check
        %p592 = pneg %p591
      $region46: #{_lambda_.24} parent=39 // pred_check_branch
        %594 = sbr.rel (%p592) target = $region48
      $region47: #{_lambda_.24} parent=39 // pred_region
        %v595 = vld [vmem:[%s337] sm:$0xff]
        %v596 = vld [vmem:[%s337 + $0x8] sm:$0xff]
        %v597 = vld [vmem:[%s2] sm:$0x3]
        %v599 = vlaneseq
        %v600 = vshrl.u32 %v599, 7
        %v601 = vsub.s32 0, %v600
        %v602 = vrot.slane %v597, %v601
        %v603 = vlaneseq
        %v604 = vshrl.u32 %v603, 7
        %v605 = vsub.s32 1, %v604
        %v606 = vrot.slane %v597, %v605
        %v609 = vmul.f32 %v595, %v602
        %v610 = vmul.f32 %v596, %v606
        %v611 = vld [vmem:[%s3] sm:$0x3]
        %v613 = vlaneseq
        %v614 = vshrl.u32 %v613, 7
        %v615 = vsub.s32 0, %v614
        %v616 = vrot.slane %v611, %v615
        %v617 = vlaneseq
        %v618 = vshrl.u32 %v617, 7
        %v619 = vsub.s32 1, %v618
        %v620 = vrot.slane %v611, %v619
        %v623 = vadd.f32 %v609, %v616
        %v624 = vadd.f32 %v610, %v620
        %v625 = vld [vmem:[%s327] sm:$0xff]
        %v626 = vld [vmem:[%s327 + $0x8] sm:$0xff]
        %v627 = vadd.f32 %v623, %v625
        %v628 = vadd.f32 %v624, %v626
        %629 = vst [vmem:[%s337] sm:$0xff] %v627
        %630 = vst [vmem:[%s337 + $0x8] sm:$0xff] %v628
        %vm631 = vcmp.ge.f32.partialorder %v627, 0.0
        %vm632 = vcmp.ge.f32.partialorder %v628, 0.0
        %v633 = vmul.f32 %v627, 0.01
        %v634 = vmul.f32 %v628, 0.01
        %v635 = vsel %vm631, %v627, %v633
        %v636 = vsel %vm632, %v628, %v634
        %637 = vst [vmem:[%s332] sm:$0xff] %v635
        %638 = vst [vmem:[%s332 + $0x8] sm:$0xff] %v636
      $region48: #{_lambda_.24} parent=39 // pred_fallthru
        _
      %p639 = scmp.lt.s32.totalorder %s22, 0
      %s640 = scalar_select %p639, %s22, 0
      %s641 = smul.addr %s640, 2
      %s642 = smul.addr %s641, 8
      %s643 = scalar_lea.vmem %s5, %s642
      %p644 = scmp.lt.s32.totalorder %s22, 0
      %s645 = scalar_select %p644, %s22, 0
      %s646 = smul.addr %s645, 2
      %s647 = smul.addr %s646, 8
      %s648 = scalar_lea.vmem %s6, %s647
      // Predicated region
      $region49: #{_lambda_.24} parent=39 // pred_check
        %p649 = pneg %p170
      $region50: #{_lambda_.24} parent=39 // pred_check_branch
        %651 = sbr.rel (%p649) target = $region52
      $region51: #{_lambda_.24} parent=39 // pred_region
        _
      $region52: #{_lambda_.24} parent=39 // pred_fallthru
        _
      // Predicated region
      $region53: #{_lambda_.24} parent=39 // pred_check
        %p652 = pneg %p196
      $region54: #{_lambda_.24} parent=39 // pred_check_branch
        %654 = sbr.rel (%p652) target = $region56
      $region55: #{_lambda_.24} parent=39 // pred_region
        _
      $region56: #{_lambda_.24} parent=39 // pred_fallthru
        _
      // Predicated region
      $region57: #{_lambda_.24} parent=39 // pred_check
        %p655 = pneg %p170
      $region58: #{_lambda_.24} parent=39 // pred_check_branch
        %657 = sbr.rel (%p655) target = $region60
      $region59: #{_lambda_.24} parent=39 // pred_region
        %p658 = scmp.lt.s32.totalorder %s22, 0
        %s659 = scalar_select %p658, %s22, 0
        %s660 = smul.addr %s659, 2
        %s661 = smul.addr %s660, 8
        %s662 = scalar_lea.vmem %s5, %s661
      $region60: #{_lambda_.24} parent=39 // pred_fallthru
        _
      // Predicated region
      $region61: #{_lambda_.24} parent=39 // pred_check
        %p663 = pneg %p196
      $region62: #{_lambda_.24} parent=39 // pred_check_branch
        %665 = sbr.rel (%p663) target = $region64
      $region63: #{_lambda_.24} parent=39 // pred_region
        %p666 = scmp.lt.s32.totalorder %s22, 0
        %s667 = scalar_select %p666, %s22, 0
        %s668 = smul.addr %s667, 2
        %s669 = smul.addr %s668, 8
        %s670 = scalar_lea.vmem %s6, %s669
      $region64: #{_lambda_.24} parent=39 // pred_fallthru
        _
    $region40: #{_lambda_.24} parent=5 // pred_fallthru
      _
    %p671 = scmp.le.s32.totalorder 2, %s13
    // Predicated region
    $region65: #{_lambda_.24} parent=5 // pred_check
      %p672 = pneg %p671
    $region66: #{_lambda_.24} parent=5 // pred_check_branch
      %674 = sbr.rel (%p672) target = $region68
    $region67: #{_lambda_.24} parent=5 // pred_region
      %s675 = ssub.s32 %s13, 2
    $region68: #{_lambda_.24} parent=5 // pred_fallthru
      _
  $region6: #{_lambda_.24} parent=0 // loop_footer
    %s17 = sadd.s32 1, %s13
  $region7: #{_lambda_.24} parent=0 // loop_footer_branch
    %12 = sbr.rel target = $region3
  $region8: #{_lambda_.24} parent=0 // loop_exit
    _

// kernel: _lambda_.26
$region0: #{_lambda_.26}
  #allocation0 [shape = 'u32[]', space=smem, size = 0x4, offset = 0x4, fixed_abs, tag = 'smem constant byte address 0x4 - core index']
  #allocation1 [shape = 'u32[144,128]{1,0:T(1,128)}', space=vmem, size = 0x12000, scoped, tag = 'internal scratch']
  %s0 = inlined_call_operand.vmem [shape: bf16[8,2304], index: 0, kind: input, shape index: {}]
  %s1 = inlined_call_operand.vmem [shape: bf16[2304,512], index: 1, kind: input, shape index: {}]
  %s2 = inlined_call_operand.vmem [shape: f32[1,512], index: 2, kind: input, shape index: {}]
  %s3 = inlined_call_operand.vmem [shape: f32[1,512], index: 3, kind: input, shape index: {}]
  %s4 = inlined_call_operand.vmem [shape: f32[8,512], index: 4, kind: output, shape index: {}]
  %s5 = sld [smem:[#allocation0]]
  $region57: #{_lambda_.26} parent=0
    _
  %s7 = ssub.s32 1, %s5
  %s8 = scalar_select 0, %s7, %s5
  loop: start=0, step=1, limit=11
  $region2: #{_lambda_.26} parent=0 // loop_pre_header
    _
  $region3: #{_lambda_.26} parent=0 // loop_header
    %s10 = sphi 0, %s14
    %p11 = scmp.ge.s32.totalorder %s10, 11
    %s17 = sphi 0, %s29
    %s18 = sphi 0, %s25
    %s19 = sphi 0, %s17
    %s20 = sphi 0, %s18
    %s21 = sphi 0, %s19
    %s22 = sphi 0, %s20
    %s34 = sphi 0, %s36
    %s37 = sphi 0, %s34
    %s38 = sphi 0, %s37
    %s54 = sphi 0, %s38
    %s60 = sphi 0, %s62
    %s63 = sphi 0, %s60
    %s64 = sphi 0, %s63
    %s80 = sphi 0, %s64
    %s84 = sphi 0, %s84
    %s86 = sphi 0, %s84
    %s87 = sphi 0, %s86
    %s101 = sphi 0, %s87
    %s105 = sphi 0, %s105
    %s107 = sphi 0, %s105
    %s108 = sphi 0, %s107
    %s122 = sphi 0, %s108
    %s128 = sphi 0, %s130
    %s131 = sphi 0, %s128
    %s132 = sphi 0, %s131
    %s148 = sphi 0, %s132
  $region4: #{_lambda_.26} parent=0 // loop_header_branch
    %13 = sbr.rel (%p11) target = $region8
  $region5: #{_lambda_.26} parent=0 // loop_body
    %s15 = ssub.s32 %s10, 1
    %s16 = ssub.s32 %s10, 2
    %s23 = sadd.s32 1, %s18
    %p24 = scmp.ge.s32.totalorder %s23, 9
    %s25 = scalar_select %p24, 0, %s23
    %s26 = sadd.s32 1, %s17
    %s27 = scalar_select %p24, %s26, %s17
    %p28 = scmp.ge.s32.totalorder %s27, 1
    %s29 = scalar_select %p28, 0, %s27
    %s30 = ssub.s32 %s17, %s29
    %s31 = ssub.s32 %s18, %s25
    %s32 = sor.u32 %s30, %s31
    %p33 = scmp.eq.s32.totalorder %s32, 0
    %s35 = sadd.s32 %s34, 1
    %s36 = scalar_select %p33, %s34, %s35
    %p39 = pneg %p33
    %p40 = scmp.eq.s32.totalorder %s10, 8
    %p41 = por %p39, %p40
    %p42 = scmp.ne.s32.totalorder %s34, %s37
    %p43 = scmp.eq.s32.totalorder %s10, 0
    %p44 = por %p42, %p43
    %p45 = scmp.ne.s32.totalorder %s34, %s37
    %p46 = scmp.eq.s32.totalorder %s15, 8
    %p47 = por %p45, %p46
    %p48 = scmp.ne.s32.totalorder %s37, %s38
    %p49 = scmp.eq.s32.totalorder %s15, 0
    %p50 = por %p48, %p49
    %p51 = scmp.ne.s32.totalorder %s37, %s38
    %p52 = scmp.eq.s32.totalorder %s16, 8
    %p53 = por %p51, %p52
    %p55 = scmp.ne.s32.totalorder %s38, %s54
    %p56 = scmp.eq.s32.totalorder %s16, 0
    %p57 = por %p55, %p56
    %s58 = ssub.s32 %s18, %s25
    %p59 = scmp.eq.s32.totalorder %s58, 0
    %s61 = sadd.s32 %s60, 1
    %s62 = scalar_select %p59, %s60, %s61
    %p65 = pneg %p59
    %p66 = scmp.eq.s32.totalorder %s10, 8
    %p67 = por %p65, %p66
    %p68 = scmp.ne.s32.totalorder %s60, %s63
    %p69 = scmp.eq.s32.totalorder %s10, 0
    %p70 = por %p68, %p69
    %p71 = scmp.ne.s32.totalorder %s60, %s63
    %p72 = scmp.eq.s32.totalorder %s15, 8
    %p73 = por %p71, %p72
    %p74 = scmp.ne.s32.totalorder %s63, %s64
    %p75 = scmp.eq.s32.totalorder %s15, 0
    %p76 = por %p74, %p75
    %p77 = scmp.ne.s32.totalorder %s63, %s64
    %p78 = scmp.eq.s32.totalorder %s16, 8
    %p79 = por %p77, %p78
    %p81 = scmp.ne.s32.totalorder %s64, %s80
    %p82 = scmp.eq.s32.totalorder %s16, 0
    %p83 = por %p81, %p82
    %s85 = sadd.s32 %s84, 1
    %p88 = scmp.eq.s32.totalorder %s10, 8
    %p89 = scmp.ne.s32.totalorder %s84, %s86
    %p90 = scmp.eq.s32.totalorder %s10, 0
    %p91 = por %p89, %p90
    %p92 = scmp.ne.s32.totalorder %s84, %s86
    %p93 = scmp.eq.s32.totalorder %s15, 8
    %p94 = por %p92, %p93
    %p95 = scmp.ne.s32.totalorder %s86, %s87
    %p96 = scmp.eq.s32.totalorder %s15, 0
    %p97 = por %p95, %p96
    %p98 = scmp.ne.s32.totalorder %s86, %s87
    %p99 = scmp.eq.s32.totalorder %s16, 8
    %p100 = por %p98, %p99
    %p102 = scmp.ne.s32.totalorder %s87, %s101
    %p103 = scmp.eq.s32.totalorder %s16, 0
    %p104 = por %p102, %p103
    %s106 = sadd.s32 %s105, 1
    %p109 = scmp.eq.s32.totalorder %s10, 8
    %p110 = scmp.ne.s32.totalorder %s105, %s107
    %p111 = scmp.eq.s32.totalorder %s10, 0
    %p112 = por %p110, %p111
    %p113 = scmp.ne.s32.totalorder %s105, %s107
    %p114 = scmp.eq.s32.totalorder %s15, 8
    %p115 = por %p113, %p114
    %p116 = scmp.ne.s32.totalorder %s107, %s108
    %p117 = scmp.eq.s32.totalorder %s15, 0
    %p118 = por %p116, %p117
    %p119 = scmp.ne.s32.totalorder %s107, %s108
    %p120 = scmp.eq.s32.totalorder %s16, 8
    %p121 = por %p119, %p120
    %p123 = scmp.ne.s32.totalorder %s108, %s122
    %p124 = scmp.eq.s32.totalorder %s16, 0
    %p125 = por %p123, %p124
    %s126 = ssub.s32 %s17, %s29
    %p127 = scmp.eq.s32.totalorder %s126, 0
    %s129 = sadd.s32 %s128, 1
    %s130 = scalar_select %p127, %s128, %s129
    %p133 = pneg %p127
    %p134 = scmp.eq.s32.totalorder %s10, 8
    %p135 = por %p133, %p134
    %p136 = scmp.ne.s32.totalorder %s128, %s131
    %p137 = scmp.eq.s32.totalorder %s10, 0
    %p138 = por %p136, %p137
    %p139 = scmp.ne.s32.totalorder %s128, %s131
    %p140 = scmp.eq.s32.totalorder %s15, 8
    %p141 = por %p139, %p140
    %p142 = scmp.ne.s32.totalorder %s131, %s132
    %p143 = scmp.eq.s32.totalorder %s15, 0
    %p144 = por %p142, %p143
    %p145 = scmp.ne.s32.totalorder %s131, %s132
    %p146 = scmp.eq.s32.totalorder %s16, 8
    %p147 = por %p145, %p146
    %p149 = scmp.ne.s32.totalorder %s132, %s148
    %p150 = scmp.eq.s32.totalorder %s16, 0
    %p151 = por %p149, %p150
    %p152 = scmp.le.s32.totalorder 1, %s10
    %p153 = scmp.lt.s32.totalorder %s10, 10
    %p154 = pnand %p152, %p153
    %p155 = pneg %p154
    // Predicated region
    $region9: #{_lambda_.26} parent=5 // pred_check
      _
    $region10: #{_lambda_.26} parent=5 // pred_check_branch
      %157 = sbr.rel (%p154) target = $region12
    $region11: #{_lambda_.26} parent=5 // pred_region
      %s158 = ssub.s32 %s10, 1
      // Predicated region
      $region13: #{_lambda_.26} parent=11 // pred_check
        %p159 = pneg %p97
      $region14: #{_lambda_.26} parent=11 // pred_check_branch
        %161 = sbr.rel (%p159) target = $region16
      $region15: #{_lambda_.26} parent=11 // pred_region
        _
      $region16: #{_lambda_.26} parent=11 // pred_fallthru
        _
      // Predicated region
      $region17: #{_lambda_.26} parent=11 // pred_check
        %p162 = pneg %p118
      $region18: #{_lambda_.26} parent=11 // pred_check_branch
        %164 = sbr.rel (%p162) target = $region20
      $region19: #{_lambda_.26} parent=11 // pred_region
        _
      $region20: #{_lambda_.26} parent=11 // pred_fallthru
        _
    $region12: #{_lambda_.26} parent=5 // pred_fallthru
      _
    %p165 = scmp.lt.s32.totalorder %s10, 9
    // Predicated region
    $region21: #{_lambda_.26} parent=5 // pred_check
      %p166 = pneg %p165
    $region22: #{_lambda_.26} parent=5 // pred_check_branch
      %168 = sbr.rel (%p166) target = $region24
    $region23: #{_lambda_.26} parent=5 // pred_region
      // Predicated region
      $region25: #{_lambda_.26} parent=23 // pred_check
        %p169 = pneg %p44
      $region26: #{_lambda_.26} parent=23 // pred_check_branch
        %171 = sbr.rel (%p169) target = $region28
      $region27: #{_lambda_.26} parent=23 // pred_region
        %s172 = smul.u32 2, %s18
        %p173 = scmp.lt.s32.totalorder %s17, 0
        %s174 = scalar_select %p173, %s17, 0
        %p175 = scmp.lt.s32.totalorder %s172, 17
        %s176 = scalar_select %p175, %s172, 17
        %s177 = smul.addr %s174, 18
        %s178 = sadd.s32 %s176, %s177
        %s179 = smul.addr %s178, 4
        %s180 = scalar_lea.vmem %s0, %s179
        %s181 = smul.u32 2, %s18
      $region28: #{_lambda_.26} parent=23 // pred_fallthru
        _
      // Predicated region
      $region29: #{_lambda_.26} parent=23 // pred_check
        %p182 = pneg %p70
      $region30: #{_lambda_.26} parent=23 // pred_check_branch
        %184 = sbr.rel (%p182) target = $region32
      $region31: #{_lambda_.26} parent=23 // pred_region
        %s185 = smul.u32 32, %s18
        %p186 = scmp.lt.s32.totalorder %s185, 287
        %s187 = scalar_select %p186, %s185, 287
        %s188 = smul.addr %s187, 4
        %s189 = smul.addr %s188, 4
        %s190 = scalar_lea.vmem %s1, %s189
        %s191 = smul.u32 32, %s18
      $region32: #{_lambda_.26} parent=23 // pred_fallthru
        _
    $region24: #{_lambda_.26} parent=5 // pred_fallthru
      _
    %p192 = scmp.le.s32.totalorder 1, %s10
    %p193 = scmp.lt.s32.totalorder %s10, 10
    %p194 = pnand %p192, %p193
    %p195 = pneg %p194
    // Predicated region
    $region33: #{_lambda_.26} parent=5 // pred_check
      _
    $region34: #{_lambda_.26} parent=5 // pred_check_branch
      %197 = sbr.rel (%p194) target = $region36
    $region35: #{_lambda_.26} parent=5 // pred_region
      %s198 = ssub.s32 %s10, 1
      %s199 = smul.u32 2, %s20
      %p200 = scmp.lt.s32.totalorder %s19, 0
      %s201 = scalar_select %p200, %s19, 0
      %p202 = scmp.lt.s32.totalorder %s199, 17
      %s203 = scalar_select %p202, %s199, 17
      %s204 = smul.addr %s201, 18
      %s205 = sadd.s32 %s203, %s204
      %s206 = smul.addr %s205, 4
      %s207 = scalar_lea.vmem %s0, %s206
      %p208 = pneg %p50
      %p209 = pneg %p47
      %s210 = smul.u32 32, %s20
      %p211 = scmp.lt.s32.totalorder %s210, 287
      %s212 = scalar_select %p211, %s210, 287
      %s213 = smul.addr %s212, 4
      %s214 = smul.addr %s213, 4
      %s215 = scalar_lea.vmem %s1, %s214
      %p216 = pneg %p76
      %p217 = pneg %p73
      %p218 = pneg %p97
      %p219 = pneg %p94
      %p220 = pneg %p118
      %p221 = pneg %p115
      %p222 = pneg %p144
      %p223 = pneg %p141
      %p224 = scmp.lt.s32.totalorder %s19, 0
      %s225 = scalar_select %p224, %s19, 0
      %s226 = smul.addr %s225, 4
      %s227 = smul.addr %s226, 8
      %s228 = scalar_lea.vmem %s4, %s227
      %s229 = smul.u32 2, %s20
      %p230 = scmp.lt.s32.totalorder %s19, 0
      %s231 = scalar_select %p230, %s19, 0
      %p232 = scmp.lt.s32.totalorder %s229, 17
      %s233 = scalar_select %p232, %s229, 17
      %s234 = smul.addr %s231, 18
      %s235 = sadd.s32 %s233, %s234
      %s236 = smul.addr %s235, 4
      %s237 = scalar_lea.vmem %s0, %s236
      %s238 = smul.u32 2, %s20
      %s239 = smul.u32 32, %s20
      %p240 = scmp.lt.s32.totalorder %s239, 287
      %s241 = scalar_select %p240, %s239, 287
      %s242 = smul.addr %s241, 4
      %s243 = smul.addr %s242, 4
      %s244 = scalar_lea.vmem %s1, %s243
      %s245 = smul.u32 32, %s20
      %p246 = scmp.lt.s32.totalorder %s19, 0
      %s247 = scalar_select %p246, %s19, 0
      %s248 = smul.addr %s247, 4
      %s249 = smul.addr %s248, 8
      %s250 = scalar_lea.vmem %s4, %s249
      %p251 = scmp.eq.s32.totalorder %s20, 0
      // Predicated region
      $region37: #{_lambda_.26} parent=35 // pred_check
        %p252 = pneg %p251
      $region38: #{_lambda_.26} parent=35 // pred_check_branch
        %254 = sbr.rel (%p252) target = $region40
      $region39: #{_lambda_.26} parent=35 // pred_region
        %255 = vst [vmem:[%s250] sm:$0xff] 0.0
        %256 = vst [vmem:[%s250 + $0x8] sm:$0xff] 0.0
        %257 = vst [vmem:[%s250 + $0x10] sm:$0xff] 0.0
        %258 = vst [vmem:[%s250 + $0x18] sm:$0xff] 0.0
      $region40: #{_lambda_.26} parent=35 // pred_fallthru
        _
      %v259 = vld [vmem:[%s250] sm:$0xff]
      %v260 = vld [vmem:[%s250 + $0x8] sm:$0xff]
      %v261 = vld [vmem:[%s250 + $0x10] sm:$0xff]
      %v262 = vld [vmem:[%s250 + $0x18] sm:$0xff]
      %v263 = vld [vmem:[%s237] sm:$0xff]
      %v264 = vld [vmem:[%s244] sm:$0xff]
      %v265 = vld [vmem:[%s244 + $0x8] sm:$0xff]
      %v266 = vld [vmem:[%s244 + $0x10] sm:$0xff]
      %v267 = vld [vmem:[%s244 + $0x18] sm:$0xff]
      %v268 = vld [vmem:[%s244 + $0x20] sm:$0xff]
      %v269 = vld [vmem:[%s244 + $0x28] sm:$0xff]
      %v270 = vld [vmem:[%s244 + $0x30] sm:$0xff]
      %v271 = vld [vmem:[%s244 + $0x38] sm:$0xff]
      %v272 = vld [vmem:[%s244 + $0x40] sm:$0xff]
      %v273 = vld [vmem:[%s244 + $0x48] sm:$0xff]
      %v274 = vld [vmem:[%s244 + $0x50] sm:$0xff]
      %v275 = vld [vmem:[%s244 + $0x58] sm:$0xff]
      %v276 = vld [vmem:[%s244 + $0x60] sm:$0xff]
      %v277 = vld [vmem:[%s244 + $0x68] sm:$0xff]
      %v278 = vld [vmem:[%s244 + $0x70] sm:$0xff]
      %v279 = vld [vmem:[%s244 + $0x78] sm:$0xff]
      %v280 = vld [vmem:[%s244 + $0x80] sm:$0xff]
      %v281 = vld [vmem:[%s244 + $0x88] sm:$0xff]
      %v282 = vld [vmem:[%s244 + $0x90] sm:$0xff]
      %v283 = vld [vmem:[%s244 + $0x98] sm:$0xff]
      %v284 = vld [vmem:[%s244 + $0xa0] sm:$0xff]
      %v285 = vld [vmem:[%s244 + $0xa8] sm:$0xff]
      %v286 = vld [vmem:[%s244 + $0xb0] sm:$0xff]
      %v287 = vld [vmem:[%s244 + $0xb8] sm:$0xff]
      %v288 = vld [vmem:[%s244 + $0xc0] sm:$0xff]
      %v289 = vld [vmem:[%s244 + $0xc8] sm:$0xff]
      %v290 = vld [vmem:[%s244 + $0xd0] sm:$0xff]
      %v291 = vld [vmem:[%s244 + $0xd8] sm:$0xff]
      %v292 = vld [vmem:[%s244 + $0xe0] sm:$0xff]
      %v293 = vld [vmem:[%s244 + $0xe8] sm:$0xff]
      %v294 = vld [vmem:[%s244 + $0xf0] sm:$0xff]
      %v295 = vld [vmem:[%s244 + $0xf8] sm:$0xff]
      %v296 = vld [vmem:[%s244 + $0x100] sm:$0xff]
      %v297 = vld [vmem:[%s244 + $0x108] sm:$0xff]
      %v298 = vld [vmem:[%s244 + $0x110] sm:$0xff]
      %v299 = vld [vmem:[%s244 + $0x118] sm:$0xff]
      %v300 = vld [vmem:[%s244 + $0x120] sm:$0xff]
      %v301 = vld [vmem:[%s244 + $0x128] sm:$0xff]
      %v302 = vld [vmem:[%s244 + $0x130] sm:$0xff]
      %v303 = vld [vmem:[%s244 + $0x138] sm:$0xff]
      %v304 = vld [vmem:[%s244 + $0x140] sm:$0xff]
      %v305 = vld [vmem:[%s244 + $0x148] sm:$0xff]
      %v306 = vld [vmem:[%s244 + $0x150] sm:$0xff]
      %v307 = vld [vmem:[%s244 + $0x158] sm:$0xff]
      %v308 = vld [vmem:[%s244 + $0x160] sm:$0xff]
      %v309 = vld [vmem:[%s244 + $0x168] sm:$0xff]
      %v310 = vld [vmem:[%s244 + $0x170] sm:$0xff]
      %v311 = vld [vmem:[%s244 + $0x178] sm:$0xff]
      %v312 = vld [vmem:[%s244 + $0x180] sm:$0xff]
      %v313 = vld [vmem:[%s244 + $0x188] sm:$0xff]
      %v314 = vld [vmem:[%s244 + $0x190] sm:$0xff]
      %v315 = vld [vmem:[%s244 + $0x198] sm:$0xff]
      %v316 = vld [vmem:[%s244 + $0x1a0] sm:$0xff]
      %v317 = vld [vmem:[%s244 + $0x1a8] sm:$0xff]
      %v318 = vld [vmem:[%s244 + $0x1b0] sm:$0xff]
      %v319 = vld [vmem:[%s244 + $0x1b8] sm:$0xff]
      %v320 = vld [vmem:[%s244 + $0x1c0] sm:$0xff]
      %v321 = vld [vmem:[%s244 + $0x1c8] sm:$0xff]
      %v322 = vld [vmem:[%s244 + $0x1d0] sm:$0xff]
      %v323 = vld [vmem:[%s244 + $0x1d8] sm:$0xff]
      %v324 = vld [vmem:[%s244 + $0x1e0] sm:$0xff]
      %v325 = vld [vmem:[%s244 + $0x1e8] sm:$0xff]
      %v326 = vld [vmem:[%s244 + $0x1f0] sm:$0xff]
      %v327 = vld [vmem:[%s244 + $0x1f8] sm:$0xff]
      %v329 = vunpack.c.l.b16 %v263
      %v330 = vunpack.c.h.b16 %v263
      %v331 = vpack.c.b16 %v329, %v329
      %v332 = vpack.c.b16 %v330, %v330
      %v399 = vunpack.c.l.b16 %v264
      %v400 = vunpack.c.h.b16 %v264
      %v401 = vunpack.c.l.b16 %v265
      %v402 = vunpack.c.h.b16 %v265
      %v403 = vunpack.c.l.b16 %v266
      %v404 = vunpack.c.h.b16 %v266
      %v405 = vunpack.c.l.b16 %v267
      %v406 = vunpack.c.h.b16 %v267
      %v407 = vunpack.c.l.b16 %v268
      %v408 = vunpack.c.h.b16 %v268
      %v409 = vunpack.c.l.b16 %v269
      %v410 = vunpack.c.h.b16 %v269
      %v411 = vunpack.c.l.b16 %v270
      %v412 = vunpack.c.h.b16 %v270
      %v413 = vunpack.c.l.b16 %v271
      %v414 = vunpack.c.h.b16 %v271
      %v415 = vunpack.c.l.b16 %v272
      %v416 = vunpack.c.h.b16 %v272
      %v417 = vunpack.c.l.b16 %v273
      %v418 = vunpack.c.h.b16 %v273
      %v419 = vunpack.c.l.b16 %v274
      %v420 = vunpack.c.h.b16 %v274
      %v421 = vunpack.c.l.b16 %v275
      %v422 = vunpack.c.h.b16 %v275
      %v423 = vunpack.c.l.b16 %v276
      %v424 = vunpack.c.h.b16 %v276
      %v425 = vunpack.c.l.b16 %v277
      %v426 = vunpack.c.h.b16 %v277
      %v427 = vunpack.c.l.b16 %v278
      %v428 = vunpack.c.h.b16 %v278
      %v429 = vunpack.c.l.b16 %v279
      %v430 = vunpack.c.h.b16 %v279
      %v431 = vunpack.c.l.b16 %v280
      %v432 = vunpack.c.h.b16 %v280
      %v433 = vunpack.c.l.b16 %v281
      %v434 = vunpack.c.h.b16 %v281
      %v435 = vunpack.c.l.b16 %v282
      %v436 = vunpack.c.h.b16 %v282
      %v437 = vunpack.c.l.b16 %v283
      %v438 = vunpack.c.h.b16 %v283
      %v439 = vunpack.c.l.b16 %v284
      %v440 = vunpack.c.h.b16 %v284
      %v441 = vunpack.c.l.b16 %v285
      %v442 = vunpack.c.h.b16 %v285
      %v443 = vunpack.c.l.b16 %v286
      %v444 = vunpack.c.h.b16 %v286
      %v445 = vunpack.c.l.b16 %v287
      %v446 = vunpack.c.h.b16 %v287
      %v447 = vunpack.c.l.b16 %v288
      %v448 = vunpack.c.h.b16 %v288
      %v449 = vunpack.c.l.b16 %v289
      %v450 = vunpack.c.h.b16 %v289
      %v451 = vunpack.c.l.b16 %v290
      %v452 = vunpack.c.h.b16 %v290
      %v453 = vunpack.c.l.b16 %v291
      %v454 = vunpack.c.h.b16 %v291
      %v455 = vunpack.c.l.b16 %v292
      %v456 = vunpack.c.h.b16 %v292
      %v457 = vunpack.c.l.b16 %v293
      %v458 = vunpack.c.h.b16 %v293
      %v459 = vunpack.c.l.b16 %v294
      %v460 = vunpack.c.h.b16 %v294
      %v461 = vunpack.c.l.b16 %v295
      %v462 = vunpack.c.h.b16 %v295
      %v463 = vunpack.c.l.b16 %v296
      %v464 = vunpack.c.h.b16 %v296
      %v465 = vunpack.c.l.b16 %v297
      %v466 = vunpack.c.h.b16 %v297
      %v467 = vunpack.c.l.b16 %v298
      %v468 = vunpack.c.h.b16 %v298
      %v469 = vunpack.c.l.b16 %v299
      %v470 = vunpack.c.h.b16 %v299
      %v471 = vunpack.c.l.b16 %v300
      %v472 = vunpack.c.h.b16 %v300
      %v473 = vunpack.c.l.b16 %v301
      %v474 = vunpack.c.h.b16 %v301
      %v475 = vunpack.c.l.b16 %v302
      %v476 = vunpack.c.h.b16 %v302
      %v477 = vunpack.c.l.b16 %v303
      %v478 = vunpack.c.h.b16 %v303
      %v479 = vunpack.c.l.b16 %v304
      %v480 = vunpack.c.h.b16 %v304
      %v481 = vunpack.c.l.b16 %v305
      %v482 = vunpack.c.h.b16 %v305
      %v483 = vunpack.c.l.b16 %v306
      %v484 = vunpack.c.h.b16 %v306
      %v485 = vunpack.c.l.b16 %v307
      %v486 = vunpack.c.h.b16 %v307
      %v487 = vunpack.c.l.b16 %v308
      %v488 = vunpack.c.h.b16 %v308
      %v489 = vunpack.c.l.b16 %v309
      %v490 = vunpack.c.h.b16 %v309
      %v491 = vunpack.c.l.b16 %v310
      %v492 = vunpack.c.h.b16 %v310
      %v493 = vunpack.c.l.b16 %v311
      %v494 = vunpack.c.h.b16 %v311
      %v495 = vunpack.c.l.b16 %v312
      %v496 = vunpack.c.h.b16 %v312
      %v497 = vunpack.c.l.b16 %v313
      %v498 = vunpack.c.h.b16 %v313
      %v499 = vunpack.c.l.b16 %v314
      %v500 = vunpack.c.h.b16 %v314
      %v501 = vunpack.c.l.b16 %v315
      %v502 = vunpack.c.h.b16 %v315
      %v503 = vunpack.c.l.b16 %v316
      %v504 = vunpack.c.h.b16 %v316
      %v505 = vunpack.c.l.b16 %v317
      %v506 = vunpack.c.h.b16 %v317
      %v507 = vunpack.c.l.b16 %v318
      %v508 = vunpack.c.h.b16 %v318
      %v509 = vunpack.c.l.b16 %v319
      %v510 = vunpack.c.h.b16 %v319
      %v511 = vunpack.c.l.b16 %v320
      %v512 = vunpack.c.h.b16 %v320
      %v513 = vunpack.c.l.b16 %v321
      %v514 = vunpack.c.h.b16 %v321
      %v515 = vunpack.c.l.b16 %v322
      %v516 = vunpack.c.h.b16 %v322
      %v517 = vunpack.c.l.b16 %v323
      %v518 = vunpack.c.h.b16 %v323
      %v519 = vunpack.c.l.b16 %v324
      %v520 = vunpack.c.h.b16 %v324
      %v521 = vunpack.c.l.b16 %v325
      %v522 = vunpack.c.h.b16 %v325
      %v523 = vunpack.c.l.b16 %v326
      %v524 = vunpack.c.h.b16 %v326
      %v525 = vunpack.c.l.b16 %v327
      %v526 = vunpack.c.h.b16 %v327
      %v527 = vpack.c.b16 %v403, %v399
      %v528 = vpack.c.b16 %v404, %v400
      %v529 = vpack.c.b16 %v405, %v401
      %v530 = vpack.c.b16 %v406, %v402
      %v531 = vpack.c.b16 %v411, %v407
      %v532 = vpack.c.b16 %v412, %v408
      %v533 = vpack.c.b16 %v413, %v409
      %v534 = vpack.c.b16 %v414, %v410
      %v535 = vpack.c.b16 %v419, %v415
      %v536 = vpack.c.b16 %v420, %v416
      %v537 = vpack.c.b16 %v421, %v417
      %v538 = vpack.c.b16 %v422, %v418
      %v539 = vpack.c.b16 %v427, %v423
      %v540 = vpack.c.b16 %v428, %v424
      %v541 = vpack.c.b16 %v429, %v425
      %v542 = vpack.c.b16 %v430, %v426
      %v543 = vpack.c.b16 %v435, %v431
      %v544 = vpack.c.b16 %v436, %v432
      %v545 = vpack.c.b16 %v437, %v433
      %v546 = vpack.c.b16 %v438, %v434
      %v547 = vpack.c.b16 %v443, %v439
      %v548 = vpack.c.b16 %v444, %v440
      %v549 = vpack.c.b16 %v445, %v441
      %v550 = vpack.c.b16 %v446, %v442
      %v551 = vpack.c.b16 %v451, %v447
      %v552 = vpack.c.b16 %v452, %v448
      %v553 = vpack.c.b16 %v453, %v449
      %v554 = vpack.c.b16 %v454, %v450
      %v555 = vpack.c.b16 %v459, %v455
      %v556 = vpack.c.b16 %v460, %v456
      %v557 = vpack.c.b16 %v461, %v457
      %v558 = vpack.c.b16 %v462, %v458
      %v559 = vpack.c.b16 %v467, %v463
      %v560 = vpack.c.b16 %v468, %v464
      %v561 = vpack.c.b16 %v469, %v465
      %v562 = vpack.c.b16 %v470, %v466
      %v563 = vpack.c.b16 %v475, %v471
      %v564 = vpack.c.b16 %v476, %v472
      %v565 = vpack.c.b16 %v477, %v473
      %v566 = vpack.c.b16 %v478, %v474
      %v567 = vpack.c.b16 %v483, %v479
      %v568 = vpack.c.b16 %v484, %v480
      %v569 = vpack.c.b16 %v485, %v481
      %v570 = vpack.c.b16 %v486, %v482
      %v571 = vpack.c.b16 %v491, %v487
      %v572 = vpack.c.b16 %v492, %v488
      %v573 = vpack.c.b16 %v493, %v489
      %v574 = vpack.c.b16 %v494, %v490
      %v575 = vpack.c.b16 %v499, %v495
      %v576 = vpack.c.b16 %v500, %v496
      %v577 = vpack.c.b16 %v501, %v497
      %v578 = vpack.c.b16 %v502, %v498
      %v579 = vpack.c.b16 %v507, %v503
      %v580 = vpack.c.b16 %v508, %v504
      %v581 = vpack.c.b16 %v509, %v505
      %v582 = vpack.c.b16 %v510, %v506
      %v583 = vpack.c.b16 %v515, %v511
      %v584 = vpack.c.b16 %v516, %v512
      %v585 = vpack.c.b16 %v517, %v513
      %v586 = vpack.c.b16 %v518, %v514
      %v587 = vpack.c.b16 %v523, %v519
      %v588 = vpack.c.b16 %v524, %v520
      %v589 = vpack.c.b16 %v525, %v521
      %v590 = vpack.c.b16 %v526, %v522
      %655 = vmatprep.subr.bf16.mxu0 %v528
      %656 = vmatpush1.bf16.msra.mxu0 %v527
      %657 = vmatprep.subr.bf16.mxu0 %v532
      %658 = vmatpush1.bf16.msra.mxu0 %v531
      %659 = vmatprep.subr.bf16.mxu0 %v536
      %660 = vmatpush1.bf16.msra.mxu0 %v535
      %661 = vmatprep.subr.bf16.mxu0 %v540
      %662 = vmatpush1.bf16.msra.mxu0 %v539
      %663 = vmatprep.subr.bf16.mxu0 %v544
      %664 = vmatpush1.bf16.msra.mxu0 %v543
      %665 = vmatprep.subr.bf16.mxu0 %v548
      %666 = vmatpush1.bf16.msra.mxu0 %v547
      %667 = vmatprep.subr.bf16.mxu0 %v552
      %668 = vmatpush1.bf16.msra.mxu0 %v551
      %669 = vmatprep.subr.bf16.mxu0 %v556
      %670 = vmatpush1.bf16.msra.mxu0 %v555
      %671 = vmatprep.subr.bf16.mxu0 %v560
      %672 = vmatpush1.bf16.msra.mxu0 %v559
      %673 = vmatprep.subr.bf16.mxu0 %v564
      %674 = vmatpush1.bf16.msra.mxu0 %v563
      %675 = vmatprep.subr.bf16.mxu0 %v568
      %676 = vmatpush1.bf16.msra.mxu0 %v567
      %677 = vmatprep.subr.bf16.mxu0 %v572
      %678 = vmatpush1.bf16.msra.mxu0 %v571
      %679 = vmatprep.subr.bf16.mxu0 %v576
      %680 = vmatpush1.bf16.msra.mxu0 %v575
      %681 = vmatprep.subr.bf16.mxu0 %v580
      %682 = vmatpush1.bf16.msra.mxu0 %v579
      %683 = vmatprep.subr.bf16.mxu0 %v584
      %684 = vmatpush1.bf16.msra.mxu0 %v583
      %685 = vmatprep.subr.bf16.mxu0 %v588
      %686 = vmatpush1.bf16.msra.mxu0 %v587
      %687 = vmatprep.mubr.bf16.mxu0 %v332
      %688 = vmatmul.mubr.bf16.gmra.mrb[0].mxu0 %v331
      %v689 = vpop.f32.mrb[0].mxu0
      %v690 = vadd.f32 0.0, %v689
      %v691 = vpop.f32.mrb[0].mxu0
      %v692 = vadd.f32 0.0, %v691
      %v693 = vpop.f32.mrb[0].mxu0
      %v694 = vpop.f32.mrb[0].mxu0
      %695 = vdwg.mxu0
      %696 = vmatprep.subr.bf16.mxu0 %v530
      %697 = vmatpush1.bf16.msra.mxu0 %v529
      %698 = vmatprep.subr.bf16.mxu0 %v534
      %699 = vmatpush1.bf16.msra.mxu0 %v533
      %700 = vmatprep.subr.bf16.mxu0 %v538
      %701 = vmatpush1.bf16.msra.mxu0 %v537
      %702 = vmatprep.subr.bf16.mxu0 %v542
      %703 = vmatpush1.bf16.msra.mxu0 %v541
      %704 = vmatprep.subr.bf16.mxu0 %v546
      %705 = vmatpush1.bf16.msra.mxu0 %v545
      %706 = vmatprep.subr.bf16.mxu0 %v550
      %707 = vmatpush1.bf16.msra.mxu0 %v549
      %708 = vmatprep.subr.bf16.mxu0 %v554
      %709 = vmatpush1.bf16.msra.mxu0 %v553
      %710 = vmatprep.subr.bf16.mxu0 %v558
      %711 = vmatpush1.bf16.msra.mxu0 %v557
      %712 = vmatprep.subr.bf16.mxu0 %v562
      %713 = vmatpush1.bf16.msra.mxu0 %v561
      %714 = vmatprep.subr.bf16.mxu0 %v566
      %715 = vmatpush1.bf16.msra.mxu0 %v565
      %716 = vmatprep.subr.bf16.mxu0 %v570
      %717 = vmatpush1.bf16.msra.mxu0 %v569
      %718 = vmatprep.subr.bf16.mxu0 %v574
      %719 = vmatpush1.bf16.msra.mxu0 %v573
      %720 = vmatprep.subr.bf16.mxu0 %v578
      %721 = vmatpush1.bf16.msra.mxu0 %v577
      %722 = vmatprep.subr.bf16.mxu0 %v582
      %723 = vmatpush1.bf16.msra.mxu0 %v581
      %724 = vmatprep.subr.bf16.mxu0 %v586
      %725 = vmatpush1.bf16.msra.mxu0 %v585
      %726 = vmatprep.subr.bf16.mxu0 %v590
      %727 = vmatpush1.bf16.msra.mxu0 %v589
      %728 = vmatprep.mubr.bf16.mxu0 %v332
      %729 = vmatmul.mubr.bf16.gmra.mrb[0].mxu0 %v331
      %v730 = vpop.f32.mrb[0].mxu0
      %v731 = vadd.f32 0.0, %v730
      %v732 = vpop.f32.mrb[0].mxu0
      %v733 = vadd.f32 0.0, %v732
      %v734 = vpop.f32.mrb[0].mxu0
      %v735 = vpop.f32.mrb[0].mxu0
      %736 = vdwg.mxu0
      %v737 = vadd.f32 %v259, %v690
      %v738 = vadd.f32 %v260, %v692
      %v739 = vadd.f32 %v261, %v731
      %v740 = vadd.f32 %v262, %v733
      %741 = vst [vmem:[%s250] sm:$0xff] %v737
      %742 = vst [vmem:[%s250 + $0x8] sm:$0xff] %v738
      %743 = vst [vmem:[%s250 + $0x10] sm:$0xff] %v739
      %744 = vst [vmem:[%s250 + $0x18] sm:$0xff] %v740
      %p745 = scmp.eq.s32.totalorder %s20, 8
      // Predicated region
      $region41: #{_lambda_.26} parent=35 // pred_check
        %p746 = pneg %p745
      $region42: #{_lambda_.26} parent=35 // pred_check_branch
        %748 = sbr.rel (%p746) target = $region44
      $region43: #{_lambda_.26} parent=35 // pred_region
        %v749 = vld [vmem:[%s250] sm:$0xff]
        %v750 = vld [vmem:[%s250 + $0x8] sm:$0xff]
        %v751 = vld [vmem:[%s250 + $0x10] sm:$0xff]
        %v752 = vld [vmem:[%s250 + $0x18] sm:$0xff]
        %v753 = vld [vmem:[%s2] sm:$0xf]
        %v755 = vlaneseq
        %v756 = vshrl.u32 %v755, 7
        %v757 = vsub.s32 0, %v756
        %v758 = vrot.slane %v753, %v757
        %v759 = vlaneseq
        %v760 = vshrl.u32 %v759, 7
        %v761 = vsub.s32 1, %v760
        %v762 = vrot.slane %v753, %v761
        %v763 = vlaneseq
        %v764 = vshrl.u32 %v763, 7
        %v765 = vsub.s32 2, %v764
        %v766 = vrot.slane %v753, %v765
        %v767 = vlaneseq
        %v768 = vshrl.u32 %v767, 7
        %v769 = vsub.s32 3, %v768
        %v770 = vrot.slane %v753, %v769
        %v775 = vmul.f32 %v749, %v758
        %v776 = vmul.f32 %v750, %v762
        %v777 = vmul.f32 %v751, %v766
        %v778 = vmul.f32 %v752, %v770
        %v779 = vld [vmem:[%s3] sm:$0xf]
        %v781 = vlaneseq
        %v782 = vshrl.u32 %v781, 7
        %v783 = vsub.s32 0, %v782
        %v784 = vrot.slane %v779, %v783
        %v785 = vlaneseq
        %v786 = vshrl.u32 %v785, 7
        %v787 = vsub.s32 1, %v786
        %v788 = vrot.slane %v779, %v787
        %v789 = vlaneseq
        %v790 = vshrl.u32 %v789, 7
        %v791 = vsub.s32 2, %v790
        %v792 = vrot.slane %v779, %v791
        %v793 = vlaneseq
        %v794 = vshrl.u32 %v793, 7
        %v795 = vsub.s32 3, %v794
        %v796 = vrot.slane %v779, %v795
        %v801 = vadd.f32 %v775, %v784
        %v802 = vadd.f32 %v776, %v788
        %v803 = vadd.f32 %v777, %v792
        %v804 = vadd.f32 %v778, %v796
        %vm805 = vcmp.ge.f32.partialorder %v801, 0.0
        %vm806 = vcmp.ge.f32.partialorder %v802, 0.0
        %vm807 = vcmp.ge.f32.partialorder %v803, 0.0
        %vm808 = vcmp.ge.f32.partialorder %v804, 0.0
        %v809 = vmul.f32 %v801, 0.01
        %v810 = vmul.f32 %v802, 0.01
        %v811 = vmul.f32 %v803, 0.01
        %v812 = vmul.f32 %v804, 0.01
        %v813 = vsel %vm805, %v801, %v809
        %v814 = vsel %vm806, %v802, %v810
        %v815 = vsel %vm807, %v803, %v811
        %v816 = vsel %vm808, %v804, %v812
        %817 = vst [vmem:[%s250] sm:$0xff] %v813
        %818 = vst [vmem:[%s250 + $0x8] sm:$0xff] %v814
        %819 = vst [vmem:[%s250 + $0x10] sm:$0xff] %v815
        %820 = vst [vmem:[%s250 + $0x18] sm:$0xff] %v816
      $region44: #{_lambda_.26} parent=35 // pred_fallthru
        _
      %p821 = scmp.lt.s32.totalorder %s19, 0
      %s822 = scalar_select %p821, %s19, 0
      %s823 = smul.addr %s822, 4
      %s824 = smul.addr %s823, 8
      %s825 = scalar_lea.vmem %s4, %s824
      // Predicated region
      $region45: #{_lambda_.26} parent=35 // pred_check
        %p826 = pneg %p141
      $region46: #{_lambda_.26} parent=35 // pred_check_branch
        %828 = sbr.rel (%p826) target = $region48
      $region47: #{_lambda_.26} parent=35 // pred_region
        _
      $region48: #{_lambda_.26} parent=35 // pred_fallthru
        _
      // Predicated region
      $region49: #{_lambda_.26} parent=35 // pred_check
        %p829 = pneg %p141
      $region50: #{_lambda_.26} parent=35 // pred_check_branch
        %831 = sbr.rel (%p829) target = $region52
      $region51: #{_lambda_.26} parent=35 // pred_region
        %p832 = scmp.lt.s32.totalorder %s19, 0
        %s833 = scalar_select %p832, %s19, 0
        %s834 = smul.addr %s833, 4
        %s835 = smul.addr %s834, 8
        %s836 = scalar_lea.vmem %s4, %s835
      $region52: #{_lambda_.26} parent=35 // pred_fallthru
        _
    $region36: #{_lambda_.26} parent=5 // pred_fallthru
      _
    %p837 = scmp.le.s32.totalorder 2, %s10
    // Predicated region
    $region53: #{_lambda_.26} parent=5 // pred_check
      %p838 = pneg %p837
    $region54: #{_lambda_.26} parent=5 // pred_check_branch
      %840 = sbr.rel (%p838) target = $region56
    $region55: #{_lambda_.26} parent=5 // pred_region
      %s841 = ssub.s32 %s10, 2
    $region56: #{_lambda_.26} parent=5 // pred_fallthru
      _
  $region6: #{_lambda_.26} parent=0 // loop_footer
    %s14 = sadd.s32 1, %s10
  $region7: #{_lambda_.26} parent=0 // loop_footer_branch
    %9 = sbr.rel target = $region3
  $region8: #{_lambda_.26} parent=0 // loop_exit
    _

// kernel: _lambda_.25
$region0: #{_lambda_.25}
  #allocation0 [shape = 'u32[]', space=smem, size = 0x4, offset = 0x4, fixed_abs, tag = 'smem constant byte address 0x4 - core index']
  #allocation1 [shape = 'u32[144,128]{1,0:T(1,128)}', space=vmem, size = 0x12000, scoped, tag = 'internal scratch']
  %s0 = inlined_call_operand.vmem [shape: f32[8,256], index: 0, kind: input, shape index: {}]
  %s1 = inlined_call_operand.vmem [shape: bf16[256,512], index: 1, kind: input, shape index: {}]
  %s2 = inlined_call_operand.vmem [shape: f32[1,512], index: 2, kind: input, shape index: {}]
  %s3 = inlined_call_operand.vmem [shape: f32[1,512], index: 3, kind: input, shape index: {}]
  %s4 = inlined_call_operand.vmem [shape: f32[8,512], index: 4, kind: output, shape index: {}]
  %s5 = sld [smem:[#allocation0]]
  $region34: #{_lambda_.25} parent=0
    _
  %s7 = ssub.s32 1, %s5
  %s8 = scalar_select 0, %s7, %s5
  // Predicated region
  $region2: #{_lambda_.25} parent=0 // pred_check
    _
  $region3: #{_lambda_.25} parent=0 // pred_check_branch
    %10 = sbr.rel (0) target = $region5
  $region4: #{_lambda_.25} parent=0 // pred_region
    _
  $region5: #{_lambda_.25} parent=0 // pred_fallthru
    _
  // Predicated region
  $region6: #{_lambda_.25} parent=0 // pred_check
    _
  $region7: #{_lambda_.25} parent=0 // pred_check_branch
    %12 = sbr.rel (0) target = $region9
  $region8: #{_lambda_.25} parent=0 // pred_region
    _
  $region9: #{_lambda_.25} parent=0 // pred_fallthru
    _
  // Predicated region
  $region10: #{_lambda_.25} parent=0 // pred_check
    _
  $region11: #{_lambda_.25} parent=0 // pred_check_branch
    %14 = sbr.rel (0) target = $region13
  $region12: #{_lambda_.25} parent=0 // pred_region
    _
  $region13: #{_lambda_.25} parent=0 // pred_fallthru
    _
  // Predicated region
  $region14: #{_lambda_.25} parent=0 // pred_check
    _
  $region15: #{_lambda_.25} parent=0 // pred_check_branch
    %16 = sbr.rel (0) target = $region17
  $region16: #{_lambda_.25} parent=0 // pred_region
    _
  $region17: #{_lambda_.25} parent=0 // pred_fallthru
    _
  %p17 = scmp.eq.s32.totalorder 0, 0
  // Predicated region
  $region18: #{_lambda_.25} parent=0 // pred_check
    %p18 = pneg %p17
  $region19: #{_lambda_.25} parent=0 // pred_check_branch
    %20 = sbr.rel (%p18) target = $region21
  $region20: #{_lambda_.25} parent=0 // pred_region
    %21 = vst [vmem:[%s4] sm:$0xff] 0.0
    %22 = vst [vmem:[%s4 + $0x8] sm:$0xff] 0.0
    %23 = vst [vmem:[%s4 + $0x10] sm:$0xff] 0.0
    %24 = vst [vmem:[%s4 + $0x18] sm:$0xff] 0.0
  $region21: #{_lambda_.25} parent=0 // pred_fallthru
    _
  %v25 = vld [vmem:[%s4] sm:$0xff]
  %v26 = vld [vmem:[%s4 + $0x8] sm:$0xff]
  %v27 = vld [vmem:[%s4 + $0x10] sm:$0xff]
  %v28 = vld [vmem:[%s4 + $0x18] sm:$0xff]
  %v29 = vld [vmem:[%s0] sm:$0xff]
  %v30 = vld [vmem:[%s0 + $0x8] sm:$0xff]
  %v31 = vpack.c.bf16 %v29, %v29
  %v32 = vpack.c.bf16 %v30, %v30
  %v33 = vld [vmem:[%s1] sm:$0xff]
  %v34 = vld [vmem:[%s1 + $0x8] sm:$0xff]
  %v35 = vld [vmem:[%s1 + $0x10] sm:$0xff]
  %v36 = vld [vmem:[%s1 + $0x18] sm:$0xff]
  %v37 = vld [vmem:[%s1 + $0x20] sm:$0xff]
  %v38 = vld [vmem:[%s1 + $0x28] sm:$0xff]
  %v39 = vld [vmem:[%s1 + $0x30] sm:$0xff]
  %v40 = vld [vmem:[%s1 + $0x38] sm:$0xff]
  %v41 = vld [vmem:[%s1 + $0x40] sm:$0xff]
  %v42 = vld [vmem:[%s1 + $0x48] sm:$0xff]
  %v43 = vld [vmem:[%s1 + $0x50] sm:$0xff]
  %v44 = vld [vmem:[%s1 + $0x58] sm:$0xff]
  %v45 = vld [vmem:[%s1 + $0x60] sm:$0xff]
  %v46 = vld [vmem:[%s1 + $0x68] sm:$0xff]
  %v47 = vld [vmem:[%s1 + $0x70] sm:$0xff]
  %v48 = vld [vmem:[%s1 + $0x78] sm:$0xff]
  %v49 = vld [vmem:[%s1 + $0x80] sm:$0xff]
  %v50 = vld [vmem:[%s1 + $0x88] sm:$0xff]
  %v51 = vld [vmem:[%s1 + $0x90] sm:$0xff]
  %v52 = vld [vmem:[%s1 + $0x98] sm:$0xff]
  %v53 = vld [vmem:[%s1 + $0xa0] sm:$0xff]
  %v54 = vld [vmem:[%s1 + $0xa8] sm:$0xff]
  %v55 = vld [vmem:[%s1 + $0xb0] sm:$0xff]
  %v56 = vld [vmem:[%s1 + $0xb8] sm:$0xff]
  %v57 = vld [vmem:[%s1 + $0xc0] sm:$0xff]
  %v58 = vld [vmem:[%s1 + $0xc8] sm:$0xff]
  %v59 = vld [vmem:[%s1 + $0xd0] sm:$0xff]
  %v60 = vld [vmem:[%s1 + $0xd8] sm:$0xff]
  %v61 = vld [vmem:[%s1 + $0xe0] sm:$0xff]
  %v62 = vld [vmem:[%s1 + $0xe8] sm:$0xff]
  %v63 = vld [vmem:[%s1 + $0xf0] sm:$0xff]
  %v64 = vld [vmem:[%s1 + $0xf8] sm:$0xff]
  %v65 = vld [vmem:[%s1 + $0x100] sm:$0xff]
  %v66 = vld [vmem:[%s1 + $0x108] sm:$0xff]
  %v67 = vld [vmem:[%s1 + $0x110] sm:$0xff]
  %v68 = vld [vmem:[%s1 + $0x118] sm:$0xff]
  %v69 = vld [vmem:[%s1 + $0x120] sm:$0xff]
  %v70 = vld [vmem:[%s1 + $0x128] sm:$0xff]
  %v71 = vld [vmem:[%s1 + $0x130] sm:$0xff]
  %v72 = vld [vmem:[%s1 + $0x138] sm:$0xff]
  %v73 = vld [vmem:[%s1 + $0x140] sm:$0xff]
  %v74 = vld [vmem:[%s1 + $0x148] sm:$0xff]
  %v75 = vld [vmem:[%s1 + $0x150] sm:$0xff]
  %v76 = vld [vmem:[%s1 + $0x158] sm:$0xff]
  %v77 = vld [vmem:[%s1 + $0x160] sm:$0xff]
  %v78 = vld [vmem:[%s1 + $0x168] sm:$0xff]
  %v79 = vld [vmem:[%s1 + $0x170] sm:$0xff]
  %v80 = vld [vmem:[%s1 + $0x178] sm:$0xff]
  %v81 = vld [vmem:[%s1 + $0x180] sm:$0xff]
  %v82 = vld [vmem:[%s1 + $0x188] sm:$0xff]
  %v83 = vld [vmem:[%s1 + $0x190] sm:$0xff]
  %v84 = vld [vmem:[%s1 + $0x198] sm:$0xff]
  %v85 = vld [vmem:[%s1 + $0x1a0] sm:$0xff]
  %v86 = vld [vmem:[%s1 + $0x1a8] sm:$0xff]
  %v87 = vld [vmem:[%s1 + $0x1b0] sm:$0xff]
  %v88 = vld [vmem:[%s1 + $0x1b8] sm:$0xff]
  %v89 = vld [vmem:[%s1 + $0x1c0] sm:$0xff]
  %v90 = vld [vmem:[%s1 + $0x1c8] sm:$0xff]
  %v91 = vld [vmem:[%s1 + $0x1d0] sm:$0xff]
  %v92 = vld [vmem:[%s1 + $0x1d8] sm:$0xff]
  %v93 = vld [vmem:[%s1 + $0x1e0] sm:$0xff]
  %v94 = vld [vmem:[%s1 + $0x1e8] sm:$0xff]
  %v95 = vld [vmem:[%s1 + $0x1f0] sm:$0xff]
  %v96 = vld [vmem:[%s1 + $0x1f8] sm:$0xff]
  %v161 = vunpack.c.l.b16 %v33
  %v162 = vunpack.c.h.b16 %v33
  %v163 = vunpack.c.l.b16 %v34
  %v164 = vunpack.c.h.b16 %v34
  %v165 = vunpack.c.l.b16 %v35
  %v166 = vunpack.c.h.b16 %v35
  %v167 = vunpack.c.l.b16 %v36
  %v168 = vunpack.c.h.b16 %v36
  %v169 = vunpack.c.l.b16 %v37
  %v170 = vunpack.c.h.b16 %v37
  %v171 = vunpack.c.l.b16 %v38
  %v172 = vunpack.c.h.b16 %v38
  %v173 = vunpack.c.l.b16 %v39
  %v174 = vunpack.c.h.b16 %v39
  %v175 = vunpack.c.l.b16 %v40
  %v176 = vunpack.c.h.b16 %v40
  %v177 = vunpack.c.l.b16 %v41
  %v178 = vunpack.c.h.b16 %v41
  %v179 = vunpack.c.l.b16 %v42
  %v180 = vunpack.c.h.b16 %v42
  %v181 = vunpack.c.l.b16 %v43
  %v182 = vunpack.c.h.b16 %v43
  %v183 = vunpack.c.l.b16 %v44
  %v184 = vunpack.c.h.b16 %v44
  %v185 = vunpack.c.l.b16 %v45
  %v186 = vunpack.c.h.b16 %v45
  %v187 = vunpack.c.l.b16 %v46
  %v188 = vunpack.c.h.b16 %v46
  %v189 = vunpack.c.l.b16 %v47
  %v190 = vunpack.c.h.b16 %v47
  %v191 = vunpack.c.l.b16 %v48
  %v192 = vunpack.c.h.b16 %v48
  %v193 = vunpack.c.l.b16 %v49
  %v194 = vunpack.c.h.b16 %v49
  %v195 = vunpack.c.l.b16 %v50
  %v196 = vunpack.c.h.b16 %v50
  %v197 = vunpack.c.l.b16 %v51
  %v198 = vunpack.c.h.b16 %v51
  %v199 = vunpack.c.l.b16 %v52
  %v200 = vunpack.c.h.b16 %v52
  %v201 = vunpack.c.l.b16 %v53
  %v202 = vunpack.c.h.b16 %v53
  %v203 = vunpack.c.l.b16 %v54
  %v204 = vunpack.c.h.b16 %v54
  %v205 = vunpack.c.l.b16 %v55
  %v206 = vunpack.c.h.b16 %v55
  %v207 = vunpack.c.l.b16 %v56
  %v208 = vunpack.c.h.b16 %v56
  %v209 = vunpack.c.l.b16 %v57
  %v210 = vunpack.c.h.b16 %v57
  %v211 = vunpack.c.l.b16 %v58
  %v212 = vunpack.c.h.b16 %v58
  %v213 = vunpack.c.l.b16 %v59
  %v214 = vunpack.c.h.b16 %v59
  %v215 = vunpack.c.l.b16 %v60
  %v216 = vunpack.c.h.b16 %v60
  %v217 = vunpack.c.l.b16 %v61
  %v218 = vunpack.c.h.b16 %v61
  %v219 = vunpack.c.l.b16 %v62
  %v220 = vunpack.c.h.b16 %v62
  %v221 = vunpack.c.l.b16 %v63
  %v222 = vunpack.c.h.b16 %v63
  %v223 = vunpack.c.l.b16 %v64
  %v224 = vunpack.c.h.b16 %v64
  %v225 = vunpack.c.l.b16 %v65
  %v226 = vunpack.c.h.b16 %v65
  %v227 = vunpack.c.l.b16 %v66
  %v228 = vunpack.c.h.b16 %v66
  %v229 = vunpack.c.l.b16 %v67
  %v230 = vunpack.c.h.b16 %v67
  %v231 = vunpack.c.l.b16 %v68
  %v232 = vunpack.c.h.b16 %v68
  %v233 = vunpack.c.l.b16 %v69
  %v234 = vunpack.c.h.b16 %v69
  %v235 = vunpack.c.l.b16 %v70
  %v236 = vunpack.c.h.b16 %v70
  %v237 = vunpack.c.l.b16 %v71
  %v238 = vunpack.c.h.b16 %v71
  %v239 = vunpack.c.l.b16 %v72
  %v240 = vunpack.c.h.b16 %v72
  %v241 = vunpack.c.l.b16 %v73
  %v242 = vunpack.c.h.b16 %v73
  %v243 = vunpack.c.l.b16 %v74
  %v244 = vunpack.c.h.b16 %v74
  %v245 = vunpack.c.l.b16 %v75
  %v246 = vunpack.c.h.b16 %v75
  %v247 = vunpack.c.l.b16 %v76
  %v248 = vunpack.c.h.b16 %v76
  %v249 = vunpack.c.l.b16 %v77
  %v250 = vunpack.c.h.b16 %v77
  %v251 = vunpack.c.l.b16 %v78
  %v252 = vunpack.c.h.b16 %v78
  %v253 = vunpack.c.l.b16 %v79
  %v254 = vunpack.c.h.b16 %v79
  %v255 = vunpack.c.l.b16 %v80
  %v256 = vunpack.c.h.b16 %v80
  %v257 = vunpack.c.l.b16 %v81
  %v258 = vunpack.c.h.b16 %v81
  %v259 = vunpack.c.l.b16 %v82
  %v260 = vunpack.c.h.b16 %v82
  %v261 = vunpack.c.l.b16 %v83
  %v262 = vunpack.c.h.b16 %v83
  %v263 = vunpack.c.l.b16 %v84
  %v264 = vunpack.c.h.b16 %v84
  %v265 = vunpack.c.l.b16 %v85
  %v266 = vunpack.c.h.b16 %v85
  %v267 = vunpack.c.l.b16 %v86
  %v268 = vunpack.c.h.b16 %v86
  %v269 = vunpack.c.l.b16 %v87
  %v270 = vunpack.c.h.b16 %v87
  %v271 = vunpack.c.l.b16 %v88
  %v272 = vunpack.c.h.b16 %v88
  %v273 = vunpack.c.l.b16 %v89
  %v274 = vunpack.c.h.b16 %v89
  %v275 = vunpack.c.l.b16 %v90
  %v276 = vunpack.c.h.b16 %v90
  %v277 = vunpack.c.l.b16 %v91
  %v278 = vunpack.c.h.b16 %v91
  %v279 = vunpack.c.l.b16 %v92
  %v280 = vunpack.c.h.b16 %v92
  %v281 = vunpack.c.l.b16 %v93
  %v282 = vunpack.c.h.b16 %v93
  %v283 = vunpack.c.l.b16 %v94
  %v284 = vunpack.c.h.b16 %v94
  %v285 = vunpack.c.l.b16 %v95
  %v286 = vunpack.c.h.b16 %v95
  %v287 = vunpack.c.l.b16 %v96
  %v288 = vunpack.c.h.b16 %v96
  %v289 = vpack.c.b16 %v165, %v161
  %v290 = vpack.c.b16 %v166, %v162
  %v291 = vpack.c.b16 %v167, %v163
  %v292 = vpack.c.b16 %v168, %v164
  %v293 = vpack.c.b16 %v173, %v169
  %v294 = vpack.c.b16 %v174, %v170
  %v295 = vpack.c.b16 %v175, %v171
  %v296 = vpack.c.b16 %v176, %v172
  %v297 = vpack.c.b16 %v181, %v177
  %v298 = vpack.c.b16 %v182, %v178
  %v299 = vpack.c.b16 %v183, %v179
  %v300 = vpack.c.b16 %v184, %v180
  %v301 = vpack.c.b16 %v189, %v185
  %v302 = vpack.c.b16 %v190, %v186
  %v303 = vpack.c.b16 %v191, %v187
  %v304 = vpack.c.b16 %v192, %v188
  %v305 = vpack.c.b16 %v197, %v193
  %v306 = vpack.c.b16 %v198, %v194
  %v307 = vpack.c.b16 %v199, %v195
  %v308 = vpack.c.b16 %v200, %v196
  %v309 = vpack.c.b16 %v205, %v201
  %v310 = vpack.c.b16 %v206, %v202
  %v311 = vpack.c.b16 %v207, %v203
  %v312 = vpack.c.b16 %v208, %v204
  %v313 = vpack.c.b16 %v213, %v209
  %v314 = vpack.c.b16 %v214, %v210
  %v315 = vpack.c.b16 %v215, %v211
  %v316 = vpack.c.b16 %v216, %v212
  %v317 = vpack.c.b16 %v221, %v217
  %v318 = vpack.c.b16 %v222, %v218
  %v319 = vpack.c.b16 %v223, %v219
  %v320 = vpack.c.b16 %v224, %v220
  %v321 = vpack.c.b16 %v229, %v225
  %v322 = vpack.c.b16 %v230, %v226
  %v323 = vpack.c.b16 %v231, %v227
  %v324 = vpack.c.b16 %v232, %v228
  %v325 = vpack.c.b16 %v237, %v233
  %v326 = vpack.c.b16 %v238, %v234
  %v327 = vpack.c.b16 %v239, %v235
  %v328 = vpack.c.b16 %v240, %v236
  %v329 = vpack.c.b16 %v245, %v241
  %v330 = vpack.c.b16 %v246, %v242
  %v331 = vpack.c.b16 %v247, %v243
  %v332 = vpack.c.b16 %v248, %v244
  %v333 = vpack.c.b16 %v253, %v249
  %v334 = vpack.c.b16 %v254, %v250
  %v335 = vpack.c.b16 %v255, %v251
  %v336 = vpack.c.b16 %v256, %v252
  %v337 = vpack.c.b16 %v261, %v257
  %v338 = vpack.c.b16 %v262, %v258
  %v339 = vpack.c.b16 %v263, %v259
  %v340 = vpack.c.b16 %v264, %v260
  %v341 = vpack.c.b16 %v269, %v265
  %v342 = vpack.c.b16 %v270, %v266
  %v343 = vpack.c.b16 %v271, %v267
  %v344 = vpack.c.b16 %v272, %v268
  %v345 = vpack.c.b16 %v277, %v273
  %v346 = vpack.c.b16 %v278, %v274
  %v347 = vpack.c.b16 %v279, %v275
  %v348 = vpack.c.b16 %v280, %v276
  %v349 = vpack.c.b16 %v285, %v281
  %v350 = vpack.c.b16 %v286, %v282
  %v351 = vpack.c.b16 %v287, %v283
  %v352 = vpack.c.b16 %v288, %v284
  %417 = vmatprep.subr.bf16.mxu0 %v290
  %418 = vmatpush1.bf16.msra.mxu0 %v289
  %419 = vmatprep.subr.bf16.mxu0 %v294
  %420 = vmatpush1.bf16.msra.mxu0 %v293
  %421 = vmatprep.subr.bf16.mxu0 %v298
  %422 = vmatpush1.bf16.msra.mxu0 %v297
  %423 = vmatprep.subr.bf16.mxu0 %v302
  %424 = vmatpush1.bf16.msra.mxu0 %v301
  %425 = vmatprep.subr.bf16.mxu0 %v306
  %426 = vmatpush1.bf16.msra.mxu0 %v305
  %427 = vmatprep.subr.bf16.mxu0 %v310
  %428 = vmatpush1.bf16.msra.mxu0 %v309
  %429 = vmatprep.subr.bf16.mxu0 %v314
  %430 = vmatpush1.bf16.msra.mxu0 %v313
  %431 = vmatprep.subr.bf16.mxu0 %v318
  %432 = vmatpush1.bf16.msra.mxu0 %v317
  %433 = vmatprep.subr.bf16.mxu0 %v322
  %434 = vmatpush1.bf16.msra.mxu0 %v321
  %435 = vmatprep.subr.bf16.mxu0 %v326
  %436 = vmatpush1.bf16.msra.mxu0 %v325
  %437 = vmatprep.subr.bf16.mxu0 %v330
  %438 = vmatpush1.bf16.msra.mxu0 %v329
  %439 = vmatprep.subr.bf16.mxu0 %v334
  %440 = vmatpush1.bf16.msra.mxu0 %v333
  %441 = vmatprep.subr.bf16.mxu0 %v338
  %442 = vmatpush1.bf16.msra.mxu0 %v337
  %443 = vmatprep.subr.bf16.mxu0 %v342
  %444 = vmatpush1.bf16.msra.mxu0 %v341
  %445 = vmatprep.subr.bf16.mxu0 %v346
  %446 = vmatpush1.bf16.msra.mxu0 %v345
  %447 = vmatprep.subr.bf16.mxu0 %v350
  %448 = vmatpush1.bf16.msra.mxu0 %v349
  %449 = vmatprep.mubr.bf16.mxu0 %v32
  %450 = vmatmul.mubr.bf16.gmra.mrb[0].mxu0 %v31
  %v451 = vpop.f32.mrb[0].mxu0
  %v452 = vadd.f32 0.0, %v451
  %v453 = vpop.f32.mrb[0].mxu0
  %v454 = vadd.f32 0.0, %v453
  %v455 = vpop.f32.mrb[0].mxu0
  %v456 = vpop.f32.mrb[0].mxu0
  %457 = vdwg.mxu0
  %458 = vmatprep.subr.bf16.mxu0 %v292
  %459 = vmatpush1.bf16.msra.mxu0 %v291
  %460 = vmatprep.subr.bf16.mxu0 %v296
  %461 = vmatpush1.bf16.msra.mxu0 %v295
  %462 = vmatprep.subr.bf16.mxu0 %v300
  %463 = vmatpush1.bf16.msra.mxu0 %v299
  %464 = vmatprep.subr.bf16.mxu0 %v304
  %465 = vmatpush1.bf16.msra.mxu0 %v303
  %466 = vmatprep.subr.bf16.mxu0 %v308
  %467 = vmatpush1.bf16.msra.mxu0 %v307
  %468 = vmatprep.subr.bf16.mxu0 %v312
  %469 = vmatpush1.bf16.msra.mxu0 %v311
  %470 = vmatprep.subr.bf16.mxu0 %v316
  %471 = vmatpush1.bf16.msra.mxu0 %v315
  %472 = vmatprep.subr.bf16.mxu0 %v320
  %473 = vmatpush1.bf16.msra.mxu0 %v319
  %474 = vmatprep.subr.bf16.mxu0 %v324
  %475 = vmatpush1.bf16.msra.mxu0 %v323
  %476 = vmatprep.subr.bf16.mxu0 %v328
  %477 = vmatpush1.bf16.msra.mxu0 %v327
  %478 = vmatprep.subr.bf16.mxu0 %v332
  %479 = vmatpush1.bf16.msra.mxu0 %v331
  %480 = vmatprep.subr.bf16.mxu0 %v336
  %481 = vmatpush1.bf16.msra.mxu0 %v335
  %482 = vmatprep.subr.bf16.mxu0 %v340
  %483 = vmatpush1.bf16.msra.mxu0 %v339
  %484 = vmatprep.subr.bf16.mxu0 %v344
  %485 = vmatpush1.bf16.msra.mxu0 %v343
  %486 = vmatprep.subr.bf16.mxu0 %v348
  %487 = vmatpush1.bf16.msra.mxu0 %v347
  %488 = vmatprep.subr.bf16.mxu0 %v352
  %489 = vmatpush1.bf16.msra.mxu0 %v351
  %490 = vmatprep.mubr.bf16.mxu0 %v32
  %491 = vmatmul.mubr.bf16.gmra.mrb[0].mxu0 %v31
  %v492 = vpop.f32.mrb[0].mxu0
  %v493 = vadd.f32 0.0, %v492
  %v494 = vpop.f32.mrb[0].mxu0
  %v495 = vadd.f32 0.0, %v494
  %v496 = vpop.f32.mrb[0].mxu0
  %v497 = vpop.f32.mrb[0].mxu0
  %498 = vdwg.mxu0
  %v499 = vadd.f32 %v25, %v452
  %v500 = vadd.f32 %v26, %v454
  %v501 = vadd.f32 %v27, %v493
  %v502 = vadd.f32 %v28, %v495
  %503 = vst [vmem:[%s4] sm:$0xff] %v499
  %504 = vst [vmem:[%s4 + $0x8] sm:$0xff] %v500
  %505 = vst [vmem:[%s4 + $0x10] sm:$0xff] %v501
  %506 = vst [vmem:[%s4 + $0x18] sm:$0xff] %v502
  // Predicated region
  $region22: #{_lambda_.25} parent=0 // pred_check
    %p507 = pneg %p17
  $region23: #{_lambda_.25} parent=0 // pred_check_branch
    %509 = sbr.rel (%p507) target = $region25
  $region24: #{_lambda_.25} parent=0 // pred_region
    %v510 = vld [vmem:[%s4] sm:$0xff]
    %v511 = vld [vmem:[%s4 + $0x8] sm:$0xff]
    %v512 = vld [vmem:[%s4 + $0x10] sm:$0xff]
    %v513 = vld [vmem:[%s4 + $0x18] sm:$0xff]
    %v514 = vld [vmem:[%s2] sm:$0xf]
    %v516 = vlaneseq
    %v517 = vshrl.u32 %v516, 7
    %v518 = vsub.s32 0, %v517
    %v519 = vrot.slane %v514, %v518
    %v520 = vlaneseq
    %v521 = vshrl.u32 %v520, 7
    %v522 = vsub.s32 1, %v521
    %v523 = vrot.slane %v514, %v522
    %v524 = vlaneseq
    %v525 = vshrl.u32 %v524, 7
    %v526 = vsub.s32 2, %v525
    %v527 = vrot.slane %v514, %v526
    %v528 = vlaneseq
    %v529 = vshrl.u32 %v528, 7
    %v530 = vsub.s32 3, %v529
    %v531 = vrot.slane %v514, %v530
    %v536 = vmul.f32 %v510, %v519
    %v537 = vmul.f32 %v511, %v523
    %v538 = vmul.f32 %v512, %v527
    %v539 = vmul.f32 %v513, %v531
    %v540 = vld [vmem:[%s3] sm:$0xf]
    %v542 = vlaneseq
    %v543 = vshrl.u32 %v542, 7
    %v544 = vsub.s32 0, %v543
    %v545 = vrot.slane %v540, %v544
    %v546 = vlaneseq
    %v547 = vshrl.u32 %v546, 7
    %v548 = vsub.s32 1, %v547
    %v549 = vrot.slane %v540, %v548
    %v550 = vlaneseq
    %v551 = vshrl.u32 %v550, 7
    %v552 = vsub.s32 2, %v551
    %v553 = vrot.slane %v540, %v552
    %v554 = vlaneseq
    %v555 = vshrl.u32 %v554, 7
    %v556 = vsub.s32 3, %v555
    %v557 = vrot.slane %v540, %v556
    %v562 = vadd.f32 %v536, %v545
    %v563 = vadd.f32 %v537, %v549
    %v564 = vadd.f32 %v538, %v553
    %v565 = vadd.f32 %v539, %v557
    %566 = vst [vmem:[%s4] sm:$0xff] %v562
    %567 = vst [vmem:[%s4 + $0x8] sm:$0xff] %v563
    %568 = vst [vmem:[%s4 + $0x10] sm:$0xff] %v564
    %569 = vst [vmem:[%s4 + $0x18] sm:$0xff] %v565
  $region25: #{_lambda_.25} parent=0 // pred_fallthru
    _
  // Predicated region
  $region26: #{_lambda_.25} parent=0 // pred_check
    _
  $region27: #{_lambda_.25} parent=0 // pred_check_branch
    %571 = sbr.rel (0) target = $region29
  $region28: #{_lambda_.25} parent=0 // pred_region
    _
  $region29: #{_lambda_.25} parent=0 // pred_fallthru
    _
  // Predicated region
  $region30: #{_lambda_.25} parent=0 // pred_check
    _
  $region31: #{_lambda_.25} parent=0 // pred_check_branch
    %573 = sbr.rel (0) target = $region33
  $region32: #{_lambda_.25} parent=0 // pred_region
    _
  $region33: #{_lambda_.25} parent=0 // pred_fallthru
    _

// kernel: _lambda_.27
$region0: #{_lambda_.27}
  #allocation0 [shape = 'u32[]', space=smem, size = 0x4, offset = 0x4, fixed_abs, tag = 'smem constant byte address 0x4 - core index']
  #allocation1 [shape = 'u32[144,128]{1,0:T(1,128)}', space=vmem, size = 0x12000, scoped, tag = 'internal scratch']
  %s0 = inlined_call_operand.vmem [shape: bf16[8,4608], index: 0, kind: input, shape index: {}]
  %s1 = inlined_call_operand.vmem [shape: bf16[4608,512], index: 1, kind: input, shape index: {}]
  %s2 = inlined_call_operand.vmem [shape: f32[1,512], index: 2, kind: input, shape index: {}]
  %s3 = inlined_call_operand.vmem [shape: f32[1,512], index: 3, kind: input, shape index: {}]
  %s4 = inlined_call_operand.vmem [shape: f32[8,512], index: 4, kind: input, shape index: {}]
  %s5 = inlined_call_operand.vmem [shape: f32[8,512], index: 5, kind: output, shape index: {0}]
  %s6 = inlined_call_operand.vmem [shape: f32[8,512], index: 6, kind: output, shape index: {1}]
  %7 = xla_tuple %s5, %s6
  %s8 = sld [smem:[#allocation0]]
  $region69: #{_lambda_.27} parent=0
    _
  %s10 = ssub.s32 1, %s8
  %s11 = scalar_select 0, %s10, %s8
  loop: start=0, step=1, limit=20
  $region2: #{_lambda_.27} parent=0 // loop_pre_header
    _
  $region3: #{_lambda_.27} parent=0 // loop_header
    %s13 = sphi 0, %s17
    %p14 = scmp.ge.s32.totalorder %s13, 20
    %s20 = sphi 0, %s32
    %s21 = sphi 0, %s28
    %s22 = sphi 0, %s20
    %s23 = sphi 0, %s21
    %s24 = sphi 0, %s22
    %s25 = sphi 0, %s23
    %s37 = sphi 0, %s39
    %s40 = sphi 0, %s37
    %s41 = sphi 0, %s40
    %s57 = sphi 0, %s41
    %s63 = sphi 0, %s65
    %s66 = sphi 0, %s63
    %s67 = sphi 0, %s66
    %s83 = sphi 0, %s67
    %s87 = sphi 0, %s87
    %s89 = sphi 0, %s87
    %s90 = sphi 0, %s89
    %s104 = sphi 0, %s90
    %s108 = sphi 0, %s108
    %s110 = sphi 0, %s108
    %s111 = sphi 0, %s110
    %s125 = sphi 0, %s111
    %s131 = sphi 0, %s133
    %s134 = sphi 0, %s131
    %s135 = sphi 0, %s134
    %s151 = sphi 0, %s135
    %s157 = sphi 0, %s159
    %s160 = sphi 0, %s157
    %s161 = sphi 0, %s160
    %s177 = sphi 0, %s161
    %s183 = sphi 0, %s185
    %s186 = sphi 0, %s183
    %s187 = sphi 0, %s186
    %s203 = sphi 0, %s187
  $region4: #{_lambda_.27} parent=0 // loop_header_branch
    %16 = sbr.rel (%p14) target = $region8
  $region5: #{_lambda_.27} parent=0 // loop_body
    %s18 = ssub.s32 %s13, 1
    %s19 = ssub.s32 %s13, 2
    %s26 = sadd.s32 1, %s21
    %p27 = scmp.ge.s32.totalorder %s26, 18
    %s28 = scalar_select %p27, 0, %s26
    %s29 = sadd.s32 1, %s20
    %s30 = scalar_select %p27, %s29, %s20
    %p31 = scmp.ge.s32.totalorder %s30, 1
    %s32 = scalar_select %p31, 0, %s30
    %s33 = ssub.s32 %s20, %s32
    %s34 = ssub.s32 %s21, %s28
    %s35 = sor.u32 %s33, %s34
    %p36 = scmp.eq.s32.totalorder %s35, 0
    %s38 = sadd.s32 %s37, 1
    %s39 = scalar_select %p36, %s37, %s38
    %p42 = pneg %p36
    %p43 = scmp.eq.s32.totalorder %s13, 17
    %p44 = por %p42, %p43
    %p45 = scmp.ne.s32.totalorder %s37, %s40
    %p46 = scmp.eq.s32.totalorder %s13, 0
    %p47 = por %p45, %p46
    %p48 = scmp.ne.s32.totalorder %s37, %s40
    %p49 = scmp.eq.s32.totalorder %s18, 17
    %p50 = por %p48, %p49
    %p51 = scmp.ne.s32.totalorder %s40, %s41
    %p52 = scmp.eq.s32.totalorder %s18, 0
    %p53 = por %p51, %p52
    %p54 = scmp.ne.s32.totalorder %s40, %s41
    %p55 = scmp.eq.s32.totalorder %s19, 17
    %p56 = por %p54, %p55
    %p58 = scmp.ne.s32.totalorder %s41, %s57
    %p59 = scmp.eq.s32.totalorder %s19, 0
    %p60 = por %p58, %p59
    %s61 = ssub.s32 %s21, %s28
    %p62 = scmp.eq.s32.totalorder %s61, 0
    %s64 = sadd.s32 %s63, 1
    %s65 = scalar_select %p62, %s63, %s64
    %p68 = pneg %p62
    %p69 = scmp.eq.s32.totalorder %s13, 17
    %p70 = por %p68, %p69
    %p71 = scmp.ne.s32.totalorder %s63, %s66
    %p72 = scmp.eq.s32.totalorder %s13, 0
    %p73 = por %p71, %p72
    %p74 = scmp.ne.s32.totalorder %s63, %s66
    %p75 = scmp.eq.s32.totalorder %s18, 17
    %p76 = por %p74, %p75
    %p77 = scmp.ne.s32.totalorder %s66, %s67
    %p78 = scmp.eq.s32.totalorder %s18, 0
    %p79 = por %p77, %p78
    %p80 = scmp.ne.s32.totalorder %s66, %s67
    %p81 = scmp.eq.s32.totalorder %s19, 17
    %p82 = por %p80, %p81
    %p84 = scmp.ne.s32.totalorder %s67, %s83
    %p85 = scmp.eq.s32.totalorder %s19, 0
    %p86 = por %p84, %p85
    %s88 = sadd.s32 %s87, 1
    %p91 = scmp.eq.s32.totalorder %s13, 17
    %p92 = scmp.ne.s32.totalorder %s87, %s89
    %p93 = scmp.eq.s32.totalorder %s13, 0
    %p94 = por %p92, %p93
    %p95 = scmp.ne.s32.totalorder %s87, %s89
    %p96 = scmp.eq.s32.totalorder %s18, 17
    %p97 = por %p95, %p96
    %p98 = scmp.ne.s32.totalorder %s89, %s90
    %p99 = scmp.eq.s32.totalorder %s18, 0
    %p100 = por %p98, %p99
    %p101 = scmp.ne.s32.totalorder %s89, %s90
    %p102 = scmp.eq.s32.totalorder %s19, 17
    %p103 = por %p101, %p102
    %p105 = scmp.ne.s32.totalorder %s90, %s104
    %p106 = scmp.eq.s32.totalorder %s19, 0
    %p107 = por %p105, %p106
    %s109 = sadd.s32 %s108, 1
    %p112 = scmp.eq.s32.totalorder %s13, 17
    %p113 = scmp.ne.s32.totalorder %s108, %s110
    %p114 = scmp.eq.s32.totalorder %s13, 0
    %p115 = por %p113, %p114
    %p116 = scmp.ne.s32.totalorder %s108, %s110
    %p117 = scmp.eq.s32.totalorder %s18, 17
    %p118 = por %p116, %p117
    %p119 = scmp.ne.s32.totalorder %s110, %s111
    %p120 = scmp.eq.s32.totalorder %s18, 0
    %p121 = por %p119, %p120
    %p122 = scmp.ne.s32.totalorder %s110, %s111
    %p123 = scmp.eq.s32.totalorder %s19, 17
    %p124 = por %p122, %p123
    %p126 = scmp.ne.s32.totalorder %s111, %s125
    %p127 = scmp.eq.s32.totalorder %s19, 0
    %p128 = por %p126, %p127
    %s129 = ssub.s32 %s20, %s32
    %p130 = scmp.eq.s32.totalorder %s129, 0
    %s132 = sadd.s32 %s131, 1
    %s133 = scalar_select %p130, %s131, %s132
    %p136 = pneg %p130
    %p137 = scmp.eq.s32.totalorder %s13, 17
    %p138 = por %p136, %p137
    %p139 = scmp.ne.s32.totalorder %s131, %s134
    %p140 = scmp.eq.s32.totalorder %s13, 0
    %p141 = por %p139, %p140
    %p142 = scmp.ne.s32.totalorder %s131, %s134
    %p143 = scmp.eq.s32.totalorder %s18, 17
    %p144 = por %p142, %p143
    %p145 = scmp.ne.s32.totalorder %s134, %s135
    %p146 = scmp.eq.s32.totalorder %s18, 0
    %p147 = por %p145, %p146
    %p148 = scmp.ne.s32.totalorder %s134, %s135
    %p149 = scmp.eq.s32.totalorder %s19, 17
    %p150 = por %p148, %p149
    %p152 = scmp.ne.s32.totalorder %s135, %s151
    %p153 = scmp.eq.s32.totalorder %s19, 0
    %p154 = por %p152, %p153
    %s155 = ssub.s32 %s20, %s32
    %p156 = scmp.eq.s32.totalorder %s155, 0
    %s158 = sadd.s32 %s157, 1
    %s159 = scalar_select %p156, %s157, %s158
    %p162 = pneg %p156
    %p163 = scmp.eq.s32.totalorder %s13, 17
    %p164 = por %p162, %p163
    %p165 = scmp.ne.s32.totalorder %s157, %s160
    %p166 = scmp.eq.s32.totalorder %s13, 0
    %p167 = por %p165, %p166
    %p168 = scmp.ne.s32.totalorder %s157, %s160
    %p169 = scmp.eq.s32.totalorder %s18, 17
    %p170 = por %p168, %p169
    %p171 = scmp.ne.s32.totalorder %s160, %s161
    %p172 = scmp.eq.s32.totalorder %s18, 0
    %p173 = por %p171, %p172
    %p174 = scmp.ne.s32.totalorder %s160, %s161
    %p175 = scmp.eq.s32.totalorder %s19, 17
    %p176 = por %p174, %p175
    %p178 = scmp.ne.s32.totalorder %s161, %s177
    %p179 = scmp.eq.s32.totalorder %s19, 0
    %p180 = por %p178, %p179
    %s181 = ssub.s32 %s20, %s32
    %p182 = scmp.eq.s32.totalorder %s181, 0
    %s184 = sadd.s32 %s183, 1
    %s185 = scalar_select %p182, %s183, %s184
    %p188 = pneg %p182
    %p189 = scmp.eq.s32.totalorder %s13, 17
    %p190 = por %p188, %p189
    %p191 = scmp.ne.s32.totalorder %s183, %s186
    %p192 = scmp.eq.s32.totalorder %s13, 0
    %p193 = por %p191, %p192
    %p194 = scmp.ne.s32.totalorder %s183, %s186
    %p195 = scmp.eq.s32.totalorder %s18, 17
    %p196 = por %p194, %p195
    %p197 = scmp.ne.s32.totalorder %s186, %s187
    %p198 = scmp.eq.s32.totalorder %s18, 0
    %p199 = por %p197, %p198
    %p200 = scmp.ne.s32.totalorder %s186, %s187
    %p201 = scmp.eq.s32.totalorder %s19, 17
    %p202 = por %p200, %p201
    %p204 = scmp.ne.s32.totalorder %s187, %s203
    %p205 = scmp.eq.s32.totalorder %s19, 0
    %p206 = por %p204, %p205
    %p207 = scmp.le.s32.totalorder 1, %s13
    %p208 = scmp.lt.s32.totalorder %s13, 19
    %p209 = pnand %p207, %p208
    %p210 = pneg %p209
    // Predicated region
    $region9: #{_lambda_.27} parent=5 // pred_check
      _
    $region10: #{_lambda_.27} parent=5 // pred_check_branch
      %212 = sbr.rel (%p209) target = $region12
    $region11: #{_lambda_.27} parent=5 // pred_region
      %s213 = ssub.s32 %s13, 1
      // Predicated region
      $region13: #{_lambda_.27} parent=11 // pred_check
        %p214 = pneg %p100
      $region14: #{_lambda_.27} parent=11 // pred_check_branch
        %216 = sbr.rel (%p214) target = $region16
      $region15: #{_lambda_.27} parent=11 // pred_region
        _
      $region16: #{_lambda_.27} parent=11 // pred_fallthru
        _
      // Predicated region
      $region17: #{_lambda_.27} parent=11 // pred_check
        %p217 = pneg %p121
      $region18: #{_lambda_.27} parent=11 // pred_check_branch
        %219 = sbr.rel (%p217) target = $region20
      $region19: #{_lambda_.27} parent=11 // pred_region
        _
      $region20: #{_lambda_.27} parent=11 // pred_fallthru
        _
      // Predicated region
      $region21: #{_lambda_.27} parent=11 // pred_check
        %p220 = pneg %p147
      $region22: #{_lambda_.27} parent=11 // pred_check_branch
        %222 = sbr.rel (%p220) target = $region24
      $region23: #{_lambda_.27} parent=11 // pred_region
        %p223 = scmp.lt.s32.totalorder %s22, 0
        %s224 = scalar_select %p223, %s22, 0
        %s225 = smul.addr %s224, 4
        %s226 = smul.addr %s225, 8
        %s227 = scalar_lea.vmem %s4, %s226
      $region24: #{_lambda_.27} parent=11 // pred_fallthru
        _
    $region12: #{_lambda_.27} parent=5 // pred_fallthru
      _
    %p228 = scmp.lt.s32.totalorder %s13, 18
    // Predicated region
    $region25: #{_lambda_.27} parent=5 // pred_check
      %p229 = pneg %p228
    $region26: #{_lambda_.27} parent=5 // pred_check_branch
      %231 = sbr.rel (%p229) target = $region28
    $region27: #{_lambda_.27} parent=5 // pred_region
      // Predicated region
      $region29: #{_lambda_.27} parent=27 // pred_check
        %p232 = pneg %p47
      $region30: #{_lambda_.27} parent=27 // pred_check_branch
        %234 = sbr.rel (%p232) target = $region32
      $region31: #{_lambda_.27} parent=27 // pred_region
        %s235 = smul.u32 2, %s21
        %p236 = scmp.lt.s32.totalorder %s20, 0
        %s237 = scalar_select %p236, %s20, 0
        %p238 = scmp.lt.s32.totalorder %s235, 35
        %s239 = scalar_select %p238, %s235, 35
        %s240 = smul.addr %s237, 36
        %s241 = sadd.s32 %s239, %s240
        %s242 = smul.addr %s241, 4
        %s243 = scalar_lea.vmem %s0, %s242
        %s244 = smul.u32 2, %s21
      $region32: #{_lambda_.27} parent=27 // pred_fallthru
        _
      // Predicated region
      $region33: #{_lambda_.27} parent=27 // pred_check
        %p245 = pneg %p73
      $region34: #{_lambda_.27} parent=27 // pred_check_branch
        %247 = sbr.rel (%p245) target = $region36
      $region35: #{_lambda_.27} parent=27 // pred_region
        %s248 = smul.u32 32, %s21
        %p249 = scmp.lt.s32.totalorder %s248, 575
        %s250 = scalar_select %p249, %s248, 575
        %s251 = smul.addr %s250, 4
        %s252 = smul.addr %s251, 4
        %s253 = scalar_lea.vmem %s1, %s252
        %s254 = smul.u32 32, %s21
      $region36: #{_lambda_.27} parent=27 // pred_fallthru
        _
    $region28: #{_lambda_.27} parent=5 // pred_fallthru
      _
    %p255 = scmp.le.s32.totalorder 1, %s13
    %p256 = scmp.lt.s32.totalorder %s13, 19
    %p257 = pnand %p255, %p256
    %p258 = pneg %p257
    // Predicated region
    $region37: #{_lambda_.27} parent=5 // pred_check
      _
    $region38: #{_lambda_.27} parent=5 // pred_check_branch
      %260 = sbr.rel (%p257) target = $region40
    $region39: #{_lambda_.27} parent=5 // pred_region
      %s261 = ssub.s32 %s13, 1
      %s262 = smul.u32 2, %s23
      %p263 = scmp.lt.s32.totalorder %s22, 0
      %s264 = scalar_select %p263, %s22, 0
      %p265 = scmp.lt.s32.totalorder %s262, 35
      %s266 = scalar_select %p265, %s262, 35
      %s267 = smul.addr %s264, 36
      %s268 = sadd.s32 %s266, %s267
      %s269 = smul.addr %s268, 4
      %s270 = scalar_lea.vmem %s0, %s269
      %p271 = pneg %p53
      %p272 = pneg %p50
      %s273 = smul.u32 32, %s23
      %p274 = scmp.lt.s32.totalorder %s273, 575
      %s275 = scalar_select %p274, %s273, 575
      %s276 = smul.addr %s275, 4
      %s277 = smul.addr %s276, 4
      %s278 = scalar_lea.vmem %s1, %s277
      %p279 = pneg %p79
      %p280 = pneg %p76
      %p281 = pneg %p100
      %p282 = pneg %p97
      %p283 = pneg %p121
      %p284 = pneg %p118
      %p285 = scmp.lt.s32.totalorder %s22, 0
      %s286 = scalar_select %p285, %s22, 0
      %s287 = smul.addr %s286, 4
      %s288 = smul.addr %s287, 8
      %s289 = scalar_lea.vmem %s4, %s288
      %p290 = pneg %p147
      %p291 = pneg %p144
      %p292 = pneg %p173
      %p293 = pneg %p170
      %p294 = scmp.lt.s32.totalorder %s22, 0
      %s295 = scalar_select %p294, %s22, 0
      %s296 = smul.addr %s295, 4
      %s297 = smul.addr %s296, 8
      %s298 = scalar_lea.vmem %s5, %s297
      %p299 = pneg %p199
      %p300 = pneg %p196
      %p301 = scmp.lt.s32.totalorder %s22, 0
      %s302 = scalar_select %p301, %s22, 0
      %s303 = smul.addr %s302, 4
      %s304 = smul.addr %s303, 8
      %s305 = scalar_lea.vmem %s6, %s304
      %s306 = smul.u32 2, %s23
      %p307 = scmp.lt.s32.totalorder %s22, 0
      %s308 = scalar_select %p307, %s22, 0
      %p309 = scmp.lt.s32.totalorder %s306, 35
      %s310 = scalar_select %p309, %s306, 35
      %s311 = smul.addr %s308, 36
      %s312 = sadd.s32 %s310, %s311
      %s313 = smul.addr %s312, 4
      %s314 = scalar_lea.vmem %s0, %s313
      %s315 = smul.u32 2, %s23
      %s316 = smul.u32 32, %s23
      %p317 = scmp.lt.s32.totalorder %s316, 575
      %s318 = scalar_select %p317, %s316, 575
      %s319 = smul.addr %s318, 4
      %s320 = smul.addr %s319, 4
      %s321 = scalar_lea.vmem %s1, %s320
      %s322 = smul.u32 32, %s23
      %p323 = scmp.lt.s32.totalorder %s22, 0
      %s324 = scalar_select %p323, %s22, 0
      %s325 = smul.addr %s324, 4
      %s326 = smul.addr %s325, 8
      %s327 = scalar_lea.vmem %s4, %s326
      %p328 = scmp.lt.s32.totalorder %s22, 0
      %s329 = scalar_select %p328, %s22, 0
      %s330 = smul.addr %s329, 4
      %s331 = smul.addr %s330, 8
      %s332 = scalar_lea.vmem %s5, %s331
      %p333 = scmp.lt.s32.totalorder %s22, 0
      %s334 = scalar_select %p333, %s22, 0
      %s335 = smul.addr %s334, 4
      %s336 = smul.addr %s335, 8
      %s337 = scalar_lea.vmem %s6, %s336
      %p338 = scmp.eq.s32.totalorder %s23, 0
      // Predicated region
      $region41: #{_lambda_.27} parent=39 // pred_check
        %p339 = pneg %p338
      $region42: #{_lambda_.27} parent=39 // pred_check_branch
        %341 = sbr.rel (%p339) target = $region44
      $region43: #{_lambda_.27} parent=39 // pred_region
        %342 = vst [vmem:[%s337] sm:$0xff] 0.0
        %343 = vst [vmem:[%s337 + $0x8] sm:$0xff] 0.0
        %344 = vst [vmem:[%s337 + $0x10] sm:$0xff] 0.0
        %345 = vst [vmem:[%s337 + $0x18] sm:$0xff] 0.0
      $region44: #{_lambda_.27} parent=39 // pred_fallthru
        _
      %v346 = vld [vmem:[%s337] sm:$0xff]
      %v347 = vld [vmem:[%s337 + $0x8] sm:$0xff]
      %v348 = vld [vmem:[%s337 + $0x10] sm:$0xff]
      %v349 = vld [vmem:[%s337 + $0x18] sm:$0xff]
      %v350 = vld [vmem:[%s314] sm:$0xff]
      %v351 = vld [vmem:[%s321] sm:$0xff]
      %v352 = vld [vmem:[%s321 + $0x8] sm:$0xff]
      %v353 = vld [vmem:[%s321 + $0x10] sm:$0xff]
      %v354 = vld [vmem:[%s321 + $0x18] sm:$0xff]
      %v355 = vld [vmem:[%s321 + $0x20] sm:$0xff]
      %v356 = vld [vmem:[%s321 + $0x28] sm:$0xff]
      %v357 = vld [vmem:[%s321 + $0x30] sm:$0xff]
      %v358 = vld [vmem:[%s321 + $0x38] sm:$0xff]
      %v359 = vld [vmem:[%s321 + $0x40] sm:$0xff]
      %v360 = vld [vmem:[%s321 + $0x48] sm:$0xff]
      %v361 = vld [vmem:[%s321 + $0x50] sm:$0xff]
      %v362 = vld [vmem:[%s321 + $0x58] sm:$0xff]
      %v363 = vld [vmem:[%s321 + $0x60] sm:$0xff]
      %v364 = vld [vmem:[%s321 + $0x68] sm:$0xff]
      %v365 = vld [vmem:[%s321 + $0x70] sm:$0xff]
      %v366 = vld [vmem:[%s321 + $0x78] sm:$0xff]
      %v367 = vld [vmem:[%s321 + $0x80] sm:$0xff]
      %v368 = vld [vmem:[%s321 + $0x88] sm:$0xff]
      %v369 = vld [vmem:[%s321 + $0x90] sm:$0xff]
      %v370 = vld [vmem:[%s321 + $0x98] sm:$0xff]
      %v371 = vld [vmem:[%s321 + $0xa0] sm:$0xff]
      %v372 = vld [vmem:[%s321 + $0xa8] sm:$0xff]
      %v373 = vld [vmem:[%s321 + $0xb0] sm:$0xff]
      %v374 = vld [vmem:[%s321 + $0xb8] sm:$0xff]
      %v375 = vld [vmem:[%s321 + $0xc0] sm:$0xff]
      %v376 = vld [vmem:[%s321 + $0xc8] sm:$0xff]
      %v377 = vld [vmem:[%s321 + $0xd0] sm:$0xff]
      %v378 = vld [vmem:[%s321 + $0xd8] sm:$0xff]
      %v379 = vld [vmem:[%s321 + $0xe0] sm:$0xff]
      %v380 = vld [vmem:[%s321 + $0xe8] sm:$0xff]
      %v381 = vld [vmem:[%s321 + $0xf0] sm:$0xff]
      %v382 = vld [vmem:[%s321 + $0xf8] sm:$0xff]
      %v383 = vld [vmem:[%s321 + $0x100] sm:$0xff]
      %v384 = vld [vmem:[%s321 + $0x108] sm:$0xff]
      %v385 = vld [vmem:[%s321 + $0x110] sm:$0xff]
      %v386 = vld [vmem:[%s321 + $0x118] sm:$0xff]
      %v387 = vld [vmem:[%s321 + $0x120] sm:$0xff]
      %v388 = vld [vmem:[%s321 + $0x128] sm:$0xff]
      %v389 = vld [vmem:[%s321 + $0x130] sm:$0xff]
      %v390 = vld [vmem:[%s321 + $0x138] sm:$0xff]
      %v391 = vld [vmem:[%s321 + $0x140] sm:$0xff]
      %v392 = vld [vmem:[%s321 + $0x148] sm:$0xff]
      %v393 = vld [vmem:[%s321 + $0x150] sm:$0xff]
      %v394 = vld [vmem:[%s321 + $0x158] sm:$0xff]
      %v395 = vld [vmem:[%s321 + $0x160] sm:$0xff]
      %v396 = vld [vmem:[%s321 + $0x168] sm:$0xff]
      %v397 = vld [vmem:[%s321 + $0x170] sm:$0xff]
      %v398 = vld [vmem:[%s321 + $0x178] sm:$0xff]
      %v399 = vld [vmem:[%s321 + $0x180] sm:$0xff]
      %v400 = vld [vmem:[%s321 + $0x188] sm:$0xff]
      %v401 = vld [vmem:[%s321 + $0x190] sm:$0xff]
      %v402 = vld [vmem:[%s321 + $0x198] sm:$0xff]
      %v403 = vld [vmem:[%s321 + $0x1a0] sm:$0xff]
      %v404 = vld [vmem:[%s321 + $0x1a8] sm:$0xff]
      %v405 = vld [vmem:[%s321 + $0x1b0] sm:$0xff]
      %v406 = vld [vmem:[%s321 + $0x1b8] sm:$0xff]
      %v407 = vld [vmem:[%s321 + $0x1c0] sm:$0xff]
      %v408 = vld [vmem:[%s321 + $0x1c8] sm:$0xff]
      %v409 = vld [vmem:[%s321 + $0x1d0] sm:$0xff]
      %v410 = vld [vmem:[%s321 + $0x1d8] sm:$0xff]
      %v411 = vld [vmem:[%s321 + $0x1e0] sm:$0xff]
      %v412 = vld [vmem:[%s321 + $0x1e8] sm:$0xff]
      %v413 = vld [vmem:[%s321 + $0x1f0] sm:$0xff]
      %v414 = vld [vmem:[%s321 + $0x1f8] sm:$0xff]
      %v416 = vunpack.c.l.b16 %v350
      %v417 = vunpack.c.h.b16 %v350
      %v418 = vpack.c.b16 %v416, %v416
      %v419 = vpack.c.b16 %v417, %v417
      %v486 = vunpack.c.l.b16 %v351
      %v487 = vunpack.c.h.b16 %v351
      %v488 = vunpack.c.l.b16 %v352
      %v489 = vunpack.c.h.b16 %v352
      %v490 = vunpack.c.l.b16 %v353
      %v491 = vunpack.c.h.b16 %v353
      %v492 = vunpack.c.l.b16 %v354
      %v493 = vunpack.c.h.b16 %v354
      %v494 = vunpack.c.l.b16 %v355
      %v495 = vunpack.c.h.b16 %v355
      %v496 = vunpack.c.l.b16 %v356
      %v497 = vunpack.c.h.b16 %v356
      %v498 = vunpack.c.l.b16 %v357
      %v499 = vunpack.c.h.b16 %v357
      %v500 = vunpack.c.l.b16 %v358
      %v501 = vunpack.c.h.b16 %v358
      %v502 = vunpack.c.l.b16 %v359
      %v503 = vunpack.c.h.b16 %v359
      %v504 = vunpack.c.l.b16 %v360
      %v505 = vunpack.c.h.b16 %v360
      %v506 = vunpack.c.l.b16 %v361
      %v507 = vunpack.c.h.b16 %v361
      %v508 = vunpack.c.l.b16 %v362
      %v509 = vunpack.c.h.b16 %v362
      %v510 = vunpack.c.l.b16 %v363
      %v511 = vunpack.c.h.b16 %v363
      %v512 = vunpack.c.l.b16 %v364
      %v513 = vunpack.c.h.b16 %v364
      %v514 = vunpack.c.l.b16 %v365
      %v515 = vunpack.c.h.b16 %v365
      %v516 = vunpack.c.l.b16 %v366
      %v517 = vunpack.c.h.b16 %v366
      %v518 = vunpack.c.l.b16 %v367
      %v519 = vunpack.c.h.b16 %v367
      %v520 = vunpack.c.l.b16 %v368
      %v521 = vunpack.c.h.b16 %v368
      %v522 = vunpack.c.l.b16 %v369
      %v523 = vunpack.c.h.b16 %v369
      %v524 = vunpack.c.l.b16 %v370
      %v525 = vunpack.c.h.b16 %v370
      %v526 = vunpack.c.l.b16 %v371
      %v527 = vunpack.c.h.b16 %v371
      %v528 = vunpack.c.l.b16 %v372
      %v529 = vunpack.c.h.b16 %v372
      %v530 = vunpack.c.l.b16 %v373
      %v531 = vunpack.c.h.b16 %v373
      %v532 = vunpack.c.l.b16 %v374
      %v533 = vunpack.c.h.b16 %v374
      %v534 = vunpack.c.l.b16 %v375
      %v535 = vunpack.c.h.b16 %v375
      %v536 = vunpack.c.l.b16 %v376
      %v537 = vunpack.c.h.b16 %v376
      %v538 = vunpack.c.l.b16 %v377
      %v539 = vunpack.c.h.b16 %v377
      %v540 = vunpack.c.l.b16 %v378
      %v541 = vunpack.c.h.b16 %v378
      %v542 = vunpack.c.l.b16 %v379
      %v543 = vunpack.c.h.b16 %v379
      %v544 = vunpack.c.l.b16 %v380
      %v545 = vunpack.c.h.b16 %v380
      %v546 = vunpack.c.l.b16 %v381
      %v547 = vunpack.c.h.b16 %v381
      %v548 = vunpack.c.l.b16 %v382
      %v549 = vunpack.c.h.b16 %v382
      %v550 = vunpack.c.l.b16 %v383
      %v551 = vunpack.c.h.b16 %v383
      %v552 = vunpack.c.l.b16 %v384
      %v553 = vunpack.c.h.b16 %v384
      %v554 = vunpack.c.l.b16 %v385
      %v555 = vunpack.c.h.b16 %v385
      %v556 = vunpack.c.l.b16 %v386
      %v557 = vunpack.c.h.b16 %v386
      %v558 = vunpack.c.l.b16 %v387
      %v559 = vunpack.c.h.b16 %v387
      %v560 = vunpack.c.l.b16 %v388
      %v561 = vunpack.c.h.b16 %v388
      %v562 = vunpack.c.l.b16 %v389
      %v563 = vunpack.c.h.b16 %v389
      %v564 = vunpack.c.l.b16 %v390
      %v565 = vunpack.c.h.b16 %v390
      %v566 = vunpack.c.l.b16 %v391
      %v567 = vunpack.c.h.b16 %v391
      %v568 = vunpack.c.l.b16 %v392
      %v569 = vunpack.c.h.b16 %v392
      %v570 = vunpack.c.l.b16 %v393
      %v571 = vunpack.c.h.b16 %v393
      %v572 = vunpack.c.l.b16 %v394
      %v573 = vunpack.c.h.b16 %v394
      %v574 = vunpack.c.l.b16 %v395
      %v575 = vunpack.c.h.b16 %v395
      %v576 = vunpack.c.l.b16 %v396
      %v577 = vunpack.c.h.b16 %v396
      %v578 = vunpack.c.l.b16 %v397
      %v579 = vunpack.c.h.b16 %v397
      %v580 = vunpack.c.l.b16 %v398
      %v581 = vunpack.c.h.b16 %v398
      %v582 = vunpack.c.l.b16 %v399
      %v583 = vunpack.c.h.b16 %v399
      %v584 = vunpack.c.l.b16 %v400
      %v585 = vunpack.c.h.b16 %v400
      %v586 = vunpack.c.l.b16 %v401
      %v587 = vunpack.c.h.b16 %v401
      %v588 = vunpack.c.l.b16 %v402
      %v589 = vunpack.c.h.b16 %v402
      %v590 = vunpack.c.l.b16 %v403
      %v591 = vunpack.c.h.b16 %v403
      %v592 = vunpack.c.l.b16 %v404
      %v593 = vunpack.c.h.b16 %v404
      %v594 = vunpack.c.l.b16 %v405
      %v595 = vunpack.c.h.b16 %v405
      %v596 = vunpack.c.l.b16 %v406
      %v597 = vunpack.c.h.b16 %v406
      %v598 = vunpack.c.l.b16 %v407
      %v599 = vunpack.c.h.b16 %v407
      %v600 = vunpack.c.l.b16 %v408
      %v601 = vunpack.c.h.b16 %v408
      %v602 = vunpack.c.l.b16 %v409
      %v603 = vunpack.c.h.b16 %v409
      %v604 = vunpack.c.l.b16 %v410
      %v605 = vunpack.c.h.b16 %v410
      %v606 = vunpack.c.l.b16 %v411
      %v607 = vunpack.c.h.b16 %v411
      %v608 = vunpack.c.l.b16 %v412
      %v609 = vunpack.c.h.b16 %v412
      %v610 = vunpack.c.l.b16 %v413
      %v611 = vunpack.c.h.b16 %v413
      %v612 = vunpack.c.l.b16 %v414
      %v613 = vunpack.c.h.b16 %v414
      %v614 = vpack.c.b16 %v490, %v486
      %v615 = vpack.c.b16 %v491, %v487
      %v616 = vpack.c.b16 %v492, %v488
      %v617 = vpack.c.b16 %v493, %v489
      %v618 = vpack.c.b16 %v498, %v494
      %v619 = vpack.c.b16 %v499, %v495
      %v620 = vpack.c.b16 %v500, %v496
      %v621 = vpack.c.b16 %v501, %v497
      %v622 = vpack.c.b16 %v506, %v502
      %v623 = vpack.c.b16 %v507, %v503
      %v624 = vpack.c.b16 %v508, %v504
      %v625 = vpack.c.b16 %v509, %v505
      %v626 = vpack.c.b16 %v514, %v510
      %v627 = vpack.c.b16 %v515, %v511
      %v628 = vpack.c.b16 %v516, %v512
      %v629 = vpack.c.b16 %v517, %v513
      %v630 = vpack.c.b16 %v522, %v518
      %v631 = vpack.c.b16 %v523, %v519
      %v632 = vpack.c.b16 %v524, %v520
      %v633 = vpack.c.b16 %v525, %v521
      %v634 = vpack.c.b16 %v530, %v526
      %v635 = vpack.c.b16 %v531, %v527
      %v636 = vpack.c.b16 %v532, %v528
      %v637 = vpack.c.b16 %v533, %v529
      %v638 = vpack.c.b16 %v538, %v534
      %v639 = vpack.c.b16 %v539, %v535
      %v640 = vpack.c.b16 %v540, %v536
      %v641 = vpack.c.b16 %v541, %v537
      %v642 = vpack.c.b16 %v546, %v542
      %v643 = vpack.c.b16 %v547, %v543
      %v644 = vpack.c.b16 %v548, %v544
      %v645 = vpack.c.b16 %v549, %v545
      %v646 = vpack.c.b16 %v554, %v550
      %v647 = vpack.c.b16 %v555, %v551
      %v648 = vpack.c.b16 %v556, %v552
      %v649 = vpack.c.b16 %v557, %v553
      %v650 = vpack.c.b16 %v562, %v558
      %v651 = vpack.c.b16 %v563, %v559
      %v652 = vpack.c.b16 %v564, %v560
      %v653 = vpack.c.b16 %v565, %v561
      %v654 = vpack.c.b16 %v570, %v566
      %v655 = vpack.c.b16 %v571, %v567
      %v656 = vpack.c.b16 %v572, %v568
      %v657 = vpack.c.b16 %v573, %v569
      %v658 = vpack.c.b16 %v578, %v574
      %v659 = vpack.c.b16 %v579, %v575
      %v660 = vpack.c.b16 %v580, %v576
      %v661 = vpack.c.b16 %v581, %v577
      %v662 = vpack.c.b16 %v586, %v582
      %v663 = vpack.c.b16 %v587, %v583
      %v664 = vpack.c.b16 %v588, %v584
      %v665 = vpack.c.b16 %v589, %v585
      %v666 = vpack.c.b16 %v594, %v590
      %v667 = vpack.c.b16 %v595, %v591
      %v668 = vpack.c.b16 %v596, %v592
      %v669 = vpack.c.b16 %v597, %v593
      %v670 = vpack.c.b16 %v602, %v598
      %v671 = vpack.c.b16 %v603, %v599
      %v672 = vpack.c.b16 %v604, %v600
      %v673 = vpack.c.b16 %v605, %v601
      %v674 = vpack.c.b16 %v610, %v606
      %v675 = vpack.c.b16 %v611, %v607
      %v676 = vpack.c.b16 %v612, %v608
      %v677 = vpack.c.b16 %v613, %v609
      %742 = vmatprep.subr.bf16.mxu0 %v615
      %743 = vmatpush1.bf16.msra.mxu0 %v614
      %744 = vmatprep.subr.bf16.mxu0 %v619
      %745 = vmatpush1.bf16.msra.mxu0 %v618
      %746 = vmatprep.subr.bf16.mxu0 %v623
      %747 = vmatpush1.bf16.msra.mxu0 %v622
      %748 = vmatprep.subr.bf16.mxu0 %v627
      %749 = vmatpush1.bf16.msra.mxu0 %v626
      %750 = vmatprep.subr.bf16.mxu0 %v631
      %751 = vmatpush1.bf16.msra.mxu0 %v630
      %752 = vmatprep.subr.bf16.mxu0 %v635
      %753 = vmatpush1.bf16.msra.mxu0 %v634
      %754 = vmatprep.subr.bf16.mxu0 %v639
      %755 = vmatpush1.bf16.msra.mxu0 %v638
      %756 = vmatprep.subr.bf16.mxu0 %v643
      %757 = vmatpush1.bf16.msra.mxu0 %v642
      %758 = vmatprep.subr.bf16.mxu0 %v647
      %759 = vmatpush1.bf16.msra.mxu0 %v646
      %760 = vmatprep.subr.bf16.mxu0 %v651
      %761 = vmatpush1.bf16.msra.mxu0 %v650
      %762 = vmatprep.subr.bf16.mxu0 %v655
      %763 = vmatpush1.bf16.msra.mxu0 %v654
      %764 = vmatprep.subr.bf16.mxu0 %v659
      %765 = vmatpush1.bf16.msra.mxu0 %v658
      %766 = vmatprep.subr.bf16.mxu0 %v663
      %767 = vmatpush1.bf16.msra.mxu0 %v662
      %768 = vmatprep.subr.bf16.mxu0 %v667
      %769 = vmatpush1.bf16.msra.mxu0 %v666
      %770 = vmatprep.subr.bf16.mxu0 %v671
      %771 = vmatpush1.bf16.msra.mxu0 %v670
      %772 = vmatprep.subr.bf16.mxu0 %v675
      %773 = vmatpush1.bf16.msra.mxu0 %v674
      %774 = vmatprep.mubr.bf16.mxu0 %v419
      %775 = vmatmul.mubr.bf16.gmra.mrb[0].mxu0 %v418
      %v776 = vpop.f32.mrb[0].mxu0
      %v777 = vadd.f32 0.0, %v776
      %v778 = vpop.f32.mrb[0].mxu0
      %v779 = vadd.f32 0.0, %v778
      %v780 = vpop.f32.mrb[0].mxu0
      %v781 = vpop.f32.mrb[0].mxu0
      %782 = vdwg.mxu0
      %783 = vmatprep.subr.bf16.mxu0 %v617
      %784 = vmatpush1.bf16.msra.mxu0 %v616
      %785 = vmatprep.subr.bf16.mxu0 %v621
      %786 = vmatpush1.bf16.msra.mxu0 %v620
      %787 = vmatprep.subr.bf16.mxu0 %v625
      %788 = vmatpush1.bf16.msra.mxu0 %v624
      %789 = vmatprep.subr.bf16.mxu0 %v629
      %790 = vmatpush1.bf16.msra.mxu0 %v628
      %791 = vmatprep.subr.bf16.mxu0 %v633
      %792 = vmatpush1.bf16.msra.mxu0 %v632
      %793 = vmatprep.subr.bf16.mxu0 %v637
      %794 = vmatpush1.bf16.msra.mxu0 %v636
      %795 = vmatprep.subr.bf16.mxu0 %v641
      %796 = vmatpush1.bf16.msra.mxu0 %v640
      %797 = vmatprep.subr.bf16.mxu0 %v645
      %798 = vmatpush1.bf16.msra.mxu0 %v644
      %799 = vmatprep.subr.bf16.mxu0 %v649
      %800 = vmatpush1.bf16.msra.mxu0 %v648
      %801 = vmatprep.subr.bf16.mxu0 %v653
      %802 = vmatpush1.bf16.msra.mxu0 %v652
      %803 = vmatprep.subr.bf16.mxu0 %v657
      %804 = vmatpush1.bf16.msra.mxu0 %v656
      %805 = vmatprep.subr.bf16.mxu0 %v661
      %806 = vmatpush1.bf16.msra.mxu0 %v660
      %807 = vmatprep.subr.bf16.mxu0 %v665
      %808 = vmatpush1.bf16.msra.mxu0 %v664
      %809 = vmatprep.subr.bf16.mxu0 %v669
      %810 = vmatpush1.bf16.msra.mxu0 %v668
      %811 = vmatprep.subr.bf16.mxu0 %v673
      %812 = vmatpush1.bf16.msra.mxu0 %v672
      %813 = vmatprep.subr.bf16.mxu0 %v677
      %814 = vmatpush1.bf16.msra.mxu0 %v676
      %815 = vmatprep.mubr.bf16.mxu0 %v419
      %816 = vmatmul.mubr.bf16.gmra.mrb[0].mxu0 %v418
      %v817 = vpop.f32.mrb[0].mxu0
      %v818 = vadd.f32 0.0, %v817
      %v819 = vpop.f32.mrb[0].mxu0
      %v820 = vadd.f32 0.0, %v819
      %v821 = vpop.f32.mrb[0].mxu0
      %v822 = vpop.f32.mrb[0].mxu0
      %823 = vdwg.mxu0
      %v824 = vadd.f32 %v346, %v777
      %v825 = vadd.f32 %v347, %v779
      %v826 = vadd.f32 %v348, %v818
      %v827 = vadd.f32 %v349, %v820
      %828 = vst [vmem:[%s337] sm:$0xff] %v824
      %829 = vst [vmem:[%s337 + $0x8] sm:$0xff] %v825
      %830 = vst [vmem:[%s337 + $0x10] sm:$0xff] %v826
      %831 = vst [vmem:[%s337 + $0x18] sm:$0xff] %v827
      %p832 = scmp.eq.s32.totalorder %s23, 17
      // Predicated region
      $region45: #{_lambda_.27} parent=39 // pred_check
        %p833 = pneg %p832
      $region46: #{_lambda_.27} parent=39 // pred_check_branch
        %835 = sbr.rel (%p833) target = $region48
      $region47: #{_lambda_.27} parent=39 // pred_region
        %v836 = vld [vmem:[%s337] sm:$0xff]
        %v837 = vld [vmem:[%s337 + $0x8] sm:$0xff]
        %v838 = vld [vmem:[%s337 + $0x10] sm:$0xff]
        %v839 = vld [vmem:[%s337 + $0x18] sm:$0xff]
        %v840 = vld [vmem:[%s2] sm:$0xf]
        %v842 = vlaneseq
        %v843 = vshrl.u32 %v842, 7
        %v844 = vsub.s32 0, %v843
        %v845 = vrot.slane %v840, %v844
        %v846 = vlaneseq
        %v847 = vshrl.u32 %v846, 7
        %v848 = vsub.s32 1, %v847
        %v849 = vrot.slane %v840, %v848
        %v850 = vlaneseq
        %v851 = vshrl.u32 %v850, 7
        %v852 = vsub.s32 2, %v851
        %v853 = vrot.slane %v840, %v852
        %v854 = vlaneseq
        %v855 = vshrl.u32 %v854, 7
        %v856 = vsub.s32 3, %v855
        %v857 = vrot.slane %v840, %v856
        %v862 = vmul.f32 %v836, %v845
        %v863 = vmul.f32 %v837, %v849
        %v864 = vmul.f32 %v838, %v853
        %v865 = vmul.f32 %v839, %v857
        %v866 = vld [vmem:[%s3] sm:$0xf]
        %v868 = vlaneseq
        %v869 = vshrl.u32 %v868, 7
        %v870 = vsub.s32 0, %v869
        %v871 = vrot.slane %v866, %v870
        %v872 = vlaneseq
        %v873 = vshrl.u32 %v872, 7
        %v874 = vsub.s32 1, %v873
        %v875 = vrot.slane %v866, %v874
        %v876 = vlaneseq
        %v877 = vshrl.u32 %v876, 7
        %v878 = vsub.s32 2, %v877
        %v879 = vrot.slane %v866, %v878
        %v880 = vlaneseq
        %v881 = vshrl.u32 %v880, 7
        %v882 = vsub.s32 3, %v881
        %v883 = vrot.slane %v866, %v882
        %v888 = vadd.f32 %v862, %v871
        %v889 = vadd.f32 %v863, %v875
        %v890 = vadd.f32 %v864, %v879
        %v891 = vadd.f32 %v865, %v883
        %v892 = vld [vmem:[%s327] sm:$0xff]
        %v893 = vld [vmem:[%s327 + $0x8] sm:$0xff]
        %v894 = vld [vmem:[%s327 + $0x10] sm:$0xff]
        %v895 = vld [vmem:[%s327 + $0x18] sm:$0xff]
        %v896 = vadd.f32 %v888, %v892
        %v897 = vadd.f32 %v889, %v893
        %v898 = vadd.f32 %v890, %v894
        %v899 = vadd.f32 %v891, %v895
        %900 = vst [vmem:[%s337] sm:$0xff] %v896
        %901 = vst [vmem:[%s337 + $0x8] sm:$0xff] %v897
        %902 = vst [vmem:[%s337 + $0x10] sm:$0xff] %v898
        %903 = vst [vmem:[%s337 + $0x18] sm:$0xff] %v899
        %vm904 = vcmp.ge.f32.partialorder %v896, 0.0
        %vm905 = vcmp.ge.f32.partialorder %v897, 0.0
        %vm906 = vcmp.ge.f32.partialorder %v898, 0.0
        %vm907 = vcmp.ge.f32.partialorder %v899, 0.0
        %v908 = vmul.f32 %v896, 0.01
        %v909 = vmul.f32 %v897, 0.01
        %v910 = vmul.f32 %v898, 0.01
        %v911 = vmul.f32 %v899, 0.01
        %v912 = vsel %vm904, %v896, %v908
        %v913 = vsel %vm905, %v897, %v909
        %v914 = vsel %vm906, %v898, %v910
        %v915 = vsel %vm907, %v899, %v911
        %916 = vst [vmem:[%s332] sm:$0xff] %v912
        %917 = vst [vmem:[%s332 + $0x8] sm:$0xff] %v913
        %918 = vst [vmem:[%s332 + $0x10] sm:$0xff] %v914
        %919 = vst [vmem:[%s332 + $0x18] sm:$0xff] %v915
      $region48: #{_lambda_.27} parent=39 // pred_fallthru
        _
      %p920 = scmp.lt.s32.totalorder %s22, 0
      %s921 = scalar_select %p920, %s22, 0
      %s922 = smul.addr %s921, 4
      %s923 = smul.addr %s922, 8
      %s924 = scalar_lea.vmem %s5, %s923
      %p925 = scmp.lt.s32.totalorder %s22, 0
      %s926 = scalar_select %p925, %s22, 0
      %s927 = smul.addr %s926, 4
      %s928 = smul.addr %s927, 8
      %s929 = scalar_lea.vmem %s6, %s928
      // Predicated region
      $region49: #{_lambda_.27} parent=39 // pred_check
        %p930 = pneg %p170
      $region50: #{_lambda_.27} parent=39 // pred_check_branch
        %932 = sbr.rel (%p930) target = $region52
      $region51: #{_lambda_.27} parent=39 // pred_region
        _
      $region52: #{_lambda_.27} parent=39 // pred_fallthru
        _
      // Predicated region
      $region53: #{_lambda_.27} parent=39 // pred_check
        %p933 = pneg %p196
      $region54: #{_lambda_.27} parent=39 // pred_check_branch
        %935 = sbr.rel (%p933) target = $region56
      $region55: #{_lambda_.27} parent=39 // pred_region
        _
      $region56: #{_lambda_.27} parent=39 // pred_fallthru
        _
      // Predicated region
      $region57: #{_lambda_.27} parent=39 // pred_check
        %p936 = pneg %p170
      $region58: #{_lambda_.27} parent=39 // pred_check_branch
        %938 = sbr.rel (%p936) target = $region60
      $region59: #{_lambda_.27} parent=39 // pred_region
        %p939 = scmp.lt.s32.totalorder %s22, 0
        %s940 = scalar_select %p939, %s22, 0
        %s941 = smul.addr %s940, 4
        %s942 = smul.addr %s941, 8
        %s943 = scalar_lea.vmem %s5, %s942
      $region60: #{_lambda_.27} parent=39 // pred_fallthru
        _
      // Predicated region
      $region61: #{_lambda_.27} parent=39 // pred_check
        %p944 = pneg %p196
      $region62: #{_lambda_.27} parent=39 // pred_check_branch
        %946 = sbr.rel (%p944) target = $region64
      $region63: #{_lambda_.27} parent=39 // pred_region
        %p947 = scmp.lt.s32.totalorder %s22, 0
        %s948 = scalar_select %p947, %s22, 0
        %s949 = smul.addr %s948, 4
        %s950 = smul.addr %s949, 8
        %s951 = scalar_lea.vmem %s6, %s950
      $region64: #{_lambda_.27} parent=39 // pred_fallthru
        _
    $region40: #{_lambda_.27} parent=5 // pred_fallthru
      _
    %p952 = scmp.le.s32.totalorder 2, %s13
    // Predicated region
    $region65: #{_lambda_.27} parent=5 // pred_check
      %p953 = pneg %p952
    $region66: #{_lambda_.27} parent=5 // pred_check_branch
      %955 = sbr.rel (%p953) target = $region68
    $region67: #{_lambda_.27} parent=5 // pred_region
      %s956 = ssub.s32 %s13, 2
    $region68: #{_lambda_.27} parent=5 // pred_fallthru
      _
  $region6: #{_lambda_.27} parent=0 // loop_footer
    %s17 = sadd.s32 1, %s13
  $region7: #{_lambda_.27} parent=0 // loop_footer_branch
    %12 = sbr.rel target = $region3
  $region8: #{_lambda_.27} parent=0 // loop_exit
    _

</llo_original>
